<compile_context>
chip_gen: v5e
topology: v5e:2x2
jax: 0.10.0
libtpu: 0.0.40
codegen_flags: <defaults>
</compile_context>

<pallas_src>
import functools
import math

import jax
import jax.numpy as jnp
from jax import lax
from jax.experimental import pallas as pl
from jax.experimental.pallas import tpu as pltpu  # noqa: F401

F32 = jnp.float32
BF16 = jnp.bfloat16

_BN_SCALE = 1.0 / math.sqrt(1.0 + 1e-5)  # eval-mode BatchNorm1d with default running stats
_GAT_HEADS = 8
_TR_HEADS = 4


# ----------------------------------------------------------------------------
# In-kernel helpers
# ----------------------------------------------------------------------------
def _mm(a, b):
    """MXU matmul: bf16 inputs, f32 accumulation."""
    return jnp.dot(a.astype(BF16), b.astype(BF16), preferred_element_type=F32)


def _masked_softmax(e, mask):
    """Masked softmax of `e` over the last (lane-dense) axis; zero-neighbor rows -> 0."""
    e = jnp.where(mask, e, -1e30)
    m = jnp.max(e, axis=-1, keepdims=True)
    p = jnp.exp(e - m)
    p = jnp.where(mask, p, 0.0)
    s = jnp.sum(p, axis=-1, keepdims=True)
    return p / jnp.maximum(s, 1e-16)


def _sage(x_dst, x_src, adj_norm, w_pack, b):
    """SAGEConv (mean aggr): [mean_agg(x_src) | x_dst] @ [lin_l ; lin_r] + bias."""
    agg = _mm(adj_norm, x_src)
    return _mm(jnp.concatenate([agg, x_dst], axis=1), w_pack) + b


# ----------------------------------------------------------------------------
# Fused kernels
# ----------------------------------------------------------------------------
def _sage_gat_skip_kernel(
        xu_ref, xr_ref, an_r2u_ref, an_u2r_ref, am_r2u_ref, am_u2r_ref,
        sw_r2u_ref, sb_r2u_ref, sw_u2r_ref, sb_u2r_ref,
        gw_ref, ga_r2u_ref, ga_u2r_ref, gb_r2u_ref, gb_u2r_ref,
        kw_u_ref, kb_u_ref, kw_r_ref, kb_r_ref,
        ou_ref, or_ref, *, heads):
    xu, xr = xu_ref[...], xr_ref[...]

    # SAGEConv + ReLU, then eval-mode BatchNorm (scale only; following ReLU is a no-op).
    hu = jnp.maximum(_sage(xu, xr, an_r2u_ref[...], sw_r2u_ref[...], sb_r2u_ref[...]), 0.0) * _BN_SCALE
    hr = jnp.maximum(_sage(xr, xu, an_u2r_ref[...], sw_u2r_ref[...], sb_u2r_ref[...]), 0.0) * _BN_SCALE

    hdim = hu.shape[1]
    hd_dim = heads * hdim

    # GAT projections: both edge types' weights stacked along N -> one GEMM per node set.
    proj_u = _mm(hu, gw_ref[...])                     # [Nu, 2*heads*H]
    proj_r = _mm(hr, gw_ref[...])                     # [Nr, 2*heads*H]

    def gat(h_dst, h_src, a_ref, b_ref, mask_ref):
        # attention scores via packed block-diagonal att matrices: one MXU op each
        sd = _mm(h_dst, a_ref[...])[:, :heads]        # att_dst scores [nd, heads]
        ss = _mm(h_src, a_ref[...])[:, heads:]        # att_src scores [ns, heads]
        ss_t = ss.T                                   # [heads, ns]
        mask = mask_ref[...] > 0
        outs = []
        for h in range(heads):
            e = sd[:, h:h + 1] + ss_t[h:h + 1, :]     # lane-dense [nd, ns]
            e = jnp.where(e >= 0, e, 0.2 * e)         # LeakyReLU(0.2)
            alpha = _masked_softmax(e, mask)
            outs.append(_mm(alpha, h_src[:, h * hdim:(h + 1) * hdim]))
        return jnp.maximum(jnp.concatenate(outs, axis=1) + b_ref[...], 0.0)

    gu = gat(proj_u[:, :hd_dim], proj_r[:, :hd_dim], ga_r2u_ref, gb_r2u_ref, am_r2u_ref)
    gr = gat(proj_r[:, hd_dim:], proj_u[:, hd_dim:], ga_u2r_ref, gb_u2r_ref, am_u2r_ref)

    # skip Linear + ReLU (fused epilogue)
    ou_ref[...] = jnp.maximum(_mm(gu, kw_u_ref[...]) + kb_u_ref[...], 0.0)
    or_ref[...] = jnp.maximum(_mm(gr, kw_r_ref[...]) + kb_r_ref[...], 0.0)


def _sage_transformer_skip_kernel(
        xu_ref, xr_ref, an_r2u_ref, an_u2r_ref, am_r2u_ref, am_u2r_ref,
        sw_r2u_ref, sb_r2u_ref, sw_u2r_ref, sb_u2r_ref,
        dw_r2u_ref, db_r2u_ref, sw2_r2u_ref, sb2_r2u_ref,
        dw_u2r_ref, db_u2r_ref, sw2_u2r_ref, sb2_u2r_ref,
        kw_u_ref, kb_u_ref, kw_r_ref, kb_r_ref,
        ou_ref, or_ref, *, heads):
    xu, xr = xu_ref[...], xr_ref[...]
    hu = jnp.maximum(_sage(xu, xr, an_r2u_ref[...], sw_r2u_ref[...], sb_r2u_ref[...]), 0.0)
    hr = jnp.maximum(_sage(xr, xu, an_u2r_ref[...], sw_u2r_ref[...], sb_u2r_ref[...]), 0.0)

    d = hu.shape[1]
    hd_dim = heads * d
    scale = 1.0 / math.sqrt(d)

    def transf(x_dst, x_src, dw_ref, db_ref, sw_ref, sb_ref, mask_ref):
        dproj = _mm(x_dst, dw_ref[...]) + db_ref[...]   # [nd, 2*hd]: [query | root skip]
        sproj = _mm(x_src, sw_ref[...]) + sb_ref[...]   # [ns, 2*hd]: [key   | value]
        q, sk = dproj[:, :hd_dim], dproj[:, hd_dim:]
        k, v = sproj[:, :hd_dim], sproj[:, hd_dim:]
        mask = mask_ref[...] > 0
        outs = []
        for h in range(heads):
            qh = q[:, h * d:(h + 1) * d]
            kh = k[:, h * d:(h + 1) * d]
            vh = v[:, h * d:(h + 1) * d]
            e = lax.dot_general(qh.astype(BF16), kh.astype(BF16),
                                (((1,), (1,)), ((), ())),
                                preferred_element_type=F32) * scale   # [nd, ns]
            alpha = _masked_softmax(e, mask)
            outs.append(_mm(alpha, vh))
        return jnp.maximum(jnp.concatenate(outs, axis=1) + sk, 0.0)    # root_weight + ReLU

    tu = transf(hu, hr, dw_r2u_ref, db_r2u_ref, sw2_r2u_ref, sb2_r2u_ref, am_r2u_ref)
    tr = transf(hr, hu, dw_u2r_ref, db_u2r_ref, sw2_u2r_ref, sb2_u2r_ref, am_u2r_ref)

    ou_ref[...] = jnp.maximum(_mm(tu, kw_u_ref[...]) + kb_u_ref[...], 0.0)
    or_ref[...] = jnp.maximum(_mm(tr, kw_r_ref[...]) + kb_r_ref[...], 0.0)


def _sage2_kernel(
        xu_ref, xr_ref, an_r2u_ref, an_u2r_ref,
        w4_r2u_ref, b4_r2u_ref, w4_u2r_ref, b4_u2r_ref,
        w5_r2u_ref, b5_r2u_ref, w5_u2r_ref, b5_u2r_ref,
        ou_ref, or_ref):
    xu, xr = xu_ref[...], xr_ref[...]
    an_r2u, an_u2r = an_r2u_ref[...], an_u2r_ref[...]
    hu = jnp.maximum(_sage(xu, xr, an_r2u, w4_r2u_ref[...], b4_r2u_ref[...]), 0.0)  # conv4 + relu
    hr = jnp.maximum(_sage(xr, xu, an_u2r, w4_u2r_ref[...], b4_u2r_ref[...]), 0.0)
    ou_ref[...] = _sage(hu, hr, an_r2u, w5_r2u_ref[...], b5_r2u_ref[...])           # conv5
    or_ref[...] = _sage(hr, hu, an_u2r, w5_u2r_ref[...], b5_u2r_ref[...])


def _decoder_kernel(
        zu_ref, zr_ref, row_ref, col_ref,
        wu1_ref, bu1_ref, wu2_ref, bu2_ref,
        wr1_ref, br1_ref, wr2_ref, br2_ref,
        o_ref):
    zu, zr = zu_ref[...], zr_ref[...]
    n_e = row_ref.shape[0]
    # exact in-kernel gather of the edge endpoints via one-hot f32 matmuls
    oh_u = (row_ref[...] == lax.broadcasted_iota(jnp.int32, (n_e, zu.shape[0]), 1)).astype(F32)
    oh_r = (col_ref[...] == lax.broadcasted_iota(jnp.int32, (n_e, zr.shape[0]), 1)).astype(F32)
    u = jnp.dot(oh_u, zu, preferred_element_type=F32)
    r = jnp.dot(oh_r, zr, preferred_element_type=F32)
    # user_lin / restaurant_lin MLPs (Dropout = identity in eval mode)
    u = jnp.maximum(_mm(u, wu1_ref[...]) + bu1_ref[...], 0.0)
    u = _mm(u, wu2_ref[...]) + bu2_ref[...]
    r = jnp.maximum(_mm(r, wr1_ref[...]) + br1_ref[...], 0.0)
    r = _mm(r, wr2_ref[...]) + br2_ref[...]
    # (u * r).sum(-1) written as a lane-dense [1, E] row
    o_ref[...] = jnp.sum((u * r).T, axis=0, keepdims=True)


# ----------------------------------------------------------------------------
# pallas_call wrappers (single-invocation, full-array blocks — toy graph sizes)
# ----------------------------------------------------------------------------
def _pallas_full(kernel, out_shapes, arrays):
    multi = isinstance(out_shapes, (list, tuple))
    outs = list(out_shapes) if multi else [out_shapes]
    in_specs = [pl.BlockSpec(a.shape, lambda *_, n=a.ndim: (0,) * n) for a in arrays]
    out_specs = [pl.BlockSpec(o.shape, lambda *_, n=len(o.shape): (0,) * n) for o in outs]
    fn = pl.pallas_call(
        kernel,
        out_shape=outs if multi else out_shapes,
        in_specs=in_specs,
        out_specs=out_specs if multi else out_specs[0],
    )
    return fn(*arrays)


def _sage_gat_layer(lp, xu, xr, adj, heads):
    nu, nr = xu.shape[0], xr.shape[0]
    h = lp["sage"]["r2u"]["b"].shape[1]
    args = [
        xu, xr, adj["an_r2u"], adj["an_u2r"], adj["am_r2u"], adj["am_u2r"],
        lp["sage"]["r2u"]["w"], lp["sage"]["r2u"]["b"],
        lp["sage"]["u2r"]["w"], lp["sage"]["u2r"]["b"],
        lp["gat"]["Wcat"], lp["gat"]["A_r2u"], lp["gat"]["A_u2r"],
        lp["gat"]["b_r2u"], lp["gat"]["b_u2r"],
        lp["skip"]["user"]["w"], lp["skip"]["user"]["b"],
        lp["skip"]["restaurant"]["w"], lp["skip"]["restaurant"]["b"],
    ]
    outs = [jax.ShapeDtypeStruct((nu, h), F32), jax.ShapeDtypeStruct((nr, h), F32)]
    return _pallas_full(functools.partial(_sage_gat_skip_kernel, heads=heads), outs, args)


def _sage_transformer_layer(lp, xu, xr, adj, heads):
    nu, nr = xu.shape[0], xr.shape[0]
    h = lp["sage"]["r2u"]["b"].shape[1]
    args = [
        xu, xr, adj["an_r2u"], adj["an_u2r"], adj["am_r2u"], adj["am_u2r"],
        lp["sage"]["r2u"]["w"], lp["sage"]["r2u"]["b"],
        lp["sage"]["u2r"]["w"], lp["sage"]["u2r"]["b"],
        lp["tr"]["dst_w_r2u"], lp["tr"]["dst_b_r2u"], lp["tr"]["src_w_r2u"], lp["tr"]["src_b_r2u"],
        lp["tr"]["dst_w_u2r"], lp["tr"]["dst_b_u2r"], lp["tr"]["src_w_u2r"], lp["tr"]["src_b_u2r"],
        lp["skip"]["user"]["w"], lp["skip"]["user"]["b"],
        lp["skip"]["restaurant"]["w"], lp["skip"]["restaurant"]["b"],
    ]
    outs = [jax.ShapeDtypeStruct((nu, h), F32), jax.ShapeDtypeStruct((nr, h), F32)]
    return _pallas_full(functools.partial(_sage_transformer_skip_kernel, heads=heads), outs, args)


def _sage2_layer(lp, xu, xr, adj):
    nu, nr = xu.shape[0], xr.shape[0]
    h = lp["sage5"]["r2u"]["b"].shape[1]
    args = [
        xu, xr, adj["an_r2u"], adj["an_u2r"],
        lp["sage4"]["r2u"]["w"], lp["sage4"]["r2u"]["b"],
        lp["sage4"]["u2r"]["w"], lp["sage4"]["u2r"]["b"],
        lp["sage5"]["r2u"]["w"], lp["sage5"]["r2u"]["b"],
        lp["sage5"]["u2r"]["w"], lp["sage5"]["u2r"]["b"],
    ]
    outs = [jax.ShapeDtypeStruct((nu, h), F32), jax.ShapeDtypeStruct((nr, h), F32)]
    return _pallas_full(_sage2_kernel, outs, args)


def _decoder(dp, zu, zr, row, col):
    n_e = row.shape[0]
    args = [zu, zr, row, col,
            dp["wu1"], dp["bu1"], dp["wu2"], dp["bu2"],
            dp["wr1"], dp["br1"], dp["wr2"], dp["br2"]]
    out = _pallas_full(_decoder_kernel, jax.ShapeDtypeStruct((1, n_e), F32), args)
    return out[0]


# ----------------------------------------------------------------------------
# Graph / forward glue
# ----------------------------------------------------------------------------
def build_adjs(edge_index_dict, sizes):
    """Dense adjacencies per edge type: row-normalized (SAGE mean) + 0/1 mask, in bf16."""
    adj = {}
    for (src_t, _rel, dst_t), ei in edge_index_dict.items():
        ns, nd = sizes[src_t], sizes[dst_t]
        a = jnp.zeros((nd, ns), F32).at[ei[1], ei[0]].set(1.0)
        deg = jnp.maximum(a.sum(axis=1, keepdims=True), 1.0)
        tag = "u2r" if src_t == "user" else "r2u"
        adj["am_" + tag] = a.astype(BF16)
        adj["an_" + tag] = (a / deg).astype(BF16)
    return adj


def improved_model_forward(packed, x_dict, edge_index_dict, edge_label_index):
    sizes = {k: v.shape[0] for k, v in x_dict.items()}
    adj = build_adjs(edge_index_dict, sizes)
    enc = packed["encoder"]

    xu = x_dict["user"].astype(F32)
    xr = x_dict["restaurant"].astype(F32)

    xu, xr = _sage_gat_layer(enc["layer1"], xu, xr, adj, heads=_GAT_HEADS)        # conv1+bn1+gat1+skip1
    xu, xr = _sage_gat_layer(enc["layer2"], xu, xr, adj, heads=_GAT_HEADS)        # conv2+bn2+gat2+skip2
    xu, xr = _sage_transformer_layer(enc["layer3"], xu, xr, adj, heads=_TR_HEADS)  # conv3+transformer+skip3
    zu, zr = _sage2_layer(enc["layer45"], xu, xr, adj)                             # conv4+conv5

    row = edge_label_index[0].astype(jnp.int32).reshape(-1, 1)
    col = edge_label_index[1].astype(jnp.int32).reshape(-1, 1)
    return _decoder(packed["decoder"], zu, zr, row, col)


# ----------------------------------------------------------------------------
# Parameter initialization (deterministic) and one-time packing
# ----------------------------------------------------------------------------
def init_params(key, H, feat_dims, edge_types, node_types):
    cnt = [0]

    def nk():
        cnt[0] += 1
        return jax.random.fold_in(key, cnt[0])

    def W(fi, fo):
        return jax.random.normal(nk(), (fi, fo), F32) * (1.0 / jnp.sqrt(fi))

    def B(fo):
        return jax.random.normal(nk(), (fo,), F32) * 0.01

    def sage_params(fin_by_type, fout):
        return {et: {"wl": W(fin_by_type[et[0]], fout),
                     "wr": W(fin_by_type[et[2]], fout),
                     "b": B(fout)} for et in edge_types}

    def gat_params(fin, heads):
        return {et: {"W": W(fin, heads * H),
                     "att_src": jax.random.normal(nk(), (heads, H), F32) * 0.1,
                     "att_dst": jax.random.normal(nk(), (heads, H), F32) * 0.1,
                     "bias": B(heads * H)} for et in edge_types}

    def transformer_params(fin, heads):
        return {et: {"Wq": W(fin, heads * H), "bq": B(heads * H),
                     "Wk": W(fin, heads * H), "bk": B(heads * H),
                     "Wv": W(fin, heads * H), "bv": B(heads * H),
                     "Wskip": W(fin, heads * H), "bskip": B(heads * H)}
                for et in edge_types}

    def skip_params(fin):
        return {nt: {"w": W(fin, H), "b": B(H)} for nt in node_types}

    hdims = {nt: H for nt in node_types}
    encoder = {
        "conv1": sage_params(feat_dims, H),
        "gat1": gat_params(H, _GAT_HEADS),
        "skip1": skip_params(_GAT_HEADS * H),
        "conv2": sage_params(hdims, H),
        "gat2": gat_params(H, _GAT_HEADS),
        "skip2": skip_params(_GAT_HEADS * H),
        "conv3": sage_params(hdims, H),
        "transformer": transformer_params(H, _TR_HEADS),
        "skip3": skip_params(_TR_HEADS * H),
        "conv4": sage_params(hdims, H),
        "conv5": sage_params(hdims, H),
    }
    decoder = {
        "wu1": W(H, 2 * H), "bu1": B(2 * H), "wu2": W(2 * H, H), "bu2": B(H),
        "wr1": W(H, 2 * H), "br1": B(2 * H), "wr2": W(2 * H, H), "br2": B(H),
    }
    return {"encoder": encoder, "decoder": decoder}


def pack_params(params, edge_types, node_types):
    """Pre-pack/pre-cast weights once outside the forward (bf16 MXU operands,
    K-stacked SAGE weights, N-stacked per-edge-type weights, block-diag att)."""
    et_u2r = next(et for et in edge_types if et[0] == "user")
    et_r2u = next(et for et in edge_types if et[0] == "restaurant")
    tagged = (("r2u", et_r2u), ("u2r", et_u2r))

    def sage_pack(p):
        return {tag: {"w": jnp.concatenate([p[et]["wl"], p[et]["wr"]], axis=0).astype(BF16),
                      "b": p[et]["b"].reshape(1, -1).astype(F32)}
                for tag, et in tagged}

    def att_blockdiag(att):
        heads, d = att.shape
        m = jnp.zeros((heads * d, heads), F32)
        for h in range(heads):
            m = m.at[h * d:(h + 1) * d, h].set(att[h])
        return m

    def gat_pack(p):
        out = {"Wcat": jnp.concatenate([p[et_r2u]["W"], p[et_u2r]["W"]], axis=1).astype(BF16)}
        for tag, et in tagged:
            out["A_" + tag] = jnp.concatenate(
                [att_blockdiag(p[et]["att_dst"]), att_blockdiag(p[et]["att_src"])],
                axis=1).astype(BF16)
            out["b_" + tag] = p[et]["bias"].reshape(1, -1).astype(F32)
        return out

    def skip_pack(p):
        return {nt: {"w": p[nt]["w"].astype(BF16),
                     "b": p[nt]["b"].reshape(1, -1).astype(F32)} for nt in node_types}

    def tr_pack(p):
        out = {}
        for tag, et in tagged:
            q = p[et]
            out["dst_w_" + tag] = jnp.concatenate([q["Wq"], q["Wskip"]], axis=1).astype(BF16)
            out["dst_b_" + tag] = jnp.concatenate([q["bq"], q["bskip"]]).reshape(1, -1).astype(F32)
            out["src_w_" + tag] = jnp.concatenate([q["Wk"], q["Wv"]], axis=1).astype(BF16)
            out["src_b_" + tag] = jnp.concatenate([q["bk"], q["bv"]]).reshape(1, -1).astype(F32)
        return out

    enc = params["encoder"]
    packed_enc = {
        "layer1": {"sage": sage_pack(enc["conv1"]), "gat": gat_pack(enc["gat1"]),
                   "skip": skip_pack(enc["skip1"])},
        "layer2": {"sage": sage_pack(enc["conv2"]), "gat": gat_pack(enc["gat2"]),
                   "skip": skip_pack(enc["skip2"])},
        "layer3": {"sage": sage_pack(enc["conv3"]), "tr": tr_pack(enc["transformer"]),
                   "skip": skip_pack(enc["skip3"])},
        "layer45": {"sage4": sage_pack(enc["conv4"]), "sage5": sage_pack(enc["conv5"])},
    }
    dec = params["decoder"]
    packed_dec = {k: (v.astype(BF16) if k.startswith("w") else v.reshape(1, -1).astype(F32))
                  for k, v in dec.items()}
    return {"encoder": packed_enc, "decoder": packed_dec}


# ----------------------------------------------------------------------------
if __name__ == "__main__":
    key = jax.random.PRNGKey(0)
    H = 32
    n_user, n_rest = 12, 10
    f_user, f_rest = 32, 32
    n_edges = 24
    n_label = 8

    k1, k2, k3, k4, kp = jax.random.split(key, 5)
    x_dict = {
        "user": jax.random.normal(k1, (n_user, f_user), F32),
        "restaurant": jax.random.normal(k2, (n_rest, f_rest), F32),
    }
    src = jax.random.randint(k3, (n_edges,), 0, n_user)
    dst = jax.random.randint(k4, (n_edges,), 0, n_rest)
    edge_index = jnp.stack([src, dst])
    edge_index_dict = {
        ("user", "rates", "restaurant"): edge_index,
        ("restaurant", "rev_rates", "user"): edge_index[::-1],
    }
    edge_label_index = jnp.stack([
        jax.random.randint(jax.random.fold_in(key, 100), (n_label,), 0, n_user),
        jax.random.randint(jax.random.fold_in(key, 101), (n_label,), 0, n_rest),
    ])

    node_types = ["user", "restaurant"]
    edge_types = list(edge_index_dict.keys())
    params = init_params(kp, H, {"user": f_user, "restaurant": f_rest},
                         edge_types, node_types)
    packed = pack_params(params, edge_types, node_types)

    fwd = jax.jit(improved_model_forward)
    scores = fwd(packed, x_dict, edge_index_dict, edge_label_index)
    scores = jax.block_until_ready(scores)
    assert scores.shape == (n_label,), scores.shape
    assert bool(jnp.all(jnp.isfinite(scores)))
    print("KERNEL_OK")
</pallas_src>

<mosaic_0001>
module attributes {stable_mosaic.version = 11 : i64} {
  func.func @_sage_gat_skip_kernel(%arg0: memref<12x32xf32, #tpu.memory_space<vmem>>, %arg1: memref<10x32xf32, #tpu.memory_space<vmem>>, %arg2: memref<12x10xbf16, #tpu.memory_space<vmem>>, %arg3: memref<10x12xbf16, #tpu.memory_space<vmem>>, %arg4: memref<12x10xbf16, #tpu.memory_space<vmem>>, %arg5: memref<10x12xbf16, #tpu.memory_space<vmem>>, %arg6: memref<64x32xbf16, #tpu.memory_space<vmem>>, %arg7: memref<1x32xf32, #tpu.memory_space<vmem>>, %arg8: memref<64x32xbf16, #tpu.memory_space<vmem>>, %arg9: memref<1x32xf32, #tpu.memory_space<vmem>>, %arg10: memref<32x512xbf16, #tpu.memory_space<vmem>>, %arg11: memref<256x16xbf16, #tpu.memory_space<vmem>>, %arg12: memref<256x16xbf16, #tpu.memory_space<vmem>>, %arg13: memref<1x256xf32, #tpu.memory_space<vmem>>, %arg14: memref<1x256xf32, #tpu.memory_space<vmem>>, %arg15: memref<256x32xbf16, #tpu.memory_space<vmem>>, %arg16: memref<1x32xf32, #tpu.memory_space<vmem>>, %arg17: memref<256x32xbf16, #tpu.memory_space<vmem>>, %arg18: memref<1x32xf32, #tpu.memory_space<vmem>>, %arg19: memref<12x32xf32, #tpu.memory_space<vmem>>, %arg20: memref<10x32xf32, #tpu.memory_space<vmem>>) attributes {dimension_semantics = [], scalar_prefetch = 0 : i64, scratch_operands = 0 : i64, tpu.core_type = #tpu.core_type<tc>} {
    %c0 = arith.constant 0 : index
    %c0_0 = arith.constant 0 : index
    %0 = vector.load %arg0[%c0, %c0_0] : memref<12x32xf32, #tpu.memory_space<vmem>>, vector<12x32xf32>
    %c0_1 = arith.constant 0 : index
    %c0_2 = arith.constant 0 : index
    %1 = vector.load %arg1[%c0_1, %c0_2] : memref<10x32xf32, #tpu.memory_space<vmem>>, vector<10x32xf32>
    %c0_3 = arith.constant 0 : index
    %c0_4 = arith.constant 0 : index
    %2 = vector.load %arg2[%c0_3, %c0_4] : memref<12x10xbf16, #tpu.memory_space<vmem>>, vector<12x10xbf16>
    %c0_5 = arith.constant 0 : index
    %c0_6 = arith.constant 0 : index
    %3 = vector.load %arg6[%c0_5, %c0_6] : memref<64x32xbf16, #tpu.memory_space<vmem>>, vector<64x32xbf16>
    %c0_7 = arith.constant 0 : index
    %c0_8 = arith.constant 0 : index
    %4 = vector.load %arg7[%c0_7, %c0_8] : memref<1x32xf32, #tpu.memory_space<vmem>>, vector<1x32xf32>
    %5 = arith.truncf %1 : vector<10x32xf32> to vector<10x32xbf16>
    %cst = arith.constant dense<0.000000e+00> : vector<12x32xf32>
    %6 = tpu.matmul %2, %5, %cst {dimension_numbers = #tpu.dot_dimension_numbers<[1], [0], [0], [1], [0, 0, 1, 1], [], []>} : vector<12x10xbf16>, vector<10x32xbf16>, vector<12x32xf32> -> vector<12x32xf32>
    %7 = tpu.concatenate %6, %0 in 1 : vector<12x32xf32>, vector<12x32xf32> -> vector<12x64xf32>
    %8 = arith.truncf %7 : vector<12x64xf32> to vector<12x64xbf16>
    %cst_9 = arith.constant dense<0.000000e+00> : vector<12x32xf32>
    %9 = tpu.matmul %8, %3, %cst_9 {dimension_numbers = #tpu.dot_dimension_numbers<[1], [0], [0], [1], [0, 0, 1, 1], [], []>} : vector<12x64xbf16>, vector<64x32xbf16>, vector<12x32xf32> -> vector<12x32xf32>
    %10 = vector.broadcast %4 : vector<1x32xf32> to vector<12x32xf32>
    %11 = arith.addf %9, %10 : vector<12x32xf32>
    %cst_10 = arith.constant 0.000000e+00 : f32
    %12 = vector.broadcast %cst_10 : f32 to vector<12x32xf32>
    %13 = arith.maximumf %11, %12 : vector<12x32xf32>
    %cst_11 = arith.constant 0.999994993 : f32
    %14 = vector.broadcast %cst_11 : f32 to vector<12x32xf32>
    %15 = arith.mulf %13, %14 : vector<12x32xf32>
    %c0_12 = arith.constant 0 : index
    %c0_13 = arith.constant 0 : index
    %16 = vector.load %arg3[%c0_12, %c0_13] : memref<10x12xbf16, #tpu.memory_space<vmem>>, vector<10x12xbf16>
    %c0_14 = arith.constant 0 : index
    %c0_15 = arith.constant 0 : index
    %17 = vector.load %arg8[%c0_14, %c0_15] : memref<64x32xbf16, #tpu.memory_space<vmem>>, vector<64x32xbf16>
    %c0_16 = arith.constant 0 : index
    %c0_17 = arith.constant 0 : index
    %18 = vector.load %arg9[%c0_16, %c0_17] : memref<1x32xf32, #tpu.memory_space<vmem>>, vector<1x32xf32>
    %19 = arith.truncf %0 : vector<12x32xf32> to vector<12x32xbf16>
    %cst_18 = arith.constant dense<0.000000e+00> : vector<10x32xf32>
    %20 = tpu.matmul %16, %19, %cst_18 {dimension_numbers = #tpu.dot_dimension_numbers<[1], [0], [0], [1], [0, 0, 1, 1], [], []>} : vector<10x12xbf16>, vector<12x32xbf16>, vector<10x32xf32> -> vector<10x32xf32>
    %21 = tpu.concatenate %20, %1 in 1 : vector<10x32xf32>, vector<10x32xf32> -> vector<10x64xf32>
    %22 = arith.truncf %21 : vector<10x64xf32> to vector<10x64xbf16>
    %cst_19 = arith.constant dense<0.000000e+00> : vector<10x32xf32>
    %23 = tpu.matmul %22, %17, %cst_19 {dimension_numbers = #tpu.dot_dimension_numbers<[1], [0], [0], [1], [0, 0, 1, 1], [], []>} : vector<10x64xbf16>, vector<64x32xbf16>, vector<10x32xf32> -> vector<10x32xf32>
    %24 = vector.broadcast %18 : vector<1x32xf32> to vector<10x32xf32>
    %25 = arith.addf %23, %24 : vector<10x32xf32>
    %cst_20 = arith.constant 0.000000e+00 : f32
    %26 = vector.broadcast %cst_20 : f32 to vector<10x32xf32>
    %27 = arith.maximumf %25, %26 : vector<10x32xf32>
    %cst_21 = arith.constant 0.999994993 : f32
    %28 = vector.broadcast %cst_21 : f32 to vector<10x32xf32>
    %29 = arith.mulf %27, %28 : vector<10x32xf32>
    %c0_22 = arith.constant 0 : index
    %c0_23 = arith.constant 0 : index
    %30 = vector.load %arg10[%c0_22, %c0_23] : memref<32x512xbf16, #tpu.memory_space<vmem>>, vector<32x512xbf16>
    %31 = arith.truncf %15 : vector<12x32xf32> to vector<12x32xbf16>
    %cst_24 = arith.constant dense<0.000000e+00> : vector<12x512xf32>
    %32 = tpu.matmul %31, %30, %cst_24 {dimension_numbers = #tpu.dot_dimension_numbers<[1], [0], [0], [1], [0, 0, 1, 1], [], []>} : vector<12x32xbf16>, vector<32x512xbf16>, vector<12x512xf32> -> vector<12x512xf32>
    %c0_25 = arith.constant 0 : index
    %c0_26 = arith.constant 0 : index
    %33 = vector.load %arg10[%c0_25, %c0_26] : memref<32x512xbf16, #tpu.memory_space<vmem>>, vector<32x512xbf16>
    %34 = arith.truncf %29 : vector<10x32xf32> to vector<10x32xbf16>
    %cst_27 = arith.constant dense<0.000000e+00> : vector<10x512xf32>
    %35 = tpu.matmul %34, %33, %cst_27 {dimension_numbers = #tpu.dot_dimension_numbers<[1], [0], [0], [1], [0, 0, 1, 1], [], []>} : vector<10x32xbf16>, vector<32x512xbf16>, vector<10x512xf32> -> vector<10x512xf32>
    %36 = vector.extract_strided_slice %32 {offsets = [0, 0], sizes = [12, 256], strides = [1, 1]} : vector<12x512xf32> to vector<12x256xf32>
    %37 = vector.extract_strided_slice %35 {offsets = [0, 0], sizes = [10, 256], strides = [1, 1]} : vector<10x512xf32> to vector<10x256xf32>
    %c0_28 = arith.constant 0 : index
    %c0_29 = arith.constant 0 : index
    %38 = vector.load %arg11[%c0_28, %c0_29] : memref<256x16xbf16, #tpu.memory_space<vmem>>, vector<256x16xbf16>
    %39 = arith.truncf %36 : vector<12x256xf32> to vector<12x256xbf16>
    %cst_30 = arith.constant dense<0.000000e+00> : vector<12x16xf32>
    %40 = tpu.matmul %39, %38, %cst_30 {dimension_numbers = #tpu.dot_dimension_numbers<[1], [0], [0], [1], [0, 0, 1, 1], [], []>} : vector<12x256xbf16>, vector<256x16xbf16>, vector<12x16xf32> -> vector<12x16xf32>
    %41 = vector.extract_strided_slice %40 {offsets = [0, 0], sizes = [12, 8], strides = [1, 1]} : vector<12x16xf32> to vector<12x8xf32>
    %c0_31 = arith.constant 0 : index
    %c0_32 = arith.constant 0 : index
    %42 = vector.load %arg11[%c0_31, %c0_32] : memref<256x16xbf16, #tpu.memory_space<vmem>>, vector<256x16xbf16>
    %43 = arith.truncf %37 : vector<10x256xf32> to vector<10x256xbf16>
    %cst_33 = arith.constant dense<0.000000e+00> : vector<10x16xf32>
    %44 = tpu.matmul %43, %42, %cst_33 {dimension_numbers = #tpu.dot_dimension_numbers<[1], [0], [0], [1], [0, 0, 1, 1], [], []>} : vector<10x256xbf16>, vector<256x16xbf16>, vector<10x16xf32> -> vector<10x16xf32>
    %45 = vector.extract_strided_slice %44 {offsets = [0, 8], sizes = [10, 8], strides = [1, 1]} : vector<10x16xf32> to vector<10x8xf32>
    %46 = tpu.transpose %45, [1, 0] : vector<10x8xf32> -> vector<8x10xf32>
    %c0_34 = arith.constant 0 : index
    %c0_35 = arith.constant 0 : index
    %47 = vector.load %arg4[%c0_34, %c0_35] : memref<12x10xbf16, #tpu.memory_space<vmem>>, vector<12x10xbf16>
    %cst_36 = arith.constant 0.000000e+00 : bf16
    %48 = vector.broadcast %cst_36 : bf16 to vector<12x10xbf16>
    %49 = arith.cmpf ogt, %47, %48 : vector<12x10xbf16>
    %50 = vector.extract_strided_slice %41 {offsets = [0, 0], sizes = [12, 1], strides = [1, 1]} : vector<12x8xf32> to vector<12x1xf32>
    %51 = vector.extract_strided_slice %46 {offsets = [0, 0], sizes = [1, 10], strides = [1, 1]} : vector<8x10xf32> to vector<1x10xf32>
    %52 = vector.broadcast %50 : vector<12x1xf32> to vector<12x10xf32>
    %53 = vector.broadcast %51 : vector<1x10xf32> to vector<12x10xf32>
    %54 = arith.addf %52, %53 : vector<12x10xf32>
    %cst_37 = arith.constant 0.000000e+00 : f32
    %55 = vector.broadcast %cst_37 : f32 to vector<12x10xf32>
    %56 = arith.cmpf oge, %54, %55 : vector<12x10xf32>
    %cst_38 = arith.constant 2.000000e-01 : f32
    %57 = vector.broadcast %cst_38 : f32 to vector<12x10xf32>
    %58 = arith.mulf %57, %54 : vector<12x10xf32>
    %59 = arith.select %56, %54, %58 : vector<12x10xi1>, vector<12x10xf32>
    %cst_39 = arith.constant -1.000000e+30 : f32
    %60 = vector.broadcast %cst_39 : f32 to vector<12x10xf32>
    %61 = arith.select %49, %59, %60 : vector<12x10xi1>, vector<12x10xf32>
    %cst_40 = arith.constant dense<0xFF800000> : vector<12xf32>
    %62 = vector.multi_reduction <maximumf>, %61, %cst_40 [1] : vector<12x10xf32> to vector<12xf32>
    %63 = vector.shape_cast %62 : vector<12xf32> to vector<12x1xf32>
    %64 = vector.broadcast %63 : vector<12x1xf32> to vector<12x10xf32>
    %65 = arith.subf %61, %64 : vector<12x10xf32>
    %66 = math.exp %65 : vector<12x10xf32>
    %cst_41 = arith.constant 0.000000e+00 : f32
    %67 = vector.broadcast %cst_41 : f32 to vector<12x10xf32>
    %68 = arith.select %49, %66, %67 : vector<12x10xi1>, vector<12x10xf32>
    %cst_42 = arith.constant dense<0.000000e+00> : vector<12xf32>
    %69 = vector.multi_reduction <add>, %68, %cst_42 [1] : vector<12x10xf32> to vector<12xf32>
    %70 = vector.shape_cast %69 : vector<12xf32> to vector<12x1xf32>
    %cst_43 = arith.constant 1.000000e-16 : f32
    %71 = vector.broadcast %cst_43 : f32 to vector<12x1xf32>
    %72 = arith.maximumf %70, %71 : vector<12x1xf32>
    %73 = vector.broadcast %72 : vector<12x1xf32> to vector<12x10xf32>
    %74 = arith.divf %68, %73 : vector<12x10xf32>
    %75 = vector.extract_strided_slice %37 {offsets = [0, 0], sizes = [10, 32], strides = [1, 1]} : vector<10x256xf32> to vector<10x32xf32>
    %76 = arith.truncf %74 : vector<12x10xf32> to vector<12x10xbf16>
    %77 = arith.truncf %75 : vector<10x32xf32> to vector<10x32xbf16>
    %cst_44 = arith.constant dense<0.000000e+00> : vector<12x32xf32>
    %78 = tpu.matmul %76, %77, %cst_44 {dimension_numbers = #tpu.dot_dimension_numbers<[1], [0], [0], [1], [0, 0, 1, 1], [], []>} : vector<12x10xbf16>, vector<10x32xbf16>, vector<12x32xf32> -> vector<12x32xf32>
    %79 = vector.extract_strided_slice %41 {offsets = [0, 1], sizes = [12, 1], strides = [1, 1]} : vector<12x8xf32> to vector<12x1xf32>
    %80 = vector.extract_strided_slice %46 {offsets = [1, 0], sizes = [1, 10], strides = [1, 1]} : vector<8x10xf32> to vector<1x10xf32>
    %81 = vector.broadcast %79 : vector<12x1xf32> to vector<12x10xf32>
    %82 = vector.broadcast %80 : vector<1x10xf32> to vector<12x10xf32>
    %83 = arith.addf %81, %82 : vector<12x10xf32>
    %cst_45 = arith.constant 0.000000e+00 : f32
    %84 = vector.broadcast %cst_45 : f32 to vector<12x10xf32>
    %85 = arith.cmpf oge, %83, %84 : vector<12x10xf32>
    %cst_46 = arith.constant 2.000000e-01 : f32
    %86 = vector.broadcast %cst_46 : f32 to vector<12x10xf32>
    %87 = arith.mulf %86, %83 : vector<12x10xf32>
    %88 = arith.select %85, %83, %87 : vector<12x10xi1>, vector<12x10xf32>
    %cst_47 = arith.constant -1.000000e+30 : f32
    %89 = vector.broadcast %cst_47 : f32 to vector<12x10xf32>
    %90 = arith.select %49, %88, %89 : vector<12x10xi1>, vector<12x10xf32>
    %cst_48 = arith.constant dense<0xFF800000> : vector<12xf32>
    %91 = vector.multi_reduction <maximumf>, %90, %cst_48 [1] : vector<12x10xf32> to vector<12xf32>
    %92 = vector.shape_cast %91 : vector<12xf32> to vector<12x1xf32>
    %93 = vector.broadcast %92 : vector<12x1xf32> to vector<12x10xf32>
    %94 = arith.subf %90, %93 : vector<12x10xf32>
    %95 = math.exp %94 : vector<12x10xf32>
    %cst_49 = arith.constant 0.000000e+00 : f32
    %96 = vector.broadcast %cst_49 : f32 to vector<12x10xf32>
    %97 = arith.select %49, %95, %96 : vector<12x10xi1>, vector<12x10xf32>
    %cst_50 = arith.constant dense<0.000000e+00> : vector<12xf32>
    %98 = vector.multi_reduction <add>, %97, %cst_50 [1] : vector<12x10xf32> to vector<12xf32>
    %99 = vector.shape_cast %98 : vector<12xf32> to vector<12x1xf32>
    %cst_51 = arith.constant 1.000000e-16 : f32
    %100 = vector.broadcast %cst_51 : f32 to vector<12x1xf32>
    %101 = arith.maximumf %99, %100 : vector<12x1xf32>
    %102 = vector.broadcast %101 : vector<12x1xf32> to vector<12x10xf32>
    %103 = arith.divf %97, %102 : vector<12x10xf32>
    %104 = vector.extract_strided_slice %37 {offsets = [0, 32], sizes = [10, 32], strides = [1, 1]} : vector<10x256xf32> to vector<10x32xf32>
    %105 = arith.truncf %103 : vector<12x10xf32> to vector<12x10xbf16>
    %106 = arith.truncf %104 : vector<10x32xf32> to vector<10x32xbf16>
    %cst_52 = arith.constant dense<0.000000e+00> : vector<12x32xf32>
    %107 = tpu.matmul %105, %106, %cst_52 {dimension_numbers = #tpu.dot_dimension_numbers<[1], [0], [0], [1], [0, 0, 1, 1], [], []>} : vector<12x10xbf16>, vector<10x32xbf16>, vector<12x32xf32> -> vector<12x32xf32>
    %108 = vector.extract_strided_slice %41 {offsets = [0, 2], sizes = [12, 1], strides = [1, 1]} : vector<12x8xf32> to vector<12x1xf32>
    %109 = vector.extract_strided_slice %46 {offsets = [2, 0], sizes = [1, 10], strides = [1, 1]} : vector<8x10xf32> to vector<1x10xf32>
    %110 = vector.broadcast %108 : vector<12x1xf32> to vector<12x10xf32>
    %111 = vector.broadcast %109 : vector<1x10xf32> to vector<12x10xf32>
    %112 = arith.addf %110, %111 : vector<12x10xf32>
    %cst_53 = arith.constant 0.000000e+00 : f32
    %113 = vector.broadcast %cst_53 : f32 to vector<12x10xf32>
    %114 = arith.cmpf oge, %112, %113 : vector<12x10xf32>
    %cst_54 = arith.constant 2.000000e-01 : f32
    %115 = vector.broadcast %cst_54 : f32 to vector<12x10xf32>
    %116 = arith.mulf %115, %112 : vector<12x10xf32>
    %117 = arith.select %114, %112, %116 : vector<12x10xi1>, vector<12x10xf32>
    %cst_55 = arith.constant -1.000000e+30 : f32
    %118 = vector.broadcast %cst_55 : f32 to vector<12x10xf32>
    %119 = arith.select %49, %117, %118 : vector<12x10xi1>, vector<12x10xf32>
    %cst_56 = arith.constant dense<0xFF800000> : vector<12xf32>
    %120 = vector.multi_reduction <maximumf>, %119, %cst_56 [1] : vector<12x10xf32> to vector<12xf32>
    %121 = vector.shape_cast %120 : vector<12xf32> to vector<12x1xf32>
    %122 = vector.broadcast %121 : vector<12x1xf32> to vector<12x10xf32>
    %123 = arith.subf %119, %122 : vector<12x10xf32>
    %124 = math.exp %123 : vector<12x10xf32>
    %cst_57 = arith.constant 0.000000e+00 : f32
    %125 = vector.broadcast %cst_57 : f32 to vector<12x10xf32>
    %126 = arith.select %49, %124, %125 : vector<12x10xi1>, vector<12x10xf32>
    %cst_58 = arith.constant dense<0.000000e+00> : vector<12xf32>
    %127 = vector.multi_reduction <add>, %126, %cst_58 [1] : vector<12x10xf32> to vector<12xf32>
    %128 = vector.shape_cast %127 : vector<12xf32> to vector<12x1xf32>
    %cst_59 = arith.constant 1.000000e-16 : f32
    %129 = vector.broadcast %cst_59 : f32 to vector<12x1xf32>
    %130 = arith.maximumf %128, %129 : vector<12x1xf32>
    %131 = vector.broadcast %130 : vector<12x1xf32> to vector<12x10xf32>
    %132 = arith.divf %126, %131 : vector<12x10xf32>
    %133 = vector.extract_strided_slice %37 {offsets = [0, 64], sizes = [10, 32], strides = [1, 1]} : vector<10x256xf32> to vector<10x32xf32>
    %134 = arith.truncf %132 : vector<12x10xf32> to vector<12x10xbf16>
    %135 = arith.truncf %133 : vector<10x32xf32> to vector<10x32xbf16>
    %cst_60 = arith.constant dense<0.000000e+00> : vector<12x32xf32>
    %136 = tpu.matmul %134, %135, %cst_60 {dimension_numbers = #tpu.dot_dimension_numbers<[1], [0], [0], [1], [0, 0, 1, 1], [], []>} : vector<12x10xbf16>, vector<10x32xbf16>, vector<12x32xf32> -> vector<12x32xf32>
    %137 = vector.extract_strided_slice %41 {offsets = [0, 3], sizes = [12, 1], strides = [1, 1]} : vector<12x8xf32> to vector<12x1xf32>
    %138 = vector.extract_strided_slice %46 {offsets = [3, 0], sizes = [1, 10], strides = [1, 1]} : vector<8x10xf32> to vector<1x10xf32>
    %139 = vector.broadcast %137 : vector<12x1xf32> to vector<12x10xf32>
    %140 = vector.broadcast %138 : vector<1x10xf32> to vector<12x10xf32>
    %141 = arith.addf %139, %140 : vector<12x10xf32>
    %cst_61 = arith.constant 0.000000e+00 : f32
    %142 = vector.broadcast %cst_61 : f32 to vector<12x10xf32>
    %143 = arith.cmpf oge, %141, %142 : vector<12x10xf32>
    %cst_62 = arith.constant 2.000000e-01 : f32
    %144 = vector.broadcast %cst_62 : f32 to vector<12x10xf32>
    %145 = arith.mulf %144, %141 : vector<12x10xf32>
    %146 = arith.select %143, %141, %145 : vector<12x10xi1>, vector<12x10xf32>
    %cst_63 = arith.constant -1.000000e+30 : f32
    %147 = vector.broadcast %cst_63 : f32 to vector<12x10xf32>
    %148 = arith.select %49, %146, %147 : vector<12x10xi1>, vector<12x10xf32>
    %cst_64 = arith.constant dense<0xFF800000> : vector<12xf32>
    %149 = vector.multi_reduction <maximumf>, %148, %cst_64 [1] : vector<12x10xf32> to vector<12xf32>
    %150 = vector.shape_cast %149 : vector<12xf32> to vector<12x1xf32>
    %151 = vector.broadcast %150 : vector<12x1xf32> to vector<12x10xf32>
    %152 = arith.subf %148, %151 : vector<12x10xf32>
    %153 = math.exp %152 : vector<12x10xf32>
    %cst_65 = arith.constant 0.000000e+00 : f32
    %154 = vector.broadcast %cst_65 : f32 to vector<12x10xf32>
    %155 = arith.select %49, %153, %154 : vector<12x10xi1>, vector<12x10xf32>
    %cst_66 = arith.constant dense<0.000000e+00> : vector<12xf32>
    %156 = vector.multi_reduction <add>, %155, %cst_66 [1] : vector<12x10xf32> to vector<12xf32>
    %157 = vector.shape_cast %156 : vector<12xf32> to vector<12x1xf32>
    %cst_67 = arith.constant 1.000000e-16 : f32
    %158 = vector.broadcast %cst_67 : f32 to vector<12x1xf32>
    %159 = arith.maximumf %157, %158 : vector<12x1xf32>
    %160 = vector.broadcast %159 : vector<12x1xf32> to vector<12x10xf32>
    %161 = arith.divf %155, %160 : vector<12x10xf32>
    %162 = vector.extract_strided_slice %37 {offsets = [0, 96], sizes = [10, 32], strides = [1, 1]} : vector<10x256xf32> to vector<10x32xf32>
    %163 = arith.truncf %161 : vector<12x10xf32> to vector<12x10xbf16>
    %164 = arith.truncf %162 : vector<10x32xf32> to vector<10x32xbf16>
    %cst_68 = arith.constant dense<0.000000e+00> : vector<12x32xf32>
    %165 = tpu.matmul %163, %164, %cst_68 {dimension_numbers = #tpu.dot_dimension_numbers<[1], [0], [0], [1], [0, 0, 1, 1], [], []>} : vector<12x10xbf16>, vector<10x32xbf16>, vector<12x32xf32> -> vector<12x32xf32>
    %166 = vector.extract_strided_slice %41 {offsets = [0, 4], sizes = [12, 1], strides = [1, 1]} : vector<12x8xf32> to vector<12x1xf32>
    %167 = vector.extract_strided_slice %46 {offsets = [4, 0], sizes = [1, 10], strides = [1, 1]} : vector<8x10xf32> to vector<1x10xf32>
    %168 = vector.broadcast %166 : vector<12x1xf32> to vector<12x10xf32>
    %169 = vector.broadcast %167 : vector<1x10xf32> to vector<12x10xf32>
    %170 = arith.addf %168, %169 : vector<12x10xf32>
    %cst_69 = arith.constant 0.000000e+00 : f32
    %171 = vector.broadcast %cst_69 : f32 to vector<12x10xf32>
    %172 = arith.cmpf oge, %170, %171 : vector<12x10xf32>
    %cst_70 = arith.constant 2.000000e-01 : f32
    %173 = vector.broadcast %cst_70 : f32 to vector<12x10xf32>
    %174 = arith.mulf %173, %170 : vector<12x10xf32>
    %175 = arith.select %172, %170, %174 : vector<12x10xi1>, vector<12x10xf32>
    %cst_71 = arith.constant -1.000000e+30 : f32
    %176 = vector.broadcast %cst_71 : f32 to vector<12x10xf32>
    %177 = arith.select %49, %175, %176 : vector<12x10xi1>, vector<12x10xf32>
    %cst_72 = arith.constant dense<0xFF800000> : vector<12xf32>
    %178 = vector.multi_reduction <maximumf>, %177, %cst_72 [1] : vector<12x10xf32> to vector<12xf32>
    %179 = vector.shape_cast %178 : vector<12xf32> to vector<12x1xf32>
    %180 = vector.broadcast %179 : vector<12x1xf32> to vector<12x10xf32>
    %181 = arith.subf %177, %180 : vector<12x10xf32>
    %182 = math.exp %181 : vector<12x10xf32>
    %cst_73 = arith.constant 0.000000e+00 : f32
    %183 = vector.broadcast %cst_73 : f32 to vector<12x10xf32>
    %184 = arith.select %49, %182, %183 : vector<12x10xi1>, vector<12x10xf32>
    %cst_74 = arith.constant dense<0.000000e+00> : vector<12xf32>
    %185 = vector.multi_reduction <add>, %184, %cst_74 [1] : vector<12x10xf32> to vector<12xf32>
    %186 = vector.shape_cast %185 : vector<12xf32> to vector<12x1xf32>
    %cst_75 = arith.constant 1.000000e-16 : f32
    %187 = vector.broadcast %cst_75 : f32 to vector<12x1xf32>
    %188 = arith.maximumf %186, %187 : vector<12x1xf32>
    %189 = vector.broadcast %188 : vector<12x1xf32> to vector<12x10xf32>
    %190 = arith.divf %184, %189 : vector<12x10xf32>
    %191 = vector.extract_strided_slice %37 {offsets = [0, 128], sizes = [10, 32], strides = [1, 1]} : vector<10x256xf32> to vector<10x32xf32>
    %192 = arith.truncf %190 : vector<12x10xf32> to vector<12x10xbf16>
    %193 = arith.truncf %191 : vector<10x32xf32> to vector<10x32xbf16>
    %cst_76 = arith.constant dense<0.000000e+00> : vector<12x32xf32>
    %194 = tpu.matmul %192, %193, %cst_76 {dimension_numbers = #tpu.dot_dimension_numbers<[1], [0], [0], [1], [0, 0, 1, 1], [], []>} : vector<12x10xbf16>, vector<10x32xbf16>, vector<12x32xf32> -> vector<12x32xf32>
    %195 = vector.extract_strided_slice %41 {offsets = [0, 5], sizes = [12, 1], strides = [1, 1]} : vector<12x8xf32> to vector<12x1xf32>
    %196 = vector.extract_strided_slice %46 {offsets = [5, 0], sizes = [1, 10], strides = [1, 1]} : vector<8x10xf32> to vector<1x10xf32>
    %197 = vector.broadcast %195 : vector<12x1xf32> to vector<12x10xf32>
    %198 = vector.broadcast %196 : vector<1x10xf32> to vector<12x10xf32>
    %199 = arith.addf %197, %198 : vector<12x10xf32>
    %cst_77 = arith.constant 0.000000e+00 : f32
    %200 = vector.broadcast %cst_77 : f32 to vector<12x10xf32>
    %201 = arith.cmpf oge, %199, %200 : vector<12x10xf32>
    %cst_78 = arith.constant 2.000000e-01 : f32
    %202 = vector.broadcast %cst_78 : f32 to vector<12x10xf32>
    %203 = arith.mulf %202, %199 : vector<12x10xf32>
    %204 = arith.select %201, %199, %203 : vector<12x10xi1>, vector<12x10xf32>
    %cst_79 = arith.constant -1.000000e+30 : f32
    %205 = vector.broadcast %cst_79 : f32 to vector<12x10xf32>
    %206 = arith.select %49, %204, %205 : vector<12x10xi1>, vector<12x10xf32>
    %cst_80 = arith.constant dense<0xFF800000> : vector<12xf32>
    %207 = vector.multi_reduction <maximumf>, %206, %cst_80 [1] : vector<12x10xf32> to vector<12xf32>
    %208 = vector.shape_cast %207 : vector<12xf32> to vector<12x1xf32>
    %209 = vector.broadcast %208 : vector<12x1xf32> to vector<12x10xf32>
    %210 = arith.subf %206, %209 : vector<12x10xf32>
    %211 = math.exp %210 : vector<12x10xf32>
    %cst_81 = arith.constant 0.000000e+00 : f32
    %212 = vector.broadcast %cst_81 : f32 to vector<12x10xf32>
    %213 = arith.select %49, %211, %212 : vector<12x10xi1>, vector<12x10xf32>
    %cst_82 = arith.constant dense<0.000000e+00> : vector<12xf32>
    %214 = vector.multi_reduction <add>, %213, %cst_82 [1] : vector<12x10xf32> to vector<12xf32>
    %215 = vector.shape_cast %214 : vector<12xf32> to vector<12x1xf32>
    %cst_83 = arith.constant 1.000000e-16 : f32
    %216 = vector.broadcast %cst_83 : f32 to vector<12x1xf32>
    %217 = arith.maximumf %215, %216 : vector<12x1xf32>
    %218 = vector.broadcast %217 : vector<12x1xf32> to vector<12x10xf32>
    %219 = arith.divf %213, %218 : vector<12x10xf32>
    %220 = vector.extract_strided_slice %37 {offsets = [0, 160], sizes = [10, 32], strides = [1, 1]} : vector<10x256xf32> to vector<10x32xf32>
    %221 = arith.truncf %219 : vector<12x10xf32> to vector<12x10xbf16>
    %222 = arith.truncf %220 : vector<10x32xf32> to vector<10x32xbf16>
    %cst_84 = arith.constant dense<0.000000e+00> : vector<12x32xf32>
    %223 = tpu.matmul %221, %222, %cst_84 {dimension_numbers = #tpu.dot_dimension_numbers<[1], [0], [0], [1], [0, 0, 1, 1], [], []>} : vector<12x10xbf16>, vector<10x32xbf16>, vector<12x32xf32> -> vector<12x32xf32>
    %224 = vector.extract_strided_slice %41 {offsets = [0, 6], sizes = [12, 1], strides = [1, 1]} : vector<12x8xf32> to vector<12x1xf32>
    %225 = vector.extract_strided_slice %46 {offsets = [6, 0], sizes = [1, 10], strides = [1, 1]} : vector<8x10xf32> to vector<1x10xf32>
    %226 = vector.broadcast %224 : vector<12x1xf32> to vector<12x10xf32>
    %227 = vector.broadcast %225 : vector<1x10xf32> to vector<12x10xf32>
    %228 = arith.addf %226, %227 : vector<12x10xf32>
    %cst_85 = arith.constant 0.000000e+00 : f32
    %229 = vector.broadcast %cst_85 : f32 to vector<12x10xf32>
    %230 = arith.cmpf oge, %228, %229 : vector<12x10xf32>
    %cst_86 = arith.constant 2.000000e-01 : f32
    %231 = vector.broadcast %cst_86 : f32 to vector<12x10xf32>
    %232 = arith.mulf %231, %228 : vector<12x10xf32>
    %233 = arith.select %230, %228, %232 : vector<12x10xi1>, vector<12x10xf32>
    %cst_87 = arith.constant -1.000000e+30 : f32
    %234 = vector.broadcast %cst_87 : f32 to vector<12x10xf32>
    %235 = arith.select %49, %233, %234 : vector<12x10xi1>, vector<12x10xf32>
    %cst_88 = arith.constant dense<0xFF800000> : vector<12xf32>
    %236 = vector.multi_reduction <maximumf>, %235, %cst_88 [1] : vector<12x10xf32> to vector<12xf32>
    %237 = vector.shape_cast %236 : vector<12xf32> to vector<12x1xf32>
    %238 = vector.broadcast %237 : vector<12x1xf32> to vector<12x10xf32>
    %239 = arith.subf %235, %238 : vector<12x10xf32>
    %240 = math.exp %239 : vector<12x10xf32>
    %cst_89 = arith.constant 0.000000e+00 : f32
    %241 = vector.broadcast %cst_89 : f32 to vector<12x10xf32>
    %242 = arith.select %49, %240, %241 : vector<12x10xi1>, vector<12x10xf32>
    %cst_90 = arith.constant dense<0.000000e+00> : vector<12xf32>
    %243 = vector.multi_reduction <add>, %242, %cst_90 [1] : vector<12x10xf32> to vector<12xf32>
    %244 = vector.shape_cast %243 : vector<12xf32> to vector<12x1xf32>
    %cst_91 = arith.constant 1.000000e-16 : f32
    %245 = vector.broadcast %cst_91 : f32 to vector<12x1xf32>
    %246 = arith.maximumf %244, %245 : vector<12x1xf32>
    %247 = vector.broadcast %246 : vector<12x1xf32> to vector<12x10xf32>
    %248 = arith.divf %242, %247 : vector<12x10xf32>
    %249 = vector.extract_strided_slice %37 {offsets = [0, 192], sizes = [10, 32], strides = [1, 1]} : vector<10x256xf32> to vector<10x32xf32>
    %250 = arith.truncf %248 : vector<12x10xf32> to vector<12x10xbf16>
    %251 = arith.truncf %249 : vector<10x32xf32> to vector<10x32xbf16>
    %cst_92 = arith.constant dense<0.000000e+00> : vector<12x32xf32>
    %252 = tpu.matmul %250, %251, %cst_92 {dimension_numbers = #tpu.dot_dimension_numbers<[1], [0], [0], [1], [0, 0, 1, 1], [], []>} : vector<12x10xbf16>, vector<10x32xbf16>, vector<12x32xf32> -> vector<12x32xf32>
    %253 = vector.extract_strided_slice %41 {offsets = [0, 7], sizes = [12, 1], strides = [1, 1]} : vector<12x8xf32> to vector<12x1xf32>
    %254 = vector.extract_strided_slice %46 {offsets = [7, 0], sizes = [1, 10], strides = [1, 1]} : vector<8x10xf32> to vector<1x10xf32>
    %255 = vector.broadcast %253 : vector<12x1xf32> to vector<12x10xf32>
    %256 = vector.broadcast %254 : vector<1x10xf32> to vector<12x10xf32>
    %257 = arith.addf %255, %256 : vector<12x10xf32>
    %cst_93 = arith.constant 0.000000e+00 : f32
    %258 = vector.broadcast %cst_93 : f32 to vector<12x10xf32>
    %259 = arith.cmpf oge, %257, %258 : vector<12x10xf32>
    %cst_94 = arith.constant 2.000000e-01 : f32
    %260 = vector.broadcast %cst_94 : f32 to vector<12x10xf32>
    %261 = arith.mulf %260, %257 : vector<12x10xf32>
    %262 = arith.select %259, %257, %261 : vector<12x10xi1>, vector<12x10xf32>
    %cst_95 = arith.constant -1.000000e+30 : f32
    %263 = vector.broadcast %cst_95 : f32 to vector<12x10xf32>
    %264 = arith.select %49, %262, %263 : vector<12x10xi1>, vector<12x10xf32>
    %cst_96 = arith.constant dense<0xFF800000> : vector<12xf32>
    %265 = vector.multi_reduction <maximumf>, %264, %cst_96 [1] : vector<12x10xf32> to vector<12xf32>
    %266 = vector.shape_cast %265 : vector<12xf32> to vector<12x1xf32>
    %267 = vector.broadcast %266 : vector<12x1xf32> to vector<12x10xf32>
    %268 = arith.subf %264, %267 : vector<12x10xf32>
    %269 = math.exp %268 : vector<12x10xf32>
    %cst_97 = arith.constant 0.000000e+00 : f32
    %270 = vector.broadcast %cst_97 : f32 to vector<12x10xf32>
    %271 = arith.select %49, %269, %270 : vector<12x10xi1>, vector<12x10xf32>
    %cst_98 = arith.constant dense<0.000000e+00> : vector<12xf32>
    %272 = vector.multi_reduction <add>, %271, %cst_98 [1] : vector<12x10xf32> to vector<12xf32>
    %273 = vector.shape_cast %272 : vector<12xf32> to vector<12x1xf32>
    %cst_99 = arith.constant 1.000000e-16 : f32
    %274 = vector.broadcast %cst_99 : f32 to vector<12x1xf32>
    %275 = arith.maximumf %273, %274 : vector<12x1xf32>
    %276 = vector.broadcast %275 : vector<12x1xf32> to vector<12x10xf32>
    %277 = arith.divf %271, %276 : vector<12x10xf32>
    %278 = vector.extract_strided_slice %37 {offsets = [0, 224], sizes = [10, 32], strides = [1, 1]} : vector<10x256xf32> to vector<10x32xf32>
    %279 = arith.truncf %277 : vector<12x10xf32> to vector<12x10xbf16>
    %280 = arith.truncf %278 : vector<10x32xf32> to vector<10x32xbf16>
    %cst_100 = arith.constant dense<0.000000e+00> : vector<12x32xf32>
    %281 = tpu.matmul %279, %280, %cst_100 {dimension_numbers = #tpu.dot_dimension_numbers<[1], [0], [0], [1], [0, 0, 1, 1], [], []>} : vector<12x10xbf16>, vector<10x32xbf16>, vector<12x32xf32> -> vector<12x32xf32>
    %282 = tpu.concatenate %78, %107, %136, %165, %194, %223, %252, %281 in 1 : vector<12x32xf32>, vector<12x32xf32>, vector<12x32xf32>, vector<12x32xf32>, vector<12x32xf32>, vector<12x32xf32>, vector<12x32xf32>, vector<12x32xf32> -> vector<12x256xf32>
    %c0_101 = arith.constant 0 : index
    %c0_102 = arith.constant 0 : index
    %283 = vector.load %arg13[%c0_101, %c0_102] : memref<1x256xf32, #tpu.memory_space<vmem>>, vector<1x256xf32>
    %284 = vector.broadcast %283 : vector<1x256xf32> to vector<12x256xf32>
    %285 = arith.addf %282, %284 : vector<12x256xf32>
    %cst_103 = arith.constant 0.000000e+00 : f32
    %286 = vector.broadcast %cst_103 : f32 to vector<12x256xf32>
    %287 = arith.maximumf %285, %286 : vector<12x256xf32>
    %288 = vector.extract_strided_slice %35 {offsets = [0, 256], sizes = [10, 256], strides = [1, 1]} : vector<10x512xf32> to vector<10x256xf32>
    %289 = vector.extract_strided_slice %32 {offsets = [0, 256], sizes = [12, 256], strides = [1, 1]} : vector<12x512xf32> to vector<12x256xf32>
    %c0_104 = arith.constant 0 : index
    %c0_105 = arith.constant 0 : index
    %290 = vector.load %arg12[%c0_104, %c0_105] : memref<256x16xbf16, #tpu.memory_space<vmem>>, vector<256x16xbf16>
    %291 = arith.truncf %288 : vector<10x256xf32> to vector<10x256xbf16>
    %cst_106 = arith.constant dense<0.000000e+00> : vector<10x16xf32>
    %292 = tpu.matmul %291, %290, %cst_106 {dimension_numbers = #tpu.dot_dimension_numbers<[1], [0], [0], [1], [0, 0, 1, 1], [], []>} : vector<10x256xbf16>, vector<256x16xbf16>, vector<10x16xf32> -> vector<10x16xf32>
    %293 = vector.extract_strided_slice %292 {offsets = [0, 0], sizes = [10, 8], strides = [1, 1]} : vector<10x16xf32> to vector<10x8xf32>
    %c0_107 = arith.constant 0 : index
    %c0_108 = arith.constant 0 : index
    %294 = vector.load %arg12[%c0_107, %c0_108] : memref<256x16xbf16, #tpu.memory_space<vmem>>, vector<256x16xbf16>
    %295 = arith.truncf %289 : vector<12x256xf32> to vector<12x256xbf16>
    %cst_109 = arith.constant dense<0.000000e+00> : vector<12x16xf32>
    %296 = tpu.matmul %295, %294, %cst_109 {dimension_numbers = #tpu.dot_dimension_numbers<[1], [0], [0], [1], [0, 0, 1, 1], [], []>} : vector<12x256xbf16>, vector<256x16xbf16>, vector<12x16xf32> -> vector<12x16xf32>
    %297 = vector.extract_strided_slice %296 {offsets = [0, 8], sizes = [12, 8], strides = [1, 1]} : vector<12x16xf32> to vector<12x8xf32>
    %298 = tpu.transpose %297, [1, 0] : vector<12x8xf32> -> vector<8x12xf32>
    %c0_110 = arith.constant 0 : index
    %c0_111 = arith.constant 0 : index
    %299 = vector.load %arg5[%c0_110, %c0_111] : memref<10x12xbf16, #tpu.memory_space<vmem>>, vector<10x12xbf16>
    %cst_112 = arith.constant 0.000000e+00 : bf16
    %300 = vector.broadcast %cst_112 : bf16 to vector<10x12xbf16>
    %301 = arith.cmpf ogt, %299, %300 : vector<10x12xbf16>
    %302 = vector.extract_strided_slice %293 {offsets = [0, 0], sizes = [10, 1], strides = [1, 1]} : vector<10x8xf32> to vector<10x1xf32>
    %303 = vector.extract_strided_slice %298 {offsets = [0, 0], sizes = [1, 12], strides = [1, 1]} : vector<8x12xf32> to vector<1x12xf32>
    %304 = vector.broadcast %302 : vector<10x1xf32> to vector<10x12xf32>
    %305 = vector.broadcast %303 : vector<1x12xf32> to vector<10x12xf32>
    %306 = arith.addf %304, %305 : vector<10x12xf32>
    %cst_113 = arith.constant 0.000000e+00 : f32
    %307 = vector.broadcast %cst_113 : f32 to vector<10x12xf32>
    %308 = arith.cmpf oge, %306, %307 : vector<10x12xf32>
    %cst_114 = arith.constant 2.000000e-01 : f32
    %309 = vector.broadcast %cst_114 : f32 to vector<10x12xf32>
    %310 = arith.mulf %309, %306 : vector<10x12xf32>
    %311 = arith.select %308, %306, %310 : vector<10x12xi1>, vector<10x12xf32>
    %cst_115 = arith.constant -1.000000e+30 : f32
    %312 = vector.broadcast %cst_115 : f32 to vector<10x12xf32>
    %313 = arith.select %301, %311, %312 : vector<10x12xi1>, vector<10x12xf32>
    %cst_116 = arith.constant dense<0xFF800000> : vector<10xf32>
    %314 = vector.multi_reduction <maximumf>, %313, %cst_116 [1] : vector<10x12xf32> to vector<10xf32>
    %315 = vector.shape_cast %314 : vector<10xf32> to vector<10x1xf32>
    %316 = vector.broadcast %315 : vector<10x1xf32> to vector<10x12xf32>
    %317 = arith.subf %313, %316 : vector<10x12xf32>
    %318 = math.exp %317 : vector<10x12xf32>
    %cst_117 = arith.constant 0.000000e+00 : f32
    %319 = vector.broadcast %cst_117 : f32 to vector<10x12xf32>
    %320 = arith.select %301, %318, %319 : vector<10x12xi1>, vector<10x12xf32>
    %cst_118 = arith.constant dense<0.000000e+00> : vector<10xf32>
    %321 = vector.multi_reduction <add>, %320, %cst_118 [1] : vector<10x12xf32> to vector<10xf32>
    %322 = vector.shape_cast %321 : vector<10xf32> to vector<10x1xf32>
    %cst_119 = arith.constant 1.000000e-16 : f32
    %323 = vector.broadcast %cst_119 : f32 to vector<10x1xf32>
    %324 = arith.maximumf %322, %323 : vector<10x1xf32>
    %325 = vector.broadcast %324 : vector<10x1xf32> to vector<10x12xf32>
    %326 = arith.divf %320, %325 : vector<10x12xf32>
    %327 = vector.extract_strided_slice %289 {offsets = [0, 0], sizes = [12, 32], strides = [1, 1]} : vector<12x256xf32> to vector<12x32xf32>
    %328 = arith.truncf %326 : vector<10x12xf32> to vector<10x12xbf16>
    %329 = arith.truncf %327 : vector<12x32xf32> to vector<12x32xbf16>
    %cst_120 = arith.constant dense<0.000000e+00> : vector<10x32xf32>
    %330 = tpu.matmul %328, %329, %cst_120 {dimension_numbers = #tpu.dot_dimension_numbers<[1], [0], [0], [1], [0, 0, 1, 1], [], []>} : vector<10x12xbf16>, vector<12x32xbf16>, vector<10x32xf32> -> vector<10x32xf32>
    %331 = vector.extract_strided_slice %293 {offsets = [0, 1], sizes = [10, 1], strides = [1, 1]} : vector<10x8xf32> to vector<10x1xf32>
    %332 = vector.extract_strided_slice %298 {offsets = [1, 0], sizes = [1, 12], strides = [1, 1]} : vector<8x12xf32> to vector<1x12xf32>
    %333 = vector.broadcast %331 : vector<10x1xf32> to vector<10x12xf32>
    %334 = vector.broadcast %332 : vector<1x12xf32> to vector<10x12xf32>
    %335 = arith.addf %333, %334 : vector<10x12xf32>
    %cst_121 = arith.constant 0.000000e+00 : f32
    %336 = vector.broadcast %cst_121 : f32 to vector<10x12xf32>
    %337 = arith.cmpf oge, %335, %336 : vector<10x12xf32>
    %cst_122 = arith.constant 2.000000e-01 : f32
    %338 = vector.broadcast %cst_122 : f32 to vector<10x12xf32>
    %339 = arith.mulf %338, %335 : vector<10x12xf32>
    %340 = arith.select %337, %335, %339 : vector<10x12xi1>, vector<10x12xf32>
    %cst_123 = arith.constant -1.000000e+30 : f32
    %341 = vector.broadcast %cst_123 : f32 to vector<10x12xf32>
    %342 = arith.select %301, %340, %341 : vector<10x12xi1>, vector<10x12xf32>
    %cst_124 = arith.constant dense<0xFF800000> : vector<10xf32>
    %343 = vector.multi_reduction <maximumf>, %342, %cst_124 [1] : vector<10x12xf32> to vector<10xf32>
    %344 = vector.shape_cast %343 : vector<10xf32> to vector<10x1xf32>
    %345 = vector.broadcast %344 : vector<10x1xf32> to vector<10x12xf32>
    %346 = arith.subf %342, %345 : vector<10x12xf32>
    %347 = math.exp %346 : vector<10x12xf32>
    %cst_125 = arith.constant 0.000000e+00 : f32
    %348 = vector.broadcast %cst_125 : f32 to vector<10x12xf32>
    %349 = arith.select %301, %347, %348 : vector<10x12xi1>, vector<10x12xf32>
    %cst_126 = arith.constant dense<0.000000e+00> : vector<10xf32>
    %350 = vector.multi_reduction <add>, %349, %cst_126 [1] : vector<10x12xf32> to vector<10xf32>
    %351 = vector.shape_cast %350 : vector<10xf32> to vector<10x1xf32>
    %cst_127 = arith.constant 1.000000e-16 : f32
    %352 = vector.broadcast %cst_127 : f32 to vector<10x1xf32>
    %353 = arith.maximumf %351, %352 : vector<10x1xf32>
    %354 = vector.broadcast %353 : vector<10x1xf32> to vector<10x12xf32>
    %355 = arith.divf %349, %354 : vector<10x12xf32>
    %356 = vector.extract_strided_slice %289 {offsets = [0, 32], sizes = [12, 32], strides = [1, 1]} : vector<12x256xf32> to vector<12x32xf32>
    %357 = arith.truncf %355 : vector<10x12xf32> to vector<10x12xbf16>
    %358 = arith.truncf %356 : vector<12x32xf32> to vector<12x32xbf16>
    %cst_128 = arith.constant dense<0.000000e+00> : vector<10x32xf32>
    %359 = tpu.matmul %357, %358, %cst_128 {dimension_numbers = #tpu.dot_dimension_numbers<[1], [0], [0], [1], [0, 0, 1, 1], [], []>} : vector<10x12xbf16>, vector<12x32xbf16>, vector<10x32xf32> -> vector<10x32xf32>
    %360 = vector.extract_strided_slice %293 {offsets = [0, 2], sizes = [10, 1], strides = [1, 1]} : vector<10x8xf32> to vector<10x1xf32>
    %361 = vector.extract_strided_slice %298 {offsets = [2, 0], sizes = [1, 12], strides = [1, 1]} : vector<8x12xf32> to vector<1x12xf32>
    %362 = vector.broadcast %360 : vector<10x1xf32> to vector<10x12xf32>
    %363 = vector.broadcast %361 : vector<1x12xf32> to vector<10x12xf32>
    %364 = arith.addf %362, %363 : vector<10x12xf32>
    %cst_129 = arith.constant 0.000000e+00 : f32
    %365 = vector.broadcast %cst_129 : f32 to vector<10x12xf32>
    %366 = arith.cmpf oge, %364, %365 : vector<10x12xf32>
    %cst_130 = arith.constant 2.000000e-01 : f32
    %367 = vector.broadcast %cst_130 : f32 to vector<10x12xf32>
    %368 = arith.mulf %367, %364 : vector<10x12xf32>
    %369 = arith.select %366, %364, %368 : vector<10x12xi1>, vector<10x12xf32>
    %cst_131 = arith.constant -1.000000e+30 : f32
    %370 = vector.broadcast %cst_131 : f32 to vector<10x12xf32>
    %371 = arith.select %301, %369, %370 : vector<10x12xi1>, vector<10x12xf32>
    %cst_132 = arith.constant dense<0xFF800000> : vector<10xf32>
    %372 = vector.multi_reduction <maximumf>, %371, %cst_132 [1] : vector<10x12xf32> to vector<10xf32>
    %373 = vector.shape_cast %372 : vector<10xf32> to vector<10x1xf32>
    %374 = vector.broadcast %373 : vector<10x1xf32> to vector<10x12xf32>
    %375 = arith.subf %371, %374 : vector<10x12xf32>
    %376 = math.exp %375 : vector<10x12xf32>
    %cst_133 = arith.constant 0.000000e+00 : f32
    %377 = vector.broadcast %cst_133 : f32 to vector<10x12xf32>
    %378 = arith.select %301, %376, %377 : vector<10x12xi1>, vector<10x12xf32>
    %cst_134 = arith.constant dense<0.000000e+00> : vector<10xf32>
    %379 = vector.multi_reduction <add>, %378, %cst_134 [1] : vector<10x12xf32> to vector<10xf32>
    %380 = vector.shape_cast %379 : vector<10xf32> to vector<10x1xf32>
    %cst_135 = arith.constant 1.000000e-16 : f32
    %381 = vector.broadcast %cst_135 : f32 to vector<10x1xf32>
    %382 = arith.maximumf %380, %381 : vector<10x1xf32>
    %383 = vector.broadcast %382 : vector<10x1xf32> to vector<10x12xf32>
    %384 = arith.divf %378, %383 : vector<10x12xf32>
    %385 = vector.extract_strided_slice %289 {offsets = [0, 64], sizes = [12, 32], strides = [1, 1]} : vector<12x256xf32> to vector<12x32xf32>
    %386 = arith.truncf %384 : vector<10x12xf32> to vector<10x12xbf16>
    %387 = arith.truncf %385 : vector<12x32xf32> to vector<12x32xbf16>
    %cst_136 = arith.constant dense<0.000000e+00> : vector<10x32xf32>
    %388 = tpu.matmul %386, %387, %cst_136 {dimension_numbers = #tpu.dot_dimension_numbers<[1], [0], [0], [1], [0, 0, 1, 1], [], []>} : vector<10x12xbf16>, vector<12x32xbf16>, vector<10x32xf32> -> vector<10x32xf32>
    %389 = vector.extract_strided_slice %293 {offsets = [0, 3], sizes = [10, 1], strides = [1, 1]} : vector<10x8xf32> to vector<10x1xf32>
    %390 = vector.extract_strided_slice %298 {offsets = [3, 0], sizes = [1, 12], strides = [1, 1]} : vector<8x12xf32> to vector<1x12xf32>
    %391 = vector.broadcast %389 : vector<10x1xf32> to vector<10x12xf32>
    %392 = vector.broadcast %390 : vector<1x12xf32> to vector<10x12xf32>
    %393 = arith.addf %391, %392 : vector<10x12xf32>
    %cst_137 = arith.constant 0.000000e+00 : f32
    %394 = vector.broadcast %cst_137 : f32 to vector<10x12xf32>
    %395 = arith.cmpf oge, %393, %394 : vector<10x12xf32>
    %cst_138 = arith.constant 2.000000e-01 : f32
    %396 = vector.broadcast %cst_138 : f32 to vector<10x12xf32>
    %397 = arith.mulf %396, %393 : vector<10x12xf32>
    %398 = arith.select %395, %393, %397 : vector<10x12xi1>, vector<10x12xf32>
    %cst_139 = arith.constant -1.000000e+30 : f32
    %399 = vector.broadcast %cst_139 : f32 to vector<10x12xf32>
    %400 = arith.select %301, %398, %399 : vector<10x12xi1>, vector<10x12xf32>
    %cst_140 = arith.constant dense<0xFF800000> : vector<10xf32>
    %401 = vector.multi_reduction <maximumf>, %400, %cst_140 [1] : vector<10x12xf32> to vector<10xf32>
    %402 = vector.shape_cast %401 : vector<10xf32> to vector<10x1xf32>
    %403 = vector.broadcast %402 : vector<10x1xf32> to vector<10x12xf32>
    %404 = arith.subf %400, %403 : vector<10x12xf32>
    %405 = math.exp %404 : vector<10x12xf32>
    %cst_141 = arith.constant 0.000000e+00 : f32
    %406 = vector.broadcast %cst_141 : f32 to vector<10x12xf32>
    %407 = arith.select %301, %405, %406 : vector<10x12xi1>, vector<10x12xf32>
    %cst_142 = arith.constant dense<0.000000e+00> : vector<10xf32>
    %408 = vector.multi_reduction <add>, %407, %cst_142 [1] : vector<10x12xf32> to vector<10xf32>
    %409 = vector.shape_cast %408 : vector<10xf32> to vector<10x1xf32>
    %cst_143 = arith.constant 1.000000e-16 : f32
    %410 = vector.broadcast %cst_143 : f32 to vector<10x1xf32>
    %411 = arith.maximumf %409, %410 : vector<10x1xf32>
    %412 = vector.broadcast %411 : vector<10x1xf32> to vector<10x12xf32>
    %413 = arith.divf %407, %412 : vector<10x12xf32>
    %414 = vector.extract_strided_slice %289 {offsets = [0, 96], sizes = [12, 32], strides = [1, 1]} : vector<12x256xf32> to vector<12x32xf32>
    %415 = arith.truncf %413 : vector<10x12xf32> to vector<10x12xbf16>
    %416 = arith.truncf %414 : vector<12x32xf32> to vector<12x32xbf16>
    %cst_144 = arith.constant dense<0.000000e+00> : vector<10x32xf32>
    %417 = tpu.matmul %415, %416, %cst_144 {dimension_numbers = #tpu.dot_dimension_numbers<[1], [0], [0], [1], [0, 0, 1, 1], [], []>} : vector<10x12xbf16>, vector<12x32xbf16>, vector<10x32xf32> -> vector<10x32xf32>
    %418 = vector.extract_strided_slice %293 {offsets = [0, 4], sizes = [10, 1], strides = [1, 1]} : vector<10x8xf32> to vector<10x1xf32>
    %419 = vector.extract_strided_slice %298 {offsets = [4, 0], sizes = [1, 12], strides = [1, 1]} : vector<8x12xf32> to vector<1x12xf32>
    %420 = vector.broadcast %418 : vector<10x1xf32> to vector<10x12xf32>
    %421 = vector.broadcast %419 : vector<1x12xf32> to vector<10x12xf32>
    %422 = arith.addf %420, %421 : vector<10x12xf32>
    %cst_145 = arith.constant 0.000000e+00 : f32
    %423 = vector.broadcast %cst_145 : f32 to vector<10x12xf32>
    %424 = arith.cmpf oge, %422, %423 : vector<10x12xf32>
    %cst_146 = arith.constant 2.000000e-01 : f32
    %425 = vector.broadcast %cst_146 : f32 to vector<10x12xf32>
    %426 = arith.mulf %425, %422 : vector<10x12xf32>
    %427 = arith.select %424, %422, %426 : vector<10x12xi1>, vector<10x12xf32>
    %cst_147 = arith.constant -1.000000e+30 : f32
    %428 = vector.broadcast %cst_147 : f32 to vector<10x12xf32>
    %429 = arith.select %301, %427, %428 : vector<10x12xi1>, vector<10x12xf32>
    %cst_148 = arith.constant dense<0xFF800000> : vector<10xf32>
    %430 = vector.multi_reduction <maximumf>, %429, %cst_148 [1] : vector<10x12xf32> to vector<10xf32>
    %431 = vector.shape_cast %430 : vector<10xf32> to vector<10x1xf32>
    %432 = vector.broadcast %431 : vector<10x1xf32> to vector<10x12xf32>
    %433 = arith.subf %429, %432 : vector<10x12xf32>
    %434 = math.exp %433 : vector<10x12xf32>
    %cst_149 = arith.constant 0.000000e+00 : f32
    %435 = vector.broadcast %cst_149 : f32 to vector<10x12xf32>
    %436 = arith.select %301, %434, %435 : vector<10x12xi1>, vector<10x12xf32>
    %cst_150 = arith.constant dense<0.000000e+00> : vector<10xf32>
    %437 = vector.multi_reduction <add>, %436, %cst_150 [1] : vector<10x12xf32> to vector<10xf32>
    %438 = vector.shape_cast %437 : vector<10xf32> to vector<10x1xf32>
    %cst_151 = arith.constant 1.000000e-16 : f32
    %439 = vector.broadcast %cst_151 : f32 to vector<10x1xf32>
    %440 = arith.maximumf %438, %439 : vector<10x1xf32>
    %441 = vector.broadcast %440 : vector<10x1xf32> to vector<10x12xf32>
    %442 = arith.divf %436, %441 : vector<10x12xf32>
    %443 = vector.extract_strided_slice %289 {offsets = [0, 128], sizes = [12, 32], strides = [1, 1]} : vector<12x256xf32> to vector<12x32xf32>
    %444 = arith.truncf %442 : vector<10x12xf32> to vector<10x12xbf16>
    %445 = arith.truncf %443 : vector<12x32xf32> to vector<12x32xbf16>
    %cst_152 = arith.constant dense<0.000000e+00> : vector<10x32xf32>
    %446 = tpu.matmul %444, %445, %cst_152 {dimension_numbers = #tpu.dot_dimension_numbers<[1], [0], [0], [1], [0, 0, 1, 1], [], []>} : vector<10x12xbf16>, vector<12x32xbf16>, vector<10x32xf32> -> vector<10x32xf32>
    %447 = vector.extract_strided_slice %293 {offsets = [0, 5], sizes = [10, 1], strides = [1, 1]} : vector<10x8xf32> to vector<10x1xf32>
    %448 = vector.extract_strided_slice %298 {offsets = [5, 0], sizes = [1, 12], strides = [1, 1]} : vector<8x12xf32> to vector<1x12xf32>
    %449 = vector.broadcast %447 : vector<10x1xf32> to vector<10x12xf32>
    %450 = vector.broadcast %448 : vector<1x12xf32> to vector<10x12xf32>
    %451 = arith.addf %449, %450 : vector<10x12xf32>
    %cst_153 = arith.constant 0.000000e+00 : f32
    %452 = vector.broadcast %cst_153 : f32 to vector<10x12xf32>
    %453 = arith.cmpf oge, %451, %452 : vector<10x12xf32>
    %cst_154 = arith.constant 2.000000e-01 : f32
    %454 = vector.broadcast %cst_154 : f32 to vector<10x12xf32>
    %455 = arith.mulf %454, %451 : vector<10x12xf32>
    %456 = arith.select %453, %451, %455 : vector<10x12xi1>, vector<10x12xf32>
    %cst_155 = arith.constant -1.000000e+30 : f32
    %457 = vector.broadcast %cst_155 : f32 to vector<10x12xf32>
    %458 = arith.select %301, %456, %457 : vector<10x12xi1>, vector<10x12xf32>
    %cst_156 = arith.constant dense<0xFF800000> : vector<10xf32>
    %459 = vector.multi_reduction <maximumf>, %458, %cst_156 [1] : vector<10x12xf32> to vector<10xf32>
    %460 = vector.shape_cast %459 : vector<10xf32> to vector<10x1xf32>
    %461 = vector.broadcast %460 : vector<10x1xf32> to vector<10x12xf32>
    %462 = arith.subf %458, %461 : vector<10x12xf32>
    %463 = math.exp %462 : vector<10x12xf32>
    %cst_157 = arith.constant 0.000000e+00 : f32
    %464 = vector.broadcast %cst_157 : f32 to vector<10x12xf32>
    %465 = arith.select %301, %463, %464 : vector<10x12xi1>, vector<10x12xf32>
    %cst_158 = arith.constant dense<0.000000e+00> : vector<10xf32>
    %466 = vector.multi_reduction <add>, %465, %cst_158 [1] : vector<10x12xf32> to vector<10xf32>
    %467 = vector.shape_cast %466 : vector<10xf32> to vector<10x1xf32>
    %cst_159 = arith.constant 1.000000e-16 : f32
    %468 = vector.broadcast %cst_159 : f32 to vector<10x1xf32>
    %469 = arith.maximumf %467, %468 : vector<10x1xf32>
    %470 = vector.broadcast %469 : vector<10x1xf32> to vector<10x12xf32>
    %471 = arith.divf %465, %470 : vector<10x12xf32>
    %472 = vector.extract_strided_slice %289 {offsets = [0, 160], sizes = [12, 32], strides = [1, 1]} : vector<12x256xf32> to vector<12x32xf32>
    %473 = arith.truncf %471 : vector<10x12xf32> to vector<10x12xbf16>
    %474 = arith.truncf %472 : vector<12x32xf32> to vector<12x32xbf16>
    %cst_160 = arith.constant dense<0.000000e+00> : vector<10x32xf32>
    %475 = tpu.matmul %473, %474, %cst_160 {dimension_numbers = #tpu.dot_dimension_numbers<[1], [0], [0], [1], [0, 0, 1, 1], [], []>} : vector<10x12xbf16>, vector<12x32xbf16>, vector<10x32xf32> -> vector<10x32xf32>
    %476 = vector.extract_strided_slice %293 {offsets = [0, 6], sizes = [10, 1], strides = [1, 1]} : vector<10x8xf32> to vector<10x1xf32>
    %477 = vector.extract_strided_slice %298 {offsets = [6, 0], sizes = [1, 12], strides = [1, 1]} : vector<8x12xf32> to vector<1x12xf32>
    %478 = vector.broadcast %476 : vector<10x1xf32> to vector<10x12xf32>
    %479 = vector.broadcast %477 : vector<1x12xf32> to vector<10x12xf32>
    %480 = arith.addf %478, %479 : vector<10x12xf32>
    %cst_161 = arith.constant 0.000000e+00 : f32
    %481 = vector.broadcast %cst_161 : f32 to vector<10x12xf32>
    %482 = arith.cmpf oge, %480, %481 : vector<10x12xf32>
    %cst_162 = arith.constant 2.000000e-01 : f32
    %483 = vector.broadcast %cst_162 : f32 to vector<10x12xf32>
    %484 = arith.mulf %483, %480 : vector<10x12xf32>
    %485 = arith.select %482, %480, %484 : vector<10x12xi1>, vector<10x12xf32>
    %cst_163 = arith.constant -1.000000e+30 : f32
    %486 = vector.broadcast %cst_163 : f32 to vector<10x12xf32>
    %487 = arith.select %301, %485, %486 : vector<10x12xi1>, vector<10x12xf32>
    %cst_164 = arith.constant dense<0xFF800000> : vector<10xf32>
    %488 = vector.multi_reduction <maximumf>, %487, %cst_164 [1] : vector<10x12xf32> to vector<10xf32>
    %489 = vector.shape_cast %488 : vector<10xf32> to vector<10x1xf32>
    %490 = vector.broadcast %489 : vector<10x1xf32> to vector<10x12xf32>
    %491 = arith.subf %487, %490 : vector<10x12xf32>
    %492 = math.exp %491 : vector<10x12xf32>
    %cst_165 = arith.constant 0.000000e+00 : f32
    %493 = vector.broadcast %cst_165 : f32 to vector<10x12xf32>
    %494 = arith.select %301, %492, %493 : vector<10x12xi1>, vector<10x12xf32>
    %cst_166 = arith.constant dense<0.000000e+00> : vector<10xf32>
    %495 = vector.multi_reduction <add>, %494, %cst_166 [1] : vector<10x12xf32> to vector<10xf32>
    %496 = vector.shape_cast %495 : vector<10xf32> to vector<10x1xf32>
    %cst_167 = arith.constant 1.000000e-16 : f32
    %497 = vector.broadcast %cst_167 : f32 to vector<10x1xf32>
    %498 = arith.maximumf %496, %497 : vector<10x1xf32>
    %499 = vector.broadcast %498 : vector<10x1xf32> to vector<10x12xf32>
    %500 = arith.divf %494, %499 : vector<10x12xf32>
    %501 = vector.extract_strided_slice %289 {offsets = [0, 192], sizes = [12, 32], strides = [1, 1]} : vector<12x256xf32> to vector<12x32xf32>
    %502 = arith.truncf %500 : vector<10x12xf32> to vector<10x12xbf16>
    %503 = arith.truncf %501 : vector<12x32xf32> to vector<12x32xbf16>
    %cst_168 = arith.constant dense<0.000000e+00> : vector<10x32xf32>
    %504 = tpu.matmul %502, %503, %cst_168 {dimension_numbers = #tpu.dot_dimension_numbers<[1], [0], [0], [1], [0, 0, 1, 1], [], []>} : vector<10x12xbf16>, vector<12x32xbf16>, vector<10x32xf32> -> vector<10x32xf32>
    %505 = vector.extract_strided_slice %293 {offsets = [0, 7], sizes = [10, 1], strides = [1, 1]} : vector<10x8xf32> to vector<10x1xf32>
    %506 = vector.extract_strided_slice %298 {offsets = [7, 0], sizes = [1, 12], strides = [1, 1]} : vector<8x12xf32> to vector<1x12xf32>
    %507 = vector.broadcast %505 : vector<10x1xf32> to vector<10x12xf32>
    %508 = vector.broadcast %506 : vector<1x12xf32> to vector<10x12xf32>
    %509 = arith.addf %507, %508 : vector<10x12xf32>
    %cst_169 = arith.constant 0.000000e+00 : f32
    %510 = vector.broadcast %cst_169 : f32 to vector<10x12xf32>
    %511 = arith.cmpf oge, %509, %510 : vector<10x12xf32>
    %cst_170 = arith.constant 2.000000e-01 : f32
    %512 = vector.broadcast %cst_170 : f32 to vector<10x12xf32>
    %513 = arith.mulf %512, %509 : vector<10x12xf32>
    %514 = arith.select %511, %509, %513 : vector<10x12xi1>, vector<10x12xf32>
    %cst_171 = arith.constant -1.000000e+30 : f32
    %515 = vector.broadcast %cst_171 : f32 to vector<10x12xf32>
    %516 = arith.select %301, %514, %515 : vector<10x12xi1>, vector<10x12xf32>
    %cst_172 = arith.constant dense<0xFF800000> : vector<10xf32>
    %517 = vector.multi_reduction <maximumf>, %516, %cst_172 [1] : vector<10x12xf32> to vector<10xf32>
    %518 = vector.shape_cast %517 : vector<10xf32> to vector<10x1xf32>
    %519 = vector.broadcast %518 : vector<10x1xf32> to vector<10x12xf32>
    %520 = arith.subf %516, %519 : vector<10x12xf32>
    %521 = math.exp %520 : vector<10x12xf32>
    %cst_173 = arith.constant 0.000000e+00 : f32
    %522 = vector.broadcast %cst_173 : f32 to vector<10x12xf32>
    %523 = arith.select %301, %521, %522 : vector<10x12xi1>, vector<10x12xf32>
    %cst_174 = arith.constant dense<0.000000e+00> : vector<10xf32>
    %524 = vector.multi_reduction <add>, %523, %cst_174 [1] : vector<10x12xf32> to vector<10xf32>
    %525 = vector.shape_cast %524 : vector<10xf32> to vector<10x1xf32>
    %cst_175 = arith.constant 1.000000e-16 : f32
    %526 = vector.broadcast %cst_175 : f32 to vector<10x1xf32>
    %527 = arith.maximumf %525, %526 : vector<10x1xf32>
    %528 = vector.broadcast %527 : vector<10x1xf32> to vector<10x12xf32>
    %529 = arith.divf %523, %528 : vector<10x12xf32>
    %530 = vector.extract_strided_slice %289 {offsets = [0, 224], sizes = [12, 32], strides = [1, 1]} : vector<12x256xf32> to vector<12x32xf32>
    %531 = arith.truncf %529 : vector<10x12xf32> to vector<10x12xbf16>
    %532 = arith.truncf %530 : vector<12x32xf32> to vector<12x32xbf16>
    %cst_176 = arith.constant dense<0.000000e+00> : vector<10x32xf32>
    %533 = tpu.matmul %531, %532, %cst_176 {dimension_numbers = #tpu.dot_dimension_numbers<[1], [0], [0], [1], [0, 0, 1, 1], [], []>} : vector<10x12xbf16>, vector<12x32xbf16>, vector<10x32xf32> -> vector<10x32xf32>
    %534 = tpu.concatenate %330, %359, %388, %417, %446, %475, %504, %533 in 1 : vector<10x32xf32>, vector<10x32xf32>, vector<10x32xf32>, vector<10x32xf32>, vector<10x32xf32>, vector<10x32xf32>, vector<10x32xf32>, vector<10x32xf32> -> vector<10x256xf32>
    %c0_177 = arith.constant 0 : index
    %c0_178 = arith.constant 0 : index
    %535 = vector.load %arg14[%c0_177, %c0_178] : memref<1x256xf32, #tpu.memory_space<vmem>>, vector<1x256xf32>
    %536 = vector.broadcast %535 : vector<1x256xf32> to vector<10x256xf32>
    %537 = arith.addf %534, %536 : vector<10x256xf32>
    %cst_179 = arith.constant 0.000000e+00 : f32
    %538 = vector.broadcast %cst_179 : f32 to vector<10x256xf32>
    %539 = arith.maximumf %537, %538 : vector<10x256xf32>
    %c0_180 = arith.constant 0 : index
    %c0_181 = arith.constant 0 : index
    %540 = vector.load %arg15[%c0_180, %c0_181] : memref<256x32xbf16, #tpu.memory_space<vmem>>, vector<256x32xbf16>
    %541 = arith.truncf %287 : vector<12x256xf32> to vector<12x256xbf16>
    %cst_182 = arith.constant dense<0.000000e+00> : vector<12x32xf32>
    %542 = tpu.matmul %541, %540, %cst_182 {dimension_numbers = #tpu.dot_dimension_numbers<[1], [0], [0], [1], [0, 0, 1, 1], [], []>} : vector<12x256xbf16>, vector<256x32xbf16>, vector<12x32xf32> -> vector<12x32xf32>
    %c0_183 = arith.constant 0 : index
    %c0_184 = arith.constant 0 : index
    %543 = vector.load %arg16[%c0_183, %c0_184] : memref<1x32xf32, #tpu.memory_space<vmem>>, vector<1x32xf32>
    %544 = vector.broadcast %543 : vector<1x32xf32> to vector<12x32xf32>
    %545 = arith.addf %542, %544 : vector<12x32xf32>
    %cst_185 = arith.constant 0.000000e+00 : f32
    %546 = vector.broadcast %cst_185 : f32 to vector<12x32xf32>
    %547 = arith.maximumf %545, %546 : vector<12x32xf32>
    %c0_186 = arith.constant 0 : index
    %c0_187 = arith.constant 0 : index
    %548 = vector.load %arg19[%c0_186, %c0_187] : memref<12x32xf32, #tpu.memory_space<vmem>>, vector<12x32xf32>
    tpu.vector_store %arg19[%c0_186, %c0_187], %547 {strides = array<i32>} : memref<12x32xf32, #tpu.memory_space<vmem>>, vector<12x32xf32>,
    %c0_188 = arith.constant 0 : index
    %c0_189 = arith.constant 0 : index
    %549 = vector.load %arg17[%c0_188, %c0_189] : memref<256x32xbf16, #tpu.memory_space<vmem>>, vector<256x32xbf16>
    %550 = arith.truncf %539 : vector<10x256xf32> to vector<10x256xbf16>
    %cst_190 = arith.constant dense<0.000000e+00> : vector<10x32xf32>
    %551 = tpu.matmul %550, %549, %cst_190 {dimension_numbers = #tpu.dot_dimension_numbers<[1], [0], [0], [1], [0, 0, 1, 1], [], []>} : vector<10x256xbf16>, vector<256x32xbf16>, vector<10x32xf32> -> vector<10x32xf32>
    %c0_191 = arith.constant 0 : index
    %c0_192 = arith.constant 0 : index
    %552 = vector.load %arg18[%c0_191, %c0_192] : memref<1x32xf32, #tpu.memory_space<vmem>>, vector<1x32xf32>
    %553 = vector.broadcast %552 : vector<1x32xf32> to vector<10x32xf32>
    %554 = arith.addf %551, %553 : vector<10x32xf32>
    %cst_193 = arith.constant 0.000000e+00 : f32
    %555 = vector.broadcast %cst_193 : f32 to vector<10x32xf32>
    %556 = arith.maximumf %554, %555 : vector<10x32xf32>
    %c0_194 = arith.constant 0 : index
    %c0_195 = arith.constant 0 : index
    %557 = vector.load %arg20[%c0_194, %c0_195] : memref<10x32xf32, #tpu.memory_space<vmem>>, vector<10x32xf32>
    tpu.vector_store %arg20[%c0_194, %c0_195], %556 {strides = array<i32>} : memref<10x32xf32, #tpu.memory_space<vmem>>, vector<10x32xf32>,
    return
  }
}

module attributes {stable_mosaic.version = 11 : i64} {
  func.func @_sage_transformer_skip_kernel(%arg0: memref<12x32xf32, #tpu.memory_space<vmem>>, %arg1: memref<10x32xf32, #tpu.memory_space<vmem>>, %arg2: memref<12x10xbf16, #tpu.memory_space<vmem>>, %arg3: memref<10x12xbf16, #tpu.memory_space<vmem>>, %arg4: memref<12x10xbf16, #tpu.memory_space<vmem>>, %arg5: memref<10x12xbf16, #tpu.memory_space<vmem>>, %arg6: memref<64x32xbf16, #tpu.memory_space<vmem>>, %arg7: memref<1x32xf32, #tpu.memory_space<vmem>>, %arg8: memref<64x32xbf16, #tpu.memory_space<vmem>>, %arg9: memref<1x32xf32, #tpu.memory_space<vmem>>, %arg10: memref<32x256xbf16, #tpu.memory_space<vmem>>, %arg11: memref<1x256xf32, #tpu.memory_space<vmem>>, %arg12: memref<32x256xbf16, #tpu.memory_space<vmem>>, %arg13: memref<1x256xf32, #tpu.memory_space<vmem>>, %arg14: memref<32x256xbf16, #tpu.memory_space<vmem>>, %arg15: memref<1x256xf32, #tpu.memory_space<vmem>>, %arg16: memref<32x256xbf16, #tpu.memory_space<vmem>>, %arg17: memref<1x256xf32, #tpu.memory_space<vmem>>, %arg18: memref<128x32xbf16, #tpu.memory_space<vmem>>, %arg19: memref<1x32xf32, #tpu.memory_space<vmem>>, %arg20: memref<128x32xbf16, #tpu.memory_space<vmem>>, %arg21: memref<1x32xf32, #tpu.memory_space<vmem>>, %arg22: memref<12x32xf32, #tpu.memory_space<vmem>>, %arg23: memref<10x32xf32, #tpu.memory_space<vmem>>) attributes {dimension_semantics = [], scalar_prefetch = 0 : i64, scratch_operands = 0 : i64, tpu.core_type = #tpu.core_type<tc>} {
    %c0 = arith.constant 0 : index
    %c0_0 = arith.constant 0 : index
    %0 = vector.load %arg0[%c0, %c0_0] : memref<12x32xf32, #tpu.memory_space<vmem>>, vector<12x32xf32>
    %c0_1 = arith.constant 0 : index
    %c0_2 = arith.constant 0 : index
    %1 = vector.load %arg1[%c0_1, %c0_2] : memref<10x32xf32, #tpu.memory_space<vmem>>, vector<10x32xf32>
    %c0_3 = arith.constant 0 : index
    %c0_4 = arith.constant 0 : index
    %2 = vector.load %arg2[%c0_3, %c0_4] : memref<12x10xbf16, #tpu.memory_space<vmem>>, vector<12x10xbf16>
    %c0_5 = arith.constant 0 : index
    %c0_6 = arith.constant 0 : index
    %3 = vector.load %arg6[%c0_5, %c0_6] : memref<64x32xbf16, #tpu.memory_space<vmem>>, vector<64x32xbf16>
    %c0_7 = arith.constant 0 : index
    %c0_8 = arith.constant 0 : index
    %4 = vector.load %arg7[%c0_7, %c0_8] : memref<1x32xf32, #tpu.memory_space<vmem>>, vector<1x32xf32>
    %5 = arith.truncf %1 : vector<10x32xf32> to vector<10x32xbf16>
    %cst = arith.constant dense<0.000000e+00> : vector<12x32xf32>
    %6 = tpu.matmul %2, %5, %cst {dimension_numbers = #tpu.dot_dimension_numbers<[1], [0], [0], [1], [0, 0, 1, 1], [], []>} : vector<12x10xbf16>, vector<10x32xbf16>, vector<12x32xf32> -> vector<12x32xf32>
    %7 = tpu.concatenate %6, %0 in 1 : vector<12x32xf32>, vector<12x32xf32> -> vector<12x64xf32>
    %8 = arith.truncf %7 : vector<12x64xf32> to vector<12x64xbf16>
    %cst_9 = arith.constant dense<0.000000e+00> : vector<12x32xf32>
    %9 = tpu.matmul %8, %3, %cst_9 {dimension_numbers = #tpu.dot_dimension_numbers<[1], [0], [0], [1], [0, 0, 1, 1], [], []>} : vector<12x64xbf16>, vector<64x32xbf16>, vector<12x32xf32> -> vector<12x32xf32>
    %10 = vector.broadcast %4 : vector<1x32xf32> to vector<12x32xf32>
    %11 = arith.addf %9, %10 : vector<12x32xf32>
    %cst_10 = arith.constant 0.000000e+00 : f32
    %12 = vector.broadcast %cst_10 : f32 to vector<12x32xf32>
    %13 = arith.maximumf %11, %12 : vector<12x32xf32>
    %c0_11 = arith.constant 0 : index
    %c0_12 = arith.constant 0 : index
    %14 = vector.load %arg3[%c0_11, %c0_12] : memref<10x12xbf16, #tpu.memory_space<vmem>>, vector<10x12xbf16>
    %c0_13 = arith.constant 0 : index
    %c0_14 = arith.constant 0 : index
    %15 = vector.load %arg8[%c0_13, %c0_14] : memref<64x32xbf16, #tpu.memory_space<vmem>>, vector<64x32xbf16>
    %c0_15 = arith.constant 0 : index
    %c0_16 = arith.constant 0 : index
    %16 = vector.load %arg9[%c0_15, %c0_16] : memref<1x32xf32, #tpu.memory_space<vmem>>, vector<1x32xf32>
    %17 = arith.truncf %0 : vector<12x32xf32> to vector<12x32xbf16>
    %cst_17 = arith.constant dense<0.000000e+00> : vector<10x32xf32>
    %18 = tpu.matmul %14, %17, %cst_17 {dimension_numbers = #tpu.dot_dimension_numbers<[1], [0], [0], [1], [0, 0, 1, 1], [], []>} : vector<10x12xbf16>, vector<12x32xbf16>, vector<10x32xf32> -> vector<10x32xf32>
    %19 = tpu.concatenate %18, %1 in 1 : vector<10x32xf32>, vector<10x32xf32> -> vector<10x64xf32>
    %20 = arith.truncf %19 : vector<10x64xf32> to vector<10x64xbf16>
    %cst_18 = arith.constant dense<0.000000e+00> : vector<10x32xf32>
    %21 = tpu.matmul %20, %15, %cst_18 {dimension_numbers = #tpu.dot_dimension_numbers<[1], [0], [0], [1], [0, 0, 1, 1], [], []>} : vector<10x64xbf16>, vector<64x32xbf16>, vector<10x32xf32> -> vector<10x32xf32>
    %22 = vector.broadcast %16 : vector<1x32xf32> to vector<10x32xf32>
    %23 = arith.addf %21, %22 : vector<10x32xf32>
    %cst_19 = arith.constant 0.000000e+00 : f32
    %24 = vector.broadcast %cst_19 : f32 to vector<10x32xf32>
    %25 = arith.maximumf %23, %24 : vector<10x32xf32>
    %c0_20 = arith.constant 0 : index
    %c0_21 = arith.constant 0 : index
    %26 = vector.load %arg10[%c0_20, %c0_21] : memref<32x256xbf16, #tpu.memory_space<vmem>>, vector<32x256xbf16>
    %27 = arith.truncf %13 : vector<12x32xf32> to vector<12x32xbf16>
    %cst_22 = arith.constant dense<0.000000e+00> : vector<12x256xf32>
    %28 = tpu.matmul %27, %26, %cst_22 {dimension_numbers = #tpu.dot_dimension_numbers<[1], [0], [0], [1], [0, 0, 1, 1], [], []>} : vector<12x32xbf16>, vector<32x256xbf16>, vector<12x256xf32> -> vector<12x256xf32>
    %c0_23 = arith.constant 0 : index
    %c0_24 = arith.constant 0 : index
    %29 = vector.load %arg11[%c0_23, %c0_24] : memref<1x256xf32, #tpu.memory_space<vmem>>, vector<1x256xf32>
    %30 = vector.broadcast %29 : vector<1x256xf32> to vector<12x256xf32>
    %31 = arith.addf %28, %30 : vector<12x256xf32>
    %c0_25 = arith.constant 0 : index
    %c0_26 = arith.constant 0 : index
    %32 = vector.load %arg12[%c0_25, %c0_26] : memref<32x256xbf16, #tpu.memory_space<vmem>>, vector<32x256xbf16>
    %33 = arith.truncf %25 : vector<10x32xf32> to vector<10x32xbf16>
    %cst_27 = arith.constant dense<0.000000e+00> : vector<10x256xf32>
    %34 = tpu.matmul %33, %32, %cst_27 {dimension_numbers = #tpu.dot_dimension_numbers<[1], [0], [0], [1], [0, 0, 1, 1], [], []>} : vector<10x32xbf16>, vector<32x256xbf16>, vector<10x256xf32> -> vector<10x256xf32>
    %c0_28 = arith.constant 0 : index
    %c0_29 = arith.constant 0 : index
    %35 = vector.load %arg13[%c0_28, %c0_29] : memref<1x256xf32, #tpu.memory_space<vmem>>, vector<1x256xf32>
    %36 = vector.broadcast %35 : vector<1x256xf32> to vector<10x256xf32>
    %37 = arith.addf %34, %36 : vector<10x256xf32>
    %38 = vector.extract_strided_slice %31 {offsets = [0, 0], sizes = [12, 128], strides = [1, 1]} : vector<12x256xf32> to vector<12x128xf32>
    %39 = vector.extract_strided_slice %31 {offsets = [0, 128], sizes = [12, 128], strides = [1, 1]} : vector<12x256xf32> to vector<12x128xf32>
    %40 = vector.extract_strided_slice %37 {offsets = [0, 0], sizes = [10, 128], strides = [1, 1]} : vector<10x256xf32> to vector<10x128xf32>
    %41 = vector.extract_strided_slice %37 {offsets = [0, 128], sizes = [10, 128], strides = [1, 1]} : vector<10x256xf32> to vector<10x128xf32>
    %c0_30 = arith.constant 0 : index
    %c0_31 = arith.constant 0 : index
    %42 = vector.load %arg4[%c0_30, %c0_31] : memref<12x10xbf16, #tpu.memory_space<vmem>>, vector<12x10xbf16>
    %cst_32 = arith.constant 0.000000e+00 : bf16
    %43 = vector.broadcast %cst_32 : bf16 to vector<12x10xbf16>
    %44 = arith.cmpf ogt, %42, %43 : vector<12x10xbf16>
    %45 = vector.extract_strided_slice %38 {offsets = [0, 0], sizes = [12, 32], strides = [1, 1]} : vector<12x128xf32> to vector<12x32xf32>
    %46 = vector.extract_strided_slice %40 {offsets = [0, 0], sizes = [10, 32], strides = [1, 1]} : vector<10x128xf32> to vector<10x32xf32>
    %47 = vector.extract_strided_slice %41 {offsets = [0, 0], sizes = [10, 32], strides = [1, 1]} : vector<10x128xf32> to vector<10x32xf32>
    %48 = arith.truncf %45 : vector<12x32xf32> to vector<12x32xbf16>
    %49 = arith.truncf %46 : vector<10x32xf32> to vector<10x32xbf16>
    %cst_33 = arith.constant dense<0.000000e+00> : vector<12x10xf32>
    %50 = tpu.matmul %48, %49, %cst_33 {dimension_numbers = #tpu.dot_dimension_numbers<[1], [1], [0], [0], [0, 0, 1, 0], [], []>} : vector<12x32xbf16>, vector<10x32xbf16>, vector<12x10xf32> -> vector<12x10xf32>
    %cst_34 = arith.constant 0.176776692 : f32
    %51 = vector.broadcast %cst_34 : f32 to vector<12x10xf32>
    %52 = arith.mulf %50, %51 : vector<12x10xf32>
    %cst_35 = arith.constant -1.000000e+30 : f32
    %53 = vector.broadcast %cst_35 : f32 to vector<12x10xf32>
    %54 = arith.select %44, %52, %53 : vector<12x10xi1>, vector<12x10xf32>
    %cst_36 = arith.constant dense<0xFF800000> : vector<12xf32>
    %55 = vector.multi_reduction <maximumf>, %54, %cst_36 [1] : vector<12x10xf32> to vector<12xf32>
    %56 = vector.shape_cast %55 : vector<12xf32> to vector<12x1xf32>
    %57 = vector.broadcast %56 : vector<12x1xf32> to vector<12x10xf32>
    %58 = arith.subf %54, %57 : vector<12x10xf32>
    %59 = math.exp %58 : vector<12x10xf32>
    %cst_37 = arith.constant 0.000000e+00 : f32
    %60 = vector.broadcast %cst_37 : f32 to vector<12x10xf32>
    %61 = arith.select %44, %59, %60 : vector<12x10xi1>, vector<12x10xf32>
    %cst_38 = arith.constant dense<0.000000e+00> : vector<12xf32>
    %62 = vector.multi_reduction <add>, %61, %cst_38 [1] : vector<12x10xf32> to vector<12xf32>
    %63 = vector.shape_cast %62 : vector<12xf32> to vector<12x1xf32>
    %cst_39 = arith.constant 1.000000e-16 : f32
    %64 = vector.broadcast %cst_39 : f32 to vector<12x1xf32>
    %65 = arith.maximumf %63, %64 : vector<12x1xf32>
    %66 = vector.broadcast %65 : vector<12x1xf32> to vector<12x10xf32>
    %67 = arith.divf %61, %66 : vector<12x10xf32>
    %68 = arith.truncf %67 : vector<12x10xf32> to vector<12x10xbf16>
    %69 = arith.truncf %47 : vector<10x32xf32> to vector<10x32xbf16>
    %cst_40 = arith.constant dense<0.000000e+00> : vector<12x32xf32>
    %70 = tpu.matmul %68, %69, %cst_40 {dimension_numbers = #tpu.dot_dimension_numbers<[1], [0], [0], [1], [0, 0, 1, 1], [], []>} : vector<12x10xbf16>, vector<10x32xbf16>, vector<12x32xf32> -> vector<12x32xf32>
    %71 = vector.extract_strided_slice %38 {offsets = [0, 32], sizes = [12, 32], strides = [1, 1]} : vector<12x128xf32> to vector<12x32xf32>
    %72 = vector.extract_strided_slice %40 {offsets = [0, 32], sizes = [10, 32], strides = [1, 1]} : vector<10x128xf32> to vector<10x32xf32>
    %73 = vector.extract_strided_slice %41 {offsets = [0, 32], sizes = [10, 32], strides = [1, 1]} : vector<10x128xf32> to vector<10x32xf32>
    %74 = arith.truncf %71 : vector<12x32xf32> to vector<12x32xbf16>
    %75 = arith.truncf %72 : vector<10x32xf32> to vector<10x32xbf16>
    %cst_41 = arith.constant dense<0.000000e+00> : vector<12x10xf32>
    %76 = tpu.matmul %74, %75, %cst_41 {dimension_numbers = #tpu.dot_dimension_numbers<[1], [1], [0], [0], [0, 0, 1, 0], [], []>} : vector<12x32xbf16>, vector<10x32xbf16>, vector<12x10xf32> -> vector<12x10xf32>
    %cst_42 = arith.constant 0.176776692 : f32
    %77 = vector.broadcast %cst_42 : f32 to vector<12x10xf32>
    %78 = arith.mulf %76, %77 : vector<12x10xf32>
    %cst_43 = arith.constant -1.000000e+30 : f32
    %79 = vector.broadcast %cst_43 : f32 to vector<12x10xf32>
    %80 = arith.select %44, %78, %79 : vector<12x10xi1>, vector<12x10xf32>
    %cst_44 = arith.constant dense<0xFF800000> : vector<12xf32>
    %81 = vector.multi_reduction <maximumf>, %80, %cst_44 [1] : vector<12x10xf32> to vector<12xf32>
    %82 = vector.shape_cast %81 : vector<12xf32> to vector<12x1xf32>
    %83 = vector.broadcast %82 : vector<12x1xf32> to vector<12x10xf32>
    %84 = arith.subf %80, %83 : vector<12x10xf32>
    %85 = math.exp %84 : vector<12x10xf32>
    %cst_45 = arith.constant 0.000000e+00 : f32
    %86 = vector.broadcast %cst_45 : f32 to vector<12x10xf32>
    %87 = arith.select %44, %85, %86 : vector<12x10xi1>, vector<12x10xf32>
    %cst_46 = arith.constant dense<0.000000e+00> : vector<12xf32>
    %88 = vector.multi_reduction <add>, %87, %cst_46 [1] : vector<12x10xf32> to vector<12xf32>
    %89 = vector.shape_cast %88 : vector<12xf32> to vector<12x1xf32>
    %cst_47 = arith.constant 1.000000e-16 : f32
    %90 = vector.broadcast %cst_47 : f32 to vector<12x1xf32>
    %91 = arith.maximumf %89, %90 : vector<12x1xf32>
    %92 = vector.broadcast %91 : vector<12x1xf32> to vector<12x10xf32>
    %93 = arith.divf %87, %92 : vector<12x10xf32>
    %94 = arith.truncf %93 : vector<12x10xf32> to vector<12x10xbf16>
    %95 = arith.truncf %73 : vector<10x32xf32> to vector<10x32xbf16>
    %cst_48 = arith.constant dense<0.000000e+00> : vector<12x32xf32>
    %96 = tpu.matmul %94, %95, %cst_48 {dimension_numbers = #tpu.dot_dimension_numbers<[1], [0], [0], [1], [0, 0, 1, 1], [], []>} : vector<12x10xbf16>, vector<10x32xbf16>, vector<12x32xf32> -> vector<12x32xf32>
    %97 = vector.extract_strided_slice %38 {offsets = [0, 64], sizes = [12, 32], strides = [1, 1]} : vector<12x128xf32> to vector<12x32xf32>
    %98 = vector.extract_strided_slice %40 {offsets = [0, 64], sizes = [10, 32], strides = [1, 1]} : vector<10x128xf32> to vector<10x32xf32>
    %99 = vector.extract_strided_slice %41 {offsets = [0, 64], sizes = [10, 32], strides = [1, 1]} : vector<10x128xf32> to vector<10x32xf32>
    %100 = arith.truncf %97 : vector<12x32xf32> to vector<12x32xbf16>
    %101 = arith.truncf %98 : vector<10x32xf32> to vector<10x32xbf16>
    %cst_49 = arith.constant dense<0.000000e+00> : vector<12x10xf32>
    %102 = tpu.matmul %100, %101, %cst_49 {dimension_numbers = #tpu.dot_dimension_numbers<[1], [1], [0], [0], [0, 0, 1, 0], [], []>} : vector<12x32xbf16>, vector<10x32xbf16>, vector<12x10xf32> -> vector<12x10xf32>
    %cst_50 = arith.constant 0.176776692 : f32
    %103 = vector.broadcast %cst_50 : f32 to vector<12x10xf32>
    %104 = arith.mulf %102, %103 : vector<12x10xf32>
    %cst_51 = arith.constant -1.000000e+30 : f32
    %105 = vector.broadcast %cst_51 : f32 to vector<12x10xf32>
    %106 = arith.select %44, %104, %105 : vector<12x10xi1>, vector<12x10xf32>
    %cst_52 = arith.constant dense<0xFF800000> : vector<12xf32>
    %107 = vector.multi_reduction <maximumf>, %106, %cst_52 [1] : vector<12x10xf32> to vector<12xf32>
    %108 = vector.shape_cast %107 : vector<12xf32> to vector<12x1xf32>
    %109 = vector.broadcast %108 : vector<12x1xf32> to vector<12x10xf32>
    %110 = arith.subf %106, %109 : vector<12x10xf32>
    %111 = math.exp %110 : vector<12x10xf32>
    %cst_53 = arith.constant 0.000000e+00 : f32
    %112 = vector.broadcast %cst_53 : f32 to vector<12x10xf32>
    %113 = arith.select %44, %111, %112 : vector<12x10xi1>, vector<12x10xf32>
    %cst_54 = arith.constant dense<0.000000e+00> : vector<12xf32>
    %114 = vector.multi_reduction <add>, %113, %cst_54 [1] : vector<12x10xf32> to vector<12xf32>
    %115 = vector.shape_cast %114 : vector<12xf32> to vector<12x1xf32>
    %cst_55 = arith.constant 1.000000e-16 : f32
    %116 = vector.broadcast %cst_55 : f32 to vector<12x1xf32>
    %117 = arith.maximumf %115, %116 : vector<12x1xf32>
    %118 = vector.broadcast %117 : vector<12x1xf32> to vector<12x10xf32>
    %119 = arith.divf %113, %118 : vector<12x10xf32>
    %120 = arith.truncf %119 : vector<12x10xf32> to vector<12x10xbf16>
    %121 = arith.truncf %99 : vector<10x32xf32> to vector<10x32xbf16>
    %cst_56 = arith.constant dense<0.000000e+00> : vector<12x32xf32>
    %122 = tpu.matmul %120, %121, %cst_56 {dimension_numbers = #tpu.dot_dimension_numbers<[1], [0], [0], [1], [0, 0, 1, 1], [], []>} : vector<12x10xbf16>, vector<10x32xbf16>, vector<12x32xf32> -> vector<12x32xf32>
    %123 = vector.extract_strided_slice %38 {offsets = [0, 96], sizes = [12, 32], strides = [1, 1]} : vector<12x128xf32> to vector<12x32xf32>
    %124 = vector.extract_strided_slice %40 {offsets = [0, 96], sizes = [10, 32], strides = [1, 1]} : vector<10x128xf32> to vector<10x32xf32>
    %125 = vector.extract_strided_slice %41 {offsets = [0, 96], sizes = [10, 32], strides = [1, 1]} : vector<10x128xf32> to vector<10x32xf32>
    %126 = arith.truncf %123 : vector<12x32xf32> to vector<12x32xbf16>
    %127 = arith.truncf %124 : vector<10x32xf32> to vector<10x32xbf16>
    %cst_57 = arith.constant dense<0.000000e+00> : vector<12x10xf32>
    %128 = tpu.matmul %126, %127, %cst_57 {dimension_numbers = #tpu.dot_dimension_numbers<[1], [1], [0], [0], [0, 0, 1, 0], [], []>} : vector<12x32xbf16>, vector<10x32xbf16>, vector<12x10xf32> -> vector<12x10xf32>
    %cst_58 = arith.constant 0.176776692 : f32
    %129 = vector.broadcast %cst_58 : f32 to vector<12x10xf32>
    %130 = arith.mulf %128, %129 : vector<12x10xf32>
    %cst_59 = arith.constant -1.000000e+30 : f32
    %131 = vector.broadcast %cst_59 : f32 to vector<12x10xf32>
    %132 = arith.select %44, %130, %131 : vector<12x10xi1>, vector<12x10xf32>
    %cst_60 = arith.constant dense<0xFF800000> : vector<12xf32>
    %133 = vector.multi_reduction <maximumf>, %132, %cst_60 [1] : vector<12x10xf32> to vector<12xf32>
    %134 = vector.shape_cast %133 : vector<12xf32> to vector<12x1xf32>
    %135 = vector.broadcast %134 : vector<12x1xf32> to vector<12x10xf32>
    %136 = arith.subf %132, %135 : vector<12x10xf32>
    %137 = math.exp %136 : vector<12x10xf32>
    %cst_61 = arith.constant 0.000000e+00 : f32
    %138 = vector.broadcast %cst_61 : f32 to vector<12x10xf32>
    %139 = arith.select %44, %137, %138 : vector<12x10xi1>, vector<12x10xf32>
    %cst_62 = arith.constant dense<0.000000e+00> : vector<12xf32>
    %140 = vector.multi_reduction <add>, %139, %cst_62 [1] : vector<12x10xf32> to vector<12xf32>
    %141 = vector.shape_cast %140 : vector<12xf32> to vector<12x1xf32>
    %cst_63 = arith.constant 1.000000e-16 : f32
    %142 = vector.broadcast %cst_63 : f32 to vector<12x1xf32>
    %143 = arith.maximumf %141, %142 : vector<12x1xf32>
    %144 = vector.broadcast %143 : vector<12x1xf32> to vector<12x10xf32>
    %145 = arith.divf %139, %144 : vector<12x10xf32>
    %146 = arith.truncf %145 : vector<12x10xf32> to vector<12x10xbf16>
    %147 = arith.truncf %125 : vector<10x32xf32> to vector<10x32xbf16>
    %cst_64 = arith.constant dense<0.000000e+00> : vector<12x32xf32>
    %148 = tpu.matmul %146, %147, %cst_64 {dimension_numbers = #tpu.dot_dimension_numbers<[1], [0], [0], [1], [0, 0, 1, 1], [], []>} : vector<12x10xbf16>, vector<10x32xbf16>, vector<12x32xf32> -> vector<12x32xf32>
    %149 = tpu.concatenate %70, %96, %122, %148 in 1 : vector<12x32xf32>, vector<12x32xf32>, vector<12x32xf32>, vector<12x32xf32> -> vector<12x128xf32>
    %150 = arith.addf %149, %39 : vector<12x128xf32>
    %cst_65 = arith.constant 0.000000e+00 : f32
    %151 = vector.broadcast %cst_65 : f32 to vector<12x128xf32>
    %152 = arith.maximumf %150, %151 : vector<12x128xf32>
    %c0_66 = arith.constant 0 : index
    %c0_67 = arith.constant 0 : index
    %153 = vector.load %arg14[%c0_66, %c0_67] : memref<32x256xbf16, #tpu.memory_space<vmem>>, vector<32x256xbf16>
    %154 = arith.truncf %25 : vector<10x32xf32> to vector<10x32xbf16>
    %cst_68 = arith.constant dense<0.000000e+00> : vector<10x256xf32>
    %155 = tpu.matmul %154, %153, %cst_68 {dimension_numbers = #tpu.dot_dimension_numbers<[1], [0], [0], [1], [0, 0, 1, 1], [], []>} : vector<10x32xbf16>, vector<32x256xbf16>, vector<10x256xf32> -> vector<10x256xf32>
    %c0_69 = arith.constant 0 : index
    %c0_70 = arith.constant 0 : index
    %156 = vector.load %arg15[%c0_69, %c0_70] : memref<1x256xf32, #tpu.memory_space<vmem>>, vector<1x256xf32>
    %157 = vector.broadcast %156 : vector<1x256xf32> to vector<10x256xf32>
    %158 = arith.addf %155, %157 : vector<10x256xf32>
    %c0_71 = arith.constant 0 : index
    %c0_72 = arith.constant 0 : index
    %159 = vector.load %arg16[%c0_71, %c0_72] : memref<32x256xbf16, #tpu.memory_space<vmem>>, vector<32x256xbf16>
    %160 = arith.truncf %13 : vector<12x32xf32> to vector<12x32xbf16>
    %cst_73 = arith.constant dense<0.000000e+00> : vector<12x256xf32>
    %161 = tpu.matmul %160, %159, %cst_73 {dimension_numbers = #tpu.dot_dimension_numbers<[1], [0], [0], [1], [0, 0, 1, 1], [], []>} : vector<12x32xbf16>, vector<32x256xbf16>, vector<12x256xf32> -> vector<12x256xf32>
    %c0_74 = arith.constant 0 : index
    %c0_75 = arith.constant 0 : index
    %162 = vector.load %arg17[%c0_74, %c0_75] : memref<1x256xf32, #tpu.memory_space<vmem>>, vector<1x256xf32>
    %163 = vector.broadcast %162 : vector<1x256xf32> to vector<12x256xf32>
    %164 = arith.addf %161, %163 : vector<12x256xf32>
    %165 = vector.extract_strided_slice %158 {offsets = [0, 0], sizes = [10, 128], strides = [1, 1]} : vector<10x256xf32> to vector<10x128xf32>
    %166 = vector.extract_strided_slice %158 {offsets = [0, 128], sizes = [10, 128], strides = [1, 1]} : vector<10x256xf32> to vector<10x128xf32>
    %167 = vector.extract_strided_slice %164 {offsets = [0, 0], sizes = [12, 128], strides = [1, 1]} : vector<12x256xf32> to vector<12x128xf32>
    %168 = vector.extract_strided_slice %164 {offsets = [0, 128], sizes = [12, 128], strides = [1, 1]} : vector<12x256xf32> to vector<12x128xf32>
    %c0_76 = arith.constant 0 : index
    %c0_77 = arith.constant 0 : index
    %169 = vector.load %arg5[%c0_76, %c0_77] : memref<10x12xbf16, #tpu.memory_space<vmem>>, vector<10x12xbf16>
    %cst_78 = arith.constant 0.000000e+00 : bf16
    %170 = vector.broadcast %cst_78 : bf16 to vector<10x12xbf16>
    %171 = arith.cmpf ogt, %169, %170 : vector<10x12xbf16>
    %172 = vector.extract_strided_slice %165 {offsets = [0, 0], sizes = [10, 32], strides = [1, 1]} : vector<10x128xf32> to vector<10x32xf32>
    %173 = vector.extract_strided_slice %167 {offsets = [0, 0], sizes = [12, 32], strides = [1, 1]} : vector<12x128xf32> to vector<12x32xf32>
    %174 = vector.extract_strided_slice %168 {offsets = [0, 0], sizes = [12, 32], strides = [1, 1]} : vector<12x128xf32> to vector<12x32xf32>
    %175 = arith.truncf %172 : vector<10x32xf32> to vector<10x32xbf16>
    %176 = arith.truncf %173 : vector<12x32xf32> to vector<12x32xbf16>
    %cst_79 = arith.constant dense<0.000000e+00> : vector<10x12xf32>
    %177 = tpu.matmul %175, %176, %cst_79 {dimension_numbers = #tpu.dot_dimension_numbers<[1], [1], [0], [0], [0, 0, 1, 0], [], []>} : vector<10x32xbf16>, vector<12x32xbf16>, vector<10x12xf32> -> vector<10x12xf32>
    %cst_80 = arith.constant 0.176776692 : f32
    %178 = vector.broadcast %cst_80 : f32 to vector<10x12xf32>
    %179 = arith.mulf %177, %178 : vector<10x12xf32>
    %cst_81 = arith.constant -1.000000e+30 : f32
    %180 = vector.broadcast %cst_81 : f32 to vector<10x12xf32>
    %181 = arith.select %171, %179, %180 : vector<10x12xi1>, vector<10x12xf32>
    %cst_82 = arith.constant dense<0xFF800000> : vector<10xf32>
    %182 = vector.multi_reduction <maximumf>, %181, %cst_82 [1] : vector<10x12xf32> to vector<10xf32>
    %183 = vector.shape_cast %182 : vector<10xf32> to vector<10x1xf32>
    %184 = vector.broadcast %183 : vector<10x1xf32> to vector<10x12xf32>
    %185 = arith.subf %181, %184 : vector<10x12xf32>
    %186 = math.exp %185 : vector<10x12xf32>
    %cst_83 = arith.constant 0.000000e+00 : f32
    %187 = vector.broadcast %cst_83 : f32 to vector<10x12xf32>
    %188 = arith.select %171, %186, %187 : vector<10x12xi1>, vector<10x12xf32>
    %cst_84 = arith.constant dense<0.000000e+00> : vector<10xf32>
    %189 = vector.multi_reduction <add>, %188, %cst_84 [1] : vector<10x12xf32> to vector<10xf32>
    %190 = vector.shape_cast %189 : vector<10xf32> to vector<10x1xf32>
    %cst_85 = arith.constant 1.000000e-16 : f32
    %191 = vector.broadcast %cst_85 : f32 to vector<10x1xf32>
    %192 = arith.maximumf %190, %191 : vector<10x1xf32>
    %193 = vector.broadcast %192 : vector<10x1xf32> to vector<10x12xf32>
    %194 = arith.divf %188, %193 : vector<10x12xf32>
    %195 = arith.truncf %194 : vector<10x12xf32> to vector<10x12xbf16>
    %196 = arith.truncf %174 : vector<12x32xf32> to vector<12x32xbf16>
    %cst_86 = arith.constant dense<0.000000e+00> : vector<10x32xf32>
    %197 = tpu.matmul %195, %196, %cst_86 {dimension_numbers = #tpu.dot_dimension_numbers<[1], [0], [0], [1], [0, 0, 1, 1], [], []>} : vector<10x12xbf16>, vector<12x32xbf16>, vector<10x32xf32> -> vector<10x32xf32>
    %198 = vector.extract_strided_slice %165 {offsets = [0, 32], sizes = [10, 32], strides = [1, 1]} : vector<10x128xf32> to vector<10x32xf32>
    %199 = vector.extract_strided_slice %167 {offsets = [0, 32], sizes = [12, 32], strides = [1, 1]} : vector<12x128xf32> to vector<12x32xf32>
    %200 = vector.extract_strided_slice %168 {offsets = [0, 32], sizes = [12, 32], strides = [1, 1]} : vector<12x128xf32> to vector<12x32xf32>
    %201 = arith.truncf %198 : vector<10x32xf32> to vector<10x32xbf16>
    %202 = arith.truncf %199 : vector<12x32xf32> to vector<12x32xbf16>
    %cst_87 = arith.constant dense<0.000000e+00> : vector<10x12xf32>
    %203 = tpu.matmul %201, %202, %cst_87 {dimension_numbers = #tpu.dot_dimension_numbers<[1], [1], [0], [0], [0, 0, 1, 0], [], []>} : vector<10x32xbf16>, vector<12x32xbf16>, vector<10x12xf32> -> vector<10x12xf32>
    %cst_88 = arith.constant 0.176776692 : f32
    %204 = vector.broadcast %cst_88 : f32 to vector<10x12xf32>
    %205 = arith.mulf %203, %204 : vector<10x12xf32>
    %cst_89 = arith.constant -1.000000e+30 : f32
    %206 = vector.broadcast %cst_89 : f32 to vector<10x12xf32>
    %207 = arith.select %171, %205, %206 : vector<10x12xi1>, vector<10x12xf32>
    %cst_90 = arith.constant dense<0xFF800000> : vector<10xf32>
    %208 = vector.multi_reduction <maximumf>, %207, %cst_90 [1] : vector<10x12xf32> to vector<10xf32>
    %209 = vector.shape_cast %208 : vector<10xf32> to vector<10x1xf32>
    %210 = vector.broadcast %209 : vector<10x1xf32> to vector<10x12xf32>
    %211 = arith.subf %207, %210 : vector<10x12xf32>
    %212 = math.exp %211 : vector<10x12xf32>
    %cst_91 = arith.constant 0.000000e+00 : f32
    %213 = vector.broadcast %cst_91 : f32 to vector<10x12xf32>
    %214 = arith.select %171, %212, %213 : vector<10x12xi1>, vector<10x12xf32>
    %cst_92 = arith.constant dense<0.000000e+00> : vector<10xf32>
    %215 = vector.multi_reduction <add>, %214, %cst_92 [1] : vector<10x12xf32> to vector<10xf32>
    %216 = vector.shape_cast %215 : vector<10xf32> to vector<10x1xf32>
    %cst_93 = arith.constant 1.000000e-16 : f32
    %217 = vector.broadcast %cst_93 : f32 to vector<10x1xf32>
    %218 = arith.maximumf %216, %217 : vector<10x1xf32>
    %219 = vector.broadcast %218 : vector<10x1xf32> to vector<10x12xf32>
    %220 = arith.divf %214, %219 : vector<10x12xf32>
    %221 = arith.truncf %220 : vector<10x12xf32> to vector<10x12xbf16>
    %222 = arith.truncf %200 : vector<12x32xf32> to vector<12x32xbf16>
    %cst_94 = arith.constant dense<0.000000e+00> : vector<10x32xf32>
    %223 = tpu.matmul %221, %222, %cst_94 {dimension_numbers = #tpu.dot_dimension_numbers<[1], [0], [0], [1], [0, 0, 1, 1], [], []>} : vector<10x12xbf16>, vector<12x32xbf16>, vector<10x32xf32> -> vector<10x32xf32>
    %224 = vector.extract_strided_slice %165 {offsets = [0, 64], sizes = [10, 32], strides = [1, 1]} : vector<10x128xf32> to vector<10x32xf32>
    %225 = vector.extract_strided_slice %167 {offsets = [0, 64], sizes = [12, 32], strides = [1, 1]} : vector<12x128xf32> to vector<12x32xf32>
    %226 = vector.extract_strided_slice %168 {offsets = [0, 64], sizes = [12, 32], strides = [1, 1]} : vector<12x128xf32> to vector<12x32xf32>
    %227 = arith.truncf %224 : vector<10x32xf32> to vector<10x32xbf16>
    %228 = arith.truncf %225 : vector<12x32xf32> to vector<12x32xbf16>
    %cst_95 = arith.constant dense<0.000000e+00> : vector<10x12xf32>
    %229 = tpu.matmul %227, %228, %cst_95 {dimension_numbers = #tpu.dot_dimension_numbers<[1], [1], [0], [0], [0, 0, 1, 0], [], []>} : vector<10x32xbf16>, vector<12x32xbf16>, vector<10x12xf32> -> vector<10x12xf32>
    %cst_96 = arith.constant 0.176776692 : f32
    %230 = vector.broadcast %cst_96 : f32 to vector<10x12xf32>
    %231 = arith.mulf %229, %230 : vector<10x12xf32>
    %cst_97 = arith.constant -1.000000e+30 : f32
    %232 = vector.broadcast %cst_97 : f32 to vector<10x12xf32>
    %233 = arith.select %171, %231, %232 : vector<10x12xi1>, vector<10x12xf32>
    %cst_98 = arith.constant dense<0xFF800000> : vector<10xf32>
    %234 = vector.multi_reduction <maximumf>, %233, %cst_98 [1] : vector<10x12xf32> to vector<10xf32>
    %235 = vector.shape_cast %234 : vector<10xf32> to vector<10x1xf32>
    %236 = vector.broadcast %235 : vector<10x1xf32> to vector<10x12xf32>
    %237 = arith.subf %233, %236 : vector<10x12xf32>
    %238 = math.exp %237 : vector<10x12xf32>
    %cst_99 = arith.constant 0.000000e+00 : f32
    %239 = vector.broadcast %cst_99 : f32 to vector<10x12xf32>
    %240 = arith.select %171, %238, %239 : vector<10x12xi1>, vector<10x12xf32>
    %cst_100 = arith.constant dense<0.000000e+00> : vector<10xf32>
    %241 = vector.multi_reduction <add>, %240, %cst_100 [1] : vector<10x12xf32> to vector<10xf32>
    %242 = vector.shape_cast %241 : vector<10xf32> to vector<10x1xf32>
    %cst_101 = arith.constant 1.000000e-16 : f32
    %243 = vector.broadcast %cst_101 : f32 to vector<10x1xf32>
    %244 = arith.maximumf %242, %243 : vector<10x1xf32>
    %245 = vector.broadcast %244 : vector<10x1xf32> to vector<10x12xf32>
    %246 = arith.divf %240, %245 : vector<10x12xf32>
    %247 = arith.truncf %246 : vector<10x12xf32> to vector<10x12xbf16>
    %248 = arith.truncf %226 : vector<12x32xf32> to vector<12x32xbf16>
    %cst_102 = arith.constant dense<0.000000e+00> : vector<10x32xf32>
    %249 = tpu.matmul %247, %248, %cst_102 {dimension_numbers = #tpu.dot_dimension_numbers<[1], [0], [0], [1], [0, 0, 1, 1], [], []>} : vector<10x12xbf16>, vector<12x32xbf16>, vector<10x32xf32> -> vector<10x32xf32>
    %250 = vector.extract_strided_slice %165 {offsets = [0, 96], sizes = [10, 32], strides = [1, 1]} : vector<10x128xf32> to vector<10x32xf32>
    %251 = vector.extract_strided_slice %167 {offsets = [0, 96], sizes = [12, 32], strides = [1, 1]} : vector<12x128xf32> to vector<12x32xf32>
    %252 = vector.extract_strided_slice %168 {offsets = [0, 96], sizes = [12, 32], strides = [1, 1]} : vector<12x128xf32> to vector<12x32xf32>
    %253 = arith.truncf %250 : vector<10x32xf32> to vector<10x32xbf16>
    %254 = arith.truncf %251 : vector<12x32xf32> to vector<12x32xbf16>
    %cst_103 = arith.constant dense<0.000000e+00> : vector<10x12xf32>
    %255 = tpu.matmul %253, %254, %cst_103 {dimension_numbers = #tpu.dot_dimension_numbers<[1], [1], [0], [0], [0, 0, 1, 0], [], []>} : vector<10x32xbf16>, vector<12x32xbf16>, vector<10x12xf32> -> vector<10x12xf32>
    %cst_104 = arith.constant 0.176776692 : f32
    %256 = vector.broadcast %cst_104 : f32 to vector<10x12xf32>
    %257 = arith.mulf %255, %256 : vector<10x12xf32>
    %cst_105 = arith.constant -1.000000e+30 : f32
    %258 = vector.broadcast %cst_105 : f32 to vector<10x12xf32>
    %259 = arith.select %171, %257, %258 : vector<10x12xi1>, vector<10x12xf32>
    %cst_106 = arith.constant dense<0xFF800000> : vector<10xf32>
    %260 = vector.multi_reduction <maximumf>, %259, %cst_106 [1] : vector<10x12xf32> to vector<10xf32>
    %261 = vector.shape_cast %260 : vector<10xf32> to vector<10x1xf32>
    %262 = vector.broadcast %261 : vector<10x1xf32> to vector<10x12xf32>
    %263 = arith.subf %259, %262 : vector<10x12xf32>
    %264 = math.exp %263 : vector<10x12xf32>
    %cst_107 = arith.constant 0.000000e+00 : f32
    %265 = vector.broadcast %cst_107 : f32 to vector<10x12xf32>
    %266 = arith.select %171, %264, %265 : vector<10x12xi1>, vector<10x12xf32>
    %cst_108 = arith.constant dense<0.000000e+00> : vector<10xf32>
    %267 = vector.multi_reduction <add>, %266, %cst_108 [1] : vector<10x12xf32> to vector<10xf32>
    %268 = vector.shape_cast %267 : vector<10xf32> to vector<10x1xf32>
    %cst_109 = arith.constant 1.000000e-16 : f32
    %269 = vector.broadcast %cst_109 : f32 to vector<10x1xf32>
    %270 = arith.maximumf %268, %269 : vector<10x1xf32>
    %271 = vector.broadcast %270 : vector<10x1xf32> to vector<10x12xf32>
    %272 = arith.divf %266, %271 : vector<10x12xf32>
    %273 = arith.truncf %272 : vector<10x12xf32> to vector<10x12xbf16>
    %274 = arith.truncf %252 : vector<12x32xf32> to vector<12x32xbf16>
    %cst_110 = arith.constant dense<0.000000e+00> : vector<10x32xf32>
    %275 = tpu.matmul %273, %274, %cst_110 {dimension_numbers = #tpu.dot_dimension_numbers<[1], [0], [0], [1], [0, 0, 1, 1], [], []>} : vector<10x12xbf16>, vector<12x32xbf16>, vector<10x32xf32> -> vector<10x32xf32>
    %276 = tpu.concatenate %197, %223, %249, %275 in 1 : vector<10x32xf32>, vector<10x32xf32>, vector<10x32xf32>, vector<10x32xf32> -> vector<10x128xf32>
    %277 = arith.addf %276, %166 : vector<10x128xf32>
    %cst_111 = arith.constant 0.000000e+00 : f32
    %278 = vector.broadcast %cst_111 : f32 to vector<10x128xf32>
    %279 = arith.maximumf %277, %278 : vector<10x128xf32>
    %c0_112 = arith.constant 0 : index
    %c0_113 = arith.constant 0 : index
    %280 = vector.load %arg18[%c0_112, %c0_113] : memref<128x32xbf16, #tpu.memory_space<vmem>>, vector<128x32xbf16>
    %281 = arith.truncf %152 : vector<12x128xf32> to vector<12x128xbf16>
    %cst_114 = arith.constant dense<0.000000e+00> : vector<12x32xf32>
    %282 = tpu.matmul %281, %280, %cst_114 {dimension_numbers = #tpu.dot_dimension_numbers<[1], [0], [0], [1], [0, 0, 1, 1], [], []>} : vector<12x128xbf16>, vector<128x32xbf16>, vector<12x32xf32> -> vector<12x32xf32>
    %c0_115 = arith.constant 0 : index
    %c0_116 = arith.constant 0 : index
    %283 = vector.load %arg19[%c0_115, %c0_116] : memref<1x32xf32, #tpu.memory_space<vmem>>, vector<1x32xf32>
    %284 = vector.broadcast %283 : vector<1x32xf32> to vector<12x32xf32>
    %285 = arith.addf %282, %284 : vector<12x32xf32>
    %cst_117 = arith.constant 0.000000e+00 : f32
    %286 = vector.broadcast %cst_117 : f32 to vector<12x32xf32>
    %287 = arith.maximumf %285, %286 : vector<12x32xf32>
    %c0_118 = arith.constant 0 : index
    %c0_119 = arith.constant 0 : index
    %288 = vector.load %arg22[%c0_118, %c0_119] : memref<12x32xf32, #tpu.memory_space<vmem>>, vector<12x32xf32>
    tpu.vector_store %arg22[%c0_118, %c0_119], %287 {strides = array<i32>} : memref<12x32xf32, #tpu.memory_space<vmem>>, vector<12x32xf32>,
    %c0_120 = arith.constant 0 : index
    %c0_121 = arith.constant 0 : index
    %289 = vector.load %arg20[%c0_120, %c0_121] : memref<128x32xbf16, #tpu.memory_space<vmem>>, vector<128x32xbf16>
    %290 = arith.truncf %279 : vector<10x128xf32> to vector<10x128xbf16>
    %cst_122 = arith.constant dense<0.000000e+00> : vector<10x32xf32>
    %291 = tpu.matmul %290, %289, %cst_122 {dimension_numbers = #tpu.dot_dimension_numbers<[1], [0], [0], [1], [0, 0, 1, 1], [], []>} : vector<10x128xbf16>, vector<128x32xbf16>, vector<10x32xf32> -> vector<10x32xf32>
    %c0_123 = arith.constant 0 : index
    %c0_124 = arith.constant 0 : index
    %292 = vector.load %arg21[%c0_123, %c0_124] : memref<1x32xf32, #tpu.memory_space<vmem>>, vector<1x32xf32>
    %293 = vector.broadcast %292 : vector<1x32xf32> to vector<10x32xf32>
    %294 = arith.addf %291, %293 : vector<10x32xf32>
    %cst_125 = arith.constant 0.000000e+00 : f32
    %295 = vector.broadcast %cst_125 : f32 to vector<10x32xf32>
    %296 = arith.maximumf %294, %295 : vector<10x32xf32>
    %c0_126 = arith.constant 0 : index
    %c0_127 = arith.constant 0 : index
    %297 = vector.load %arg23[%c0_126, %c0_127] : memref<10x32xf32, #tpu.memory_space<vmem>>, vector<10x32xf32>
    tpu.vector_store %arg23[%c0_126, %c0_127], %296 {strides = array<i32>} : memref<10x32xf32, #tpu.memory_space<vmem>>, vector<10x32xf32>,
    return
  }
}

module attributes {stable_mosaic.version = 11 : i64} {
  func.func @_sage2_kernel(%arg0: memref<12x32xf32, #tpu.memory_space<vmem>>, %arg1: memref<10x32xf32, #tpu.memory_space<vmem>>, %arg2: memref<12x10xbf16, #tpu.memory_space<vmem>>, %arg3: memref<10x12xbf16, #tpu.memory_space<vmem>>, %arg4: memref<64x32xbf16, #tpu.memory_space<vmem>>, %arg5: memref<1x32xf32, #tpu.memory_space<vmem>>, %arg6: memref<64x32xbf16, #tpu.memory_space<vmem>>, %arg7: memref<1x32xf32, #tpu.memory_space<vmem>>, %arg8: memref<64x32xbf16, #tpu.memory_space<vmem>>, %arg9: memref<1x32xf32, #tpu.memory_space<vmem>>, %arg10: memref<64x32xbf16, #tpu.memory_space<vmem>>, %arg11: memref<1x32xf32, #tpu.memory_space<vmem>>, %arg12: memref<12x32xf32, #tpu.memory_space<vmem>>, %arg13: memref<10x32xf32, #tpu.memory_space<vmem>>) attributes {dimension_semantics = [], scalar_prefetch = 0 : i64, scratch_operands = 0 : i64, tpu.core_type = #tpu.core_type<tc>} {
    %c0 = arith.constant 0 : index
    %c0_0 = arith.constant 0 : index
    %0 = vector.load %arg0[%c0, %c0_0] : memref<12x32xf32, #tpu.memory_space<vmem>>, vector<12x32xf32>
    %c0_1 = arith.constant 0 : index
    %c0_2 = arith.constant 0 : index
    %1 = vector.load %arg1[%c0_1, %c0_2] : memref<10x32xf32, #tpu.memory_space<vmem>>, vector<10x32xf32>
    %c0_3 = arith.constant 0 : index
    %c0_4 = arith.constant 0 : index
    %2 = vector.load %arg2[%c0_3, %c0_4] : memref<12x10xbf16, #tpu.memory_space<vmem>>, vector<12x10xbf16>
    %c0_5 = arith.constant 0 : index
    %c0_6 = arith.constant 0 : index
    %3 = vector.load %arg3[%c0_5, %c0_6] : memref<10x12xbf16, #tpu.memory_space<vmem>>, vector<10x12xbf16>
    %c0_7 = arith.constant 0 : index
    %c0_8 = arith.constant 0 : index
    %4 = vector.load %arg4[%c0_7, %c0_8] : memref<64x32xbf16, #tpu.memory_space<vmem>>, vector<64x32xbf16>
    %c0_9 = arith.constant 0 : index
    %c0_10 = arith.constant 0 : index
    %5 = vector.load %arg5[%c0_9, %c0_10] : memref<1x32xf32, #tpu.memory_space<vmem>>, vector<1x32xf32>
    %6 = arith.truncf %1 : vector<10x32xf32> to vector<10x32xbf16>
    %cst = arith.constant dense<0.000000e+00> : vector<12x32xf32>
    %7 = tpu.matmul %2, %6, %cst {dimension_numbers = #tpu.dot_dimension_numbers<[1], [0], [0], [1], [0, 0, 1, 1], [], []>} : vector<12x10xbf16>, vector<10x32xbf16>, vector<12x32xf32> -> vector<12x32xf32>
    %8 = tpu.concatenate %7, %0 in 1 : vector<12x32xf32>, vector<12x32xf32> -> vector<12x64xf32>
    %9 = arith.truncf %8 : vector<12x64xf32> to vector<12x64xbf16>
    %cst_11 = arith.constant dense<0.000000e+00> : vector<12x32xf32>
    %10 = tpu.matmul %9, %4, %cst_11 {dimension_numbers = #tpu.dot_dimension_numbers<[1], [0], [0], [1], [0, 0, 1, 1], [], []>} : vector<12x64xbf16>, vector<64x32xbf16>, vector<12x32xf32> -> vector<12x32xf32>
    %11 = vector.broadcast %5 : vector<1x32xf32> to vector<12x32xf32>
    %12 = arith.addf %10, %11 : vector<12x32xf32>
    %cst_12 = arith.constant 0.000000e+00 : f32
    %13 = vector.broadcast %cst_12 : f32 to vector<12x32xf32>
    %14 = arith.maximumf %12, %13 : vector<12x32xf32>
    %c0_13 = arith.constant 0 : index
    %c0_14 = arith.constant 0 : index
    %15 = vector.load %arg6[%c0_13, %c0_14] : memref<64x32xbf16, #tpu.memory_space<vmem>>, vector<64x32xbf16>
    %c0_15 = arith.constant 0 : index
    %c0_16 = arith.constant 0 : index
    %16 = vector.load %arg7[%c0_15, %c0_16] : memref<1x32xf32, #tpu.memory_space<vmem>>, vector<1x32xf32>
    %17 = arith.truncf %0 : vector<12x32xf32> to vector<12x32xbf16>
    %cst_17 = arith.constant dense<0.000000e+00> : vector<10x32xf32>
    %18 = tpu.matmul %3, %17, %cst_17 {dimension_numbers = #tpu.dot_dimension_numbers<[1], [0], [0], [1], [0, 0, 1, 1], [], []>} : vector<10x12xbf16>, vector<12x32xbf16>, vector<10x32xf32> -> vector<10x32xf32>
    %19 = tpu.concatenate %18, %1 in 1 : vector<10x32xf32>, vector<10x32xf32> -> vector<10x64xf32>
    %20 = arith.truncf %19 : vector<10x64xf32> to vector<10x64xbf16>
    %cst_18 = arith.constant dense<0.000000e+00> : vector<10x32xf32>
    %21 = tpu.matmul %20, %15, %cst_18 {dimension_numbers = #tpu.dot_dimension_numbers<[1], [0], [0], [1], [0, 0, 1, 1], [], []>} : vector<10x64xbf16>, vector<64x32xbf16>, vector<10x32xf32> -> vector<10x32xf32>
    %22 = vector.broadcast %16 : vector<1x32xf32> to vector<10x32xf32>
    %23 = arith.addf %21, %22 : vector<10x32xf32>
    %cst_19 = arith.constant 0.000000e+00 : f32
    %24 = vector.broadcast %cst_19 : f32 to vector<10x32xf32>
    %25 = arith.maximumf %23, %24 : vector<10x32xf32>
    %c0_20 = arith.constant 0 : index
    %c0_21 = arith.constant 0 : index
    %26 = vector.load %arg8[%c0_20, %c0_21] : memref<64x32xbf16, #tpu.memory_space<vmem>>, vector<64x32xbf16>
    %c0_22 = arith.constant 0 : index
    %c0_23 = arith.constant 0 : index
    %27 = vector.load %arg9[%c0_22, %c0_23] : memref<1x32xf32, #tpu.memory_space<vmem>>, vector<1x32xf32>
    %28 = arith.truncf %25 : vector<10x32xf32> to vector<10x32xbf16>
    %cst_24 = arith.constant dense<0.000000e+00> : vector<12x32xf32>
    %29 = tpu.matmul %2, %28, %cst_24 {dimension_numbers = #tpu.dot_dimension_numbers<[1], [0], [0], [1], [0, 0, 1, 1], [], []>} : vector<12x10xbf16>, vector<10x32xbf16>, vector<12x32xf32> -> vector<12x32xf32>
    %30 = tpu.concatenate %29, %14 in 1 : vector<12x32xf32>, vector<12x32xf32> -> vector<12x64xf32>
    %31 = arith.truncf %30 : vector<12x64xf32> to vector<12x64xbf16>
    %cst_25 = arith.constant dense<0.000000e+00> : vector<12x32xf32>
    %32 = tpu.matmul %31, %26, %cst_25 {dimension_numbers = #tpu.dot_dimension_numbers<[1], [0], [0], [1], [0, 0, 1, 1], [], []>} : vector<12x64xbf16>, vector<64x32xbf16>, vector<12x32xf32> -> vector<12x32xf32>
    %33 = vector.broadcast %27 : vector<1x32xf32> to vector<12x32xf32>
    %34 = arith.addf %32, %33 : vector<12x32xf32>
    %c0_26 = arith.constant 0 : index
    %c0_27 = arith.constant 0 : index
    %35 = vector.load %arg12[%c0_26, %c0_27] : memref<12x32xf32, #tpu.memory_space<vmem>>, vector<12x32xf32>
    tpu.vector_store %arg12[%c0_26, %c0_27], %34 {strides = array<i32>} : memref<12x32xf32, #tpu.memory_space<vmem>>, vector<12x32xf32>,
    %c0_28 = arith.constant 0 : index
    %c0_29 = arith.constant 0 : index
    %36 = vector.load %arg10[%c0_28, %c0_29] : memref<64x32xbf16, #tpu.memory_space<vmem>>, vector<64x32xbf16>
    %c0_30 = arith.constant 0 : index
    %c0_31 = arith.constant 0 : index
    %37 = vector.load %arg11[%c0_30, %c0_31] : memref<1x32xf32, #tpu.memory_space<vmem>>, vector<1x32xf32>
    %38 = arith.truncf %14 : vector<12x32xf32> to vector<12x32xbf16>
    %cst_32 = arith.constant dense<0.000000e+00> : vector<10x32xf32>
    %39 = tpu.matmul %3, %38, %cst_32 {dimension_numbers = #tpu.dot_dimension_numbers<[1], [0], [0], [1], [0, 0, 1, 1], [], []>} : vector<10x12xbf16>, vector<12x32xbf16>, vector<10x32xf32> -> vector<10x32xf32>
    %40 = tpu.concatenate %39, %25 in 1 : vector<10x32xf32>, vector<10x32xf32> -> vector<10x64xf32>
    %41 = arith.truncf %40 : vector<10x64xf32> to vector<10x64xbf16>
    %cst_33 = arith.constant dense<0.000000e+00> : vector<10x32xf32>
    %42 = tpu.matmul %41, %36, %cst_33 {dimension_numbers = #tpu.dot_dimension_numbers<[1], [0], [0], [1], [0, 0, 1, 1], [], []>} : vector<10x64xbf16>, vector<64x32xbf16>, vector<10x32xf32> -> vector<10x32xf32>
    %43 = vector.broadcast %37 : vector<1x32xf32> to vector<10x32xf32>
    %44 = arith.addf %42, %43 : vector<10x32xf32>
    %c0_34 = arith.constant 0 : index
    %c0_35 = arith.constant 0 : index
    %45 = vector.load %arg13[%c0_34, %c0_35] : memref<10x32xf32, #tpu.memory_space<vmem>>, vector<10x32xf32>
    tpu.vector_store %arg13[%c0_34, %c0_35], %44 {strides = array<i32>} : memref<10x32xf32, #tpu.memory_space<vmem>>, vector<10x32xf32>,
    return
  }
}

module attributes {stable_mosaic.version = 11 : i64} {
  func.func @_decoder_kernel(%arg0: memref<12x32xf32, #tpu.memory_space<vmem>>, %arg1: memref<10x32xf32, #tpu.memory_space<vmem>>, %arg2: memref<8x1xi32, #tpu.memory_space<vmem>>, %arg3: memref<8x1xi32, #tpu.memory_space<vmem>>, %arg4: memref<32x64xbf16, #tpu.memory_space<vmem>>, %arg5: memref<1x64xf32, #tpu.memory_space<vmem>>, %arg6: memref<64x32xbf16, #tpu.memory_space<vmem>>, %arg7: memref<1x32xf32, #tpu.memory_space<vmem>>, %arg8: memref<32x64xbf16, #tpu.memory_space<vmem>>, %arg9: memref<1x64xf32, #tpu.memory_space<vmem>>, %arg10: memref<64x32xbf16, #tpu.memory_space<vmem>>, %arg11: memref<1x32xf32, #tpu.memory_space<vmem>>, %arg12: memref<1x8xf32, #tpu.memory_space<vmem>>) attributes {dimension_semantics = [], scalar_prefetch = 0 : i64, scratch_operands = 0 : i64, tpu.core_type = #tpu.core_type<tc>} {
    %c0 = arith.constant 0 : index
    %c0_0 = arith.constant 0 : index
    %0 = vector.load %arg0[%c0, %c0_0] : memref<12x32xf32, #tpu.memory_space<vmem>>, vector<12x32xf32>
    %c0_1 = arith.constant 0 : index
    %c0_2 = arith.constant 0 : index
    %1 = vector.load %arg1[%c0_1, %c0_2] : memref<10x32xf32, #tpu.memory_space<vmem>>, vector<10x32xf32>
    %c0_3 = arith.constant 0 : index
    %c0_4 = arith.constant 0 : index
    %2 = vector.load %arg2[%c0_3, %c0_4] : memref<8x1xi32, #tpu.memory_space<vmem>>, vector<8x1xi32>
    %3 = tpu.iota {dimensions = array<i32: 1>} : vector<8x12xi32>
    %4 = vector.broadcast %2 : vector<8x1xi32> to vector<8x12xi32>
    %5 = arith.cmpi eq, %4, %3 : vector<8x12xi32>
    %6 = arith.extui %5 : vector<8x12xi1> to vector<8x12xi32>
    %7 = arith.sitofp %6 : vector<8x12xi32> to vector<8x12xf32>
    %c0_5 = arith.constant 0 : index
    %c0_6 = arith.constant 0 : index
    %8 = vector.load %arg3[%c0_5, %c0_6] : memref<8x1xi32, #tpu.memory_space<vmem>>, vector<8x1xi32>
    %9 = tpu.iota {dimensions = array<i32: 1>} : vector<8x10xi32>
    %10 = vector.broadcast %8 : vector<8x1xi32> to vector<8x10xi32>
    %11 = arith.cmpi eq, %10, %9 : vector<8x10xi32>
    %12 = arith.extui %11 : vector<8x10xi1> to vector<8x10xi32>
    %13 = arith.sitofp %12 : vector<8x10xi32> to vector<8x10xf32>
    %cst = arith.constant dense<0.000000e+00> : vector<8x32xf32>
    %14 = tpu.matmul %7, %0, %cst {dimension_numbers = #tpu.dot_dimension_numbers<[1], [0], [0], [1], [0, 0, 1, 1], [], []>} : vector<8x12xf32>, vector<12x32xf32>, vector<8x32xf32> -> vector<8x32xf32>
    %cst_7 = arith.constant dense<0.000000e+00> : vector<8x32xf32>
    %15 = tpu.matmul %13, %1, %cst_7 {dimension_numbers = #tpu.dot_dimension_numbers<[1], [0], [0], [1], [0, 0, 1, 1], [], []>} : vector<8x10xf32>, vector<10x32xf32>, vector<8x32xf32> -> vector<8x32xf32>
    %c0_8 = arith.constant 0 : index
    %c0_9 = arith.constant 0 : index
    %16 = vector.load %arg4[%c0_8, %c0_9] : memref<32x64xbf16, #tpu.memory_space<vmem>>, vector<32x64xbf16>
    %17 = arith.truncf %14 : vector<8x32xf32> to vector<8x32xbf16>
    %cst_10 = arith.constant dense<0.000000e+00> : vector<8x64xf32>
    %18 = tpu.matmul %17, %16, %cst_10 {dimension_numbers = #tpu.dot_dimension_numbers<[1], [0], [0], [1], [0, 0, 1, 1], [], []>} : vector<8x32xbf16>, vector<32x64xbf16>, vector<8x64xf32> -> vector<8x64xf32>
    %c0_11 = arith.constant 0 : index
    %c0_12 = arith.constant 0 : index
    %19 = vector.load %arg5[%c0_11, %c0_12] : memref<1x64xf32, #tpu.memory_space<vmem>>, vector<1x64xf32>
    %20 = vector.broadcast %19 : vector<1x64xf32> to vector<8x64xf32>
    %21 = arith.addf %18, %20 : vector<8x64xf32>
    %cst_13 = arith.constant 0.000000e+00 : f32
    %22 = vector.broadcast %cst_13 : f32 to vector<8x64xf32>
    %23 = arith.maximumf %21, %22 : vector<8x64xf32>
    %c0_14 = arith.constant 0 : index
    %c0_15 = arith.constant 0 : index
    %24 = vector.load %arg6[%c0_14, %c0_15] : memref<64x32xbf16, #tpu.memory_space<vmem>>, vector<64x32xbf16>
    %25 = arith.truncf %23 : vector<8x64xf32> to vector<8x64xbf16>
    %cst_16 = arith.constant dense<0.000000e+00> : vector<8x32xf32>
    %26 = tpu.matmul %25, %24, %cst_16 {dimension_numbers = #tpu.dot_dimension_numbers<[1], [0], [0], [1], [0, 0, 1, 1], [], []>} : vector<8x64xbf16>, vector<64x32xbf16>, vector<8x32xf32> -> vector<8x32xf32>
    %c0_17 = arith.constant 0 : index
    %c0_18 = arith.constant 0 : index
    %27 = vector.load %arg7[%c0_17, %c0_18] : memref<1x32xf32, #tpu.memory_space<vmem>>, vector<1x32xf32>
    %28 = vector.broadcast %27 : vector<1x32xf32> to vector<8x32xf32>
    %29 = arith.addf %26, %28 : vector<8x32xf32>
    %c0_19 = arith.constant 0 : index
    %c0_20 = arith.constant 0 : index
    %30 = vector.load %arg8[%c0_19, %c0_20] : memref<32x64xbf16, #tpu.memory_space<vmem>>, vector<32x64xbf16>
    %31 = arith.truncf %15 : vector<8x32xf32> to vector<8x32xbf16>
    %cst_21 = arith.constant dense<0.000000e+00> : vector<8x64xf32>
    %32 = tpu.matmul %31, %30, %cst_21 {dimension_numbers = #tpu.dot_dimension_numbers<[1], [0], [0], [1], [0, 0, 1, 1], [], []>} : vector<8x32xbf16>, vector<32x64xbf16>, vector<8x64xf32> -> vector<8x64xf32>
    %c0_22 = arith.constant 0 : index
    %c0_23 = arith.constant 0 : index
    %33 = vector.load %arg9[%c0_22, %c0_23] : memref<1x64xf32, #tpu.memory_space<vmem>>, vector<1x64xf32>
    %34 = vector.broadcast %33 : vector<1x64xf32> to vector<8x64xf32>
    %35 = arith.addf %32, %34 : vector<8x64xf32>
    %cst_24 = arith.constant 0.000000e+00 : f32
    %36 = vector.broadcast %cst_24 : f32 to vector<8x64xf32>
    %37 = arith.maximumf %35, %36 : vector<8x64xf32>
    %c0_25 = arith.constant 0 : index
    %c0_26 = arith.constant 0 : index
    %38 = vector.load %arg10[%c0_25, %c0_26] : memref<64x32xbf16, #tpu.memory_space<vmem>>, vector<64x32xbf16>
    %39 = arith.truncf %37 : vector<8x64xf32> to vector<8x64xbf16>
    %cst_27 = arith.constant dense<0.000000e+00> : vector<8x32xf32>
    %40 = tpu.matmul %39, %38, %cst_27 {dimension_numbers = #tpu.dot_dimension_numbers<[1], [0], [0], [1], [0, 0, 1, 1], [], []>} : vector<8x64xbf16>, vector<64x32xbf16>, vector<8x32xf32> -> vector<8x32xf32>
    %c0_28 = arith.constant 0 : index
    %c0_29 = arith.constant 0 : index
    %41 = vector.load %arg11[%c0_28, %c0_29] : memref<1x32xf32, #tpu.memory_space<vmem>>, vector<1x32xf32>
    %42 = vector.broadcast %41 : vector<1x32xf32> to vector<8x32xf32>
    %43 = arith.addf %40, %42 : vector<8x32xf32>
    %44 = arith.mulf %29, %43 : vector<8x32xf32>
    %45 = tpu.transpose %44, [1, 0] : vector<8x32xf32> -> vector<32x8xf32>
    %cst_30 = arith.constant dense<0.000000e+00> : vector<8xf32>
    %46 = vector.multi_reduction <add>, %45, %cst_30 [0] : vector<32x8xf32> to vector<8xf32>
    %47 = vector.shape_cast %46 : vector<8xf32> to vector<1x8xf32>
    %c0_31 = arith.constant 0 : index
    %c0_32 = arith.constant 0 : index
    %48 = vector.load %arg12[%c0_31, %c0_32] : memref<1x8xf32, #tpu.memory_space<vmem>>, vector<1x8xf32>
    tpu.vector_store %arg12[%c0_31, %c0_32], %47 {strides = array<i32>} : memref<1x8xf32, #tpu.memory_space<vmem>>, vector<1x8xf32>,
    return
  }
}

</mosaic_0001>

<llo_original>
// kernel: improved_model_forward.8
$region0: #{improved_model_forward.8}
  #allocation0 [shape = 'u32[]', space=smem, size = 0x4, offset = 0x4, fixed_abs, tag = 'smem constant byte address 0x4 - core index']
  #allocation1 [shape = 'u32[72,128]{1,0:T(1,128)}', space=vmem, size = 0x9000, scoped, tag = 'internal scratch']
  %s0 = inlined_call_operand.vmem [shape: f32[12,32], index: 0, kind: input, shape index: {}]
  %s1 = inlined_call_operand.vmem [shape: f32[10,32], index: 1, kind: input, shape index: {}]
  %s2 = inlined_call_operand.vmem [shape: bf16[12,10], index: 2, kind: input, shape index: {}]
  %s3 = inlined_call_operand.vmem [shape: bf16[10,12], index: 3, kind: input, shape index: {}]
  %s4 = inlined_call_operand.vmem [shape: bf16[64,32], index: 4, kind: input, shape index: {}]
  %s5 = inlined_call_operand.vmem [shape: f32[1,32], index: 5, kind: input, shape index: {}]
  %s6 = inlined_call_operand.vmem [shape: bf16[64,32], index: 6, kind: input, shape index: {}]
  %s7 = inlined_call_operand.vmem [shape: f32[1,32], index: 7, kind: input, shape index: {}]
  %s8 = inlined_call_operand.vmem [shape: bf16[64,32], index: 8, kind: input, shape index: {}]
  %s9 = inlined_call_operand.vmem [shape: f32[1,32], index: 9, kind: input, shape index: {}]
  %s10 = inlined_call_operand.vmem [shape: bf16[64,32], index: 10, kind: input, shape index: {}]
  %s11 = inlined_call_operand.vmem [shape: f32[1,32], index: 11, kind: input, shape index: {}]
  %s12 = inlined_call_operand.vmem [shape: f32[12,32], index: 12, kind: output, shape index: {0}]
  %s13 = inlined_call_operand.vmem [shape: f32[10,32], index: 13, kind: output, shape index: {1}]
  %14 = xla_tuple %s12, %s13
  %s15 = sld [smem:[#allocation0]]
  $region66: #{improved_model_forward.8} parent=0
    _
  %s17 = ssub.s32 1, %s15
  %s18 = scalar_select 0, %s17, %s15
  // Predicated region
  $region2: #{improved_model_forward.8} parent=0 // pred_check
    _
  $region3: #{improved_model_forward.8} parent=0 // pred_check_branch
    %20 = sbr.rel (0) target = $region5
  $region4: #{improved_model_forward.8} parent=0 // pred_region
    _
  $region5: #{improved_model_forward.8} parent=0 // pred_fallthru
    _
  // Predicated region
  $region6: #{improved_model_forward.8} parent=0 // pred_check
    _
  $region7: #{improved_model_forward.8} parent=0 // pred_check_branch
    %22 = sbr.rel (0) target = $region9
  $region8: #{improved_model_forward.8} parent=0 // pred_region
    _
  $region9: #{improved_model_forward.8} parent=0 // pred_fallthru
    _
  // Predicated region
  $region10: #{improved_model_forward.8} parent=0 // pred_check
    _
  $region11: #{improved_model_forward.8} parent=0 // pred_check_branch
    %24 = sbr.rel (0) target = $region13
  $region12: #{improved_model_forward.8} parent=0 // pred_region
    _
  $region13: #{improved_model_forward.8} parent=0 // pred_fallthru
    _
  // Predicated region
  $region14: #{improved_model_forward.8} parent=0 // pred_check
    _
  $region15: #{improved_model_forward.8} parent=0 // pred_check_branch
    %26 = sbr.rel (0) target = $region17
  $region16: #{improved_model_forward.8} parent=0 // pred_region
    _
  $region17: #{improved_model_forward.8} parent=0 // pred_fallthru
    _
  // Predicated region
  $region18: #{improved_model_forward.8} parent=0 // pred_check
    _
  $region19: #{improved_model_forward.8} parent=0 // pred_check_branch
    %28 = sbr.rel (0) target = $region21
  $region20: #{improved_model_forward.8} parent=0 // pred_region
    _
  $region21: #{improved_model_forward.8} parent=0 // pred_fallthru
    _
  // Predicated region
  $region22: #{improved_model_forward.8} parent=0 // pred_check
    _
  $region23: #{improved_model_forward.8} parent=0 // pred_check_branch
    %30 = sbr.rel (0) target = $region25
  $region24: #{improved_model_forward.8} parent=0 // pred_region
    _
  $region25: #{improved_model_forward.8} parent=0 // pred_fallthru
    _
  // Predicated region
  $region26: #{improved_model_forward.8} parent=0 // pred_check
    _
  $region27: #{improved_model_forward.8} parent=0 // pred_check_branch
    %32 = sbr.rel (0) target = $region29
  $region28: #{improved_model_forward.8} parent=0 // pred_region
    _
  $region29: #{improved_model_forward.8} parent=0 // pred_fallthru
    _
  // Predicated region
  $region30: #{improved_model_forward.8} parent=0 // pred_check
    _
  $region31: #{improved_model_forward.8} parent=0 // pred_check_branch
    %34 = sbr.rel (0) target = $region33
  $region32: #{improved_model_forward.8} parent=0 // pred_region
    _
  $region33: #{improved_model_forward.8} parent=0 // pred_fallthru
    _
  // Predicated region
  $region34: #{improved_model_forward.8} parent=0 // pred_check
    _
  $region35: #{improved_model_forward.8} parent=0 // pred_check_branch
    %36 = sbr.rel (0) target = $region37
  $region36: #{improved_model_forward.8} parent=0 // pred_region
    _
  $region37: #{improved_model_forward.8} parent=0 // pred_fallthru
    _
  // Predicated region
  $region38: #{improved_model_forward.8} parent=0 // pred_check
    _
  $region39: #{improved_model_forward.8} parent=0 // pred_check_branch
    %38 = sbr.rel (0) target = $region41
  $region40: #{improved_model_forward.8} parent=0 // pred_region
    _
  $region41: #{improved_model_forward.8} parent=0 // pred_fallthru
    _
  // Predicated region
  $region42: #{improved_model_forward.8} parent=0 // pred_check
    _
  $region43: #{improved_model_forward.8} parent=0 // pred_check_branch
    %40 = sbr.rel (0) target = $region45
  $region44: #{improved_model_forward.8} parent=0 // pred_region
    _
  $region45: #{improved_model_forward.8} parent=0 // pred_fallthru
    _
  // Predicated region
  $region46: #{improved_model_forward.8} parent=0 // pred_check
    _
  $region47: #{improved_model_forward.8} parent=0 // pred_check_branch
    %42 = sbr.rel (0) target = $region49
  $region48: #{improved_model_forward.8} parent=0 // pred_region
    _
  $region49: #{improved_model_forward.8} parent=0 // pred_fallthru
    _
  %v44 = vld [vmem:[%s0] sm:$0xff]
  %v45 = vld [vmem:[%s0 + $0x8] sm:$0xf]
  %v46 = vld [vmem:[%s1] sm:$0xff]
  %v47 = vld [vmem:[%s1 + $0x8] sm:$0x3]
  %v48 = vld [vmem:[%s2] sm:$0xf]
  %v49 = vld [vmem:[%s2 + $0x4] sm:$0x3]
  %v50 = vld [vmem:[%s3] sm:$0xf]
  %v51 = vld [vmem:[%s3 + $0x4] sm:$0x1]
  %v52 = vld [vmem:[%s4] sm:$0xf]
  %v53 = vld [vmem:[%s4 + $0x4] sm:$0xf]
  %v54 = vld [vmem:[%s4 + $0x8] sm:$0xf]
  %v55 = vld [vmem:[%s4 + $0xc] sm:$0xf]
  %v56 = vld [vmem:[%s4 + $0x10] sm:$0xf]
  %v57 = vld [vmem:[%s4 + $0x14] sm:$0xf]
  %v58 = vld [vmem:[%s4 + $0x18] sm:$0xf]
  %v59 = vld [vmem:[%s4 + $0x1c] sm:$0xf]
  %v60 = vld [vmem:[%s5] sm:$0x1]
  %v61 = vpack.c.bf16 %v47, %v46
  %v64 = vunpack.c.l.b16 %v48
  %v65 = vunpack.c.l.b16 %v49
  %v66 = vpack.c.b16 %v65, %v64
  %vm67 = vcmask 80896
  %v69 = vsel %vm67, %v66, 0
  %vm71 = vcmask 1044480
  %v73 = vsel %vm71, %v61, 0
  %75 = vmatpush.bf16.msra.mxu0 0
  %76 = vmatpush.bf16.msra.mxu0 0
  %77 = vmatpush.bf16.msra.mxu0 0
  %78 = vmatpush.bf16.msra.mxu0 0
  %79 = vmatpush.bf16.msra.mxu0 0
  %80 = vmatpush.bf16.msra.mxu0 0
  %81 = vmatpush.bf16.msra.mxu0 0
  %82 = vmatpush.bf16.msra.mxu0 %v73
  %83 = vmatmul.bf16.gmra.mxu0 %v69
  %v84 = vpop.f32.mrf.mxu0
  %v85 = vadd.f32 0.0, %v84
  %v86 = vpop.f32.mrf.mxu0
  %v87 = vadd.f32 0.0, %v86
  %88 = vdwg.mxu0
  %91 = vrot.lane.b32.xlu0 %v44, 32
  %v92 = vpop.permute.xlu0 %91
  %93 = vrot.lane.b32.xlu0 %v45, 32
  %v94 = vpop.permute.xlu0 %93
  %vm97 = vcmask 261120
  %v98 = vsel %vm97, %v85, %v92
  %v99 = vsel %vm97, %v87, %v94
  %v100 = vpack.c.bf16 %v99, %v98
  %v102 = vperm.slane %v60, 0
  %v112 = vunpack.c.l.b16 %v52
  %v113 = vunpack.c.l.b16 %v53
  %v114 = vunpack.c.l.b16 %v54
  %v115 = vunpack.c.l.b16 %v55
  %v116 = vunpack.c.l.b16 %v56
  %v117 = vunpack.c.l.b16 %v57
  %v118 = vunpack.c.l.b16 %v58
  %v119 = vunpack.c.l.b16 %v59
  %v120 = vpack.c.b16 %v113, %v112
  %v121 = vpack.c.b16 %v115, %v114
  %v122 = vpack.c.b16 %v117, %v116
  %v123 = vpack.c.b16 %v119, %v118
  %vm128 = vcmask 523264
  %v130 = vsel %vm128, %v100, 0
  %132 = vmatpush.bf16.msra.mxu0 0
  %133 = vmatpush.bf16.msra.mxu0 0
  %134 = vmatpush.bf16.msra.mxu0 0
  %135 = vmatpush.bf16.msra.mxu0 0
  %136 = vmatpush.bf16.msra.mxu0 %v123
  %137 = vmatpush.bf16.msra.mxu0 %v122
  %138 = vmatpush.bf16.msra.mxu0 %v121
  %139 = vmatpush.bf16.msra.mxu0 %v120
  %140 = vmatmul.bf16.gmra.mxu0 %v130
  %v141 = vpop.f32.mrf.mxu0
  %v142 = vadd.f32 %v102, %v141
  %v143 = vpop.f32.mrf.mxu0
  %v144 = vadd.f32 %v102, %v143
  %145 = vdwg.mxu0
  %v146 = vmax.f32 %v142, 0.0
  %v147 = vmax.f32 %v144, 0.0
  %v148 = vld [vmem:[%s6] sm:$0xf]
  %v149 = vld [vmem:[%s6 + $0x4] sm:$0xf]
  %v150 = vld [vmem:[%s6 + $0x8] sm:$0xf]
  %v151 = vld [vmem:[%s6 + $0xc] sm:$0xf]
  %v152 = vld [vmem:[%s6 + $0x10] sm:$0xf]
  %v153 = vld [vmem:[%s6 + $0x14] sm:$0xf]
  %v154 = vld [vmem:[%s6 + $0x18] sm:$0xf]
  %v155 = vld [vmem:[%s6 + $0x1c] sm:$0xf]
  %v156 = vld [vmem:[%s7] sm:$0x1]
  %v157 = vpack.c.bf16 %v45, %v44
  %v160 = vunpack.c.l.b16 %v50
  %v161 = vunpack.c.l.b16 %v51
  %v162 = vpack.c.b16 %v161, %v160
  %vm163 = vcmask 97280
  %v165 = vsel %vm163, %v162, 0
  %vm167 = vcmask 1045504
  %v169 = vsel %vm167, %v157, 0
  %171 = vmatpush.bf16.msra.mxu0 0
  %172 = vmatpush.bf16.msra.mxu0 0
  %173 = vmatpush.bf16.msra.mxu0 0
  %174 = vmatpush.bf16.msra.mxu0 0
  %175 = vmatpush.bf16.msra.mxu0 0
  %176 = vmatpush.bf16.msra.mxu0 0
  %177 = vmatpush.bf16.msra.mxu0 0
  %178 = vmatpush.bf16.msra.mxu0 %v169
  %179 = vmatmul.bf16.gmra.mxu0 %v165
  %v180 = vpop.f32.mrf.mxu0
  %v181 = vadd.f32 0.0, %v180
  %v182 = vpop.f32.mrf.mxu0
  %v183 = vadd.f32 0.0, %v182
  %184 = vdwg.mxu0
  %187 = vrot.lane.b32.xlu0 %v46, 32
  %v188 = vpop.permute.xlu0 %187
  %189 = vrot.lane.b32.xlu0 %v47, 32
  %v190 = vpop.permute.xlu0 %189
  %v193 = vsel %vm97, %v181, %v188
  %v194 = vsel %vm97, %v183, %v190
  %v195 = vpack.c.bf16 %v194, %v193
  %v197 = vperm.slane %v156, 0
  %v207 = vunpack.c.l.b16 %v148
  %v208 = vunpack.c.l.b16 %v149
  %v209 = vunpack.c.l.b16 %v150
  %v210 = vunpack.c.l.b16 %v151
  %v211 = vunpack.c.l.b16 %v152
  %v212 = vunpack.c.l.b16 %v153
  %v213 = vunpack.c.l.b16 %v154
  %v214 = vunpack.c.l.b16 %v155
  %v215 = vpack.c.b16 %v208, %v207
  %v216 = vpack.c.b16 %v210, %v209
  %v217 = vpack.c.b16 %v212, %v211
  %v218 = vpack.c.b16 %v214, %v213
  %v224 = vsel %vm128, %v195, 0
  %226 = vmatpush.bf16.msra.mxu0 0
  %227 = vmatpush.bf16.msra.mxu0 0
  %228 = vmatpush.bf16.msra.mxu0 0
  %229 = vmatpush.bf16.msra.mxu0 0
  %230 = vmatpush.bf16.msra.mxu0 %v218
  %231 = vmatpush.bf16.msra.mxu0 %v217
  %232 = vmatpush.bf16.msra.mxu0 %v216
  %233 = vmatpush.bf16.msra.mxu0 %v215
  %234 = vmatmul.bf16.gmra.mxu0 %v224
  %v235 = vpop.f32.mrf.mxu0
  %v236 = vadd.f32 %v197, %v235
  %v237 = vpop.f32.mrf.mxu0
  %v238 = vadd.f32 %v197, %v237
  %239 = vdwg.mxu0
  %v240 = vmax.f32 %v236, 0.0
  %v241 = vmax.f32 %v238, 0.0
  %v242 = vld [vmem:[%s8] sm:$0xf]
  %v243 = vld [vmem:[%s8 + $0x4] sm:$0xf]
  %v244 = vld [vmem:[%s8 + $0x8] sm:$0xf]
  %v245 = vld [vmem:[%s8 + $0xc] sm:$0xf]
  %v246 = vld [vmem:[%s8 + $0x10] sm:$0xf]
  %v247 = vld [vmem:[%s8 + $0x14] sm:$0xf]
  %v248 = vld [vmem:[%s8 + $0x18] sm:$0xf]
  %v249 = vld [vmem:[%s8 + $0x1c] sm:$0xf]
  %v250 = vld [vmem:[%s9] sm:$0x1]
  %v251 = vpack.c.bf16 %v241, %v240
  %v253 = vsel %vm71, %v251, 0
  %255 = vmatpush.bf16.msra.mxu0 0
  %256 = vmatpush.bf16.msra.mxu0 0
  %257 = vmatpush.bf16.msra.mxu0 0
  %258 = vmatpush.bf16.msra.mxu0 0
  %259 = vmatpush.bf16.msra.mxu0 0
  %260 = vmatpush.bf16.msra.mxu0 0
  %261 = vmatpush.bf16.msra.mxu0 0
  %262 = vmatpush.bf16.msra.mxu0 %v253
  %263 = vmatmul.bf16.gmra.mxu0 %v69
  %v264 = vpop.f32.mrf.mxu0
  %v265 = vadd.f32 0.0, %v264
  %v266 = vpop.f32.mrf.mxu0
  %v267 = vadd.f32 0.0, %v266
  %268 = vdwg.mxu0
  %271 = vrot.lane.b32.xlu0 %v146, 32
  %v272 = vpop.permute.xlu0 %271
  %273 = vrot.lane.b32.xlu0 %v147, 32
  %v274 = vpop.permute.xlu0 %273
  %v277 = vsel %vm97, %v265, %v272
  %v278 = vsel %vm97, %v267, %v274
  %v279 = vpack.c.bf16 %v278, %v277
  %v281 = vperm.slane %v250, 0
  %v291 = vunpack.c.l.b16 %v242
  %v292 = vunpack.c.l.b16 %v243
  %v293 = vunpack.c.l.b16 %v244
  %v294 = vunpack.c.l.b16 %v245
  %v295 = vunpack.c.l.b16 %v246
  %v296 = vunpack.c.l.b16 %v247
  %v297 = vunpack.c.l.b16 %v248
  %v298 = vunpack.c.l.b16 %v249
  %v299 = vpack.c.b16 %v292, %v291
  %v300 = vpack.c.b16 %v294, %v293
  %v301 = vpack.c.b16 %v296, %v295
  %v302 = vpack.c.b16 %v298, %v297
  %v308 = vsel %vm128, %v279, 0
  %310 = vmatpush.bf16.msra.mxu0 0
  %311 = vmatpush.bf16.msra.mxu0 0
  %312 = vmatpush.bf16.msra.mxu0 0
  %313 = vmatpush.bf16.msra.mxu0 0
  %314 = vmatpush.bf16.msra.mxu0 %v302
  %315 = vmatpush.bf16.msra.mxu0 %v301
  %316 = vmatpush.bf16.msra.mxu0 %v300
  %317 = vmatpush.bf16.msra.mxu0 %v299
  %318 = vmatmul.bf16.gmra.mxu0 %v308
  %v319 = vpop.f32.mrf.mxu0
  %v320 = vadd.f32 %v281, %v319
  %v321 = vpop.f32.mrf.mxu0
  %v322 = vadd.f32 %v281, %v321
  %323 = vdwg.mxu0
  %324 = vst.msk [vmem:[%s12] sm:$0xff] %vm97, %v320
  %vm325 = vcmask 257024
  %326 = vst.msk [vmem:[%s12 + $0x8] sm:$0xf] %vm325, %v322
  %v327 = vld [vmem:[%s10] sm:$0xf]
  %v328 = vld [vmem:[%s10 + $0x4] sm:$0xf]
  %v329 = vld [vmem:[%s10 + $0x8] sm:$0xf]
  %v330 = vld [vmem:[%s10 + $0xc] sm:$0xf]
  %v331 = vld [vmem:[%s10 + $0x10] sm:$0xf]
  %v332 = vld [vmem:[%s10 + $0x14] sm:$0xf]
  %v333 = vld [vmem:[%s10 + $0x18] sm:$0xf]
  %v334 = vld [vmem:[%s10 + $0x1c] sm:$0xf]
  %v335 = vld [vmem:[%s11] sm:$0x1]
  %v336 = vpack.c.bf16 %v147, %v146
  %v338 = vsel %vm167, %v336, 0
  %340 = vmatpush.bf16.msra.mxu0 0
  %341 = vmatpush.bf16.msra.mxu0 0
  %342 = vmatpush.bf16.msra.mxu0 0
  %343 = vmatpush.bf16.msra.mxu0 0
  %344 = vmatpush.bf16.msra.mxu0 0
  %345 = vmatpush.bf16.msra.mxu0 0
  %346 = vmatpush.bf16.msra.mxu0 0
  %347 = vmatpush.bf16.msra.mxu0 %v338
  %348 = vmatmul.bf16.gmra.mxu0 %v165
  %v349 = vpop.f32.mrf.mxu0
  %v350 = vadd.f32 0.0, %v349
  %v351 = vpop.f32.mrf.mxu0
  %v352 = vadd.f32 0.0, %v351
  %353 = vdwg.mxu0
  %356 = vrot.lane.b32.xlu0 %v240, 32
  %v357 = vpop.permute.xlu0 %356
  %358 = vrot.lane.b32.xlu0 %v241, 32
  %v359 = vpop.permute.xlu0 %358
  %v362 = vsel %vm97, %v350, %v357
  %v363 = vsel %vm97, %v352, %v359
  %v364 = vpack.c.bf16 %v363, %v362
  %v366 = vperm.slane %v335, 0
  %v376 = vunpack.c.l.b16 %v327
  %v377 = vunpack.c.l.b16 %v328
  %v378 = vunpack.c.l.b16 %v329
  %v379 = vunpack.c.l.b16 %v330
  %v380 = vunpack.c.l.b16 %v331
  %v381 = vunpack.c.l.b16 %v332
  %v382 = vunpack.c.l.b16 %v333
  %v383 = vunpack.c.l.b16 %v334
  %v384 = vpack.c.b16 %v377, %v376
  %v385 = vpack.c.b16 %v379, %v378
  %v386 = vpack.c.b16 %v381, %v380
  %v387 = vpack.c.b16 %v383, %v382
  %v393 = vsel %vm128, %v364, 0
  %395 = vmatpush.bf16.msra.mxu0 0
  %396 = vmatpush.bf16.msra.mxu0 0
  %397 = vmatpush.bf16.msra.mxu0 0
  %398 = vmatpush.bf16.msra.mxu0 0
  %399 = vmatpush.bf16.msra.mxu0 %v387
  %400 = vmatpush.bf16.msra.mxu0 %v386
  %401 = vmatpush.bf16.msra.mxu0 %v385
  %402 = vmatpush.bf16.msra.mxu0 %v384
  %403 = vmatmul.bf16.gmra.mxu0 %v393
  %v404 = vpop.f32.mrf.mxu0
  %v405 = vadd.f32 %v366, %v404
  %v406 = vpop.f32.mrf.mxu0
  %v407 = vadd.f32 %v366, %v406
  %408 = vdwg.mxu0
  %409 = vst.msk [vmem:[%s13] sm:$0xff] %vm97, %v405
  %vm410 = vcmask 254976
  %411 = vst.msk [vmem:[%s13 + $0x8] sm:$0x3] %vm410, %v407
  // Predicated region
  $region50: #{improved_model_forward.8} parent=0 // pred_check
    _
  $region51: #{improved_model_forward.8} parent=0 // pred_check_branch
    %413 = sbr.rel (0) target = $region53
  $region52: #{improved_model_forward.8} parent=0 // pred_region
    _
  $region53: #{improved_model_forward.8} parent=0 // pred_fallthru
    _
  // Predicated region
  $region54: #{improved_model_forward.8} parent=0 // pred_check
    _
  $region55: #{improved_model_forward.8} parent=0 // pred_check_branch
    %415 = sbr.rel (0) target = $region57
  $region56: #{improved_model_forward.8} parent=0 // pred_region
    _
  $region57: #{improved_model_forward.8} parent=0 // pred_fallthru
    _
  // Predicated region
  $region58: #{improved_model_forward.8} parent=0 // pred_check
    _
  $region59: #{improved_model_forward.8} parent=0 // pred_check_branch
    %417 = sbr.rel (0) target = $region61
  $region60: #{improved_model_forward.8} parent=0 // pred_region
    _
  $region61: #{improved_model_forward.8} parent=0 // pred_fallthru
    _
  // Predicated region
  $region62: #{improved_model_forward.8} parent=0 // pred_check
    _
  $region63: #{improved_model_forward.8} parent=0 // pred_check_branch
    %419 = sbr.rel (0) target = $region65
  $region64: #{improved_model_forward.8} parent=0 // pred_region
    _
  $region65: #{improved_model_forward.8} parent=0 // pred_fallthru
    _

// kernel: improved_model_forward.7
$region0: #{improved_model_forward.7}
  #allocation0 [shape = 'u32[]', space=smem, size = 0x4, offset = 0x4, fixed_abs, tag = 'smem constant byte address 0x4 - core index']
  #allocation1 [shape = 'u32[72,128]{1,0:T(1,128)}', space=vmem, size = 0x9000, scoped, tag = 'internal scratch']
  %s0 = inlined_call_operand.vmem [shape: f32[12,32], index: 0, kind: input, shape index: {}]
  %s1 = inlined_call_operand.vmem [shape: f32[10,32], index: 1, kind: input, shape index: {}]
  %s2 = inlined_call_operand.vmem [shape: bf16[12,10], index: 2, kind: input, shape index: {}]
  %s3 = inlined_call_operand.vmem [shape: bf16[10,12], index: 3, kind: input, shape index: {}]
  %s4 = inlined_call_operand.vmem [shape: bf16[12,10], index: 4, kind: input, shape index: {}]
  %s5 = inlined_call_operand.vmem [shape: bf16[10,12], index: 5, kind: input, shape index: {}]
  %s6 = inlined_call_operand.vmem [shape: bf16[64,32], index: 6, kind: input, shape index: {}]
  %s7 = inlined_call_operand.vmem [shape: f32[1,32], index: 7, kind: input, shape index: {}]
  %s8 = inlined_call_operand.vmem [shape: bf16[64,32], index: 8, kind: input, shape index: {}]
  %s9 = inlined_call_operand.vmem [shape: f32[1,32], index: 9, kind: input, shape index: {}]
  %s10 = inlined_call_operand.vmem [shape: bf16[32,256], index: 10, kind: input, shape index: {}]
  %s11 = inlined_call_operand.vmem [shape: f32[1,256], index: 11, kind: input, shape index: {}]
  %s12 = inlined_call_operand.vmem [shape: bf16[32,256], index: 12, kind: input, shape index: {}]
  %s13 = inlined_call_operand.vmem [shape: f32[1,256], index: 13, kind: input, shape index: {}]
  %s14 = inlined_call_operand.vmem [shape: bf16[32,256], index: 14, kind: input, shape index: {}]
  %s15 = inlined_call_operand.vmem [shape: f32[1,256], index: 15, kind: input, shape index: {}]
  %s16 = inlined_call_operand.vmem [shape: bf16[32,256], index: 16, kind: input, shape index: {}]
  %s17 = inlined_call_operand.vmem [shape: f32[1,256], index: 17, kind: input, shape index: {}]
  %s18 = inlined_call_operand.vmem [shape: bf16[128,32], index: 18, kind: input, shape index: {}]
  %s19 = inlined_call_operand.vmem [shape: f32[1,32], index: 19, kind: input, shape index: {}]
  %s20 = inlined_call_operand.vmem [shape: bf16[128,32], index: 20, kind: input, shape index: {}]
  %s21 = inlined_call_operand.vmem [shape: f32[1,32], index: 21, kind: input, shape index: {}]
  %s22 = inlined_call_operand.vmem [shape: f32[12,32], index: 22, kind: output, shape index: {0}]
  %s23 = inlined_call_operand.vmem [shape: f32[10,32], index: 23, kind: output, shape index: {1}]
  %24 = xla_tuple %s22, %s23
  %s25 = sld [smem:[#allocation0]]
  $region106: #{improved_model_forward.7} parent=0
    _
  %s27 = ssub.s32 1, %s25
  %s28 = scalar_select 0, %s27, %s25
  // Predicated region
  $region2: #{improved_model_forward.7} parent=0 // pred_check
    _
  $region3: #{improved_model_forward.7} parent=0 // pred_check_branch
    %30 = sbr.rel (0) target = $region5
  $region4: #{improved_model_forward.7} parent=0 // pred_region
    _
  $region5: #{improved_model_forward.7} parent=0 // pred_fallthru
    _
  // Predicated region
  $region6: #{improved_model_forward.7} parent=0 // pred_check
    _
  $region7: #{improved_model_forward.7} parent=0 // pred_check_branch
    %32 = sbr.rel (0) target = $region9
  $region8: #{improved_model_forward.7} parent=0 // pred_region
    _
  $region9: #{improved_model_forward.7} parent=0 // pred_fallthru
    _
  // Predicated region
  $region10: #{improved_model_forward.7} parent=0 // pred_check
    _
  $region11: #{improved_model_forward.7} parent=0 // pred_check_branch
    %34 = sbr.rel (0) target = $region13
  $region12: #{improved_model_forward.7} parent=0 // pred_region
    _
  $region13: #{improved_model_forward.7} parent=0 // pred_fallthru
    _
  // Predicated region
  $region14: #{improved_model_forward.7} parent=0 // pred_check
    _
  $region15: #{improved_model_forward.7} parent=0 // pred_check_branch
    %36 = sbr.rel (0) target = $region17
  $region16: #{improved_model_forward.7} parent=0 // pred_region
    _
  $region17: #{improved_model_forward.7} parent=0 // pred_fallthru
    _
  // Predicated region
  $region18: #{improved_model_forward.7} parent=0 // pred_check
    _
  $region19: #{improved_model_forward.7} parent=0 // pred_check_branch
    %38 = sbr.rel (0) target = $region21
  $region20: #{improved_model_forward.7} parent=0 // pred_region
    _
  $region21: #{improved_model_forward.7} parent=0 // pred_fallthru
    _
  // Predicated region
  $region22: #{improved_model_forward.7} parent=0 // pred_check
    _
  $region23: #{improved_model_forward.7} parent=0 // pred_check_branch
    %40 = sbr.rel (0) target = $region25
  $region24: #{improved_model_forward.7} parent=0 // pred_region
    _
  $region25: #{improved_model_forward.7} parent=0 // pred_fallthru
    _
  // Predicated region
  $region26: #{improved_model_forward.7} parent=0 // pred_check
    _
  $region27: #{improved_model_forward.7} parent=0 // pred_check_branch
    %42 = sbr.rel (0) target = $region29
  $region28: #{improved_model_forward.7} parent=0 // pred_region
    _
  $region29: #{improved_model_forward.7} parent=0 // pred_fallthru
    _
  // Predicated region
  $region30: #{improved_model_forward.7} parent=0 // pred_check
    _
  $region31: #{improved_model_forward.7} parent=0 // pred_check_branch
    %44 = sbr.rel (0) target = $region33
  $region32: #{improved_model_forward.7} parent=0 // pred_region
    _
  $region33: #{improved_model_forward.7} parent=0 // pred_fallthru
    _
  // Predicated region
  $region34: #{improved_model_forward.7} parent=0 // pred_check
    _
  $region35: #{improved_model_forward.7} parent=0 // pred_check_branch
    %46 = sbr.rel (0) target = $region37
  $region36: #{improved_model_forward.7} parent=0 // pred_region
    _
  $region37: #{improved_model_forward.7} parent=0 // pred_fallthru
    _
  // Predicated region
  $region38: #{improved_model_forward.7} parent=0 // pred_check
    _
  $region39: #{improved_model_forward.7} parent=0 // pred_check_branch
    %48 = sbr.rel (0) target = $region41
  $region40: #{improved_model_forward.7} parent=0 // pred_region
    _
  $region41: #{improved_model_forward.7} parent=0 // pred_fallthru
    _
  // Predicated region
  $region42: #{improved_model_forward.7} parent=0 // pred_check
    _
  $region43: #{improved_model_forward.7} parent=0 // pred_check_branch
    %50 = sbr.rel (0) target = $region45
  $region44: #{improved_model_forward.7} parent=0 // pred_region
    _
  $region45: #{improved_model_forward.7} parent=0 // pred_fallthru
    _
  // Predicated region
  $region46: #{improved_model_forward.7} parent=0 // pred_check
    _
  $region47: #{improved_model_forward.7} parent=0 // pred_check_branch
    %52 = sbr.rel (0) target = $region49
  $region48: #{improved_model_forward.7} parent=0 // pred_region
    _
  $region49: #{improved_model_forward.7} parent=0 // pred_fallthru
    _
  // Predicated region
  $region50: #{improved_model_forward.7} parent=0 // pred_check
    _
  $region51: #{improved_model_forward.7} parent=0 // pred_check_branch
    %54 = sbr.rel (0) target = $region53
  $region52: #{improved_model_forward.7} parent=0 // pred_region
    _
  $region53: #{improved_model_forward.7} parent=0 // pred_fallthru
    _
  // Predicated region
  $region54: #{improved_model_forward.7} parent=0 // pred_check
    _
  $region55: #{improved_model_forward.7} parent=0 // pred_check_branch
    %56 = sbr.rel (0) target = $region57
  $region56: #{improved_model_forward.7} parent=0 // pred_region
    _
  $region57: #{improved_model_forward.7} parent=0 // pred_fallthru
    _
  // Predicated region
  $region58: #{improved_model_forward.7} parent=0 // pred_check
    _
  $region59: #{improved_model_forward.7} parent=0 // pred_check_branch
    %58 = sbr.rel (0) target = $region61
  $region60: #{improved_model_forward.7} parent=0 // pred_region
    _
  $region61: #{improved_model_forward.7} parent=0 // pred_fallthru
    _
  // Predicated region
  $region62: #{improved_model_forward.7} parent=0 // pred_check
    _
  $region63: #{improved_model_forward.7} parent=0 // pred_check_branch
    %60 = sbr.rel (0) target = $region65
  $region64: #{improved_model_forward.7} parent=0 // pred_region
    _
  $region65: #{improved_model_forward.7} parent=0 // pred_fallthru
    _
  // Predicated region
  $region66: #{improved_model_forward.7} parent=0 // pred_check
    _
  $region67: #{improved_model_forward.7} parent=0 // pred_check_branch
    %62 = sbr.rel (0) target = $region69
  $region68: #{improved_model_forward.7} parent=0 // pred_region
    _
  $region69: #{improved_model_forward.7} parent=0 // pred_fallthru
    _
  // Predicated region
  $region70: #{improved_model_forward.7} parent=0 // pred_check
    _
  $region71: #{improved_model_forward.7} parent=0 // pred_check_branch
    %64 = sbr.rel (0) target = $region73
  $region72: #{improved_model_forward.7} parent=0 // pred_region
    _
  $region73: #{improved_model_forward.7} parent=0 // pred_fallthru
    _
  // Predicated region
  $region74: #{improved_model_forward.7} parent=0 // pred_check
    _
  $region75: #{improved_model_forward.7} parent=0 // pred_check_branch
    %66 = sbr.rel (0) target = $region77
  $region76: #{improved_model_forward.7} parent=0 // pred_region
    _
  $region77: #{improved_model_forward.7} parent=0 // pred_fallthru
    _
  // Predicated region
  $region78: #{improved_model_forward.7} parent=0 // pred_check
    _
  $region79: #{improved_model_forward.7} parent=0 // pred_check_branch
    %68 = sbr.rel (0) target = $region81
  $region80: #{improved_model_forward.7} parent=0 // pred_region
    _
  $region81: #{improved_model_forward.7} parent=0 // pred_fallthru
    _
  // Predicated region
  $region82: #{improved_model_forward.7} parent=0 // pred_check
    _
  $region83: #{improved_model_forward.7} parent=0 // pred_check_branch
    %70 = sbr.rel (0) target = $region85
  $region84: #{improved_model_forward.7} parent=0 // pred_region
    _
  $region85: #{improved_model_forward.7} parent=0 // pred_fallthru
    _
  // Predicated region
  $region86: #{improved_model_forward.7} parent=0 // pred_check
    _
  $region87: #{improved_model_forward.7} parent=0 // pred_check_branch
    %72 = sbr.rel (0) target = $region89
  $region88: #{improved_model_forward.7} parent=0 // pred_region
    _
  $region89: #{improved_model_forward.7} parent=0 // pred_fallthru
    _
  %v74 = vld [vmem:[%s0] sm:$0xff]
  %v75 = vld [vmem:[%s0 + $0x8] sm:$0xf]
  %v76 = vld [vmem:[%s1] sm:$0xff]
  %v77 = vld [vmem:[%s1 + $0x8] sm:$0x3]
  %v78 = vld [vmem:[%s2] sm:$0xf]
  %v79 = vld [vmem:[%s2 + $0x4] sm:$0x3]
  %v80 = vld [vmem:[%s6] sm:$0xf]
  %v81 = vld [vmem:[%s6 + $0x4] sm:$0xf]
  %v82 = vld [vmem:[%s6 + $0x8] sm:$0xf]
  %v83 = vld [vmem:[%s6 + $0xc] sm:$0xf]
  %v84 = vld [vmem:[%s6 + $0x10] sm:$0xf]
  %v85 = vld [vmem:[%s6 + $0x14] sm:$0xf]
  %v86 = vld [vmem:[%s6 + $0x18] sm:$0xf]
  %v87 = vld [vmem:[%s6 + $0x1c] sm:$0xf]
  %v88 = vld [vmem:[%s7] sm:$0x1]
  %v89 = vpack.c.bf16 %v77, %v76
  %v92 = vunpack.c.l.b16 %v78
  %v93 = vunpack.c.l.b16 %v79
  %v94 = vpack.c.b16 %v93, %v92
  %vm95 = vcmask 80896
  %v97 = vsel %vm95, %v94, 0
  %vm99 = vcmask 1044480
  %v101 = vsel %vm99, %v89, 0
  %103 = vmatpush.bf16.msra.mxu0 0
  %104 = vmatpush.bf16.msra.mxu0 0
  %105 = vmatpush.bf16.msra.mxu0 0
  %106 = vmatpush.bf16.msra.mxu0 0
  %107 = vmatpush.bf16.msra.mxu0 0
  %108 = vmatpush.bf16.msra.mxu0 0
  %109 = vmatpush.bf16.msra.mxu0 0
  %110 = vmatpush.bf16.msra.mxu0 %v101
  %111 = vmatmul.bf16.gmra.mxu0 %v97
  %v112 = vpop.f32.mrf.mxu0
  %v113 = vadd.f32 0.0, %v112
  %v114 = vpop.f32.mrf.mxu0
  %v115 = vadd.f32 0.0, %v114
  %116 = vdwg.mxu0
  %119 = vrot.lane.b32.xlu0 %v74, 32
  %v120 = vpop.permute.xlu0 %119
  %121 = vrot.lane.b32.xlu0 %v75, 32
  %v122 = vpop.permute.xlu0 %121
  %vm125 = vcmask 261120
  %v126 = vsel %vm125, %v113, %v120
  %v127 = vsel %vm125, %v115, %v122
  %v128 = vpack.c.bf16 %v127, %v126
  %v130 = vperm.slane %v88, 0
  %v140 = vunpack.c.l.b16 %v80
  %v141 = vunpack.c.l.b16 %v81
  %v142 = vunpack.c.l.b16 %v82
  %v143 = vunpack.c.l.b16 %v83
  %v144 = vunpack.c.l.b16 %v84
  %v145 = vunpack.c.l.b16 %v85
  %v146 = vunpack.c.l.b16 %v86
  %v147 = vunpack.c.l.b16 %v87
  %v148 = vpack.c.b16 %v141, %v140
  %v149 = vpack.c.b16 %v143, %v142
  %v150 = vpack.c.b16 %v145, %v144
  %v151 = vpack.c.b16 %v147, %v146
  %vm156 = vcmask 523264
  %v158 = vsel %vm156, %v128, 0
  %160 = vmatpush.bf16.msra.mxu0 0
  %161 = vmatpush.bf16.msra.mxu0 0
  %162 = vmatpush.bf16.msra.mxu0 0
  %163 = vmatpush.bf16.msra.mxu0 0
  %164 = vmatpush.bf16.msra.mxu0 %v151
  %165 = vmatpush.bf16.msra.mxu0 %v150
  %166 = vmatpush.bf16.msra.mxu0 %v149
  %167 = vmatpush.bf16.msra.mxu0 %v148
  %168 = vmatmul.bf16.gmra.mxu0 %v158
  %v169 = vpop.f32.mrf.mxu0
  %v170 = vadd.f32 %v130, %v169
  %v171 = vpop.f32.mrf.mxu0
  %v172 = vadd.f32 %v130, %v171
  %173 = vdwg.mxu0
  %v174 = vmax.f32 %v170, 0.0
  %v175 = vmax.f32 %v172, 0.0
  %v176 = vld [vmem:[%s3] sm:$0xf]
  %v177 = vld [vmem:[%s3 + $0x4] sm:$0x1]
  %v178 = vld [vmem:[%s8] sm:$0xf]
  %v179 = vld [vmem:[%s8 + $0x4] sm:$0xf]
  %v180 = vld [vmem:[%s8 + $0x8] sm:$0xf]
  %v181 = vld [vmem:[%s8 + $0xc] sm:$0xf]
  %v182 = vld [vmem:[%s8 + $0x10] sm:$0xf]
  %v183 = vld [vmem:[%s8 + $0x14] sm:$0xf]
  %v184 = vld [vmem:[%s8 + $0x18] sm:$0xf]
  %v185 = vld [vmem:[%s8 + $0x1c] sm:$0xf]
  %v186 = vld [vmem:[%s9] sm:$0x1]
  %v187 = vpack.c.bf16 %v75, %v74
  %v190 = vunpack.c.l.b16 %v176
  %v191 = vunpack.c.l.b16 %v177
  %v192 = vpack.c.b16 %v191, %v190
  %vm193 = vcmask 97280
  %v195 = vsel %vm193, %v192, 0
  %vm197 = vcmask 1045504
  %v199 = vsel %vm197, %v187, 0
  %201 = vmatpush.bf16.msra.mxu0 0
  %202 = vmatpush.bf16.msra.mxu0 0
  %203 = vmatpush.bf16.msra.mxu0 0
  %204 = vmatpush.bf16.msra.mxu0 0
  %205 = vmatpush.bf16.msra.mxu0 0
  %206 = vmatpush.bf16.msra.mxu0 0
  %207 = vmatpush.bf16.msra.mxu0 0
  %208 = vmatpush.bf16.msra.mxu0 %v199
  %209 = vmatmul.bf16.gmra.mxu0 %v195
  %v210 = vpop.f32.mrf.mxu0
  %v211 = vadd.f32 0.0, %v210
  %v212 = vpop.f32.mrf.mxu0
  %v213 = vadd.f32 0.0, %v212
  %214 = vdwg.mxu0
  %217 = vrot.lane.b32.xlu0 %v76, 32
  %v218 = vpop.permute.xlu0 %217
  %219 = vrot.lane.b32.xlu0 %v77, 32
  %v220 = vpop.permute.xlu0 %219
  %v223 = vsel %vm125, %v211, %v218
  %v224 = vsel %vm125, %v213, %v220
  %v225 = vpack.c.bf16 %v224, %v223
  %v227 = vperm.slane %v186, 0
  %v237 = vunpack.c.l.b16 %v178
  %v238 = vunpack.c.l.b16 %v179
  %v239 = vunpack.c.l.b16 %v180
  %v240 = vunpack.c.l.b16 %v181
  %v241 = vunpack.c.l.b16 %v182
  %v242 = vunpack.c.l.b16 %v183
  %v243 = vunpack.c.l.b16 %v184
  %v244 = vunpack.c.l.b16 %v185
  %v245 = vpack.c.b16 %v238, %v237
  %v246 = vpack.c.b16 %v240, %v239
  %v247 = vpack.c.b16 %v242, %v241
  %v248 = vpack.c.b16 %v244, %v243
  %v254 = vsel %vm156, %v225, 0
  %256 = vmatpush.bf16.msra.mxu0 0
  %257 = vmatpush.bf16.msra.mxu0 0
  %258 = vmatpush.bf16.msra.mxu0 0
  %259 = vmatpush.bf16.msra.mxu0 0
  %260 = vmatpush.bf16.msra.mxu0 %v248
  %261 = vmatpush.bf16.msra.mxu0 %v247
  %262 = vmatpush.bf16.msra.mxu0 %v246
  %263 = vmatpush.bf16.msra.mxu0 %v245
  %264 = vmatmul.bf16.gmra.mxu0 %v254
  %v265 = vpop.f32.mrf.mxu0
  %v266 = vadd.f32 %v227, %v265
  %v267 = vpop.f32.mrf.mxu0
  %v268 = vadd.f32 %v227, %v267
  %269 = vdwg.mxu0
  %v270 = vmax.f32 %v266, 0.0
  %v271 = vmax.f32 %v268, 0.0
  %v272 = vld [vmem:[%s10] sm:$0xff]
  %v273 = vld [vmem:[%s10 + $0x8] sm:$0xff]
  %v274 = vld [vmem:[%s10 + $0x10] sm:$0xff]
  %v275 = vld [vmem:[%s10 + $0x18] sm:$0xff]
  %v276 = vpack.c.bf16 %v175, %v174
  %v277 = vld [vmem:[%s11] sm:$0x3]
  %v279 = vperm.slane %v277, 0
  %v280 = vperm.slane %v277, 1
  %v287 = vunpack.c.l.b16 %v272
  %v288 = vunpack.c.h.b16 %v272
  %v289 = vunpack.c.l.b16 %v273
  %v290 = vunpack.c.h.b16 %v273
  %v291 = vunpack.c.l.b16 %v274
  %v292 = vunpack.c.h.b16 %v274
  %v293 = vunpack.c.l.b16 %v275
  %v294 = vunpack.c.h.b16 %v275
  %v295 = vpack.c.b16 %v289, %v287
  %v296 = vpack.c.b16 %v290, %v288
  %v297 = vpack.c.b16 %v293, %v291
  %v298 = vpack.c.b16 %v294, %v292
  %v304 = vsel %vm125, %v276, 0
  %306 = vmatpush.bf16.msra.mxu0 0
  %307 = vmatpush.bf16.msra.mxu0 0
  %308 = vmatpush.bf16.msra.mxu0 0
  %309 = vmatpush.bf16.msra.mxu0 0
  %310 = vmatpush.bf16.msra.mxu0 0
  %311 = vmatpush.bf16.msra.mxu0 0
  %312 = vmatpush.bf16.msra.mxu0 %v297
  %313 = vmatpush.bf16.msra.mxu0 %v295
  %314 = vmatmul.bf16.gmra.mxu0 %v304
  %v315 = vpop.f32.mrf.mxu0
  %v316 = vadd.f32 %v279, %v315
  %v317 = vpop.f32.mrf.mxu0
  %v318 = vadd.f32 %v279, %v317
  %319 = vdwg.mxu0
  %320 = vmatpush.bf16.msra.mxu0 0
  %321 = vmatpush.bf16.msra.mxu0 0
  %322 = vmatpush.bf16.msra.mxu0 0
  %323 = vmatpush.bf16.msra.mxu0 0
  %324 = vmatpush.bf16.msra.mxu0 0
  %325 = vmatpush.bf16.msra.mxu0 0
  %326 = vmatpush.bf16.msra.mxu0 %v298
  %327 = vmatpush.bf16.msra.mxu0 %v296
  %328 = vmatmul.bf16.gmra.mxu0 %v304
  %v329 = vpop.f32.mrf.mxu0
  %v330 = vadd.f32 %v280, %v329
  %v331 = vpop.f32.mrf.mxu0
  %v332 = vadd.f32 %v280, %v331
  %333 = vdwg.mxu0
  %v334 = vld [vmem:[%s12] sm:$0xff]
  %v335 = vld [vmem:[%s12 + $0x8] sm:$0xff]
  %v336 = vld [vmem:[%s12 + $0x10] sm:$0xff]
  %v337 = vld [vmem:[%s12 + $0x18] sm:$0xff]
  %v338 = vpack.c.bf16 %v271, %v270
  %v339 = vld [vmem:[%s13] sm:$0x3]
  %v341 = vperm.slane %v339, 0
  %v342 = vperm.slane %v339, 1
  %v349 = vunpack.c.l.b16 %v334
  %v350 = vunpack.c.h.b16 %v334
  %v351 = vunpack.c.l.b16 %v335
  %v352 = vunpack.c.h.b16 %v335
  %v353 = vunpack.c.l.b16 %v336
  %v354 = vunpack.c.h.b16 %v336
  %v355 = vunpack.c.l.b16 %v337
  %v356 = vunpack.c.h.b16 %v337
  %v357 = vpack.c.b16 %v351, %v349
  %v358 = vpack.c.b16 %v352, %v350
  %v359 = vpack.c.b16 %v355, %v353
  %v360 = vpack.c.b16 %v356, %v354
  %v366 = vsel %vm125, %v338, 0
  %368 = vmatpush.bf16.msra.mxu0 0
  %369 = vmatpush.bf16.msra.mxu0 0
  %370 = vmatpush.bf16.msra.mxu0 0
  %371 = vmatpush.bf16.msra.mxu0 0
  %372 = vmatpush.bf16.msra.mxu0 0
  %373 = vmatpush.bf16.msra.mxu0 0
  %374 = vmatpush.bf16.msra.mxu0 %v359
  %375 = vmatpush.bf16.msra.mxu0 %v357
  %376 = vmatmul.bf16.gmra.mxu0 %v366
  %v377 = vpop.f32.mrf.mxu0
  %v378 = vadd.f32 %v341, %v377
  %v379 = vpop.f32.mrf.mxu0
  %v380 = vadd.f32 %v341, %v379
  %381 = vdwg.mxu0
  %382 = vmatpush.bf16.msra.mxu0 0
  %383 = vmatpush.bf16.msra.mxu0 0
  %384 = vmatpush.bf16.msra.mxu0 0
  %385 = vmatpush.bf16.msra.mxu0 0
  %386 = vmatpush.bf16.msra.mxu0 0
  %387 = vmatpush.bf16.msra.mxu0 0
  %388 = vmatpush.bf16.msra.mxu0 %v360
  %389 = vmatpush.bf16.msra.mxu0 %v358
  %390 = vmatmul.bf16.gmra.mxu0 %v366
  %v391 = vpop.f32.mrf.mxu0
  %v392 = vadd.f32 %v342, %v391
  %v393 = vpop.f32.mrf.mxu0
  %v394 = vadd.f32 %v342, %v393
  %395 = vdwg.mxu0
  %v396 = vld [vmem:[%s4] sm:$0xf]
  %v397 = vld [vmem:[%s4 + $0x4] sm:$0x3]
  %v398 = vunpack.c.l.bf16 %v396
  %v399 = vunpack.c.l.bf16 %v397
  %vm400 = vcmp.gt.f32.partialorder %v398, 0.0
  %vm401 = vcmp.gt.f32.partialorder %v399, 0.0
  %v402 = vpack.c.bf16 %v318, %v316
  %v403 = vpack.c.bf16 %v380, %v378
  %v405 = vsel %vm125, %v402, 0
  %v408 = vsel %vm125, %v403, 0
  %410 = vmatpush.bf16.xpose.msra.mxu0 0
  %411 = vmatpush.bf16.xpose.msra.mxu0 0
  %412 = vmatpush.bf16.xpose.msra.mxu0 0
  %413 = vmatpush.bf16.xpose.msra.mxu0 0
  %414 = vmatpush.bf16.xpose.msra.mxu0 0
  %415 = vmatpush.bf16.xpose.msra.mxu0 0
  %416 = vmatpush.bf16.xpose.msra.mxu0 0
  %417 = vmatpush.bf16.xpose.msra.mxu0 %v408
  %418 = vmatmul.bf16.gmra.mxu0 %v405
  %v419 = vpop.f32.mrf.mxu0
  %v420 = vadd.f32 0.0, %v419
  %v421 = vpop.f32.mrf.mxu0
  %v422 = vadd.f32 0.0, %v421
  %423 = vdwg.mxu0
  %v424 = vmul.f32 %v420, 0.17677669
  %v425 = vmul.f32 %v422, 0.17677669
  %v426 = vsel %vm400, %v424, -1e+30
  %v427 = vsel %vm401, %v425, -1e+30
  %v428 = vsel %vm95, %v426, -inf
  %429 = vmax.xlane.f32.xlu0 %v428
  %v430 = vpop.xlane.xlu0 %429
  %vm431 = vcmask 76800
  %v432 = vsel %vm431, %v427, -inf
  %433 = vmax.xlane.f32.xlu0 %v432
  %v434 = vpop.xlane.xlu0 %433
  %v435 = vsub.f32 %v426, %v430
  %v436 = vsub.f32 %v427, %v434
  %v437 = vmul.f32 %v435, 1.442695
  %v438 = vpow.pop %v437
  %v439 = vmul.f32 %v436, 1.442695
  %v440 = vpow.pop %v439
  %v441 = vsel %vm400, %v438, 0.0
  %v442 = vsel %vm401, %v440, 0.0
  %v443 = vsel %vm95, %v441, 0.0
  %444 = vadd.xlane.f32.xlu0 %v443
  %v445 = vpop.xlane.xlu0 %444
  %v446 = vsel %vm431, %v442, 0.0
  %447 = vadd.xlane.f32.xlu0 %v446
  %v448 = vpop.xlane.xlu0 %447
  %v449 = vmax.f32 %v445, 1e-16
  %v450 = vmax.f32 %v448, 1e-16
  %v451 = vrcp.pop %v449
  %v452 = vmul.f32 %v449, %v451
  %v453 = vsub.f32 1.0, %v452
  %v454 = vmul.f32 %v451, %v453
  %v455 = vadd.f32 %v451, %v454
  %vm456 = vweird.f32 %v449
  %vm457 = vweird.f32 %v451
  %vm458 = vmor %vm456, %vm457
  %v459 = vsel %vm458, %v451, %v455
  %v460 = vand.u32 2147483647, %v449
  %vm461 = vcmp.eq.f32.partialorder %v460, 8.507059e+37
  %v462 = vand.u32 %v449, 2147483648
  %v463 = vor.u32 1.1754944e-38, %v462
  %v464 = vsel %vm461, %v463, %v459
  %v465 = vmul.f32 %v441, %v464
  %v466 = vrcp.pop %v450
  %v467 = vmul.f32 %v450, %v466
  %v468 = vsub.f32 1.0, %v467
  %v469 = vmul.f32 %v466, %v468
  %v470 = vadd.f32 %v466, %v469
  %vm471 = vweird.f32 %v450
  %vm472 = vweird.f32 %v466
  %vm473 = vmor %vm471, %vm472
  %v474 = vsel %vm473, %v466, %v470
  %v475 = vand.u32 2147483647, %v450
  %vm476 = vcmp.eq.f32.partialorder %v475, 8.507059e+37
  %v477 = vand.u32 %v450, 2147483648
  %v478 = vor.u32 1.1754944e-38, %v477
  %v479 = vsel %vm476, %v478, %v474
  %v480 = vmul.f32 %v442, %v479
  %v481 = vpack.c.bf16 %v480, %v465
  %v482 = vpack.c.bf16 %v394, %v392
  %v484 = vsel %vm95, %v481, 0
  %v487 = vsel %vm99, %v482, 0
  %489 = vmatpush.bf16.msra.mxu0 0
  %490 = vmatpush.bf16.msra.mxu0 0
  %491 = vmatpush.bf16.msra.mxu0 0
  %492 = vmatpush.bf16.msra.mxu0 0
  %493 = vmatpush.bf16.msra.mxu0 0
  %494 = vmatpush.bf16.msra.mxu0 0
  %495 = vmatpush.bf16.msra.mxu0 0
  %496 = vmatpush.bf16.msra.mxu0 %v487
  %497 = vmatmul.bf16.gmra.mxu0 %v484
  %v498 = vpop.f32.mrf.mxu0
  %v499 = vadd.f32 0.0, %v498
  %v500 = vpop.f32.mrf.mxu0
  %v501 = vadd.f32 0.0, %v500
  %502 = vdwg.mxu0
  %504 = vrot.lane.b32.xlu0 %v402, 96
  %v505 = vpop.permute.xlu0 %504
  %507 = vrot.lane.b32.xlu0 %v403, 96
  %v508 = vpop.permute.xlu0 %507
  %v510 = vsel %vm125, %v505, 0
  %v513 = vsel %vm125, %v508, 0
  %515 = vmatpush.bf16.xpose.msra.mxu0 0
  %516 = vmatpush.bf16.xpose.msra.mxu0 0
  %517 = vmatpush.bf16.xpose.msra.mxu0 0
  %518 = vmatpush.bf16.xpose.msra.mxu0 0
  %519 = vmatpush.bf16.xpose.msra.mxu0 0
  %520 = vmatpush.bf16.xpose.msra.mxu0 0
  %521 = vmatpush.bf16.xpose.msra.mxu0 0
  %522 = vmatpush.bf16.xpose.msra.mxu0 %v513
  %523 = vmatmul.bf16.gmra.mxu0 %v510
  %v524 = vpop.f32.mrf.mxu0
  %v525 = vadd.f32 0.0, %v524
  %v526 = vpop.f32.mrf.mxu0
  %v527 = vadd.f32 0.0, %v526
  %528 = vdwg.mxu0
  %v529 = vmul.f32 %v525, 0.17677669
  %v530 = vmul.f32 %v527, 0.17677669
  %v531 = vsel %vm400, %v529, -1e+30
  %v532 = vsel %vm401, %v530, -1e+30
  %v533 = vsel %vm95, %v531, -inf
  %534 = vmax.xlane.f32.xlu0 %v533
  %v535 = vpop.xlane.xlu0 %534
  %v536 = vsel %vm431, %v532, -inf
  %537 = vmax.xlane.f32.xlu0 %v536
  %v538 = vpop.xlane.xlu0 %537
  %v539 = vsub.f32 %v531, %v535
  %v540 = vsub.f32 %v532, %v538
  %v541 = vmul.f32 %v539, 1.442695
  %v542 = vpow.pop %v541
  %v543 = vmul.f32 %v540, 1.442695
  %v544 = vpow.pop %v543
  %v545 = vsel %vm400, %v542, 0.0
  %v546 = vsel %vm401, %v544, 0.0
  %v547 = vsel %vm95, %v545, 0.0
  %548 = vadd.xlane.f32.xlu0 %v547
  %v549 = vpop.xlane.xlu0 %548
  %v550 = vsel %vm431, %v546, 0.0
  %551 = vadd.xlane.f32.xlu0 %v550
  %v552 = vpop.xlane.xlu0 %551
  %v553 = vmax.f32 %v549, 1e-16
  %v554 = vmax.f32 %v552, 1e-16
  %v555 = vrcp.pop %v553
  %v556 = vmul.f32 %v553, %v555
  %v557 = vsub.f32 1.0, %v556
  %v558 = vmul.f32 %v555, %v557
  %v559 = vadd.f32 %v555, %v558
  %vm560 = vweird.f32 %v553
  %vm561 = vweird.f32 %v555
  %vm562 = vmor %vm560, %vm561
  %v563 = vsel %vm562, %v555, %v559
  %v564 = vand.u32 2147483647, %v553
  %vm565 = vcmp.eq.f32.partialorder %v564, 8.507059e+37
  %v566 = vand.u32 %v553, 2147483648
  %v567 = vor.u32 1.1754944e-38, %v566
  %v568 = vsel %vm565, %v567, %v563
  %v569 = vmul.f32 %v545, %v568
  %v570 = vrcp.pop %v554
  %v571 = vmul.f32 %v554, %v570
  %v572 = vsub.f32 1.0, %v571
  %v573 = vmul.f32 %v570, %v572
  %v574 = vadd.f32 %v570, %v573
  %vm575 = vweird.f32 %v554
  %vm576 = vweird.f32 %v570
  %vm577 = vmor %vm575, %vm576
  %v578 = vsel %vm577, %v570, %v574
  %v579 = vand.u32 2147483647, %v554
  %vm580 = vcmp.eq.f32.partialorder %v579, 8.507059e+37
  %v581 = vand.u32 %v554, 2147483648
  %v582 = vor.u32 1.1754944e-38, %v581
  %v583 = vsel %vm580, %v582, %v578
  %v584 = vmul.f32 %v546, %v583
  %v585 = vpack.c.bf16 %v584, %v569
  %587 = vrot.lane.b32.xlu0 %v482, 96
  %v588 = vpop.permute.xlu0 %587
  %v590 = vsel %vm95, %v585, 0
  %v593 = vsel %vm99, %v588, 0
  %595 = vmatpush.bf16.msra.mxu0 0
  %596 = vmatpush.bf16.msra.mxu0 0
  %597 = vmatpush.bf16.msra.mxu0 0
  %598 = vmatpush.bf16.msra.mxu0 0
  %599 = vmatpush.bf16.msra.mxu0 0
  %600 = vmatpush.bf16.msra.mxu0 0
  %601 = vmatpush.bf16.msra.mxu0 0
  %602 = vmatpush.bf16.msra.mxu0 %v593
  %603 = vmatmul.bf16.gmra.mxu0 %v590
  %v604 = vpop.f32.mrf.mxu0
  %v605 = vadd.f32 0.0, %v604
  %v606 = vpop.f32.mrf.mxu0
  %v607 = vadd.f32 0.0, %v606
  %608 = vdwg.mxu0
  %609 = vrot.lane.b32.xlu0 %v402, 64
  %v610 = vpop.permute.xlu0 %609
  %611 = vrot.lane.b32.xlu0 %v403, 64
  %v612 = vpop.permute.xlu0 %611
  %v614 = vsel %vm125, %v610, 0
  %v617 = vsel %vm125, %v612, 0
  %619 = vmatpush.bf16.xpose.msra.mxu0 0
  %620 = vmatpush.bf16.xpose.msra.mxu0 0
  %621 = vmatpush.bf16.xpose.msra.mxu0 0
  %622 = vmatpush.bf16.xpose.msra.mxu0 0
  %623 = vmatpush.bf16.xpose.msra.mxu0 0
  %624 = vmatpush.bf16.xpose.msra.mxu0 0
  %625 = vmatpush.bf16.xpose.msra.mxu0 0
  %626 = vmatpush.bf16.xpose.msra.mxu0 %v617
  %627 = vmatmul.bf16.gmra.mxu0 %v614
  %v628 = vpop.f32.mrf.mxu0
  %v629 = vadd.f32 0.0, %v628
  %v630 = vpop.f32.mrf.mxu0
  %v631 = vadd.f32 0.0, %v630
  %632 = vdwg.mxu0
  %v633 = vmul.f32 %v629, 0.17677669
  %v634 = vmul.f32 %v631, 0.17677669
  %v635 = vsel %vm400, %v633, -1e+30
  %v636 = vsel %vm401, %v634, -1e+30
  %v637 = vsel %vm95, %v635, -inf
  %638 = vmax.xlane.f32.xlu0 %v637
  %v639 = vpop.xlane.xlu0 %638
  %v640 = vsel %vm431, %v636, -inf
  %641 = vmax.xlane.f32.xlu0 %v640
  %v642 = vpop.xlane.xlu0 %641
  %v643 = vsub.f32 %v635, %v639
  %v644 = vsub.f32 %v636, %v642
  %v645 = vmul.f32 %v643, 1.442695
  %v646 = vpow.pop %v645
  %v647 = vmul.f32 %v644, 1.442695
  %v648 = vpow.pop %v647
  %v649 = vsel %vm400, %v646, 0.0
  %v650 = vsel %vm401, %v648, 0.0
  %v651 = vsel %vm95, %v649, 0.0
  %652 = vadd.xlane.f32.xlu0 %v651
  %v653 = vpop.xlane.xlu0 %652
  %v654 = vsel %vm431, %v650, 0.0
  %655 = vadd.xlane.f32.xlu0 %v654
  %v656 = vpop.xlane.xlu0 %655
  %v657 = vmax.f32 %v653, 1e-16
  %v658 = vmax.f32 %v656, 1e-16
  %v659 = vrcp.pop %v657
  %v660 = vmul.f32 %v657, %v659
  %v661 = vsub.f32 1.0, %v660
  %v662 = vmul.f32 %v659, %v661
  %v663 = vadd.f32 %v659, %v662
  %vm664 = vweird.f32 %v657
  %vm665 = vweird.f32 %v659
  %vm666 = vmor %vm664, %vm665
  %v667 = vsel %vm666, %v659, %v663
  %v668 = vand.u32 2147483647, %v657
  %vm669 = vcmp.eq.f32.partialorder %v668, 8.507059e+37
  %v670 = vand.u32 %v657, 2147483648
  %v671 = vor.u32 1.1754944e-38, %v670
  %v672 = vsel %vm669, %v671, %v667
  %v673 = vmul.f32 %v649, %v672
  %v674 = vrcp.pop %v658
  %v675 = vmul.f32 %v658, %v674
  %v676 = vsub.f32 1.0, %v675
  %v677 = vmul.f32 %v674, %v676
  %v678 = vadd.f32 %v674, %v677
  %vm679 = vweird.f32 %v658
  %vm680 = vweird.f32 %v674
  %vm681 = vmor %vm679, %vm680
  %v682 = vsel %vm681, %v674, %v678
  %v683 = vand.u32 2147483647, %v658
  %vm684 = vcmp.eq.f32.partialorder %v683, 8.507059e+37
  %v685 = vand.u32 %v658, 2147483648
  %v686 = vor.u32 1.1754944e-38, %v685
  %v687 = vsel %vm684, %v686, %v682
  %v688 = vmul.f32 %v650, %v687
  %v689 = vpack.c.bf16 %v688, %v673
  %690 = vrot.lane.b32.xlu0 %v482, 64
  %v691 = vpop.permute.xlu0 %690
  %v693 = vsel %vm95, %v689, 0
  %v696 = vsel %vm99, %v691, 0
  %698 = vmatpush.bf16.msra.mxu0 0
  %699 = vmatpush.bf16.msra.mxu0 0
  %700 = vmatpush.bf16.msra.mxu0 0
  %701 = vmatpush.bf16.msra.mxu0 0
  %702 = vmatpush.bf16.msra.mxu0 0
  %703 = vmatpush.bf16.msra.mxu0 0
  %704 = vmatpush.bf16.msra.mxu0 0
  %705 = vmatpush.bf16.msra.mxu0 %v696
  %706 = vmatmul.bf16.gmra.mxu0 %v693
  %v707 = vpop.f32.mrf.mxu0
  %v708 = vadd.f32 0.0, %v707
  %v709 = vpop.f32.mrf.mxu0
  %v710 = vadd.f32 0.0, %v709
  %711 = vdwg.mxu0
  %712 = vrot.lane.b32.xlu0 %v402, 32
  %v713 = vpop.permute.xlu0 %712
  %714 = vrot.lane.b32.xlu0 %v403, 32
  %v715 = vpop.permute.xlu0 %714
  %v717 = vsel %vm125, %v713, 0
  %v720 = vsel %vm125, %v715, 0
  %722 = vmatpush.bf16.xpose.msra.mxu0 0
  %723 = vmatpush.bf16.xpose.msra.mxu0 0
  %724 = vmatpush.bf16.xpose.msra.mxu0 0
  %725 = vmatpush.bf16.xpose.msra.mxu0 0
  %726 = vmatpush.bf16.xpose.msra.mxu0 0
  %727 = vmatpush.bf16.xpose.msra.mxu0 0
  %728 = vmatpush.bf16.xpose.msra.mxu0 0
  %729 = vmatpush.bf16.xpose.msra.mxu0 %v720
  %730 = vmatmul.bf16.gmra.mxu0 %v717
  %v731 = vpop.f32.mrf.mxu0
  %v732 = vadd.f32 0.0, %v731
  %v733 = vpop.f32.mrf.mxu0
  %v734 = vadd.f32 0.0, %v733
  %735 = vdwg.mxu0
  %v736 = vmul.f32 %v732, 0.17677669
  %v737 = vmul.f32 %v734, 0.17677669
  %v738 = vsel %vm400, %v736, -1e+30
  %v739 = vsel %vm401, %v737, -1e+30
  %v740 = vsel %vm95, %v738, -inf
  %741 = vmax.xlane.f32.xlu0 %v740
  %v742 = vpop.xlane.xlu0 %741
  %v743 = vsel %vm431, %v739, -inf
  %744 = vmax.xlane.f32.xlu0 %v743
  %v745 = vpop.xlane.xlu0 %744
  %v746 = vsub.f32 %v738, %v742
  %v747 = vsub.f32 %v739, %v745
  %v748 = vmul.f32 %v746, 1.442695
  %v749 = vpow.pop %v748
  %v750 = vmul.f32 %v747, 1.442695
  %v751 = vpow.pop %v750
  %v752 = vsel %vm400, %v749, 0.0
  %v753 = vsel %vm401, %v751, 0.0
  %v754 = vsel %vm95, %v752, 0.0
  %755 = vadd.xlane.f32.xlu0 %v754
  %v756 = vpop.xlane.xlu0 %755
  %v757 = vsel %vm431, %v753, 0.0
  %758 = vadd.xlane.f32.xlu0 %v757
  %v759 = vpop.xlane.xlu0 %758
  %v760 = vmax.f32 %v756, 1e-16
  %v761 = vmax.f32 %v759, 1e-16
  %v762 = vrcp.pop %v760
  %v763 = vmul.f32 %v760, %v762
  %v764 = vsub.f32 1.0, %v763
  %v765 = vmul.f32 %v762, %v764
  %v766 = vadd.f32 %v762, %v765
  %vm767 = vweird.f32 %v760
  %vm768 = vweird.f32 %v762
  %vm769 = vmor %vm767, %vm768
  %v770 = vsel %vm769, %v762, %v766
  %v771 = vand.u32 2147483647, %v760
  %vm772 = vcmp.eq.f32.partialorder %v771, 8.507059e+37
  %v773 = vand.u32 %v760, 2147483648
  %v774 = vor.u32 1.1754944e-38, %v773
  %v775 = vsel %vm772, %v774, %v770
  %v776 = vmul.f32 %v752, %v775
  %v777 = vrcp.pop %v761
  %v778 = vmul.f32 %v761, %v777
  %v779 = vsub.f32 1.0, %v778
  %v780 = vmul.f32 %v777, %v779
  %v781 = vadd.f32 %v777, %v780
  %vm782 = vweird.f32 %v761
  %vm783 = vweird.f32 %v777
  %vm784 = vmor %vm782, %vm783
  %v785 = vsel %vm784, %v777, %v781
  %v786 = vand.u32 2147483647, %v761
  %vm787 = vcmp.eq.f32.partialorder %v786, 8.507059e+37
  %v788 = vand.u32 %v761, 2147483648
  %v789 = vor.u32 1.1754944e-38, %v788
  %v790 = vsel %vm787, %v789, %v785
  %v791 = vmul.f32 %v753, %v790
  %v792 = vpack.c.bf16 %v791, %v776
  %793 = vrot.lane.b32.xlu0 %v482, 32
  %v794 = vpop.permute.xlu0 %793
  %v796 = vsel %vm95, %v792, 0
  %v799 = vsel %vm99, %v794, 0
  %801 = vmatpush.bf16.msra.mxu0 0
  %802 = vmatpush.bf16.msra.mxu0 0
  %803 = vmatpush.bf16.msra.mxu0 0
  %804 = vmatpush.bf16.msra.mxu0 0
  %805 = vmatpush.bf16.msra.mxu0 0
  %806 = vmatpush.bf16.msra.mxu0 0
  %807 = vmatpush.bf16.msra.mxu0 0
  %808 = vmatpush.bf16.msra.mxu0 %v799
  %809 = vmatmul.bf16.gmra.mxu0 %v796
  %v810 = vpop.f32.mrf.mxu0
  %v811 = vadd.f32 0.0, %v810
  %v812 = vpop.f32.mrf.mxu0
  %v813 = vadd.f32 0.0, %v812
  %814 = vdwg.mxu0
  %817 = vrot.lane.b32.xlu0 %v605, 32
  %v818 = vpop.permute.xlu0 %817
  %819 = vrot.lane.b32.xlu0 %v607, 32
  %v820 = vpop.permute.xlu0 %819
  %825 = vrot.lane.b32.xlu0 %v708, 64
  %v826 = vpop.permute.xlu0 %825
  %827 = vrot.lane.b32.xlu0 %v710, 64
  %v828 = vpop.permute.xlu0 %827
  %833 = vrot.lane.b32.xlu0 %v811, 96
  %v834 = vpop.permute.xlu0 %833
  %835 = vrot.lane.b32.xlu0 %v813, 96
  %v836 = vpop.permute.xlu0 %835
  %v839 = vsel %vm125, %v499, %v818
  %v840 = vsel %vm125, %v501, %v820
  %v841 = vsel %vm156, %v839, %v826
  %v842 = vsel %vm156, %v840, %v828
  %vm843 = vcmask 785408
  %v844 = vsel %vm843, %v841, %v834
  %v845 = vsel %vm843, %v842, %v836
  %v846 = vadd.f32 %v844, %v330
  %v847 = vadd.f32 %v845, %v332
  %v848 = vmax.f32 %v846, 0.0
  %v849 = vmax.f32 %v847, 0.0
  %v850 = vld [vmem:[%s14] sm:$0xff]
  %v851 = vld [vmem:[%s14 + $0x8] sm:$0xff]
  %v852 = vld [vmem:[%s14 + $0x10] sm:$0xff]
  %v853 = vld [vmem:[%s14 + $0x18] sm:$0xff]
  %v854 = vld [vmem:[%s15] sm:$0x3]
  %v856 = vperm.slane %v854, 0
  %v857 = vperm.slane %v854, 1
  %v864 = vunpack.c.l.b16 %v850
  %v865 = vunpack.c.h.b16 %v850
  %v866 = vunpack.c.l.b16 %v851
  %v867 = vunpack.c.h.b16 %v851
  %v868 = vunpack.c.l.b16 %v852
  %v869 = vunpack.c.h.b16 %v852
  %v870 = vunpack.c.l.b16 %v853
  %v871 = vunpack.c.h.b16 %v853
  %v872 = vpack.c.b16 %v866, %v864
  %v873 = vpack.c.b16 %v867, %v865
  %v874 = vpack.c.b16 %v870, %v868
  %v875 = vpack.c.b16 %v871, %v869
  %880 = vmatpush.bf16.msra.mxu0 0
  %881 = vmatpush.bf16.msra.mxu0 0
  %882 = vmatpush.bf16.msra.mxu0 0
  %883 = vmatpush.bf16.msra.mxu0 0
  %884 = vmatpush.bf16.msra.mxu0 0
  %885 = vmatpush.bf16.msra.mxu0 0
  %886 = vmatpush.bf16.msra.mxu0 %v874
  %887 = vmatpush.bf16.msra.mxu0 %v872
  %888 = vmatmul.bf16.gmra.mxu0 %v366
  %v889 = vpop.f32.mrf.mxu0
  %v890 = vadd.f32 %v856, %v889
  %v891 = vpop.f32.mrf.mxu0
  %v892 = vadd.f32 %v856, %v891
  %893 = vdwg.mxu0
  %894 = vmatpush.bf16.msra.mxu0 0
  %895 = vmatpush.bf16.msra.mxu0 0
  %896 = vmatpush.bf16.msra.mxu0 0
  %897 = vmatpush.bf16.msra.mxu0 0
  %898 = vmatpush.bf16.msra.mxu0 0
  %899 = vmatpush.bf16.msra.mxu0 0
  %900 = vmatpush.bf16.msra.mxu0 %v875
  %901 = vmatpush.bf16.msra.mxu0 %v873
  %902 = vmatmul.bf16.gmra.mxu0 %v366
  %v903 = vpop.f32.mrf.mxu0
  %v904 = vadd.f32 %v857, %v903
  %v905 = vpop.f32.mrf.mxu0
  %v906 = vadd.f32 %v857, %v905
  %907 = vdwg.mxu0
  %v908 = vld [vmem:[%s16] sm:$0xff]
  %v909 = vld [vmem:[%s16 + $0x8] sm:$0xff]
  %v910 = vld [vmem:[%s16 + $0x10] sm:$0xff]
  %v911 = vld [vmem:[%s16 + $0x18] sm:$0xff]
  %v912 = vld [vmem:[%s17] sm:$0x3]
  %v914 = vperm.slane %v912, 0
  %v915 = vperm.slane %v912, 1
  %v922 = vunpack.c.l.b16 %v908
  %v923 = vunpack.c.h.b16 %v908
  %v924 = vunpack.c.l.b16 %v909
  %v925 = vunpack.c.h.b16 %v909
  %v926 = vunpack.c.l.b16 %v910
  %v927 = vunpack.c.h.b16 %v910
  %v928 = vunpack.c.l.b16 %v911
  %v929 = vunpack.c.h.b16 %v911
  %v930 = vpack.c.b16 %v924, %v922
  %v931 = vpack.c.b16 %v925, %v923
  %v932 = vpack.c.b16 %v928, %v926
  %v933 = vpack.c.b16 %v929, %v927
  %938 = vmatpush.bf16.msra.mxu0 0
  %939 = vmatpush.bf16.msra.mxu0 0
  %940 = vmatpush.bf16.msra.mxu0 0
  %941 = vmatpush.bf16.msra.mxu0 0
  %942 = vmatpush.bf16.msra.mxu0 0
  %943 = vmatpush.bf16.msra.mxu0 0
  %944 = vmatpush.bf16.msra.mxu0 %v932
  %945 = vmatpush.bf16.msra.mxu0 %v930
  %946 = vmatmul.bf16.gmra.mxu0 %v304
  %v947 = vpop.f32.mrf.mxu0
  %v948 = vadd.f32 %v914, %v947
  %v949 = vpop.f32.mrf.mxu0
  %v950 = vadd.f32 %v914, %v949
  %951 = vdwg.mxu0
  %952 = vmatpush.bf16.msra.mxu0 0
  %953 = vmatpush.bf16.msra.mxu0 0
  %954 = vmatpush.bf16.msra.mxu0 0
  %955 = vmatpush.bf16.msra.mxu0 0
  %956 = vmatpush.bf16.msra.mxu0 0
  %957 = vmatpush.bf16.msra.mxu0 0
  %958 = vmatpush.bf16.msra.mxu0 %v933
  %959 = vmatpush.bf16.msra.mxu0 %v931
  %960 = vmatmul.bf16.gmra.mxu0 %v304
  %v961 = vpop.f32.mrf.mxu0
  %v962 = vadd.f32 %v915, %v961
  %v963 = vpop.f32.mrf.mxu0
  %v964 = vadd.f32 %v915, %v963
  %965 = vdwg.mxu0
  %v966 = vld [vmem:[%s5] sm:$0xf]
  %v967 = vld [vmem:[%s5 + $0x4] sm:$0x1]
  %v968 = vunpack.c.l.bf16 %v966
  %v969 = vunpack.c.l.bf16 %v967
  %vm970 = vcmp.gt.f32.partialorder %v968, 0.0
  %vm971 = vcmp.gt.f32.partialorder %v969, 0.0
  %v972 = vpack.c.bf16 %v892, %v890
  %v973 = vpack.c.bf16 %v950, %v948
  %v975 = vsel %vm125, %v972, 0
  %v978 = vsel %vm125, %v973, 0
  %980 = vmatpush.bf16.xpose.msra.mxu0 0
  %981 = vmatpush.bf16.xpose.msra.mxu0 0
  %982 = vmatpush.bf16.xpose.msra.mxu0 0
  %983 = vmatpush.bf16.xpose.msra.mxu0 0
  %984 = vmatpush.bf16.xpose.msra.mxu0 0
  %985 = vmatpush.bf16.xpose.msra.mxu0 0
  %986 = vmatpush.bf16.xpose.msra.mxu0 0
  %987 = vmatpush.bf16.xpose.msra.mxu0 %v978
  %988 = vmatmul.bf16.gmra.mxu0 %v975
  %v989 = vpop.f32.mrf.mxu0
  %v990 = vadd.f32 0.0, %v989
  %v991 = vpop.f32.mrf.mxu0
  %v992 = vadd.f32 0.0, %v991
  %993 = vdwg.mxu0
  %v994 = vmul.f32 %v990, 0.17677669
  %v995 = vmul.f32 %v992, 0.17677669
  %v996 = vsel %vm970, %v994, -1e+30
  %v997 = vsel %vm971, %v995, -1e+30
  %v998 = vsel %vm193, %v996, -inf
  %999 = vmax.xlane.f32.xlu0 %v998
  %v1000 = vpop.xlane.xlu0 %999
  %vm1001 = vcmask 91136
  %v1002 = vsel %vm1001, %v997, -inf
  %1003 = vmax.xlane.f32.xlu0 %v1002
  %v1004 = vpop.xlane.xlu0 %1003
  %v1005 = vsub.f32 %v996, %v1000
  %v1006 = vsub.f32 %v997, %v1004
  %v1007 = vmul.f32 %v1005, 1.442695
  %v1008 = vpow.pop %v1007
  %v1009 = vmul.f32 %v1006, 1.442695
  %v1010 = vpow.pop %v1009
  %v1011 = vsel %vm970, %v1008, 0.0
  %v1012 = vsel %vm971, %v1010, 0.0
  %v1013 = vsel %vm193, %v1011, 0.0
  %1014 = vadd.xlane.f32.xlu0 %v1013
  %v1015 = vpop.xlane.xlu0 %1014
  %v1016 = vsel %vm1001, %v1012, 0.0
  %1017 = vadd.xlane.f32.xlu0 %v1016
  %v1018 = vpop.xlane.xlu0 %1017
  %v1019 = vmax.f32 %v1015, 1e-16
  %v1020 = vmax.f32 %v1018, 1e-16
  %v1021 = vrcp.pop %v1019
  %v1022 = vmul.f32 %v1019, %v1021
  %v1023 = vsub.f32 1.0, %v1022
  %v1024 = vmul.f32 %v1021, %v1023
  %v1025 = vadd.f32 %v1021, %v1024
  %vm1026 = vweird.f32 %v1019
  %vm1027 = vweird.f32 %v1021
  %vm1028 = vmor %vm1026, %vm1027
  %v1029 = vsel %vm1028, %v1021, %v1025
  %v1030 = vand.u32 2147483647, %v1019
  %vm1031 = vcmp.eq.f32.partialorder %v1030, 8.507059e+37
  %v1032 = vand.u32 %v1019, 2147483648
  %v1033 = vor.u32 1.1754944e-38, %v1032
  %v1034 = vsel %vm1031, %v1033, %v1029
  %v1035 = vmul.f32 %v1011, %v1034
  %v1036 = vrcp.pop %v1020
  %v1037 = vmul.f32 %v1020, %v1036
  %v1038 = vsub.f32 1.0, %v1037
  %v1039 = vmul.f32 %v1036, %v1038
  %v1040 = vadd.f32 %v1036, %v1039
  %vm1041 = vweird.f32 %v1020
  %vm1042 = vweird.f32 %v1036
  %vm1043 = vmor %vm1041, %vm1042
  %v1044 = vsel %vm1043, %v1036, %v1040
  %v1045 = vand.u32 2147483647, %v1020
  %vm1046 = vcmp.eq.f32.partialorder %v1045, 8.507059e+37
  %v1047 = vand.u32 %v1020, 2147483648
  %v1048 = vor.u32 1.1754944e-38, %v1047
  %v1049 = vsel %vm1046, %v1048, %v1044
  %v1050 = vmul.f32 %v1012, %v1049
  %v1051 = vpack.c.bf16 %v1050, %v1035
  %v1052 = vpack.c.bf16 %v964, %v962
  %v1054 = vsel %vm193, %v1051, 0
  %v1057 = vsel %vm197, %v1052, 0
  %1059 = vmatpush.bf16.msra.mxu0 0
  %1060 = vmatpush.bf16.msra.mxu0 0
  %1061 = vmatpush.bf16.msra.mxu0 0
  %1062 = vmatpush.bf16.msra.mxu0 0
  %1063 = vmatpush.bf16.msra.mxu0 0
  %1064 = vmatpush.bf16.msra.mxu0 0
  %1065 = vmatpush.bf16.msra.mxu0 0
  %1066 = vmatpush.bf16.msra.mxu0 %v1057
  %1067 = vmatmul.bf16.gmra.mxu0 %v1054
  %v1068 = vpop.f32.mrf.mxu0
  %v1069 = vadd.f32 0.0, %v1068
  %v1070 = vpop.f32.mrf.mxu0
  %v1071 = vadd.f32 0.0, %v1070
  %1072 = vdwg.mxu0
  %1074 = vrot.lane.b32.xlu0 %v972, 96
  %v1075 = vpop.permute.xlu0 %1074
  %1077 = vrot.lane.b32.xlu0 %v973, 96
  %v1078 = vpop.permute.xlu0 %1077
  %v1080 = vsel %vm125, %v1075, 0
  %v1083 = vsel %vm125, %v1078, 0
  %1085 = vmatpush.bf16.xpose.msra.mxu0 0
  %1086 = vmatpush.bf16.xpose.msra.mxu0 0
  %1087 = vmatpush.bf16.xpose.msra.mxu0 0
  %1088 = vmatpush.bf16.xpose.msra.mxu0 0
  %1089 = vmatpush.bf16.xpose.msra.mxu0 0
  %1090 = vmatpush.bf16.xpose.msra.mxu0 0
  %1091 = vmatpush.bf16.xpose.msra.mxu0 0
  %1092 = vmatpush.bf16.xpose.msra.mxu0 %v1083
  %1093 = vmatmul.bf16.gmra.mxu0 %v1080
  %v1094 = vpop.f32.mrf.mxu0
  %v1095 = vadd.f32 0.0, %v1094
  %v1096 = vpop.f32.mrf.mxu0
  %v1097 = vadd.f32 0.0, %v1096
  %1098 = vdwg.mxu0
  %v1099 = vmul.f32 %v1095, 0.17677669
  %v1100 = vmul.f32 %v1097, 0.17677669
  %v1101 = vsel %vm970, %v1099, -1e+30
  %v1102 = vsel %vm971, %v1100, -1e+30
  %v1103 = vsel %vm193, %v1101, -inf
  %1104 = vmax.xlane.f32.xlu0 %v1103
  %v1105 = vpop.xlane.xlu0 %1104
  %v1106 = vsel %vm1001, %v1102, -inf
  %1107 = vmax.xlane.f32.xlu0 %v1106
  %v1108 = vpop.xlane.xlu0 %1107
  %v1109 = vsub.f32 %v1101, %v1105
  %v1110 = vsub.f32 %v1102, %v1108
  %v1111 = vmul.f32 %v1109, 1.442695
  %v1112 = vpow.pop %v1111
  %v1113 = vmul.f32 %v1110, 1.442695
  %v1114 = vpow.pop %v1113
  %v1115 = vsel %vm970, %v1112, 0.0
  %v1116 = vsel %vm971, %v1114, 0.0
  %v1117 = vsel %vm193, %v1115, 0.0
  %1118 = vadd.xlane.f32.xlu0 %v1117
  %v1119 = vpop.xlane.xlu0 %1118
  %v1120 = vsel %vm1001, %v1116, 0.0
  %1121 = vadd.xlane.f32.xlu0 %v1120
  %v1122 = vpop.xlane.xlu0 %1121
  %v1123 = vmax.f32 %v1119, 1e-16
  %v1124 = vmax.f32 %v1122, 1e-16
  %v1125 = vrcp.pop %v1123
  %v1126 = vmul.f32 %v1123, %v1125
  %v1127 = vsub.f32 1.0, %v1126
  %v1128 = vmul.f32 %v1125, %v1127
  %v1129 = vadd.f32 %v1125, %v1128
  %vm1130 = vweird.f32 %v1123
  %vm1131 = vweird.f32 %v1125
  %vm1132 = vmor %vm1130, %vm1131
  %v1133 = vsel %vm1132, %v1125, %v1129
  %v1134 = vand.u32 2147483647, %v1123
  %vm1135 = vcmp.eq.f32.partialorder %v1134, 8.507059e+37
  %v1136 = vand.u32 %v1123, 2147483648
  %v1137 = vor.u32 1.1754944e-38, %v1136
  %v1138 = vsel %vm1135, %v1137, %v1133
  %v1139 = vmul.f32 %v1115, %v1138
  %v1140 = vrcp.pop %v1124
  %v1141 = vmul.f32 %v1124, %v1140
  %v1142 = vsub.f32 1.0, %v1141
  %v1143 = vmul.f32 %v1140, %v1142
  %v1144 = vadd.f32 %v1140, %v1143
  %vm1145 = vweird.f32 %v1124
  %vm1146 = vweird.f32 %v1140
  %vm1147 = vmor %vm1145, %vm1146
  %v1148 = vsel %vm1147, %v1140, %v1144
  %v1149 = vand.u32 2147483647, %v1124
  %vm1150 = vcmp.eq.f32.partialorder %v1149, 8.507059e+37
  %v1151 = vand.u32 %v1124, 2147483648
  %v1152 = vor.u32 1.1754944e-38, %v1151
  %v1153 = vsel %vm1150, %v1152, %v1148
  %v1154 = vmul.f32 %v1116, %v1153
  %v1155 = vpack.c.bf16 %v1154, %v1139
  %1157 = vrot.lane.b32.xlu0 %v1052, 96
  %v1158 = vpop.permute.xlu0 %1157
  %v1160 = vsel %vm193, %v1155, 0
  %v1163 = vsel %vm197, %v1158, 0
  %1165 = vmatpush.bf16.msra.mxu0 0
  %1166 = vmatpush.bf16.msra.mxu0 0
  %1167 = vmatpush.bf16.msra.mxu0 0
  %1168 = vmatpush.bf16.msra.mxu0 0
  %1169 = vmatpush.bf16.msra.mxu0 0
  %1170 = vmatpush.bf16.msra.mxu0 0
  %1171 = vmatpush.bf16.msra.mxu0 0
  %1172 = vmatpush.bf16.msra.mxu0 %v1163
  %1173 = vmatmul.bf16.gmra.mxu0 %v1160
  %v1174 = vpop.f32.mrf.mxu0
  %v1175 = vadd.f32 0.0, %v1174
  %v1176 = vpop.f32.mrf.mxu0
  %v1177 = vadd.f32 0.0, %v1176
  %1178 = vdwg.mxu0
  %1179 = vrot.lane.b32.xlu0 %v972, 64
  %v1180 = vpop.permute.xlu0 %1179
  %1181 = vrot.lane.b32.xlu0 %v973, 64
  %v1182 = vpop.permute.xlu0 %1181
  %v1184 = vsel %vm125, %v1180, 0
  %v1187 = vsel %vm125, %v1182, 0
  %1189 = vmatpush.bf16.xpose.msra.mxu0 0
  %1190 = vmatpush.bf16.xpose.msra.mxu0 0
  %1191 = vmatpush.bf16.xpose.msra.mxu0 0
  %1192 = vmatpush.bf16.xpose.msra.mxu0 0
  %1193 = vmatpush.bf16.xpose.msra.mxu0 0
  %1194 = vmatpush.bf16.xpose.msra.mxu0 0
  %1195 = vmatpush.bf16.xpose.msra.mxu0 0
  %1196 = vmatpush.bf16.xpose.msra.mxu0 %v1187
  %1197 = vmatmul.bf16.gmra.mxu0 %v1184
  %v1198 = vpop.f32.mrf.mxu0
  %v1199 = vadd.f32 0.0, %v1198
  %v1200 = vpop.f32.mrf.mxu0
  %v1201 = vadd.f32 0.0, %v1200
  %1202 = vdwg.mxu0
  %v1203 = vmul.f32 %v1199, 0.17677669
  %v1204 = vmul.f32 %v1201, 0.17677669
  %v1205 = vsel %vm970, %v1203, -1e+30
  %v1206 = vsel %vm971, %v1204, -1e+30
  %v1207 = vsel %vm193, %v1205, -inf
  %1208 = vmax.xlane.f32.xlu0 %v1207
  %v1209 = vpop.xlane.xlu0 %1208
  %v1210 = vsel %vm1001, %v1206, -inf
  %1211 = vmax.xlane.f32.xlu0 %v1210
  %v1212 = vpop.xlane.xlu0 %1211
  %v1213 = vsub.f32 %v1205, %v1209
  %v1214 = vsub.f32 %v1206, %v1212
  %v1215 = vmul.f32 %v1213, 1.442695
  %v1216 = vpow.pop %v1215
  %v1217 = vmul.f32 %v1214, 1.442695
  %v1218 = vpow.pop %v1217
  %v1219 = vsel %vm970, %v1216, 0.0
  %v1220 = vsel %vm971, %v1218, 0.0
  %v1221 = vsel %vm193, %v1219, 0.0
  %1222 = vadd.xlane.f32.xlu0 %v1221
  %v1223 = vpop.xlane.xlu0 %1222
  %v1224 = vsel %vm1001, %v1220, 0.0
  %1225 = vadd.xlane.f32.xlu0 %v1224
  %v1226 = vpop.xlane.xlu0 %1225
  %v1227 = vmax.f32 %v1223, 1e-16
  %v1228 = vmax.f32 %v1226, 1e-16
  %v1229 = vrcp.pop %v1227
  %v1230 = vmul.f32 %v1227, %v1229
  %v1231 = vsub.f32 1.0, %v1230
  %v1232 = vmul.f32 %v1229, %v1231
  %v1233 = vadd.f32 %v1229, %v1232
  %vm1234 = vweird.f32 %v1227
  %vm1235 = vweird.f32 %v1229
  %vm1236 = vmor %vm1234, %vm1235
  %v1237 = vsel %vm1236, %v1229, %v1233
  %v1238 = vand.u32 2147483647, %v1227
  %vm1239 = vcmp.eq.f32.partialorder %v1238, 8.507059e+37
  %v1240 = vand.u32 %v1227, 2147483648
  %v1241 = vor.u32 1.1754944e-38, %v1240
  %v1242 = vsel %vm1239, %v1241, %v1237
  %v1243 = vmul.f32 %v1219, %v1242
  %v1244 = vrcp.pop %v1228
  %v1245 = vmul.f32 %v1228, %v1244
  %v1246 = vsub.f32 1.0, %v1245
  %v1247 = vmul.f32 %v1244, %v1246
  %v1248 = vadd.f32 %v1244, %v1247
  %vm1249 = vweird.f32 %v1228
  %vm1250 = vweird.f32 %v1244
  %vm1251 = vmor %vm1249, %vm1250
  %v1252 = vsel %vm1251, %v1244, %v1248
  %v1253 = vand.u32 2147483647, %v1228
  %vm1254 = vcmp.eq.f32.partialorder %v1253, 8.507059e+37
  %v1255 = vand.u32 %v1228, 2147483648
  %v1256 = vor.u32 1.1754944e-38, %v1255
  %v1257 = vsel %vm1254, %v1256, %v1252
  %v1258 = vmul.f32 %v1220, %v1257
  %v1259 = vpack.c.bf16 %v1258, %v1243
  %1260 = vrot.lane.b32.xlu0 %v1052, 64
  %v1261 = vpop.permute.xlu0 %1260
  %v1263 = vsel %vm193, %v1259, 0
  %v1266 = vsel %vm197, %v1261, 0
  %1268 = vmatpush.bf16.msra.mxu0 0
  %1269 = vmatpush.bf16.msra.mxu0 0
  %1270 = vmatpush.bf16.msra.mxu0 0
  %1271 = vmatpush.bf16.msra.mxu0 0
  %1272 = vmatpush.bf16.msra.mxu0 0
  %1273 = vmatpush.bf16.msra.mxu0 0
  %1274 = vmatpush.bf16.msra.mxu0 0
  %1275 = vmatpush.bf16.msra.mxu0 %v1266
  %1276 = vmatmul.bf16.gmra.mxu0 %v1263
  %v1277 = vpop.f32.mrf.mxu0
  %v1278 = vadd.f32 0.0, %v1277
  %v1279 = vpop.f32.mrf.mxu0
  %v1280 = vadd.f32 0.0, %v1279
  %1281 = vdwg.mxu0
  %1282 = vrot.lane.b32.xlu0 %v972, 32
  %v1283 = vpop.permute.xlu0 %1282
  %1284 = vrot.lane.b32.xlu0 %v973, 32
  %v1285 = vpop.permute.xlu0 %1284
  %v1287 = vsel %vm125, %v1283, 0
  %v1290 = vsel %vm125, %v1285, 0
  %1292 = vmatpush.bf16.xpose.msra.mxu0 0
  %1293 = vmatpush.bf16.xpose.msra.mxu0 0
  %1294 = vmatpush.bf16.xpose.msra.mxu0 0
  %1295 = vmatpush.bf16.xpose.msra.mxu0 0
  %1296 = vmatpush.bf16.xpose.msra.mxu0 0
  %1297 = vmatpush.bf16.xpose.msra.mxu0 0
  %1298 = vmatpush.bf16.xpose.msra.mxu0 0
  %1299 = vmatpush.bf16.xpose.msra.mxu0 %v1290
  %1300 = vmatmul.bf16.gmra.mxu0 %v1287
  %v1301 = vpop.f32.mrf.mxu0
  %v1302 = vadd.f32 0.0, %v1301
  %v1303 = vpop.f32.mrf.mxu0
  %v1304 = vadd.f32 0.0, %v1303
  %1305 = vdwg.mxu0
  %v1306 = vmul.f32 %v1302, 0.17677669
  %v1307 = vmul.f32 %v1304, 0.17677669
  %v1308 = vsel %vm970, %v1306, -1e+30
  %v1309 = vsel %vm971, %v1307, -1e+30
  %v1310 = vsel %vm193, %v1308, -inf
  %1311 = vmax.xlane.f32.xlu0 %v1310
  %v1312 = vpop.xlane.xlu0 %1311
  %v1313 = vsel %vm1001, %v1309, -inf
  %1314 = vmax.xlane.f32.xlu0 %v1313
  %v1315 = vpop.xlane.xlu0 %1314
  %v1316 = vsub.f32 %v1308, %v1312
  %v1317 = vsub.f32 %v1309, %v1315
  %v1318 = vmul.f32 %v1316, 1.442695
  %v1319 = vpow.pop %v1318
  %v1320 = vmul.f32 %v1317, 1.442695
  %v1321 = vpow.pop %v1320
  %v1322 = vsel %vm970, %v1319, 0.0
  %v1323 = vsel %vm971, %v1321, 0.0
  %v1324 = vsel %vm193, %v1322, 0.0
  %1325 = vadd.xlane.f32.xlu0 %v1324
  %v1326 = vpop.xlane.xlu0 %1325
  %v1327 = vsel %vm1001, %v1323, 0.0
  %1328 = vadd.xlane.f32.xlu0 %v1327
  %v1329 = vpop.xlane.xlu0 %1328
  %v1330 = vmax.f32 %v1326, 1e-16
  %v1331 = vmax.f32 %v1329, 1e-16
  %v1332 = vrcp.pop %v1330
  %v1333 = vmul.f32 %v1330, %v1332
  %v1334 = vsub.f32 1.0, %v1333
  %v1335 = vmul.f32 %v1332, %v1334
  %v1336 = vadd.f32 %v1332, %v1335
  %vm1337 = vweird.f32 %v1330
  %vm1338 = vweird.f32 %v1332
  %vm1339 = vmor %vm1337, %vm1338
  %v1340 = vsel %vm1339, %v1332, %v1336
  %v1341 = vand.u32 2147483647, %v1330
  %vm1342 = vcmp.eq.f32.partialorder %v1341, 8.507059e+37
  %v1343 = vand.u32 %v1330, 2147483648
  %v1344 = vor.u32 1.1754944e-38, %v1343
  %v1345 = vsel %vm1342, %v1344, %v1340
  %v1346 = vmul.f32 %v1322, %v1345
  %v1347 = vrcp.pop %v1331
  %v1348 = vmul.f32 %v1331, %v1347
  %v1349 = vsub.f32 1.0, %v1348
  %v1350 = vmul.f32 %v1347, %v1349
  %v1351 = vadd.f32 %v1347, %v1350
  %vm1352 = vweird.f32 %v1331
  %vm1353 = vweird.f32 %v1347
  %vm1354 = vmor %vm1352, %vm1353
  %v1355 = vsel %vm1354, %v1347, %v1351
  %v1356 = vand.u32 2147483647, %v1331
  %vm1357 = vcmp.eq.f32.partialorder %v1356, 8.507059e+37
  %v1358 = vand.u32 %v1331, 2147483648
  %v1359 = vor.u32 1.1754944e-38, %v1358
  %v1360 = vsel %vm1357, %v1359, %v1355
  %v1361 = vmul.f32 %v1323, %v1360
  %v1362 = vpack.c.bf16 %v1361, %v1346
  %1363 = vrot.lane.b32.xlu0 %v1052, 32
  %v1364 = vpop.permute.xlu0 %1363
  %v1366 = vsel %vm193, %v1362, 0
  %v1369 = vsel %vm197, %v1364, 0
  %1371 = vmatpush.bf16.msra.mxu0 0
  %1372 = vmatpush.bf16.msra.mxu0 0
  %1373 = vmatpush.bf16.msra.mxu0 0
  %1374 = vmatpush.bf16.msra.mxu0 0
  %1375 = vmatpush.bf16.msra.mxu0 0
  %1376 = vmatpush.bf16.msra.mxu0 0
  %1377 = vmatpush.bf16.msra.mxu0 0
  %1378 = vmatpush.bf16.msra.mxu0 %v1369
  %1379 = vmatmul.bf16.gmra.mxu0 %v1366
  %v1380 = vpop.f32.mrf.mxu0
  %v1381 = vadd.f32 0.0, %v1380
  %v1382 = vpop.f32.mrf.mxu0
  %v1383 = vadd.f32 0.0, %v1382
  %1384 = vdwg.mxu0
  %1387 = vrot.lane.b32.xlu0 %v1175, 32
  %v1388 = vpop.permute.xlu0 %1387
  %1389 = vrot.lane.b32.xlu0 %v1177, 32
  %v1390 = vpop.permute.xlu0 %1389
  %1395 = vrot.lane.b32.xlu0 %v1278, 64
  %v1396 = vpop.permute.xlu0 %1395
  %1397 = vrot.lane.b32.xlu0 %v1280, 64
  %v1398 = vpop.permute.xlu0 %1397
  %1403 = vrot.lane.b32.xlu0 %v1381, 96
  %v1404 = vpop.permute.xlu0 %1403
  %1405 = vrot.lane.b32.xlu0 %v1383, 96
  %v1406 = vpop.permute.xlu0 %1405
  %v1409 = vsel %vm125, %v1069, %v1388
  %v1410 = vsel %vm125, %v1071, %v1390
  %v1411 = vsel %vm156, %v1409, %v1396
  %v1412 = vsel %vm156, %v1410, %v1398
  %v1413 = vsel %vm843, %v1411, %v1404
  %v1414 = vsel %vm843, %v1412, %v1406
  %v1415 = vadd.f32 %v1413, %v904
  %v1416 = vadd.f32 %v1414, %v906
  %v1417 = vmax.f32 %v1415, 0.0
  %v1418 = vmax.f32 %v1416, 0.0
  %v1419 = vld [vmem:[%s18] sm:$0xf]
  %v1420 = vld [vmem:[%s18 + $0x4] sm:$0xf]
  %v1421 = vld [vmem:[%s18 + $0x8] sm:$0xf]
  %v1422 = vld [vmem:[%s18 + $0xc] sm:$0xf]
  %v1423 = vld [vmem:[%s18 + $0x10] sm:$0xf]
  %v1424 = vld [vmem:[%s18 + $0x14] sm:$0xf]
  %v1425 = vld [vmem:[%s18 + $0x18] sm:$0xf]
  %v1426 = vld [vmem:[%s18 + $0x1c] sm:$0xf]
  %v1427 = vld [vmem:[%s18 + $0x20] sm:$0xf]
  %v1428 = vld [vmem:[%s18 + $0x24] sm:$0xf]
  %v1429 = vld [vmem:[%s18 + $0x28] sm:$0xf]
  %v1430 = vld [vmem:[%s18 + $0x2c] sm:$0xf]
  %v1431 = vld [vmem:[%s18 + $0x30] sm:$0xf]
  %v1432 = vld [vmem:[%s18 + $0x34] sm:$0xf]
  %v1433 = vld [vmem:[%s18 + $0x38] sm:$0xf]
  %v1434 = vld [vmem:[%s18 + $0x3c] sm:$0xf]
  %v1435 = vpack.c.bf16 %v849, %v848
  %v1436 = vld [vmem:[%s19] sm:$0x1]
  %v1438 = vperm.slane %v1436, 0
  %v1456 = vunpack.c.l.b16 %v1419
  %v1457 = vunpack.c.l.b16 %v1420
  %v1458 = vunpack.c.l.b16 %v1421
  %v1459 = vunpack.c.l.b16 %v1422
  %v1460 = vunpack.c.l.b16 %v1423
  %v1461 = vunpack.c.l.b16 %v1424
  %v1462 = vunpack.c.l.b16 %v1425
  %v1463 = vunpack.c.l.b16 %v1426
  %v1464 = vunpack.c.l.b16 %v1427
  %v1465 = vunpack.c.l.b16 %v1428
  %v1466 = vunpack.c.l.b16 %v1429
  %v1467 = vunpack.c.l.b16 %v1430
  %v1468 = vunpack.c.l.b16 %v1431
  %v1469 = vunpack.c.l.b16 %v1432
  %v1470 = vunpack.c.l.b16 %v1433
  %v1471 = vunpack.c.l.b16 %v1434
  %v1472 = vpack.c.b16 %v1457, %v1456
  %v1473 = vpack.c.b16 %v1459, %v1458
  %v1474 = vpack.c.b16 %v1461, %v1460
  %v1475 = vpack.c.b16 %v1463, %v1462
  %v1476 = vpack.c.b16 %v1465, %v1464
  %v1477 = vpack.c.b16 %v1467, %v1466
  %v1478 = vpack.c.b16 %v1469, %v1468
  %v1479 = vpack.c.b16 %v1471, %v1470
  %1488 = vmatpush.bf16.msra.mxu0 %v1479
  %1489 = vmatpush.bf16.msra.mxu0 %v1478
  %1490 = vmatpush.bf16.msra.mxu0 %v1477
  %1491 = vmatpush.bf16.msra.mxu0 %v1476
  %1492 = vmatpush.bf16.msra.mxu0 %v1475
  %1493 = vmatpush.bf16.msra.mxu0 %v1474
  %1494 = vmatpush.bf16.msra.mxu0 %v1473
  %1495 = vmatpush.bf16.msra.mxu0 %v1472
  %1496 = vmatmul.bf16.gmra.mxu0 %v1435
  %v1497 = vpop.f32.mrf.mxu0
  %v1498 = vadd.f32 %v1438, %v1497
  %v1499 = vpop.f32.mrf.mxu0
  %v1500 = vadd.f32 %v1438, %v1499
  %1501 = vdwg.mxu0
  %v1502 = vmax.f32 %v1498, 0.0
  %v1503 = vmax.f32 %v1500, 0.0
  %1504 = vst.msk [vmem:[%s22] sm:$0xff] %vm125, %v1502
  %vm1505 = vcmask 257024
  %1506 = vst.msk [vmem:[%s22 + $0x8] sm:$0xf] %vm1505, %v1503
  %v1507 = vld [vmem:[%s20] sm:$0xf]
  %v1508 = vld [vmem:[%s20 + $0x4] sm:$0xf]
  %v1509 = vld [vmem:[%s20 + $0x8] sm:$0xf]
  %v1510 = vld [vmem:[%s20 + $0xc] sm:$0xf]
  %v1511 = vld [vmem:[%s20 + $0x10] sm:$0xf]
  %v1512 = vld [vmem:[%s20 + $0x14] sm:$0xf]
  %v1513 = vld [vmem:[%s20 + $0x18] sm:$0xf]
  %v1514 = vld [vmem:[%s20 + $0x1c] sm:$0xf]
  %v1515 = vld [vmem:[%s20 + $0x20] sm:$0xf]
  %v1516 = vld [vmem:[%s20 + $0x24] sm:$0xf]
  %v1517 = vld [vmem:[%s20 + $0x28] sm:$0xf]
  %v1518 = vld [vmem:[%s20 + $0x2c] sm:$0xf]
  %v1519 = vld [vmem:[%s20 + $0x30] sm:$0xf]
  %v1520 = vld [vmem:[%s20 + $0x34] sm:$0xf]
  %v1521 = vld [vmem:[%s20 + $0x38] sm:$0xf]
  %v1522 = vld [vmem:[%s20 + $0x3c] sm:$0xf]
  %v1523 = vpack.c.bf16 %v1418, %v1417
  %v1524 = vld [vmem:[%s21] sm:$0x1]
  %v1526 = vperm.slane %v1524, 0
  %v1544 = vunpack.c.l.b16 %v1507
  %v1545 = vunpack.c.l.b16 %v1508
  %v1546 = vunpack.c.l.b16 %v1509
  %v1547 = vunpack.c.l.b16 %v1510
  %v1548 = vunpack.c.l.b16 %v1511
  %v1549 = vunpack.c.l.b16 %v1512
  %v1550 = vunpack.c.l.b16 %v1513
  %v1551 = vunpack.c.l.b16 %v1514
  %v1552 = vunpack.c.l.b16 %v1515
  %v1553 = vunpack.c.l.b16 %v1516
  %v1554 = vunpack.c.l.b16 %v1517
  %v1555 = vunpack.c.l.b16 %v1518
  %v1556 = vunpack.c.l.b16 %v1519
  %v1557 = vunpack.c.l.b16 %v1520
  %v1558 = vunpack.c.l.b16 %v1521
  %v1559 = vunpack.c.l.b16 %v1522
  %v1560 = vpack.c.b16 %v1545, %v1544
  %v1561 = vpack.c.b16 %v1547, %v1546
  %v1562 = vpack.c.b16 %v1549, %v1548
  %v1563 = vpack.c.b16 %v1551, %v1550
  %v1564 = vpack.c.b16 %v1553, %v1552
  %v1565 = vpack.c.b16 %v1555, %v1554
  %v1566 = vpack.c.b16 %v1557, %v1556
  %v1567 = vpack.c.b16 %v1559, %v1558
  %1576 = vmatpush.bf16.msra.mxu0 %v1567
  %1577 = vmatpush.bf16.msra.mxu0 %v1566
  %1578 = vmatpush.bf16.msra.mxu0 %v1565
  %1579 = vmatpush.bf16.msra.mxu0 %v1564
  %1580 = vmatpush.bf16.msra.mxu0 %v1563
  %1581 = vmatpush.bf16.msra.mxu0 %v1562
  %1582 = vmatpush.bf16.msra.mxu0 %v1561
  %1583 = vmatpush.bf16.msra.mxu0 %v1560
  %1584 = vmatmul.bf16.gmra.mxu0 %v1523
  %v1585 = vpop.f32.mrf.mxu0
  %v1586 = vadd.f32 %v1526, %v1585
  %v1587 = vpop.f32.mrf.mxu0
  %v1588 = vadd.f32 %v1526, %v1587
  %1589 = vdwg.mxu0
  %v1590 = vmax.f32 %v1586, 0.0
  %v1591 = vmax.f32 %v1588, 0.0
  %1592 = vst.msk [vmem:[%s23] sm:$0xff] %vm125, %v1590
  %vm1593 = vcmask 254976
  %1594 = vst.msk [vmem:[%s23 + $0x8] sm:$0x3] %vm1593, %v1591
  // Predicated region
  $region90: #{improved_model_forward.7} parent=0 // pred_check
    _
  $region91: #{improved_model_forward.7} parent=0 // pred_check_branch
    %1596 = sbr.rel (0) target = $region93
  $region92: #{improved_model_forward.7} parent=0 // pred_region
    _
  $region93: #{improved_model_forward.7} parent=0 // pred_fallthru
    _
  // Predicated region
  $region94: #{improved_model_forward.7} parent=0 // pred_check
    _
  $region95: #{improved_model_forward.7} parent=0 // pred_check_branch
    %1598 = sbr.rel (0) target = $region97
  $region96: #{improved_model_forward.7} parent=0 // pred_region
    _
  $region97: #{improved_model_forward.7} parent=0 // pred_fallthru
    _
  // Predicated region
  $region98: #{improved_model_forward.7} parent=0 // pred_check
    _
  $region99: #{improved_model_forward.7} parent=0 // pred_check_branch
    %1600 = sbr.rel (0) target = $region101
  $region100: #{improved_model_forward.7} parent=0 // pred_region
    _
  $region101: #{improved_model_forward.7} parent=0 // pred_fallthru
    _
  // Predicated region
  $region102: #{improved_model_forward.7} parent=0 // pred_check
    _
  $region103: #{improved_model_forward.7} parent=0 // pred_check_branch
    %1602 = sbr.rel (0) target = $region105
  $region104: #{improved_model_forward.7} parent=0 // pred_region
    _
  $region105: #{improved_model_forward.7} parent=0 // pred_fallthru
    _

// kernel: improved_model_forward.9
$region0: #{improved_model_forward.9}
  #allocation0 [shape = 'u32[]', space=smem, size = 0x4, offset = 0x4, fixed_abs, tag = 'smem constant byte address 0x4 - core index']
  #allocation1 [shape = 'u32[72,128]{1,0:T(1,128)}', space=vmem, size = 0x9000, scoped, tag = 'internal scratch']
  %s0 = inlined_call_operand.vmem [shape: f32[12,32], index: 0, kind: input, shape index: {}]
  %s1 = inlined_call_operand.vmem [shape: f32[10,32], index: 1, kind: input, shape index: {}]
  %s2 = inlined_call_operand.vmem [shape: s32[8,1], index: 2, kind: input, shape index: {}]
  %s3 = inlined_call_operand.vmem [shape: s32[8,1], index: 3, kind: input, shape index: {}]
  %s4 = inlined_call_operand.vmem [shape: bf16[32,64], index: 4, kind: input, shape index: {}]
  %s5 = inlined_call_operand.vmem [shape: f32[1,64], index: 5, kind: input, shape index: {}]
  %s6 = inlined_call_operand.vmem [shape: bf16[64,32], index: 6, kind: input, shape index: {}]
  %s7 = inlined_call_operand.vmem [shape: f32[1,32], index: 7, kind: input, shape index: {}]
  %s8 = inlined_call_operand.vmem [shape: bf16[32,64], index: 8, kind: input, shape index: {}]
  %s9 = inlined_call_operand.vmem [shape: f32[1,64], index: 9, kind: input, shape index: {}]
  %s10 = inlined_call_operand.vmem [shape: bf16[64,32], index: 10, kind: input, shape index: {}]
  %s11 = inlined_call_operand.vmem [shape: f32[1,32], index: 11, kind: input, shape index: {}]
  %s12 = inlined_call_operand.hbm [shape: f32[1,8], index: 12, kind: output, shape index: {}]
  %s13 = sld [smem:[#allocation0]]
  $region58: #{improved_model_forward.9} parent=0
    _
  %s15 = ssub.s32 1, %s13
  %s16 = scalar_select 0, %s15, %s13
  $region1: #{improved_model_forward.9} parent=0
    #allocation2 [shape = 'u8[512]{0}', space=vmem, size = 0x400, scoped, tag = 'output window, operand 0, single buffered']
    #allocation3 [shape = 's32[1]{0}', space=sflag, size = 0x4, scoped, tag = 'scoped memory for improved_model_forward.9']
    %17 = vsyncpa [#allocation3], 0
    // Predicated region
    $region2: #{improved_model_forward.9} parent=1 // pred_check
      _
    $region3: #{improved_model_forward.9} parent=1 // pred_check_branch
      %19 = sbr.rel (0) target = $region5
    $region4: #{improved_model_forward.9} parent=1 // pred_region
      _
    $region5: #{improved_model_forward.9} parent=1 // pred_fallthru
      _
    // Predicated region
    $region6: #{improved_model_forward.9} parent=1 // pred_check
      _
    $region7: #{improved_model_forward.9} parent=1 // pred_check_branch
      %21 = sbr.rel (0) target = $region9
    $region8: #{improved_model_forward.9} parent=1 // pred_region
      _
    $region9: #{improved_model_forward.9} parent=1 // pred_fallthru
      _
    // Predicated region
    $region10: #{improved_model_forward.9} parent=1 // pred_check
      _
    $region11: #{improved_model_forward.9} parent=1 // pred_check_branch
      %23 = sbr.rel (0) target = $region13
    $region12: #{improved_model_forward.9} parent=1 // pred_region
      _
    $region13: #{improved_model_forward.9} parent=1 // pred_fallthru
      _
    // Predicated region
    $region14: #{improved_model_forward.9} parent=1 // pred_check
      _
    $region15: #{improved_model_forward.9} parent=1 // pred_check_branch
      %25 = sbr.rel (0) target = $region17
    $region16: #{improved_model_forward.9} parent=1 // pred_region
      _
    $region17: #{improved_model_forward.9} parent=1 // pred_fallthru
      _
    // Predicated region
    $region18: #{improved_model_forward.9} parent=1 // pred_check
      _
    $region19: #{improved_model_forward.9} parent=1 // pred_check_branch
      %27 = sbr.rel (0) target = $region21
    $region20: #{improved_model_forward.9} parent=1 // pred_region
      _
    $region21: #{improved_model_forward.9} parent=1 // pred_fallthru
      _
    // Predicated region
    $region22: #{improved_model_forward.9} parent=1 // pred_check
      _
    $region23: #{improved_model_forward.9} parent=1 // pred_check_branch
      %29 = sbr.rel (0) target = $region25
    $region24: #{improved_model_forward.9} parent=1 // pred_region
      _
    $region25: #{improved_model_forward.9} parent=1 // pred_fallthru
      _
    // Predicated region
    $region26: #{improved_model_forward.9} parent=1 // pred_check
      _
    $region27: #{improved_model_forward.9} parent=1 // pred_check_branch
      %31 = sbr.rel (0) target = $region29
    $region28: #{improved_model_forward.9} parent=1 // pred_region
      _
    $region29: #{improved_model_forward.9} parent=1 // pred_fallthru
      _
    // Predicated region
    $region30: #{improved_model_forward.9} parent=1 // pred_check
      _
    $region31: #{improved_model_forward.9} parent=1 // pred_check_branch
      %33 = sbr.rel (0) target = $region33
    $region32: #{improved_model_forward.9} parent=1 // pred_region
      _
    $region33: #{improved_model_forward.9} parent=1 // pred_fallthru
      _
    // Predicated region
    $region34: #{improved_model_forward.9} parent=1 // pred_check
      _
    $region35: #{improved_model_forward.9} parent=1 // pred_check_branch
      %35 = sbr.rel (0) target = $region37
    $region36: #{improved_model_forward.9} parent=1 // pred_region
      _
    $region37: #{improved_model_forward.9} parent=1 // pred_fallthru
      _
    // Predicated region
    $region38: #{improved_model_forward.9} parent=1 // pred_check
      _
    $region39: #{improved_model_forward.9} parent=1 // pred_check_branch
      %37 = sbr.rel (0) target = $region41
    $region40: #{improved_model_forward.9} parent=1 // pred_region
      _
    $region41: #{improved_model_forward.9} parent=1 // pred_fallthru
      _
    // Predicated region
    $region42: #{improved_model_forward.9} parent=1 // pred_check
      _
    $region43: #{improved_model_forward.9} parent=1 // pred_check_branch
      %39 = sbr.rel (0) target = $region45
    $region44: #{improved_model_forward.9} parent=1 // pred_region
      _
    $region45: #{improved_model_forward.9} parent=1 // pred_fallthru
      _
    // Predicated region
    $region46: #{improved_model_forward.9} parent=1 // pred_check
      _
    $region47: #{improved_model_forward.9} parent=1 // pred_check_branch
      %41 = sbr.rel (0) target = $region49
    $region48: #{improved_model_forward.9} parent=1 // pred_region
      _
    $region49: #{improved_model_forward.9} parent=1 // pred_fallthru
      _
    %v43 = vld [vmem:[%s0] sm:$0xff]
    %v44 = vld [vmem:[%s0 + $0x8] sm:$0xf]
    %v45 = vld [vmem:[%s1] sm:$0xff]
    %v46 = vld [vmem:[%s1 + $0x8] sm:$0x3]
    %v47 = vld [vmem:[%s2] sm:$0xff]
    %v48 = vlaneseq
    %v49 = vand.u32 %v48, 127
    %50 = vset.pattern.permute.xlu0 0
    %51 = vperm.xlu0 %50, %v47
    %v52 = vpop.permute.xlu0 %51
    %vm53 = vcmp.eq.s32.totalorder %v52, %v49
    %v54 = vsel %vm53, 1, 0
    %v55 = vcvt.s32.f32 %v54
    %v56 = vld [vmem:[%s3] sm:$0xff]
    %57 = vset.pattern.permute.xlu0 0
    %58 = vperm.xlu0 %57, %v56
    %v59 = vpop.permute.xlu0 %58
    %vm60 = vcmp.eq.s32.totalorder %v59, %v49
    %v61 = vsel %vm60, 1, 0
    %v62 = vcvt.s32.f32 %v61
    %vm63 = vcmask 97280
    %v65 = vsel %vm63, %v55, 0
    %vm67 = vcmask 1043456
    %v69 = vsel %vm67, %v44, 0
    %71 = vmatpush.msra.mxu0 0.0
    %72 = vmatpush.msra.mxu0 0.0
    %73 = vmatpush.msra.mxu0 0.0
    %74 = vmatpush.msra.mxu0 0.0
    %75 = vmatpush.msra.mxu0 0.0
    %76 = vmatpush.msra.mxu0 0.0
    %77 = vmatpush.msra.mxu0 0.0
    %78 = vmatpush.msra.mxu0 0.0
    %79 = vmatpush.msra.mxu0 0.0
    %80 = vmatpush.msra.mxu0 0.0
    %81 = vmatpush.msra.mxu0 0.0
    %82 = vmatpush.msra.mxu0 0.0
    %83 = vmatpush.msra.mxu0 0.0
    %84 = vmatpush.msra.mxu0 0.0
    %85 = vmatpush.msra.mxu0 %v69
    %86 = vmatpush.msra.mxu0 %v43
    %87 = vmatmul.f32.gmra.mxu0 %v65
    %v88 = vpop.f32.mrf.mxu0
    %v89 = vadd.f32 0.0, %v88
    %90 = vdwg.mxu0
    %vm91 = vcmask 80896
    %v93 = vsel %vm91, %v62, 0
    %vm95 = vcmask 1041408
    %v97 = vsel %vm95, %v46, 0
    %99 = vmatpush.msra.mxu0 0.0
    %100 = vmatpush.msra.mxu0 0.0
    %101 = vmatpush.msra.mxu0 0.0
    %102 = vmatpush.msra.mxu0 0.0
    %103 = vmatpush.msra.mxu0 0.0
    %104 = vmatpush.msra.mxu0 0.0
    %105 = vmatpush.msra.mxu0 0.0
    %106 = vmatpush.msra.mxu0 0.0
    %107 = vmatpush.msra.mxu0 0.0
    %108 = vmatpush.msra.mxu0 0.0
    %109 = vmatpush.msra.mxu0 0.0
    %110 = vmatpush.msra.mxu0 0.0
    %111 = vmatpush.msra.mxu0 0.0
    %112 = vmatpush.msra.mxu0 0.0
    %113 = vmatpush.msra.mxu0 %v97
    %114 = vmatpush.msra.mxu0 %v45
    %115 = vmatmul.f32.gmra.mxu0 %v93
    %v116 = vpop.f32.mrf.mxu0
    %v117 = vadd.f32 0.0, %v116
    %118 = vdwg.mxu0
    %v119 = vld [vmem:[%s4] sm:$0xf]
    %v120 = vld [vmem:[%s4 + $0x4] sm:$0xf]
    %v121 = vld [vmem:[%s4 + $0x8] sm:$0xf]
    %v122 = vld [vmem:[%s4 + $0xc] sm:$0xf]
    %v123 = vpack.c.bf16 %v89, %v89
    %v124 = vld [vmem:[%s5] sm:$0x1]
    %v126 = vperm.slane %v124, 0
    %v132 = vunpack.c.l.b16 %v119
    %v133 = vunpack.c.l.b16 %v120
    %v134 = vunpack.c.l.b16 %v121
    %v135 = vunpack.c.l.b16 %v122
    %v136 = vpack.c.b16 %v133, %v132
    %v137 = vpack.c.b16 %v135, %v134
    %vm140 = vcmask 261120
    %v142 = vsel %vm140, %v123, 0
    %144 = vmatpush.bf16.msra.mxu0 0
    %145 = vmatpush.bf16.msra.mxu0 0
    %146 = vmatpush.bf16.msra.mxu0 0
    %147 = vmatpush.bf16.msra.mxu0 0
    %148 = vmatpush.bf16.msra.mxu0 0
    %149 = vmatpush.bf16.msra.mxu0 0
    %150 = vmatpush.bf16.msra.mxu0 %v137
    %151 = vmatpush.bf16.msra.mxu0 %v136
    %152 = vmatmul.bf16.gmra.mxu0 %v142
    %v153 = vpop.f32.mrf.mxu0
    %v154 = vadd.f32 %v126, %v153
    %v155 = vpop.f32.mrf.mxu0
    %156 = vdwg.mxu0
    %v157 = vmax.f32 %v154, 0.0
    %v158 = vld [vmem:[%s6] sm:$0xf]
    %v159 = vld [vmem:[%s6 + $0x4] sm:$0xf]
    %v160 = vld [vmem:[%s6 + $0x8] sm:$0xf]
    %v161 = vld [vmem:[%s6 + $0xc] sm:$0xf]
    %v162 = vld [vmem:[%s6 + $0x10] sm:$0xf]
    %v163 = vld [vmem:[%s6 + $0x14] sm:$0xf]
    %v164 = vld [vmem:[%s6 + $0x18] sm:$0xf]
    %v165 = vld [vmem:[%s6 + $0x1c] sm:$0xf]
    %v166 = vpack.c.bf16 %v157, %v157
    %v167 = vld [vmem:[%s7] sm:$0x1]
    %v169 = vperm.slane %v167, 0
    %v179 = vunpack.c.l.b16 %v158
    %v180 = vunpack.c.l.b16 %v159
    %v181 = vunpack.c.l.b16 %v160
    %v182 = vunpack.c.l.b16 %v161
    %v183 = vunpack.c.l.b16 %v162
    %v184 = vunpack.c.l.b16 %v163
    %v185 = vunpack.c.l.b16 %v164
    %v186 = vunpack.c.l.b16 %v165
    %v187 = vpack.c.b16 %v180, %v179
    %v188 = vpack.c.b16 %v182, %v181
    %v189 = vpack.c.b16 %v184, %v183
    %v190 = vpack.c.b16 %v186, %v185
    %vm195 = vcmask 523264
    %v197 = vsel %vm195, %v166, 0
    %199 = vmatpush.bf16.msra.mxu0 0
    %200 = vmatpush.bf16.msra.mxu0 0
    %201 = vmatpush.bf16.msra.mxu0 0
    %202 = vmatpush.bf16.msra.mxu0 0
    %203 = vmatpush.bf16.msra.mxu0 %v190
    %204 = vmatpush.bf16.msra.mxu0 %v189
    %205 = vmatpush.bf16.msra.mxu0 %v188
    %206 = vmatpush.bf16.msra.mxu0 %v187
    %207 = vmatmul.bf16.gmra.mxu0 %v197
    %v208 = vpop.f32.mrf.mxu0
    %v209 = vadd.f32 %v169, %v208
    %v210 = vpop.f32.mrf.mxu0
    %211 = vdwg.mxu0
    %v212 = vld [vmem:[%s8] sm:$0xf]
    %v213 = vld [vmem:[%s8 + $0x4] sm:$0xf]
    %v214 = vld [vmem:[%s8 + $0x8] sm:$0xf]
    %v215 = vld [vmem:[%s8 + $0xc] sm:$0xf]
    %v216 = vpack.c.bf16 %v117, %v117
    %v217 = vld [vmem:[%s9] sm:$0x1]
    %v219 = vperm.slane %v217, 0
    %v225 = vunpack.c.l.b16 %v212
    %v226 = vunpack.c.l.b16 %v213
    %v227 = vunpack.c.l.b16 %v214
    %v228 = vunpack.c.l.b16 %v215
    %v229 = vpack.c.b16 %v226, %v225
    %v230 = vpack.c.b16 %v228, %v227
    %v234 = vsel %vm140, %v216, 0
    %236 = vmatpush.bf16.msra.mxu0 0
    %237 = vmatpush.bf16.msra.mxu0 0
    %238 = vmatpush.bf16.msra.mxu0 0
    %239 = vmatpush.bf16.msra.mxu0 0
    %240 = vmatpush.bf16.msra.mxu0 0
    %241 = vmatpush.bf16.msra.mxu0 0
    %242 = vmatpush.bf16.msra.mxu0 %v230
    %243 = vmatpush.bf16.msra.mxu0 %v229
    %244 = vmatmul.bf16.gmra.mxu0 %v234
    %v245 = vpop.f32.mrf.mxu0
    %v246 = vadd.f32 %v219, %v245
    %v247 = vpop.f32.mrf.mxu0
    %248 = vdwg.mxu0
    %v249 = vmax.f32 %v246, 0.0
    %v250 = vld [vmem:[%s10] sm:$0xf]
    %v251 = vld [vmem:[%s10 + $0x4] sm:$0xf]
    %v252 = vld [vmem:[%s10 + $0x8] sm:$0xf]
    %v253 = vld [vmem:[%s10 + $0xc] sm:$0xf]
    %v254 = vld [vmem:[%s10 + $0x10] sm:$0xf]
    %v255 = vld [vmem:[%s10 + $0x14] sm:$0xf]
    %v256 = vld [vmem:[%s10 + $0x18] sm:$0xf]
    %v257 = vld [vmem:[%s10 + $0x1c] sm:$0xf]
    %v258 = vpack.c.bf16 %v249, %v249
    %v259 = vld [vmem:[%s11] sm:$0x1]
    %v261 = vperm.slane %v259, 0
    %v271 = vunpack.c.l.b16 %v250
    %v272 = vunpack.c.l.b16 %v251
    %v273 = vunpack.c.l.b16 %v252
    %v274 = vunpack.c.l.b16 %v253
    %v275 = vunpack.c.l.b16 %v254
    %v276 = vunpack.c.l.b16 %v255
    %v277 = vunpack.c.l.b16 %v256
    %v278 = vunpack.c.l.b16 %v257
    %v279 = vpack.c.b16 %v272, %v271
    %v280 = vpack.c.b16 %v274, %v273
    %v281 = vpack.c.b16 %v276, %v275
    %v282 = vpack.c.b16 %v278, %v277
    %v288 = vsel %vm195, %v258, 0
    %290 = vmatpush.bf16.msra.mxu0 0
    %291 = vmatpush.bf16.msra.mxu0 0
    %292 = vmatpush.bf16.msra.mxu0 0
    %293 = vmatpush.bf16.msra.mxu0 0
    %294 = vmatpush.bf16.msra.mxu0 %v282
    %295 = vmatpush.bf16.msra.mxu0 %v281
    %296 = vmatpush.bf16.msra.mxu0 %v280
    %297 = vmatpush.bf16.msra.mxu0 %v279
    %298 = vmatmul.bf16.gmra.mxu0 %v288
    %v299 = vpop.f32.mrf.mxu0
    %v300 = vadd.f32 %v261, %v299
    %v301 = vpop.f32.mrf.mxu0
    %302 = vdwg.mxu0
    %v303 = vmul.f32 %v209, %v300
    %304 = vxpose.xlu0.b32.start [1/16] %v303, 128
    %305 = vxpose.xlu0.b32.cont [2/16] 0.0, 128
    %306 = vxpose.xlu0.b32.cont [3/16] 0.0, 128
    %307 = vxpose.xlu0.b32.cont [4/16] 0.0, 128
    %308 = vxpose.xlu0.b32.cont [5/16] 0.0, 128
    %309 = vxpose.xlu0.b32.cont [6/16] 0.0, 128
    %310 = vxpose.xlu0.b32.cont [7/16] 0.0, 128
    %311 = vxpose.xlu0.b32.cont [8/16] 0.0, 128
    %312 = vxpose.xlu0.b32.cont [9/16] 0.0, 128
    %313 = vxpose.xlu0.b32.cont [10/16] 0.0, 128
    %314 = vxpose.xlu0.b32.cont [11/16] 0.0, 128
    %315 = vxpose.xlu0.b32.cont [12/16] 0.0, 128
    %316 = vxpose.xlu0.b32.cont [13/16] 0.0, 128
    %317 = vxpose.xlu0.b32.cont [14/16] 0.0, 128
    %318 = vxpose.xlu0.b32.cont [15/16] 0.0, 128
    %319 = vxpose.xlu0.b32.end [16/16] 0.0, 128
    %v320 = vpop.trf.xlu0
    %v321 = vpop.trf.xlu0
    %v322 = vpop.trf.xlu0
    %v323 = vpop.trf.xlu0
    %v324 = vpop.trf.xlu0
    %v325 = vpop.trf.xlu0
    %v326 = vpop.trf.xlu0
    %v327 = vpop.trf.xlu0
    %v328 = vpop.trf.xlu0
    %v329 = vpop.trf.xlu0
    %v330 = vpop.trf.xlu0
    %v331 = vpop.trf.xlu0
    %v332 = vpop.trf.xlu0
    %v333 = vpop.trf.xlu0
    %v334 = vpop.trf.xlu0
    %v335 = vpop.trf.xlu0
    %vm336 = vcmask 64512
    %v337 = vsel %vm336, %v320, 0.0
    %v338 = vsel %vm336, %v321, 0.0
    %v339 = vadd.f32 %v337, %v338
    %v340 = vsel %vm336, %v322, 0.0
    %v341 = vadd.f32 %v339, %v340
    %v342 = vsel %vm336, %v323, 0.0
    %v343 = vadd.f32 %v341, %v342
    %v344 = vrot.slane %v343, 4
    %v345 = vadd.f32 %v343, %v344
    %v346 = vrot.slane %v345, 2
    %v347 = vadd.f32 %v345, %v346
    %v348 = vrot.slane %v347, 1
    %v349 = vadd.f32 %v347, %v348
    %vm350 = vcmask 57344
    %351 = vst.msk [vmem:[#allocation2] sm:$0x1] %vm350, %v349
    // Predicated region
    $region50: #{improved_model_forward.9} parent=1 // pred_check
      _
    $region51: #{improved_model_forward.9} parent=1 // pred_check_branch
      %353 = sbr.rel (0) target = $region53
    $region52: #{improved_model_forward.9} parent=1 // pred_region
      %355 = vsyncadd [#allocation3], 0
      %s357 = sshll.u32 [#allocation2], 4
      %s358 = int_to_ptr.vmem [resolvable:$true] %s357
      %s359 = sshll.u32 %s12, 4
      %s360 = int_to_ptr.hbm [resolvable:$true] %s359
      %362 = dma.vmem_to_hbm [thread:$0]  %s358, 16, %s360, [#allocation3]
    $region53: #{improved_model_forward.9} parent=1 // pred_fallthru
      _
    // Predicated region
    $region54: #{improved_model_forward.9} parent=1 // pred_check
      _
    $region55: #{improved_model_forward.9} parent=1 // pred_check_branch
      %364 = sbr.rel (0) target = $region57
    $region56: #{improved_model_forward.9} parent=1 // pred_region
      %366 = dma.done [#allocation3], 16
    $region57: #{improved_model_forward.9} parent=1 // pred_fallthru
      _
    %367 = vsyncpa [#allocation3], 1

// kernel: improved_model_forward.5
$region0: #{improved_model_forward.5}
  #allocation0 [shape = 'u32[]', space=smem, size = 0x4, offset = 0x4, fixed_abs, tag = 'smem constant byte address 0x4 - core index']
  #allocation1 [shape = 'u32[72,128]{1,0:T(1,128)}', space=vmem, size = 0x9000, scoped, tag = 'internal scratch']
  %s0 = inlined_call_operand.vmem [shape: f32[12,32], index: 0, kind: input, shape index: {}]
  %s1 = inlined_call_operand.vmem [shape: f32[10,32], index: 1, kind: input, shape index: {}]
  %s2 = inlined_call_operand.vmem [shape: bf16[12,10], index: 2, kind: input, shape index: {}]
  %s3 = inlined_call_operand.vmem [shape: bf16[10,12], index: 3, kind: input, shape index: {}]
  %s4 = inlined_call_operand.vmem [shape: bf16[12,10], index: 4, kind: input, shape index: {}]
  %s5 = inlined_call_operand.vmem [shape: bf16[10,12], index: 5, kind: input, shape index: {}]
  %s6 = inlined_call_operand.vmem [shape: bf16[64,32], index: 6, kind: input, shape index: {}]
  %s7 = inlined_call_operand.vmem [shape: f32[1,32], index: 7, kind: input, shape index: {}]
  %s8 = inlined_call_operand.vmem [shape: bf16[64,32], index: 8, kind: input, shape index: {}]
  %s9 = inlined_call_operand.vmem [shape: f32[1,32], index: 9, kind: input, shape index: {}]
  %s10 = inlined_call_operand.vmem [shape: bf16[32,512], index: 10, kind: input, shape index: {}]
  %s11 = inlined_call_operand.vmem [shape: bf16[256,16], index: 11, kind: input, shape index: {}]
  %s12 = inlined_call_operand.vmem [shape: bf16[256,16], index: 12, kind: input, shape index: {}]
  %s13 = inlined_call_operand.vmem [shape: f32[1,256], index: 13, kind: input, shape index: {}]
  %s14 = inlined_call_operand.vmem [shape: f32[1,256], index: 14, kind: input, shape index: {}]
  %s15 = inlined_call_operand.vmem [shape: bf16[256,32], index: 15, kind: input, shape index: {}]
  %s16 = inlined_call_operand.vmem [shape: f32[1,32], index: 16, kind: input, shape index: {}]
  %s17 = inlined_call_operand.vmem [shape: bf16[256,32], index: 17, kind: input, shape index: {}]
  %s18 = inlined_call_operand.vmem [shape: f32[1,32], index: 18, kind: input, shape index: {}]
  %s19 = inlined_call_operand.vmem [shape: f32[12,32], index: 19, kind: output, shape index: {0}]
  %s20 = inlined_call_operand.vmem [shape: f32[10,32], index: 20, kind: output, shape index: {1}]
  %21 = xla_tuple %s19, %s20
  %s22 = sld [smem:[#allocation0]]
  $region94: #{improved_model_forward.5} parent=0
    _
  %s24 = ssub.s32 1, %s22
  %s25 = scalar_select 0, %s24, %s22
  // Predicated region
  $region2: #{improved_model_forward.5} parent=0 // pred_check
    _
  $region3: #{improved_model_forward.5} parent=0 // pred_check_branch
    %27 = sbr.rel (0) target = $region5
  $region4: #{improved_model_forward.5} parent=0 // pred_region
    _
  $region5: #{improved_model_forward.5} parent=0 // pred_fallthru
    _
  // Predicated region
  $region6: #{improved_model_forward.5} parent=0 // pred_check
    _
  $region7: #{improved_model_forward.5} parent=0 // pred_check_branch
    %29 = sbr.rel (0) target = $region9
  $region8: #{improved_model_forward.5} parent=0 // pred_region
    _
  $region9: #{improved_model_forward.5} parent=0 // pred_fallthru
    _
  // Predicated region
  $region10: #{improved_model_forward.5} parent=0 // pred_check
    _
  $region11: #{improved_model_forward.5} parent=0 // pred_check_branch
    %31 = sbr.rel (0) target = $region13
  $region12: #{improved_model_forward.5} parent=0 // pred_region
    _
  $region13: #{improved_model_forward.5} parent=0 // pred_fallthru
    _
  // Predicated region
  $region14: #{improved_model_forward.5} parent=0 // pred_check
    _
  $region15: #{improved_model_forward.5} parent=0 // pred_check_branch
    %33 = sbr.rel (0) target = $region17
  $region16: #{improved_model_forward.5} parent=0 // pred_region
    _
  $region17: #{improved_model_forward.5} parent=0 // pred_fallthru
    _
  // Predicated region
  $region18: #{improved_model_forward.5} parent=0 // pred_check
    _
  $region19: #{improved_model_forward.5} parent=0 // pred_check_branch
    %35 = sbr.rel (0) target = $region21
  $region20: #{improved_model_forward.5} parent=0 // pred_region
    _
  $region21: #{improved_model_forward.5} parent=0 // pred_fallthru
    _
  // Predicated region
  $region22: #{improved_model_forward.5} parent=0 // pred_check
    _
  $region23: #{improved_model_forward.5} parent=0 // pred_check_branch
    %37 = sbr.rel (0) target = $region25
  $region24: #{improved_model_forward.5} parent=0 // pred_region
    _
  $region25: #{improved_model_forward.5} parent=0 // pred_fallthru
    _
  // Predicated region
  $region26: #{improved_model_forward.5} parent=0 // pred_check
    _
  $region27: #{improved_model_forward.5} parent=0 // pred_check_branch
    %39 = sbr.rel (0) target = $region29
  $region28: #{improved_model_forward.5} parent=0 // pred_region
    _
  $region29: #{improved_model_forward.5} parent=0 // pred_fallthru
    _
  // Predicated region
  $region30: #{improved_model_forward.5} parent=0 // pred_check
    _
  $region31: #{improved_model_forward.5} parent=0 // pred_check_branch
    %41 = sbr.rel (0) target = $region33
  $region32: #{improved_model_forward.5} parent=0 // pred_region
    _
  $region33: #{improved_model_forward.5} parent=0 // pred_fallthru
    _
  // Predicated region
  $region34: #{improved_model_forward.5} parent=0 // pred_check
    _
  $region35: #{improved_model_forward.5} parent=0 // pred_check_branch
    %43 = sbr.rel (0) target = $region37
  $region36: #{improved_model_forward.5} parent=0 // pred_region
    _
  $region37: #{improved_model_forward.5} parent=0 // pred_fallthru
    _
  // Predicated region
  $region38: #{improved_model_forward.5} parent=0 // pred_check
    _
  $region39: #{improved_model_forward.5} parent=0 // pred_check_branch
    %45 = sbr.rel (0) target = $region41
  $region40: #{improved_model_forward.5} parent=0 // pred_region
    _
  $region41: #{improved_model_forward.5} parent=0 // pred_fallthru
    _
  // Predicated region
  $region42: #{improved_model_forward.5} parent=0 // pred_check
    _
  $region43: #{improved_model_forward.5} parent=0 // pred_check_branch
    %47 = sbr.rel (0) target = $region45
  $region44: #{improved_model_forward.5} parent=0 // pred_region
    _
  $region45: #{improved_model_forward.5} parent=0 // pred_fallthru
    _
  // Predicated region
  $region46: #{improved_model_forward.5} parent=0 // pred_check
    _
  $region47: #{improved_model_forward.5} parent=0 // pred_check_branch
    %49 = sbr.rel (0) target = $region49
  $region48: #{improved_model_forward.5} parent=0 // pred_region
    _
  $region49: #{improved_model_forward.5} parent=0 // pred_fallthru
    _
  // Predicated region
  $region50: #{improved_model_forward.5} parent=0 // pred_check
    _
  $region51: #{improved_model_forward.5} parent=0 // pred_check_branch
    %51 = sbr.rel (0) target = $region53
  $region52: #{improved_model_forward.5} parent=0 // pred_region
    _
  $region53: #{improved_model_forward.5} parent=0 // pred_fallthru
    _
  // Predicated region
  $region54: #{improved_model_forward.5} parent=0 // pred_check
    _
  $region55: #{improved_model_forward.5} parent=0 // pred_check_branch
    %53 = sbr.rel (0) target = $region57
  $region56: #{improved_model_forward.5} parent=0 // pred_region
    _
  $region57: #{improved_model_forward.5} parent=0 // pred_fallthru
    _
  // Predicated region
  $region58: #{improved_model_forward.5} parent=0 // pred_check
    _
  $region59: #{improved_model_forward.5} parent=0 // pred_check_branch
    %55 = sbr.rel (0) target = $region61
  $region60: #{improved_model_forward.5} parent=0 // pred_region
    _
  $region61: #{improved_model_forward.5} parent=0 // pred_fallthru
    _
  // Predicated region
  $region62: #{improved_model_forward.5} parent=0 // pred_check
    _
  $region63: #{improved_model_forward.5} parent=0 // pred_check_branch
    %57 = sbr.rel (0) target = $region65
  $region64: #{improved_model_forward.5} parent=0 // pred_region
    _
  $region65: #{improved_model_forward.5} parent=0 // pred_fallthru
    _
  // Predicated region
  $region66: #{improved_model_forward.5} parent=0 // pred_check
    _
  $region67: #{improved_model_forward.5} parent=0 // pred_check_branch
    %59 = sbr.rel (0) target = $region69
  $region68: #{improved_model_forward.5} parent=0 // pred_region
    _
  $region69: #{improved_model_forward.5} parent=0 // pred_fallthru
    _
  // Predicated region
  $region70: #{improved_model_forward.5} parent=0 // pred_check
    _
  $region71: #{improved_model_forward.5} parent=0 // pred_check_branch
    %61 = sbr.rel (0) target = $region73
  $region72: #{improved_model_forward.5} parent=0 // pred_region
    _
  $region73: #{improved_model_forward.5} parent=0 // pred_fallthru
    _
  // Predicated region
  $region74: #{improved_model_forward.5} parent=0 // pred_check
    _
  $region75: #{improved_model_forward.5} parent=0 // pred_check_branch
    %63 = sbr.rel (0) target = $region77
  $region76: #{improved_model_forward.5} parent=0 // pred_region
    _
  $region77: #{improved_model_forward.5} parent=0 // pred_fallthru
    _
  %v65 = vld [vmem:[%s0] sm:$0xff]
  %v66 = vld [vmem:[%s0 + $0x8] sm:$0xf]
  %v67 = vld [vmem:[%s1] sm:$0xff]
  %v68 = vld [vmem:[%s1 + $0x8] sm:$0x3]
  %v69 = vld [vmem:[%s2] sm:$0xf]
  %v70 = vld [vmem:[%s2 + $0x4] sm:$0x3]
  %v71 = vld [vmem:[%s6] sm:$0xf]
  %v72 = vld [vmem:[%s6 + $0x4] sm:$0xf]
  %v73 = vld [vmem:[%s6 + $0x8] sm:$0xf]
  %v74 = vld [vmem:[%s6 + $0xc] sm:$0xf]
  %v75 = vld [vmem:[%s6 + $0x10] sm:$0xf]
  %v76 = vld [vmem:[%s6 + $0x14] sm:$0xf]
  %v77 = vld [vmem:[%s6 + $0x18] sm:$0xf]
  %v78 = vld [vmem:[%s6 + $0x1c] sm:$0xf]
  %v79 = vld [vmem:[%s7] sm:$0x1]
  %v80 = vpack.c.bf16 %v68, %v67
  %v83 = vunpack.c.l.b16 %v69
  %v84 = vunpack.c.l.b16 %v70
  %v85 = vpack.c.b16 %v84, %v83
  %vm86 = vcmask 80896
  %v88 = vsel %vm86, %v85, 0
  %vm90 = vcmask 1044480
  %v92 = vsel %vm90, %v80, 0
  %94 = vmatpush.bf16.msra.mxu0 0
  %95 = vmatpush.bf16.msra.mxu0 0
  %96 = vmatpush.bf16.msra.mxu0 0
  %97 = vmatpush.bf16.msra.mxu0 0
  %98 = vmatpush.bf16.msra.mxu0 0
  %99 = vmatpush.bf16.msra.mxu0 0
  %100 = vmatpush.bf16.msra.mxu0 0
  %101 = vmatpush.bf16.msra.mxu0 %v92
  %102 = vmatmul.bf16.gmra.mxu0 %v88
  %v103 = vpop.f32.mrf.mxu0
  %v104 = vadd.f32 0.0, %v103
  %v105 = vpop.f32.mrf.mxu0
  %v106 = vadd.f32 0.0, %v105
  %107 = vdwg.mxu0
  %110 = vrot.lane.b32.xlu0 %v65, 32
  %v111 = vpop.permute.xlu0 %110
  %112 = vrot.lane.b32.xlu0 %v66, 32
  %v113 = vpop.permute.xlu0 %112
  %vm116 = vcmask 261120
  %v117 = vsel %vm116, %v104, %v111
  %v118 = vsel %vm116, %v106, %v113
  %v119 = vpack.c.bf16 %v118, %v117
  %v121 = vperm.slane %v79, 0
  %v131 = vunpack.c.l.b16 %v71
  %v132 = vunpack.c.l.b16 %v72
  %v133 = vunpack.c.l.b16 %v73
  %v134 = vunpack.c.l.b16 %v74
  %v135 = vunpack.c.l.b16 %v75
  %v136 = vunpack.c.l.b16 %v76
  %v137 = vunpack.c.l.b16 %v77
  %v138 = vunpack.c.l.b16 %v78
  %v139 = vpack.c.b16 %v132, %v131
  %v140 = vpack.c.b16 %v134, %v133
  %v141 = vpack.c.b16 %v136, %v135
  %v142 = vpack.c.b16 %v138, %v137
  %vm147 = vcmask 523264
  %v149 = vsel %vm147, %v119, 0
  %151 = vmatpush.bf16.msra.mxu0 0
  %152 = vmatpush.bf16.msra.mxu0 0
  %153 = vmatpush.bf16.msra.mxu0 0
  %154 = vmatpush.bf16.msra.mxu0 0
  %155 = vmatpush.bf16.msra.mxu0 %v142
  %156 = vmatpush.bf16.msra.mxu0 %v141
  %157 = vmatpush.bf16.msra.mxu0 %v140
  %158 = vmatpush.bf16.msra.mxu0 %v139
  %159 = vmatmul.bf16.gmra.mxu0 %v149
  %v160 = vpop.f32.mrf.mxu0
  %v161 = vadd.f32 %v121, %v160
  %v162 = vpop.f32.mrf.mxu0
  %v163 = vadd.f32 %v121, %v162
  %164 = vdwg.mxu0
  %v165 = vmax.f32 %v161, 0.0
  %v166 = vmax.f32 %v163, 0.0
  %v167 = vmul.f32 %v165, 0.999995
  %v168 = vmul.f32 %v166, 0.999995
  %v169 = vld [vmem:[%s3] sm:$0xf]
  %v170 = vld [vmem:[%s3 + $0x4] sm:$0x1]
  %v171 = vld [vmem:[%s8] sm:$0xf]
  %v172 = vld [vmem:[%s8 + $0x4] sm:$0xf]
  %v173 = vld [vmem:[%s8 + $0x8] sm:$0xf]
  %v174 = vld [vmem:[%s8 + $0xc] sm:$0xf]
  %v175 = vld [vmem:[%s8 + $0x10] sm:$0xf]
  %v176 = vld [vmem:[%s8 + $0x14] sm:$0xf]
  %v177 = vld [vmem:[%s8 + $0x18] sm:$0xf]
  %v178 = vld [vmem:[%s8 + $0x1c] sm:$0xf]
  %v179 = vld [vmem:[%s9] sm:$0x1]
  %v180 = vpack.c.bf16 %v66, %v65
  %v183 = vunpack.c.l.b16 %v169
  %v184 = vunpack.c.l.b16 %v170
  %v185 = vpack.c.b16 %v184, %v183
  %vm186 = vcmask 97280
  %v188 = vsel %vm186, %v185, 0
  %vm190 = vcmask 1045504
  %v192 = vsel %vm190, %v180, 0
  %194 = vmatpush.bf16.msra.mxu0 0
  %195 = vmatpush.bf16.msra.mxu0 0
  %196 = vmatpush.bf16.msra.mxu0 0
  %197 = vmatpush.bf16.msra.mxu0 0
  %198 = vmatpush.bf16.msra.mxu0 0
  %199 = vmatpush.bf16.msra.mxu0 0
  %200 = vmatpush.bf16.msra.mxu0 0
  %201 = vmatpush.bf16.msra.mxu0 %v192
  %202 = vmatmul.bf16.gmra.mxu0 %v188
  %v203 = vpop.f32.mrf.mxu0
  %v204 = vadd.f32 0.0, %v203
  %v205 = vpop.f32.mrf.mxu0
  %v206 = vadd.f32 0.0, %v205
  %207 = vdwg.mxu0
  %210 = vrot.lane.b32.xlu0 %v67, 32
  %v211 = vpop.permute.xlu0 %210
  %212 = vrot.lane.b32.xlu0 %v68, 32
  %v213 = vpop.permute.xlu0 %212
  %v216 = vsel %vm116, %v204, %v211
  %v217 = vsel %vm116, %v206, %v213
  %v218 = vpack.c.bf16 %v217, %v216
  %v220 = vperm.slane %v179, 0
  %v230 = vunpack.c.l.b16 %v171
  %v231 = vunpack.c.l.b16 %v172
  %v232 = vunpack.c.l.b16 %v173
  %v233 = vunpack.c.l.b16 %v174
  %v234 = vunpack.c.l.b16 %v175
  %v235 = vunpack.c.l.b16 %v176
  %v236 = vunpack.c.l.b16 %v177
  %v237 = vunpack.c.l.b16 %v178
  %v238 = vpack.c.b16 %v231, %v230
  %v239 = vpack.c.b16 %v233, %v232
  %v240 = vpack.c.b16 %v235, %v234
  %v241 = vpack.c.b16 %v237, %v236
  %v247 = vsel %vm147, %v218, 0
  %249 = vmatpush.bf16.msra.mxu0 0
  %250 = vmatpush.bf16.msra.mxu0 0
  %251 = vmatpush.bf16.msra.mxu0 0
  %252 = vmatpush.bf16.msra.mxu0 0
  %253 = vmatpush.bf16.msra.mxu0 %v241
  %254 = vmatpush.bf16.msra.mxu0 %v240
  %255 = vmatpush.bf16.msra.mxu0 %v239
  %256 = vmatpush.bf16.msra.mxu0 %v238
  %257 = vmatmul.bf16.gmra.mxu0 %v247
  %v258 = vpop.f32.mrf.mxu0
  %v259 = vadd.f32 %v220, %v258
  %v260 = vpop.f32.mrf.mxu0
  %v261 = vadd.f32 %v220, %v260
  %262 = vdwg.mxu0
  %v263 = vmax.f32 %v259, 0.0
  %v264 = vmax.f32 %v261, 0.0
  %v265 = vmul.f32 %v263, 0.999995
  %v266 = vmul.f32 %v264, 0.999995
  %v267 = vld [vmem:[%s10] sm:$0xff]
  %v268 = vld [vmem:[%s10 + $0x8] sm:$0xff]
  %v269 = vld [vmem:[%s10 + $0x10] sm:$0xff]
  %v270 = vld [vmem:[%s10 + $0x18] sm:$0xff]
  %v271 = vld [vmem:[%s10 + $0x20] sm:$0xff]
  %v272 = vld [vmem:[%s10 + $0x28] sm:$0xff]
  %v273 = vld [vmem:[%s10 + $0x30] sm:$0xff]
  %v274 = vld [vmem:[%s10 + $0x38] sm:$0xff]
  %v275 = vpack.c.bf16 %v168, %v167
  %v284 = vunpack.c.l.b16 %v267
  %v285 = vunpack.c.h.b16 %v267
  %v286 = vunpack.c.l.b16 %v268
  %v287 = vunpack.c.h.b16 %v268
  %v288 = vunpack.c.l.b16 %v269
  %v289 = vunpack.c.h.b16 %v269
  %v290 = vunpack.c.l.b16 %v270
  %v291 = vunpack.c.h.b16 %v270
  %v292 = vunpack.c.l.b16 %v271
  %v293 = vunpack.c.h.b16 %v271
  %v294 = vunpack.c.l.b16 %v272
  %v295 = vunpack.c.h.b16 %v272
  %v296 = vunpack.c.l.b16 %v273
  %v297 = vunpack.c.h.b16 %v273
  %v298 = vunpack.c.l.b16 %v274
  %v299 = vunpack.c.h.b16 %v274
  %v300 = vpack.c.b16 %v288, %v284
  %v301 = vpack.c.b16 %v289, %v285
  %v302 = vpack.c.b16 %v290, %v286
  %v303 = vpack.c.b16 %v291, %v287
  %v304 = vpack.c.b16 %v296, %v292
  %v305 = vpack.c.b16 %v297, %v293
  %v306 = vpack.c.b16 %v298, %v294
  %v307 = vpack.c.b16 %v299, %v295
  %v317 = vsel %vm116, %v275, 0
  %319 = vmatpush.bf16.msra.mxu0 0
  %320 = vmatpush.bf16.msra.mxu0 0
  %321 = vmatpush.bf16.msra.mxu0 0
  %322 = vmatpush.bf16.msra.mxu0 0
  %323 = vmatpush.bf16.msra.mxu0 0
  %324 = vmatpush.bf16.msra.mxu0 0
  %325 = vmatpush.bf16.msra.mxu0 %v304
  %326 = vmatpush.bf16.msra.mxu0 %v300
  %327 = vmatmul.bf16.gmra.mxu0 %v317
  %v328 = vpop.f32.mrf.mxu0
  %v329 = vadd.f32 0.0, %v328
  %v330 = vpop.f32.mrf.mxu0
  %v331 = vadd.f32 0.0, %v330
  %332 = vdwg.mxu0
  %333 = vmatpush.bf16.msra.mxu0 0
  %334 = vmatpush.bf16.msra.mxu0 0
  %335 = vmatpush.bf16.msra.mxu0 0
  %336 = vmatpush.bf16.msra.mxu0 0
  %337 = vmatpush.bf16.msra.mxu0 0
  %338 = vmatpush.bf16.msra.mxu0 0
  %339 = vmatpush.bf16.msra.mxu0 %v305
  %340 = vmatpush.bf16.msra.mxu0 %v301
  %341 = vmatmul.bf16.gmra.mxu0 %v317
  %v342 = vpop.f32.mrf.mxu0
  %v343 = vadd.f32 0.0, %v342
  %v344 = vpop.f32.mrf.mxu0
  %v345 = vadd.f32 0.0, %v344
  %346 = vdwg.mxu0
  %347 = vmatpush.bf16.msra.mxu0 0
  %348 = vmatpush.bf16.msra.mxu0 0
  %349 = vmatpush.bf16.msra.mxu0 0
  %350 = vmatpush.bf16.msra.mxu0 0
  %351 = vmatpush.bf16.msra.mxu0 0
  %352 = vmatpush.bf16.msra.mxu0 0
  %353 = vmatpush.bf16.msra.mxu0 %v306
  %354 = vmatpush.bf16.msra.mxu0 %v302
  %355 = vmatmul.bf16.gmra.mxu0 %v317
  %v356 = vpop.f32.mrf.mxu0
  %v357 = vadd.f32 0.0, %v356
  %v358 = vpop.f32.mrf.mxu0
  %v359 = vadd.f32 0.0, %v358
  %360 = vdwg.mxu0
  %361 = vmatpush.bf16.msra.mxu0 0
  %362 = vmatpush.bf16.msra.mxu0 0
  %363 = vmatpush.bf16.msra.mxu0 0
  %364 = vmatpush.bf16.msra.mxu0 0
  %365 = vmatpush.bf16.msra.mxu0 0
  %366 = vmatpush.bf16.msra.mxu0 0
  %367 = vmatpush.bf16.msra.mxu0 %v307
  %368 = vmatpush.bf16.msra.mxu0 %v303
  %369 = vmatmul.bf16.gmra.mxu0 %v317
  %v370 = vpop.f32.mrf.mxu0
  %v371 = vadd.f32 0.0, %v370
  %v372 = vpop.f32.mrf.mxu0
  %v373 = vadd.f32 0.0, %v372
  %374 = vdwg.mxu0
  %v375 = vpack.c.bf16 %v266, %v265
  %v377 = vsel %vm116, %v375, 0
  %379 = vmatpush.bf16.msra.mxu0 0
  %380 = vmatpush.bf16.msra.mxu0 0
  %381 = vmatpush.bf16.msra.mxu0 0
  %382 = vmatpush.bf16.msra.mxu0 0
  %383 = vmatpush.bf16.msra.mxu0 0
  %384 = vmatpush.bf16.msra.mxu0 0
  %385 = vmatpush.bf16.msra.mxu0 %v304
  %386 = vmatpush.bf16.msra.mxu0 %v300
  %387 = vmatmul.bf16.gmra.mxu0 %v377
  %v388 = vpop.f32.mrf.mxu0
  %v389 = vadd.f32 0.0, %v388
  %v390 = vpop.f32.mrf.mxu0
  %v391 = vadd.f32 0.0, %v390
  %392 = vdwg.mxu0
  %393 = vmatpush.bf16.msra.mxu0 0
  %394 = vmatpush.bf16.msra.mxu0 0
  %395 = vmatpush.bf16.msra.mxu0 0
  %396 = vmatpush.bf16.msra.mxu0 0
  %397 = vmatpush.bf16.msra.mxu0 0
  %398 = vmatpush.bf16.msra.mxu0 0
  %399 = vmatpush.bf16.msra.mxu0 %v305
  %400 = vmatpush.bf16.msra.mxu0 %v301
  %401 = vmatmul.bf16.gmra.mxu0 %v377
  %v402 = vpop.f32.mrf.mxu0
  %v403 = vadd.f32 0.0, %v402
  %v404 = vpop.f32.mrf.mxu0
  %v405 = vadd.f32 0.0, %v404
  %406 = vdwg.mxu0
  %407 = vmatpush.bf16.msra.mxu0 0
  %408 = vmatpush.bf16.msra.mxu0 0
  %409 = vmatpush.bf16.msra.mxu0 0
  %410 = vmatpush.bf16.msra.mxu0 0
  %411 = vmatpush.bf16.msra.mxu0 0
  %412 = vmatpush.bf16.msra.mxu0 0
  %413 = vmatpush.bf16.msra.mxu0 %v306
  %414 = vmatpush.bf16.msra.mxu0 %v302
  %415 = vmatmul.bf16.gmra.mxu0 %v377
  %v416 = vpop.f32.mrf.mxu0
  %v417 = vadd.f32 0.0, %v416
  %v418 = vpop.f32.mrf.mxu0
  %v419 = vadd.f32 0.0, %v418
  %420 = vdwg.mxu0
  %421 = vmatpush.bf16.msra.mxu0 0
  %422 = vmatpush.bf16.msra.mxu0 0
  %423 = vmatpush.bf16.msra.mxu0 0
  %424 = vmatpush.bf16.msra.mxu0 0
  %425 = vmatpush.bf16.msra.mxu0 0
  %426 = vmatpush.bf16.msra.mxu0 0
  %427 = vmatpush.bf16.msra.mxu0 %v307
  %428 = vmatpush.bf16.msra.mxu0 %v303
  %429 = vmatmul.bf16.gmra.mxu0 %v377
  %v430 = vpop.f32.mrf.mxu0
  %v431 = vadd.f32 0.0, %v430
  %v432 = vpop.f32.mrf.mxu0
  %v433 = vadd.f32 0.0, %v432
  %434 = vdwg.mxu0
  %v435 = vld [vmem:[%s11] sm:$0xf]
  %v436 = vld [vmem:[%s11 + $0x4] sm:$0xf]
  %v437 = vld [vmem:[%s11 + $0x8] sm:$0xf]
  %v438 = vld [vmem:[%s11 + $0xc] sm:$0xf]
  %v439 = vld [vmem:[%s11 + $0x10] sm:$0xf]
  %v440 = vld [vmem:[%s11 + $0x14] sm:$0xf]
  %v441 = vld [vmem:[%s11 + $0x18] sm:$0xf]
  %v442 = vld [vmem:[%s11 + $0x1c] sm:$0xf]
  %v443 = vld [vmem:[%s11 + $0x20] sm:$0xf]
  %v444 = vld [vmem:[%s11 + $0x24] sm:$0xf]
  %v445 = vld [vmem:[%s11 + $0x28] sm:$0xf]
  %v446 = vld [vmem:[%s11 + $0x2c] sm:$0xf]
  %v447 = vld [vmem:[%s11 + $0x30] sm:$0xf]
  %v448 = vld [vmem:[%s11 + $0x34] sm:$0xf]
  %v449 = vld [vmem:[%s11 + $0x38] sm:$0xf]
  %v450 = vld [vmem:[%s11 + $0x3c] sm:$0xf]
  %v451 = vld [vmem:[%s11 + $0x40] sm:$0xf]
  %v452 = vld [vmem:[%s11 + $0x44] sm:$0xf]
  %v453 = vld [vmem:[%s11 + $0x48] sm:$0xf]
  %v454 = vld [vmem:[%s11 + $0x4c] sm:$0xf]
  %v455 = vld [vmem:[%s11 + $0x50] sm:$0xf]
  %v456 = vld [vmem:[%s11 + $0x54] sm:$0xf]
  %v457 = vld [vmem:[%s11 + $0x58] sm:$0xf]
  %v458 = vld [vmem:[%s11 + $0x5c] sm:$0xf]
  %v459 = vld [vmem:[%s11 + $0x60] sm:$0xf]
  %v460 = vld [vmem:[%s11 + $0x64] sm:$0xf]
  %v461 = vld [vmem:[%s11 + $0x68] sm:$0xf]
  %v462 = vld [vmem:[%s11 + $0x6c] sm:$0xf]
  %v463 = vld [vmem:[%s11 + $0x70] sm:$0xf]
  %v464 = vld [vmem:[%s11 + $0x74] sm:$0xf]
  %v465 = vld [vmem:[%s11 + $0x78] sm:$0xf]
  %v466 = vld [vmem:[%s11 + $0x7c] sm:$0xf]
  %v467 = vpack.c.bf16 %v331, %v329
  %v468 = vpack.c.bf16 %v345, %v343
  %v501 = vunpack.c.l.b16 %v435
  %v502 = vunpack.c.l.b16 %v436
  %v503 = vunpack.c.l.b16 %v437
  %v504 = vunpack.c.l.b16 %v438
  %v505 = vunpack.c.l.b16 %v439
  %v506 = vunpack.c.l.b16 %v440
  %v507 = vunpack.c.l.b16 %v441
  %v508 = vunpack.c.l.b16 %v442
  %v509 = vunpack.c.l.b16 %v443
  %v510 = vunpack.c.l.b16 %v444
  %v511 = vunpack.c.l.b16 %v445
  %v512 = vunpack.c.l.b16 %v446
  %v513 = vunpack.c.l.b16 %v447
  %v514 = vunpack.c.l.b16 %v448
  %v515 = vunpack.c.l.b16 %v449
  %v516 = vunpack.c.l.b16 %v450
  %v517 = vunpack.c.l.b16 %v451
  %v518 = vunpack.c.l.b16 %v452
  %v519 = vunpack.c.l.b16 %v453
  %v520 = vunpack.c.l.b16 %v454
  %v521 = vunpack.c.l.b16 %v455
  %v522 = vunpack.c.l.b16 %v456
  %v523 = vunpack.c.l.b16 %v457
  %v524 = vunpack.c.l.b16 %v458
  %v525 = vunpack.c.l.b16 %v459
  %v526 = vunpack.c.l.b16 %v460
  %v527 = vunpack.c.l.b16 %v461
  %v528 = vunpack.c.l.b16 %v462
  %v529 = vunpack.c.l.b16 %v463
  %v530 = vunpack.c.l.b16 %v464
  %v531 = vunpack.c.l.b16 %v465
  %v532 = vunpack.c.l.b16 %v466
  %v533 = vpack.c.b16 %v502, %v501
  %v534 = vpack.c.b16 %v504, %v503
  %v535 = vpack.c.b16 %v506, %v505
  %v536 = vpack.c.b16 %v508, %v507
  %v537 = vpack.c.b16 %v510, %v509
  %v538 = vpack.c.b16 %v512, %v511
  %v539 = vpack.c.b16 %v514, %v513
  %v540 = vpack.c.b16 %v516, %v515
  %v541 = vpack.c.b16 %v518, %v517
  %v542 = vpack.c.b16 %v520, %v519
  %v543 = vpack.c.b16 %v522, %v521
  %v544 = vpack.c.b16 %v524, %v523
  %v545 = vpack.c.b16 %v526, %v525
  %v546 = vpack.c.b16 %v528, %v527
  %v547 = vpack.c.b16 %v530, %v529
  %v548 = vpack.c.b16 %v532, %v531
  %565 = vmatpush.bf16.msra.mxu0 %v540
  %566 = vmatpush.bf16.msra.mxu0 %v539
  %567 = vmatpush.bf16.msra.mxu0 %v538
  %568 = vmatpush.bf16.msra.mxu0 %v537
  %569 = vmatpush.bf16.msra.mxu0 %v536
  %570 = vmatpush.bf16.msra.mxu0 %v535
  %571 = vmatpush.bf16.msra.mxu0 %v534
  %572 = vmatpush.bf16.msra.mxu0 %v533
  %573 = vmatmul.bf16.gmra.mxu0 %v467
  %v574 = vpop.f32.mrf.mxu0
  %v575 = vadd.f32 0.0, %v574
  %v576 = vpop.f32.mrf.mxu0
  %v577 = vadd.f32 0.0, %v576
  %578 = vdwg.mxu0
  %579 = vmatpush.bf16.msra.mxu0 %v548
  %580 = vmatpush.bf16.msra.mxu0 %v547
  %581 = vmatpush.bf16.msra.mxu0 %v546
  %582 = vmatpush.bf16.msra.mxu0 %v545
  %583 = vmatpush.bf16.msra.mxu0 %v544
  %584 = vmatpush.bf16.msra.mxu0 %v543
  %585 = vmatpush.bf16.msra.mxu0 %v542
  %586 = vmatpush.bf16.msra.mxu0 %v541
  %587 = vmatmul.bf16.gmra.mxu0 %v468
  %v588 = vpop.f32.mrf.mxu0
  %v589 = vadd.f32 %v575, %v588
  %v590 = vpop.f32.mrf.mxu0
  %v591 = vadd.f32 %v577, %v590
  %592 = vdwg.mxu0
  %v593 = vpack.c.bf16 %v391, %v389
  %v594 = vpack.c.bf16 %v405, %v403
  %595 = vmatpush.bf16.msra.mxu0 %v540
  %596 = vmatpush.bf16.msra.mxu0 %v539
  %597 = vmatpush.bf16.msra.mxu0 %v538
  %598 = vmatpush.bf16.msra.mxu0 %v537
  %599 = vmatpush.bf16.msra.mxu0 %v536
  %600 = vmatpush.bf16.msra.mxu0 %v535
  %601 = vmatpush.bf16.msra.mxu0 %v534
  %602 = vmatpush.bf16.msra.mxu0 %v533
  %603 = vmatmul.bf16.gmra.mxu0 %v593
  %v604 = vpop.f32.mrf.mxu0
  %v605 = vadd.f32 0.0, %v604
  %v606 = vpop.f32.mrf.mxu0
  %v607 = vadd.f32 0.0, %v606
  %608 = vdwg.mxu0
  %609 = vmatpush.bf16.msra.mxu0 %v548
  %610 = vmatpush.bf16.msra.mxu0 %v547
  %611 = vmatpush.bf16.msra.mxu0 %v546
  %612 = vmatpush.bf16.msra.mxu0 %v545
  %613 = vmatpush.bf16.msra.mxu0 %v544
  %614 = vmatpush.bf16.msra.mxu0 %v543
  %615 = vmatpush.bf16.msra.mxu0 %v542
  %616 = vmatpush.bf16.msra.mxu0 %v541
  %617 = vmatmul.bf16.gmra.mxu0 %v594
  %v618 = vpop.f32.mrf.mxu0
  %v619 = vadd.f32 %v605, %v618
  %v620 = vpop.f32.mrf.mxu0
  %v621 = vadd.f32 %v607, %v620
  %622 = vdwg.mxu0
  %625 = vrot.lane.b32.xlu0 %v619, 120
  %v626 = vpop.permute.xlu0 %625
  %627 = vrot.lane.b32.xlu0 %v621, 120
  %v628 = vpop.permute.xlu0 %627
  %631 = vxpose.xlu0.b32.start [1/16] %v626, 128
  %632 = vxpose.xlu0.b32.cont [2/16] %v628, 128
  %633 = vxpose.xlu0.b32.cont [3/16] 0.0, 128
  %634 = vxpose.xlu0.b32.cont [4/16] 0.0, 128
  %635 = vxpose.xlu0.b32.cont [5/16] 0.0, 128
  %636 = vxpose.xlu0.b32.cont [6/16] 0.0, 128
  %637 = vxpose.xlu0.b32.cont [7/16] 0.0, 128
  %638 = vxpose.xlu0.b32.cont [8/16] 0.0, 128
  %639 = vxpose.xlu0.b32.cont [9/16] 0.0, 128
  %640 = vxpose.xlu0.b32.cont [10/16] 0.0, 128
  %641 = vxpose.xlu0.b32.cont [11/16] 0.0, 128
  %642 = vxpose.xlu0.b32.cont [12/16] 0.0, 128
  %643 = vxpose.xlu0.b32.cont [13/16] 0.0, 128
  %644 = vxpose.xlu0.b32.cont [14/16] 0.0, 128
  %645 = vxpose.xlu0.b32.cont [15/16] 0.0, 128
  %646 = vxpose.xlu0.b32.end [16/16] 0.0, 128
  %v647 = vpop.trf.xlu0
  %v648 = vpop.trf.xlu0
  %v649 = vpop.trf.xlu0
  %v650 = vpop.trf.xlu0
  %v651 = vpop.trf.xlu0
  %v652 = vpop.trf.xlu0
  %v653 = vpop.trf.xlu0
  %v654 = vpop.trf.xlu0
  %v655 = vpop.trf.xlu0
  %v656 = vpop.trf.xlu0
  %v657 = vpop.trf.xlu0
  %v658 = vpop.trf.xlu0
  %v659 = vpop.trf.xlu0
  %v660 = vpop.trf.xlu0
  %v661 = vpop.trf.xlu0
  %v662 = vpop.trf.xlu0
  %v663 = vld [vmem:[%s4] sm:$0xf]
  %v664 = vld [vmem:[%s4 + $0x4] sm:$0x3]
  %v665 = vunpack.c.l.bf16 %v663
  %v666 = vunpack.c.l.bf16 %v664
  %vm667 = vcmp.gt.f32.partialorder %v665, 0.0
  %vm668 = vcmp.gt.f32.partialorder %v666, 0.0
  %670 = vset.pattern.permute.xlu0 0
  %671 = vperm.xlu0 %670, %v589
  %v672 = vpop.permute.xlu0 %671
  %675 = vset.pattern.permute.xlu0 0
  %676 = vperm.xlu0 %675, %v591
  %v677 = vpop.permute.xlu0 %676
  %v679 = vperm.slane %v647, 0
  %v680 = vadd.f32 %v672, %v679
  %v681 = vadd.f32 %v677, %v679
  %vm682 = vcmp.ge.f32.partialorder %v680, 0.0
  %vm683 = vcmp.ge.f32.partialorder %v681, 0.0
  %v684 = vmul.f32 %v680, 0.2
  %v685 = vmul.f32 %v681, 0.2
  %v686 = vsel %vm682, %v680, %v684
  %v687 = vsel %vm683, %v681, %v685
  %v688 = vsel %vm667, %v686, -1e+30
  %v689 = vsel %vm668, %v687, -1e+30
  %v690 = vsel %vm86, %v688, -inf
  %691 = vmax.xlane.f32.xlu0 %v690
  %v692 = vpop.xlane.xlu0 %691
  %vm693 = vcmask 76800
  %v694 = vsel %vm693, %v689, -inf
  %695 = vmax.xlane.f32.xlu0 %v694
  %v696 = vpop.xlane.xlu0 %695
  %v697 = vsub.f32 %v688, %v692
  %v698 = vsub.f32 %v689, %v696
  %v699 = vmul.f32 %v697, 1.442695
  %v700 = vpow.pop %v699
  %v701 = vmul.f32 %v698, 1.442695
  %v702 = vpow.pop %v701
  %v703 = vsel %vm667, %v700, 0.0
  %v704 = vsel %vm668, %v702, 0.0
  %v705 = vsel %vm86, %v703, 0.0
  %706 = vadd.xlane.f32.xlu0 %v705
  %v707 = vpop.xlane.xlu0 %706
  %v708 = vsel %vm693, %v704, 0.0
  %709 = vadd.xlane.f32.xlu0 %v708
  %v710 = vpop.xlane.xlu0 %709
  %v711 = vmax.f32 %v707, 1e-16
  %v712 = vmax.f32 %v710, 1e-16
  %v713 = vrcp.pop %v711
  %v714 = vmul.f32 %v711, %v713
  %v715 = vsub.f32 1.0, %v714
  %v716 = vmul.f32 %v713, %v715
  %v717 = vadd.f32 %v713, %v716
  %vm718 = vweird.f32 %v711
  %vm719 = vweird.f32 %v713
  %vm720 = vmor %vm718, %vm719
  %v721 = vsel %vm720, %v713, %v717
  %v722 = vand.u32 2147483647, %v711
  %vm723 = vcmp.eq.f32.partialorder %v722, 8.507059e+37
  %v724 = vand.u32 %v711, 2147483648
  %v725 = vor.u32 1.1754944e-38, %v724
  %v726 = vsel %vm723, %v725, %v721
  %v727 = vmul.f32 %v703, %v726
  %v728 = vrcp.pop %v712
  %v729 = vmul.f32 %v712, %v728
  %v730 = vsub.f32 1.0, %v729
  %v731 = vmul.f32 %v728, %v730
  %v732 = vadd.f32 %v728, %v731
  %vm733 = vweird.f32 %v712
  %vm734 = vweird.f32 %v728
  %vm735 = vmor %vm733, %vm734
  %v736 = vsel %vm735, %v728, %v732
  %v737 = vand.u32 2147483647, %v712
  %vm738 = vcmp.eq.f32.partialorder %v737, 8.507059e+37
  %v739 = vand.u32 %v712, 2147483648
  %v740 = vor.u32 1.1754944e-38, %v739
  %v741 = vsel %vm738, %v740, %v736
  %v742 = vmul.f32 %v704, %v741
  %v743 = vpack.c.bf16 %v742, %v727
  %v745 = vsel %vm86, %v743, 0
  %v748 = vsel %vm90, %v593, 0
  %750 = vmatpush.bf16.msra.mxu0 0
  %751 = vmatpush.bf16.msra.mxu0 0
  %752 = vmatpush.bf16.msra.mxu0 0
  %753 = vmatpush.bf16.msra.mxu0 0
  %754 = vmatpush.bf16.msra.mxu0 0
  %755 = vmatpush.bf16.msra.mxu0 0
  %756 = vmatpush.bf16.msra.mxu0 0
  %757 = vmatpush.bf16.msra.mxu0 %v748
  %758 = vmatmul.bf16.gmra.mxu0 %v745
  %v759 = vpop.f32.mrf.mxu0
  %v760 = vadd.f32 0.0, %v759
  %v761 = vpop.f32.mrf.mxu0
  %v762 = vadd.f32 0.0, %v761
  %763 = vdwg.mxu0
  %764 = vset.pattern.permute.xlu0 1
  %765 = vperm.xlu0 %764, %v589
  %v766 = vpop.permute.xlu0 %765
  %768 = vset.pattern.permute.xlu0 1
  %769 = vperm.xlu0 %768, %v591
  %v770 = vpop.permute.xlu0 %769
  %v772 = vperm.slane %v647, 1
  %v773 = vadd.f32 %v766, %v772
  %v774 = vadd.f32 %v770, %v772
  %vm775 = vcmp.ge.f32.partialorder %v773, 0.0
  %vm776 = vcmp.ge.f32.partialorder %v774, 0.0
  %v777 = vmul.f32 %v773, 0.2
  %v778 = vmul.f32 %v774, 0.2
  %v779 = vsel %vm775, %v773, %v777
  %v780 = vsel %vm776, %v774, %v778
  %v781 = vsel %vm667, %v779, -1e+30
  %v782 = vsel %vm668, %v780, -1e+30
  %v783 = vsel %vm86, %v781, -inf
  %784 = vmax.xlane.f32.xlu0 %v783
  %v785 = vpop.xlane.xlu0 %784
  %v786 = vsel %vm693, %v782, -inf
  %787 = vmax.xlane.f32.xlu0 %v786
  %v788 = vpop.xlane.xlu0 %787
  %v789 = vsub.f32 %v781, %v785
  %v790 = vsub.f32 %v782, %v788
  %v791 = vmul.f32 %v789, 1.442695
  %v792 = vpow.pop %v791
  %v793 = vmul.f32 %v790, 1.442695
  %v794 = vpow.pop %v793
  %v795 = vsel %vm667, %v792, 0.0
  %v796 = vsel %vm668, %v794, 0.0
  %v797 = vsel %vm86, %v795, 0.0
  %798 = vadd.xlane.f32.xlu0 %v797
  %v799 = vpop.xlane.xlu0 %798
  %v800 = vsel %vm693, %v796, 0.0
  %801 = vadd.xlane.f32.xlu0 %v800
  %v802 = vpop.xlane.xlu0 %801
  %v803 = vmax.f32 %v799, 1e-16
  %v804 = vmax.f32 %v802, 1e-16
  %v805 = vrcp.pop %v803
  %v806 = vmul.f32 %v803, %v805
  %v807 = vsub.f32 1.0, %v806
  %v808 = vmul.f32 %v805, %v807
  %v809 = vadd.f32 %v805, %v808
  %vm810 = vweird.f32 %v803
  %vm811 = vweird.f32 %v805
  %vm812 = vmor %vm810, %vm811
  %v813 = vsel %vm812, %v805, %v809
  %v814 = vand.u32 2147483647, %v803
  %vm815 = vcmp.eq.f32.partialorder %v814, 8.507059e+37
  %v816 = vand.u32 %v803, 2147483648
  %v817 = vor.u32 1.1754944e-38, %v816
  %v818 = vsel %vm815, %v817, %v813
  %v819 = vmul.f32 %v795, %v818
  %v820 = vrcp.pop %v804
  %v821 = vmul.f32 %v804, %v820
  %v822 = vsub.f32 1.0, %v821
  %v823 = vmul.f32 %v820, %v822
  %v824 = vadd.f32 %v820, %v823
  %vm825 = vweird.f32 %v804
  %vm826 = vweird.f32 %v820
  %vm827 = vmor %vm825, %vm826
  %v828 = vsel %vm827, %v820, %v824
  %v829 = vand.u32 2147483647, %v804
  %vm830 = vcmp.eq.f32.partialorder %v829, 8.507059e+37
  %v831 = vand.u32 %v804, 2147483648
  %v832 = vor.u32 1.1754944e-38, %v831
  %v833 = vsel %vm830, %v832, %v828
  %v834 = vmul.f32 %v796, %v833
  %v835 = vpack.c.bf16 %v834, %v819
  %837 = vrot.lane.b32.xlu0 %v593, 96
  %v838 = vpop.permute.xlu0 %837
  %v840 = vsel %vm86, %v835, 0
  %v843 = vsel %vm90, %v838, 0
  %845 = vmatpush.bf16.msra.mxu0 0
  %846 = vmatpush.bf16.msra.mxu0 0
  %847 = vmatpush.bf16.msra.mxu0 0
  %848 = vmatpush.bf16.msra.mxu0 0
  %849 = vmatpush.bf16.msra.mxu0 0
  %850 = vmatpush.bf16.msra.mxu0 0
  %851 = vmatpush.bf16.msra.mxu0 0
  %852 = vmatpush.bf16.msra.mxu0 %v843
  %853 = vmatmul.bf16.gmra.mxu0 %v840
  %v854 = vpop.f32.mrf.mxu0
  %v855 = vadd.f32 0.0, %v854
  %v856 = vpop.f32.mrf.mxu0
  %v857 = vadd.f32 0.0, %v856
  %858 = vdwg.mxu0
  %859 = vset.pattern.permute.xlu0 2
  %860 = vperm.xlu0 %859, %v589
  %v861 = vpop.permute.xlu0 %860
  %863 = vset.pattern.permute.xlu0 2
  %864 = vperm.xlu0 %863, %v591
  %v865 = vpop.permute.xlu0 %864
  %v867 = vperm.slane %v647, 2
  %v868 = vadd.f32 %v861, %v867
  %v869 = vadd.f32 %v865, %v867
  %vm870 = vcmp.ge.f32.partialorder %v868, 0.0
  %vm871 = vcmp.ge.f32.partialorder %v869, 0.0
  %v872 = vmul.f32 %v868, 0.2
  %v873 = vmul.f32 %v869, 0.2
  %v874 = vsel %vm870, %v868, %v872
  %v875 = vsel %vm871, %v869, %v873
  %v876 = vsel %vm667, %v874, -1e+30
  %v877 = vsel %vm668, %v875, -1e+30
  %v878 = vsel %vm86, %v876, -inf
  %879 = vmax.xlane.f32.xlu0 %v878
  %v880 = vpop.xlane.xlu0 %879
  %v881 = vsel %vm693, %v877, -inf
  %882 = vmax.xlane.f32.xlu0 %v881
  %v883 = vpop.xlane.xlu0 %882
  %v884 = vsub.f32 %v876, %v880
  %v885 = vsub.f32 %v877, %v883
  %v886 = vmul.f32 %v884, 1.442695
  %v887 = vpow.pop %v886
  %v888 = vmul.f32 %v885, 1.442695
  %v889 = vpow.pop %v888
  %v890 = vsel %vm667, %v887, 0.0
  %v891 = vsel %vm668, %v889, 0.0
  %v892 = vsel %vm86, %v890, 0.0
  %893 = vadd.xlane.f32.xlu0 %v892
  %v894 = vpop.xlane.xlu0 %893
  %v895 = vsel %vm693, %v891, 0.0
  %896 = vadd.xlane.f32.xlu0 %v895
  %v897 = vpop.xlane.xlu0 %896
  %v898 = vmax.f32 %v894, 1e-16
  %v899 = vmax.f32 %v897, 1e-16
  %v900 = vrcp.pop %v898
  %v901 = vmul.f32 %v898, %v900
  %v902 = vsub.f32 1.0, %v901
  %v903 = vmul.f32 %v900, %v902
  %v904 = vadd.f32 %v900, %v903
  %vm905 = vweird.f32 %v898
  %vm906 = vweird.f32 %v900
  %vm907 = vmor %vm905, %vm906
  %v908 = vsel %vm907, %v900, %v904
  %v909 = vand.u32 2147483647, %v898
  %vm910 = vcmp.eq.f32.partialorder %v909, 8.507059e+37
  %v911 = vand.u32 %v898, 2147483648
  %v912 = vor.u32 1.1754944e-38, %v911
  %v913 = vsel %vm910, %v912, %v908
  %v914 = vmul.f32 %v890, %v913
  %v915 = vrcp.pop %v899
  %v916 = vmul.f32 %v899, %v915
  %v917 = vsub.f32 1.0, %v916
  %v918 = vmul.f32 %v915, %v917
  %v919 = vadd.f32 %v915, %v918
  %vm920 = vweird.f32 %v899
  %vm921 = vweird.f32 %v915
  %vm922 = vmor %vm920, %vm921
  %v923 = vsel %vm922, %v915, %v919
  %v924 = vand.u32 2147483647, %v899
  %vm925 = vcmp.eq.f32.partialorder %v924, 8.507059e+37
  %v926 = vand.u32 %v899, 2147483648
  %v927 = vor.u32 1.1754944e-38, %v926
  %v928 = vsel %vm925, %v927, %v923
  %v929 = vmul.f32 %v891, %v928
  %v930 = vpack.c.bf16 %v929, %v914
  %931 = vrot.lane.b32.xlu0 %v593, 64
  %v932 = vpop.permute.xlu0 %931
  %v934 = vsel %vm86, %v930, 0
  %v937 = vsel %vm90, %v932, 0
  %939 = vmatpush.bf16.msra.mxu0 0
  %940 = vmatpush.bf16.msra.mxu0 0
  %941 = vmatpush.bf16.msra.mxu0 0
  %942 = vmatpush.bf16.msra.mxu0 0
  %943 = vmatpush.bf16.msra.mxu0 0
  %944 = vmatpush.bf16.msra.mxu0 0
  %945 = vmatpush.bf16.msra.mxu0 0
  %946 = vmatpush.bf16.msra.mxu0 %v937
  %947 = vmatmul.bf16.gmra.mxu0 %v934
  %v948 = vpop.f32.mrf.mxu0
  %v949 = vadd.f32 0.0, %v948
  %v950 = vpop.f32.mrf.mxu0
  %v951 = vadd.f32 0.0, %v950
  %952 = vdwg.mxu0
  %953 = vset.pattern.permute.xlu0 3
  %954 = vperm.xlu0 %953, %v589
  %v955 = vpop.permute.xlu0 %954
  %957 = vset.pattern.permute.xlu0 3
  %958 = vperm.xlu0 %957, %v591
  %v959 = vpop.permute.xlu0 %958
  %v961 = vperm.slane %v647, 3
  %v962 = vadd.f32 %v955, %v961
  %v963 = vadd.f32 %v959, %v961
  %vm964 = vcmp.ge.f32.partialorder %v962, 0.0
  %vm965 = vcmp.ge.f32.partialorder %v963, 0.0
  %v966 = vmul.f32 %v962, 0.2
  %v967 = vmul.f32 %v963, 0.2
  %v968 = vsel %vm964, %v962, %v966
  %v969 = vsel %vm965, %v963, %v967
  %v970 = vsel %vm667, %v968, -1e+30
  %v971 = vsel %vm668, %v969, -1e+30
  %v972 = vsel %vm86, %v970, -inf
  %973 = vmax.xlane.f32.xlu0 %v972
  %v974 = vpop.xlane.xlu0 %973
  %v975 = vsel %vm693, %v971, -inf
  %976 = vmax.xlane.f32.xlu0 %v975
  %v977 = vpop.xlane.xlu0 %976
  %v978 = vsub.f32 %v970, %v974
  %v979 = vsub.f32 %v971, %v977
  %v980 = vmul.f32 %v978, 1.442695
  %v981 = vpow.pop %v980
  %v982 = vmul.f32 %v979, 1.442695
  %v983 = vpow.pop %v982
  %v984 = vsel %vm667, %v981, 0.0
  %v985 = vsel %vm668, %v983, 0.0
  %v986 = vsel %vm86, %v984, 0.0
  %987 = vadd.xlane.f32.xlu0 %v986
  %v988 = vpop.xlane.xlu0 %987
  %v989 = vsel %vm693, %v985, 0.0
  %990 = vadd.xlane.f32.xlu0 %v989
  %v991 = vpop.xlane.xlu0 %990
  %v992 = vmax.f32 %v988, 1e-16
  %v993 = vmax.f32 %v991, 1e-16
  %v994 = vrcp.pop %v992
  %v995 = vmul.f32 %v992, %v994
  %v996 = vsub.f32 1.0, %v995
  %v997 = vmul.f32 %v994, %v996
  %v998 = vadd.f32 %v994, %v997
  %vm999 = vweird.f32 %v992
  %vm1000 = vweird.f32 %v994
  %vm1001 = vmor %vm999, %vm1000
  %v1002 = vsel %vm1001, %v994, %v998
  %v1003 = vand.u32 2147483647, %v992
  %vm1004 = vcmp.eq.f32.partialorder %v1003, 8.507059e+37
  %v1005 = vand.u32 %v992, 2147483648
  %v1006 = vor.u32 1.1754944e-38, %v1005
  %v1007 = vsel %vm1004, %v1006, %v1002
  %v1008 = vmul.f32 %v984, %v1007
  %v1009 = vrcp.pop %v993
  %v1010 = vmul.f32 %v993, %v1009
  %v1011 = vsub.f32 1.0, %v1010
  %v1012 = vmul.f32 %v1009, %v1011
  %v1013 = vadd.f32 %v1009, %v1012
  %vm1014 = vweird.f32 %v993
  %vm1015 = vweird.f32 %v1009
  %vm1016 = vmor %vm1014, %vm1015
  %v1017 = vsel %vm1016, %v1009, %v1013
  %v1018 = vand.u32 2147483647, %v993
  %vm1019 = vcmp.eq.f32.partialorder %v1018, 8.507059e+37
  %v1020 = vand.u32 %v993, 2147483648
  %v1021 = vor.u32 1.1754944e-38, %v1020
  %v1022 = vsel %vm1019, %v1021, %v1017
  %v1023 = vmul.f32 %v985, %v1022
  %v1024 = vpack.c.bf16 %v1023, %v1008
  %1025 = vrot.lane.b32.xlu0 %v593, 32
  %v1026 = vpop.permute.xlu0 %1025
  %v1028 = vsel %vm86, %v1024, 0
  %v1031 = vsel %vm90, %v1026, 0
  %1033 = vmatpush.bf16.msra.mxu0 0
  %1034 = vmatpush.bf16.msra.mxu0 0
  %1035 = vmatpush.bf16.msra.mxu0 0
  %1036 = vmatpush.bf16.msra.mxu0 0
  %1037 = vmatpush.bf16.msra.mxu0 0
  %1038 = vmatpush.bf16.msra.mxu0 0
  %1039 = vmatpush.bf16.msra.mxu0 0
  %1040 = vmatpush.bf16.msra.mxu0 %v1031
  %1041 = vmatmul.bf16.gmra.mxu0 %v1028
  %v1042 = vpop.f32.mrf.mxu0
  %v1043 = vadd.f32 0.0, %v1042
  %v1044 = vpop.f32.mrf.mxu0
  %v1045 = vadd.f32 0.0, %v1044
  %1046 = vdwg.mxu0
  %1047 = vset.pattern.permute.xlu0 4
  %1048 = vperm.xlu0 %1047, %v589
  %v1049 = vpop.permute.xlu0 %1048
  %1051 = vset.pattern.permute.xlu0 4
  %1052 = vperm.xlu0 %1051, %v591
  %v1053 = vpop.permute.xlu0 %1052
  %v1055 = vperm.slane %v647, 4
  %v1056 = vadd.f32 %v1049, %v1055
  %v1057 = vadd.f32 %v1053, %v1055
  %vm1058 = vcmp.ge.f32.partialorder %v1056, 0.0
  %vm1059 = vcmp.ge.f32.partialorder %v1057, 0.0
  %v1060 = vmul.f32 %v1056, 0.2
  %v1061 = vmul.f32 %v1057, 0.2
  %v1062 = vsel %vm1058, %v1056, %v1060
  %v1063 = vsel %vm1059, %v1057, %v1061
  %v1064 = vsel %vm667, %v1062, -1e+30
  %v1065 = vsel %vm668, %v1063, -1e+30
  %v1066 = vsel %vm86, %v1064, -inf
  %1067 = vmax.xlane.f32.xlu0 %v1066
  %v1068 = vpop.xlane.xlu0 %1067
  %v1069 = vsel %vm693, %v1065, -inf
  %1070 = vmax.xlane.f32.xlu0 %v1069
  %v1071 = vpop.xlane.xlu0 %1070
  %v1072 = vsub.f32 %v1064, %v1068
  %v1073 = vsub.f32 %v1065, %v1071
  %v1074 = vmul.f32 %v1072, 1.442695
  %v1075 = vpow.pop %v1074
  %v1076 = vmul.f32 %v1073, 1.442695
  %v1077 = vpow.pop %v1076
  %v1078 = vsel %vm667, %v1075, 0.0
  %v1079 = vsel %vm668, %v1077, 0.0
  %v1080 = vsel %vm86, %v1078, 0.0
  %1081 = vadd.xlane.f32.xlu0 %v1080
  %v1082 = vpop.xlane.xlu0 %1081
  %v1083 = vsel %vm693, %v1079, 0.0
  %1084 = vadd.xlane.f32.xlu0 %v1083
  %v1085 = vpop.xlane.xlu0 %1084
  %v1086 = vmax.f32 %v1082, 1e-16
  %v1087 = vmax.f32 %v1085, 1e-16
  %v1088 = vrcp.pop %v1086
  %v1089 = vmul.f32 %v1086, %v1088
  %v1090 = vsub.f32 1.0, %v1089
  %v1091 = vmul.f32 %v1088, %v1090
  %v1092 = vadd.f32 %v1088, %v1091
  %vm1093 = vweird.f32 %v1086
  %vm1094 = vweird.f32 %v1088
  %vm1095 = vmor %vm1093, %vm1094
  %v1096 = vsel %vm1095, %v1088, %v1092
  %v1097 = vand.u32 2147483647, %v1086
  %vm1098 = vcmp.eq.f32.partialorder %v1097, 8.507059e+37
  %v1099 = vand.u32 %v1086, 2147483648
  %v1100 = vor.u32 1.1754944e-38, %v1099
  %v1101 = vsel %vm1098, %v1100, %v1096
  %v1102 = vmul.f32 %v1078, %v1101
  %v1103 = vrcp.pop %v1087
  %v1104 = vmul.f32 %v1087, %v1103
  %v1105 = vsub.f32 1.0, %v1104
  %v1106 = vmul.f32 %v1103, %v1105
  %v1107 = vadd.f32 %v1103, %v1106
  %vm1108 = vweird.f32 %v1087
  %vm1109 = vweird.f32 %v1103
  %vm1110 = vmor %vm1108, %vm1109
  %v1111 = vsel %vm1110, %v1103, %v1107
  %v1112 = vand.u32 2147483647, %v1087
  %vm1113 = vcmp.eq.f32.partialorder %v1112, 8.507059e+37
  %v1114 = vand.u32 %v1087, 2147483648
  %v1115 = vor.u32 1.1754944e-38, %v1114
  %v1116 = vsel %vm1113, %v1115, %v1111
  %v1117 = vmul.f32 %v1079, %v1116
  %v1118 = vpack.c.bf16 %v1117, %v1102
  %v1120 = vsel %vm86, %v1118, 0
  %v1123 = vsel %vm90, %v594, 0
  %1125 = vmatpush.bf16.msra.mxu0 0
  %1126 = vmatpush.bf16.msra.mxu0 0
  %1127 = vmatpush.bf16.msra.mxu0 0
  %1128 = vmatpush.bf16.msra.mxu0 0
  %1129 = vmatpush.bf16.msra.mxu0 0
  %1130 = vmatpush.bf16.msra.mxu0 0
  %1131 = vmatpush.bf16.msra.mxu0 0
  %1132 = vmatpush.bf16.msra.mxu0 %v1123
  %1133 = vmatmul.bf16.gmra.mxu0 %v1120
  %v1134 = vpop.f32.mrf.mxu0
  %v1135 = vadd.f32 0.0, %v1134
  %v1136 = vpop.f32.mrf.mxu0
  %v1137 = vadd.f32 0.0, %v1136
  %1138 = vdwg.mxu0
  %1139 = vset.pattern.permute.xlu0 5
  %1140 = vperm.xlu0 %1139, %v589
  %v1141 = vpop.permute.xlu0 %1140
  %1143 = vset.pattern.permute.xlu0 5
  %1144 = vperm.xlu0 %1143, %v591
  %v1145 = vpop.permute.xlu0 %1144
  %v1147 = vperm.slane %v647, 5
  %v1148 = vadd.f32 %v1141, %v1147
  %v1149 = vadd.f32 %v1145, %v1147
  %vm1150 = vcmp.ge.f32.partialorder %v1148, 0.0
  %vm1151 = vcmp.ge.f32.partialorder %v1149, 0.0
  %v1152 = vmul.f32 %v1148, 0.2
  %v1153 = vmul.f32 %v1149, 0.2
  %v1154 = vsel %vm1150, %v1148, %v1152
  %v1155 = vsel %vm1151, %v1149, %v1153
  %v1156 = vsel %vm667, %v1154, -1e+30
  %v1157 = vsel %vm668, %v1155, -1e+30
  %v1158 = vsel %vm86, %v1156, -inf
  %1159 = vmax.xlane.f32.xlu0 %v1158
  %v1160 = vpop.xlane.xlu0 %1159
  %v1161 = vsel %vm693, %v1157, -inf
  %1162 = vmax.xlane.f32.xlu0 %v1161
  %v1163 = vpop.xlane.xlu0 %1162
  %v1164 = vsub.f32 %v1156, %v1160
  %v1165 = vsub.f32 %v1157, %v1163
  %v1166 = vmul.f32 %v1164, 1.442695
  %v1167 = vpow.pop %v1166
  %v1168 = vmul.f32 %v1165, 1.442695
  %v1169 = vpow.pop %v1168
  %v1170 = vsel %vm667, %v1167, 0.0
  %v1171 = vsel %vm668, %v1169, 0.0
  %v1172 = vsel %vm86, %v1170, 0.0
  %1173 = vadd.xlane.f32.xlu0 %v1172
  %v1174 = vpop.xlane.xlu0 %1173
  %v1175 = vsel %vm693, %v1171, 0.0
  %1176 = vadd.xlane.f32.xlu0 %v1175
  %v1177 = vpop.xlane.xlu0 %1176
  %v1178 = vmax.f32 %v1174, 1e-16
  %v1179 = vmax.f32 %v1177, 1e-16
  %v1180 = vrcp.pop %v1178
  %v1181 = vmul.f32 %v1178, %v1180
  %v1182 = vsub.f32 1.0, %v1181
  %v1183 = vmul.f32 %v1180, %v1182
  %v1184 = vadd.f32 %v1180, %v1183
  %vm1185 = vweird.f32 %v1178
  %vm1186 = vweird.f32 %v1180
  %vm1187 = vmor %vm1185, %vm1186
  %v1188 = vsel %vm1187, %v1180, %v1184
  %v1189 = vand.u32 2147483647, %v1178
  %vm1190 = vcmp.eq.f32.partialorder %v1189, 8.507059e+37
  %v1191 = vand.u32 %v1178, 2147483648
  %v1192 = vor.u32 1.1754944e-38, %v1191
  %v1193 = vsel %vm1190, %v1192, %v1188
  %v1194 = vmul.f32 %v1170, %v1193
  %v1195 = vrcp.pop %v1179
  %v1196 = vmul.f32 %v1179, %v1195
  %v1197 = vsub.f32 1.0, %v1196
  %v1198 = vmul.f32 %v1195, %v1197
  %v1199 = vadd.f32 %v1195, %v1198
  %vm1200 = vweird.f32 %v1179
  %vm1201 = vweird.f32 %v1195
  %vm1202 = vmor %vm1200, %vm1201
  %v1203 = vsel %vm1202, %v1195, %v1199
  %v1204 = vand.u32 2147483647, %v1179
  %vm1205 = vcmp.eq.f32.partialorder %v1204, 8.507059e+37
  %v1206 = vand.u32 %v1179, 2147483648
  %v1207 = vor.u32 1.1754944e-38, %v1206
  %v1208 = vsel %vm1205, %v1207, %v1203
  %v1209 = vmul.f32 %v1171, %v1208
  %v1210 = vpack.c.bf16 %v1209, %v1194
  %1212 = vrot.lane.b32.xlu0 %v594, 96
  %v1213 = vpop.permute.xlu0 %1212
  %v1215 = vsel %vm86, %v1210, 0
  %v1218 = vsel %vm90, %v1213, 0
  %1220 = vmatpush.bf16.msra.mxu0 0
  %1221 = vmatpush.bf16.msra.mxu0 0
  %1222 = vmatpush.bf16.msra.mxu0 0
  %1223 = vmatpush.bf16.msra.mxu0 0
  %1224 = vmatpush.bf16.msra.mxu0 0
  %1225 = vmatpush.bf16.msra.mxu0 0
  %1226 = vmatpush.bf16.msra.mxu0 0
  %1227 = vmatpush.bf16.msra.mxu0 %v1218
  %1228 = vmatmul.bf16.gmra.mxu0 %v1215
  %v1229 = vpop.f32.mrf.mxu0
  %v1230 = vadd.f32 0.0, %v1229
  %v1231 = vpop.f32.mrf.mxu0
  %v1232 = vadd.f32 0.0, %v1231
  %1233 = vdwg.mxu0
  %1234 = vset.pattern.permute.xlu0 6
  %1235 = vperm.xlu0 %1234, %v589
  %v1236 = vpop.permute.xlu0 %1235
  %1238 = vset.pattern.permute.xlu0 6
  %1239 = vperm.xlu0 %1238, %v591
  %v1240 = vpop.permute.xlu0 %1239
  %v1242 = vperm.slane %v647, 6
  %v1243 = vadd.f32 %v1236, %v1242
  %v1244 = vadd.f32 %v1240, %v1242
  %vm1245 = vcmp.ge.f32.partialorder %v1243, 0.0
  %vm1246 = vcmp.ge.f32.partialorder %v1244, 0.0
  %v1247 = vmul.f32 %v1243, 0.2
  %v1248 = vmul.f32 %v1244, 0.2
  %v1249 = vsel %vm1245, %v1243, %v1247
  %v1250 = vsel %vm1246, %v1244, %v1248
  %v1251 = vsel %vm667, %v1249, -1e+30
  %v1252 = vsel %vm668, %v1250, -1e+30
  %v1253 = vsel %vm86, %v1251, -inf
  %1254 = vmax.xlane.f32.xlu0 %v1253
  %v1255 = vpop.xlane.xlu0 %1254
  %v1256 = vsel %vm693, %v1252, -inf
  %1257 = vmax.xlane.f32.xlu0 %v1256
  %v1258 = vpop.xlane.xlu0 %1257
  %v1259 = vsub.f32 %v1251, %v1255
  %v1260 = vsub.f32 %v1252, %v1258
  %v1261 = vmul.f32 %v1259, 1.442695
  %v1262 = vpow.pop %v1261
  %v1263 = vmul.f32 %v1260, 1.442695
  %v1264 = vpow.pop %v1263
  %v1265 = vsel %vm667, %v1262, 0.0
  %v1266 = vsel %vm668, %v1264, 0.0
  %v1267 = vsel %vm86, %v1265, 0.0
  %1268 = vadd.xlane.f32.xlu0 %v1267
  %v1269 = vpop.xlane.xlu0 %1268
  %v1270 = vsel %vm693, %v1266, 0.0
  %1271 = vadd.xlane.f32.xlu0 %v1270
  %v1272 = vpop.xlane.xlu0 %1271
  %v1273 = vmax.f32 %v1269, 1e-16
  %v1274 = vmax.f32 %v1272, 1e-16
  %v1275 = vrcp.pop %v1273
  %v1276 = vmul.f32 %v1273, %v1275
  %v1277 = vsub.f32 1.0, %v1276
  %v1278 = vmul.f32 %v1275, %v1277
  %v1279 = vadd.f32 %v1275, %v1278
  %vm1280 = vweird.f32 %v1273
  %vm1281 = vweird.f32 %v1275
  %vm1282 = vmor %vm1280, %vm1281
  %v1283 = vsel %vm1282, %v1275, %v1279
  %v1284 = vand.u32 2147483647, %v1273
  %vm1285 = vcmp.eq.f32.partialorder %v1284, 8.507059e+37
  %v1286 = vand.u32 %v1273, 2147483648
  %v1287 = vor.u32 1.1754944e-38, %v1286
  %v1288 = vsel %vm1285, %v1287, %v1283
  %v1289 = vmul.f32 %v1265, %v1288
  %v1290 = vrcp.pop %v1274
  %v1291 = vmul.f32 %v1274, %v1290
  %v1292 = vsub.f32 1.0, %v1291
  %v1293 = vmul.f32 %v1290, %v1292
  %v1294 = vadd.f32 %v1290, %v1293
  %vm1295 = vweird.f32 %v1274
  %vm1296 = vweird.f32 %v1290
  %vm1297 = vmor %vm1295, %vm1296
  %v1298 = vsel %vm1297, %v1290, %v1294
  %v1299 = vand.u32 2147483647, %v1274
  %vm1300 = vcmp.eq.f32.partialorder %v1299, 8.507059e+37
  %v1301 = vand.u32 %v1274, 2147483648
  %v1302 = vor.u32 1.1754944e-38, %v1301
  %v1303 = vsel %vm1300, %v1302, %v1298
  %v1304 = vmul.f32 %v1266, %v1303
  %v1305 = vpack.c.bf16 %v1304, %v1289
  %1306 = vrot.lane.b32.xlu0 %v594, 64
  %v1307 = vpop.permute.xlu0 %1306
  %v1309 = vsel %vm86, %v1305, 0
  %v1312 = vsel %vm90, %v1307, 0
  %1314 = vmatpush.bf16.msra.mxu0 0
  %1315 = vmatpush.bf16.msra.mxu0 0
  %1316 = vmatpush.bf16.msra.mxu0 0
  %1317 = vmatpush.bf16.msra.mxu0 0
  %1318 = vmatpush.bf16.msra.mxu0 0
  %1319 = vmatpush.bf16.msra.mxu0 0
  %1320 = vmatpush.bf16.msra.mxu0 0
  %1321 = vmatpush.bf16.msra.mxu0 %v1312
  %1322 = vmatmul.bf16.gmra.mxu0 %v1309
  %v1323 = vpop.f32.mrf.mxu0
  %v1324 = vadd.f32 0.0, %v1323
  %v1325 = vpop.f32.mrf.mxu0
  %v1326 = vadd.f32 0.0, %v1325
  %1327 = vdwg.mxu0
  %1328 = vset.pattern.permute.xlu0 7
  %1329 = vperm.xlu0 %1328, %v589
  %v1330 = vpop.permute.xlu0 %1329
  %1332 = vset.pattern.permute.xlu0 7
  %1333 = vperm.xlu0 %1332, %v591
  %v1334 = vpop.permute.xlu0 %1333
  %v1336 = vperm.slane %v647, 7
  %v1337 = vadd.f32 %v1330, %v1336
  %v1338 = vadd.f32 %v1334, %v1336
  %vm1339 = vcmp.ge.f32.partialorder %v1337, 0.0
  %vm1340 = vcmp.ge.f32.partialorder %v1338, 0.0
  %v1341 = vmul.f32 %v1337, 0.2
  %v1342 = vmul.f32 %v1338, 0.2
  %v1343 = vsel %vm1339, %v1337, %v1341
  %v1344 = vsel %vm1340, %v1338, %v1342
  %v1345 = vsel %vm667, %v1343, -1e+30
  %v1346 = vsel %vm668, %v1344, -1e+30
  %v1347 = vsel %vm86, %v1345, -inf
  %1348 = vmax.xlane.f32.xlu0 %v1347
  %v1349 = vpop.xlane.xlu0 %1348
  %v1350 = vsel %vm693, %v1346, -inf
  %1351 = vmax.xlane.f32.xlu0 %v1350
  %v1352 = vpop.xlane.xlu0 %1351
  %v1353 = vsub.f32 %v1345, %v1349
  %v1354 = vsub.f32 %v1346, %v1352
  %v1355 = vmul.f32 %v1353, 1.442695
  %v1356 = vpow.pop %v1355
  %v1357 = vmul.f32 %v1354, 1.442695
  %v1358 = vpow.pop %v1357
  %v1359 = vsel %vm667, %v1356, 0.0
  %v1360 = vsel %vm668, %v1358, 0.0
  %v1361 = vsel %vm86, %v1359, 0.0
  %1362 = vadd.xlane.f32.xlu0 %v1361
  %v1363 = vpop.xlane.xlu0 %1362
  %v1364 = vsel %vm693, %v1360, 0.0
  %1365 = vadd.xlane.f32.xlu0 %v1364
  %v1366 = vpop.xlane.xlu0 %1365
  %v1367 = vmax.f32 %v1363, 1e-16
  %v1368 = vmax.f32 %v1366, 1e-16
  %v1369 = vrcp.pop %v1367
  %v1370 = vmul.f32 %v1367, %v1369
  %v1371 = vsub.f32 1.0, %v1370
  %v1372 = vmul.f32 %v1369, %v1371
  %v1373 = vadd.f32 %v1369, %v1372
  %vm1374 = vweird.f32 %v1367
  %vm1375 = vweird.f32 %v1369
  %vm1376 = vmor %vm1374, %vm1375
  %v1377 = vsel %vm1376, %v1369, %v1373
  %v1378 = vand.u32 2147483647, %v1367
  %vm1379 = vcmp.eq.f32.partialorder %v1378, 8.507059e+37
  %v1380 = vand.u32 %v1367, 2147483648
  %v1381 = vor.u32 1.1754944e-38, %v1380
  %v1382 = vsel %vm1379, %v1381, %v1377
  %v1383 = vmul.f32 %v1359, %v1382
  %v1384 = vrcp.pop %v1368
  %v1385 = vmul.f32 %v1368, %v1384
  %v1386 = vsub.f32 1.0, %v1385
  %v1387 = vmul.f32 %v1384, %v1386
  %v1388 = vadd.f32 %v1384, %v1387
  %vm1389 = vweird.f32 %v1368
  %vm1390 = vweird.f32 %v1384
  %vm1391 = vmor %vm1389, %vm1390
  %v1392 = vsel %vm1391, %v1384, %v1388
  %v1393 = vand.u32 2147483647, %v1368
  %vm1394 = vcmp.eq.f32.partialorder %v1393, 8.507059e+37
  %v1395 = vand.u32 %v1368, 2147483648
  %v1396 = vor.u32 1.1754944e-38, %v1395
  %v1397 = vsel %vm1394, %v1396, %v1392
  %v1398 = vmul.f32 %v1360, %v1397
  %v1399 = vpack.c.bf16 %v1398, %v1383
  %1400 = vrot.lane.b32.xlu0 %v594, 32
  %v1401 = vpop.permute.xlu0 %1400
  %v1403 = vsel %vm86, %v1399, 0
  %v1406 = vsel %vm90, %v1401, 0
  %1408 = vmatpush.bf16.msra.mxu0 0
  %1409 = vmatpush.bf16.msra.mxu0 0
  %1410 = vmatpush.bf16.msra.mxu0 0
  %1411 = vmatpush.bf16.msra.mxu0 0
  %1412 = vmatpush.bf16.msra.mxu0 0
  %1413 = vmatpush.bf16.msra.mxu0 0
  %1414 = vmatpush.bf16.msra.mxu0 0
  %1415 = vmatpush.bf16.msra.mxu0 %v1406
  %1416 = vmatmul.bf16.gmra.mxu0 %v1403
  %v1417 = vpop.f32.mrf.mxu0
  %v1418 = vadd.f32 0.0, %v1417
  %v1419 = vpop.f32.mrf.mxu0
  %v1420 = vadd.f32 0.0, %v1419
  %1421 = vdwg.mxu0
  %1424 = vrot.lane.b32.xlu0 %v855, 32
  %v1425 = vpop.permute.xlu0 %1424
  %1426 = vrot.lane.b32.xlu0 %v857, 32
  %v1427 = vpop.permute.xlu0 %1426
  %1432 = vrot.lane.b32.xlu0 %v949, 64
  %v1433 = vpop.permute.xlu0 %1432
  %1434 = vrot.lane.b32.xlu0 %v951, 64
  %v1435 = vpop.permute.xlu0 %1434
  %1440 = vrot.lane.b32.xlu0 %v1043, 96
  %v1441 = vpop.permute.xlu0 %1440
  %1442 = vrot.lane.b32.xlu0 %v1045, 96
  %v1443 = vpop.permute.xlu0 %1442
  %1448 = vrot.lane.b32.xlu0 %v1230, 32
  %v1449 = vpop.permute.xlu0 %1448
  %1450 = vrot.lane.b32.xlu0 %v1232, 32
  %v1451 = vpop.permute.xlu0 %1450
  %1456 = vrot.lane.b32.xlu0 %v1324, 64
  %v1457 = vpop.permute.xlu0 %1456
  %1458 = vrot.lane.b32.xlu0 %v1326, 64
  %v1459 = vpop.permute.xlu0 %1458
  %1464 = vrot.lane.b32.xlu0 %v1418, 96
  %v1465 = vpop.permute.xlu0 %1464
  %1466 = vrot.lane.b32.xlu0 %v1420, 96
  %v1467 = vpop.permute.xlu0 %1466
  %v1470 = vsel %vm116, %v760, %v1425
  %v1471 = vsel %vm116, %v762, %v1427
  %v1472 = vsel %vm147, %v1470, %v1433
  %v1473 = vsel %vm147, %v1471, %v1435
  %vm1474 = vcmask 785408
  %v1475 = vsel %vm1474, %v1472, %v1441
  %v1476 = vsel %vm1474, %v1473, %v1443
  %v1477 = vsel %vm116, %v1135, %v1449
  %v1478 = vsel %vm116, %v1137, %v1451
  %v1479 = vsel %vm147, %v1477, %v1457
  %v1480 = vsel %vm147, %v1478, %v1459
  %v1481 = vsel %vm1474, %v1479, %v1465
  %v1482 = vsel %vm1474, %v1480, %v1467
  %v1483 = vld [vmem:[%s13] sm:$0x3]
  %v1485 = vperm.slane %v1483, 0
  %v1486 = vperm.slane %v1483, 1
  %v1489 = vadd.f32 %v1475, %v1485
  %v1490 = vadd.f32 %v1481, %v1486
  %v1491 = vadd.f32 %v1476, %v1485
  %v1492 = vadd.f32 %v1482, %v1486
  %v1493 = vmax.f32 %v1489, 0.0
  %v1494 = vmax.f32 %v1490, 0.0
  %v1495 = vmax.f32 %v1491, 0.0
  %v1496 = vmax.f32 %v1492, 0.0
  %v1497 = vld [vmem:[%s12] sm:$0xf]
  %v1498 = vld [vmem:[%s12 + $0x4] sm:$0xf]
  %v1499 = vld [vmem:[%s12 + $0x8] sm:$0xf]
  %v1500 = vld [vmem:[%s12 + $0xc] sm:$0xf]
  %v1501 = vld [vmem:[%s12 + $0x10] sm:$0xf]
  %v1502 = vld [vmem:[%s12 + $0x14] sm:$0xf]
  %v1503 = vld [vmem:[%s12 + $0x18] sm:$0xf]
  %v1504 = vld [vmem:[%s12 + $0x1c] sm:$0xf]
  %v1505 = vld [vmem:[%s12 + $0x20] sm:$0xf]
  %v1506 = vld [vmem:[%s12 + $0x24] sm:$0xf]
  %v1507 = vld [vmem:[%s12 + $0x28] sm:$0xf]
  %v1508 = vld [vmem:[%s12 + $0x2c] sm:$0xf]
  %v1509 = vld [vmem:[%s12 + $0x30] sm:$0xf]
  %v1510 = vld [vmem:[%s12 + $0x34] sm:$0xf]
  %v1511 = vld [vmem:[%s12 + $0x38] sm:$0xf]
  %v1512 = vld [vmem:[%s12 + $0x3c] sm:$0xf]
  %v1513 = vld [vmem:[%s12 + $0x40] sm:$0xf]
  %v1514 = vld [vmem:[%s12 + $0x44] sm:$0xf]
  %v1515 = vld [vmem:[%s12 + $0x48] sm:$0xf]
  %v1516 = vld [vmem:[%s12 + $0x4c] sm:$0xf]
  %v1517 = vld [vmem:[%s12 + $0x50] sm:$0xf]
  %v1518 = vld [vmem:[%s12 + $0x54] sm:$0xf]
  %v1519 = vld [vmem:[%s12 + $0x58] sm:$0xf]
  %v1520 = vld [vmem:[%s12 + $0x5c] sm:$0xf]
  %v1521 = vld [vmem:[%s12 + $0x60] sm:$0xf]
  %v1522 = vld [vmem:[%s12 + $0x64] sm:$0xf]
  %v1523 = vld [vmem:[%s12 + $0x68] sm:$0xf]
  %v1524 = vld [vmem:[%s12 + $0x6c] sm:$0xf]
  %v1525 = vld [vmem:[%s12 + $0x70] sm:$0xf]
  %v1526 = vld [vmem:[%s12 + $0x74] sm:$0xf]
  %v1527 = vld [vmem:[%s12 + $0x78] sm:$0xf]
  %v1528 = vld [vmem:[%s12 + $0x7c] sm:$0xf]
  %v1529 = vpack.c.bf16 %v419, %v417
  %v1530 = vpack.c.bf16 %v433, %v431
  %v1563 = vunpack.c.l.b16 %v1497
  %v1564 = vunpack.c.l.b16 %v1498
  %v1565 = vunpack.c.l.b16 %v1499
  %v1566 = vunpack.c.l.b16 %v1500
  %v1567 = vunpack.c.l.b16 %v1501
  %v1568 = vunpack.c.l.b16 %v1502
  %v1569 = vunpack.c.l.b16 %v1503
  %v1570 = vunpack.c.l.b16 %v1504
  %v1571 = vunpack.c.l.b16 %v1505
  %v1572 = vunpack.c.l.b16 %v1506
  %v1573 = vunpack.c.l.b16 %v1507
  %v1574 = vunpack.c.l.b16 %v1508
  %v1575 = vunpack.c.l.b16 %v1509
  %v1576 = vunpack.c.l.b16 %v1510
  %v1577 = vunpack.c.l.b16 %v1511
  %v1578 = vunpack.c.l.b16 %v1512
  %v1579 = vunpack.c.l.b16 %v1513
  %v1580 = vunpack.c.l.b16 %v1514
  %v1581 = vunpack.c.l.b16 %v1515
  %v1582 = vunpack.c.l.b16 %v1516
  %v1583 = vunpack.c.l.b16 %v1517
  %v1584 = vunpack.c.l.b16 %v1518
  %v1585 = vunpack.c.l.b16 %v1519
  %v1586 = vunpack.c.l.b16 %v1520
  %v1587 = vunpack.c.l.b16 %v1521
  %v1588 = vunpack.c.l.b16 %v1522
  %v1589 = vunpack.c.l.b16 %v1523
  %v1590 = vunpack.c.l.b16 %v1524
  %v1591 = vunpack.c.l.b16 %v1525
  %v1592 = vunpack.c.l.b16 %v1526
  %v1593 = vunpack.c.l.b16 %v1527
  %v1594 = vunpack.c.l.b16 %v1528
  %v1595 = vpack.c.b16 %v1564, %v1563
  %v1596 = vpack.c.b16 %v1566, %v1565
  %v1597 = vpack.c.b16 %v1568, %v1567
  %v1598 = vpack.c.b16 %v1570, %v1569
  %v1599 = vpack.c.b16 %v1572, %v1571
  %v1600 = vpack.c.b16 %v1574, %v1573
  %v1601 = vpack.c.b16 %v1576, %v1575
  %v1602 = vpack.c.b16 %v1578, %v1577
  %v1603 = vpack.c.b16 %v1580, %v1579
  %v1604 = vpack.c.b16 %v1582, %v1581
  %v1605 = vpack.c.b16 %v1584, %v1583
  %v1606 = vpack.c.b16 %v1586, %v1585
  %v1607 = vpack.c.b16 %v1588, %v1587
  %v1608 = vpack.c.b16 %v1590, %v1589
  %v1609 = vpack.c.b16 %v1592, %v1591
  %v1610 = vpack.c.b16 %v1594, %v1593
  %1627 = vmatpush.bf16.msra.mxu0 %v1602
  %1628 = vmatpush.bf16.msra.mxu0 %v1601
  %1629 = vmatpush.bf16.msra.mxu0 %v1600
  %1630 = vmatpush.bf16.msra.mxu0 %v1599
  %1631 = vmatpush.bf16.msra.mxu0 %v1598
  %1632 = vmatpush.bf16.msra.mxu0 %v1597
  %1633 = vmatpush.bf16.msra.mxu0 %v1596
  %1634 = vmatpush.bf16.msra.mxu0 %v1595
  %1635 = vmatmul.bf16.gmra.mxu0 %v1529
  %v1636 = vpop.f32.mrf.mxu0
  %v1637 = vadd.f32 0.0, %v1636
  %v1638 = vpop.f32.mrf.mxu0
  %v1639 = vadd.f32 0.0, %v1638
  %1640 = vdwg.mxu0
  %1641 = vmatpush.bf16.msra.mxu0 %v1610
  %1642 = vmatpush.bf16.msra.mxu0 %v1609
  %1643 = vmatpush.bf16.msra.mxu0 %v1608
  %1644 = vmatpush.bf16.msra.mxu0 %v1607
  %1645 = vmatpush.bf16.msra.mxu0 %v1606
  %1646 = vmatpush.bf16.msra.mxu0 %v1605
  %1647 = vmatpush.bf16.msra.mxu0 %v1604
  %1648 = vmatpush.bf16.msra.mxu0 %v1603
  %1649 = vmatmul.bf16.gmra.mxu0 %v1530
  %v1650 = vpop.f32.mrf.mxu0
  %v1651 = vadd.f32 %v1637, %v1650
  %v1652 = vpop.f32.mrf.mxu0
  %v1653 = vadd.f32 %v1639, %v1652
  %1654 = vdwg.mxu0
  %v1655 = vpack.c.bf16 %v359, %v357
  %v1656 = vpack.c.bf16 %v373, %v371
  %1657 = vmatpush.bf16.msra.mxu0 %v1602
  %1658 = vmatpush.bf16.msra.mxu0 %v1601
  %1659 = vmatpush.bf16.msra.mxu0 %v1600
  %1660 = vmatpush.bf16.msra.mxu0 %v1599
  %1661 = vmatpush.bf16.msra.mxu0 %v1598
  %1662 = vmatpush.bf16.msra.mxu0 %v1597
  %1663 = vmatpush.bf16.msra.mxu0 %v1596
  %1664 = vmatpush.bf16.msra.mxu0 %v1595
  %1665 = vmatmul.bf16.gmra.mxu0 %v1655
  %v1666 = vpop.f32.mrf.mxu0
  %v1667 = vadd.f32 0.0, %v1666
  %v1668 = vpop.f32.mrf.mxu0
  %v1669 = vadd.f32 0.0, %v1668
  %1670 = vdwg.mxu0
  %1671 = vmatpush.bf16.msra.mxu0 %v1610
  %1672 = vmatpush.bf16.msra.mxu0 %v1609
  %1673 = vmatpush.bf16.msra.mxu0 %v1608
  %1674 = vmatpush.bf16.msra.mxu0 %v1607
  %1675 = vmatpush.bf16.msra.mxu0 %v1606
  %1676 = vmatpush.bf16.msra.mxu0 %v1605
  %1677 = vmatpush.bf16.msra.mxu0 %v1604
  %1678 = vmatpush.bf16.msra.mxu0 %v1603
  %1679 = vmatmul.bf16.gmra.mxu0 %v1656
  %v1680 = vpop.f32.mrf.mxu0
  %v1681 = vadd.f32 %v1667, %v1680
  %v1682 = vpop.f32.mrf.mxu0
  %v1683 = vadd.f32 %v1669, %v1682
  %1684 = vdwg.mxu0
  %1687 = vrot.lane.b32.xlu0 %v1681, 120
  %v1688 = vpop.permute.xlu0 %1687
  %1689 = vrot.lane.b32.xlu0 %v1683, 120
  %v1690 = vpop.permute.xlu0 %1689
  %1693 = vxpose.xlu0.b32.start [1/16] %v1688, 128
  %1694 = vxpose.xlu0.b32.cont [2/16] %v1690, 128
  %1695 = vxpose.xlu0.b32.cont [3/16] 0.0, 128
  %1696 = vxpose.xlu0.b32.cont [4/16] 0.0, 128
  %1697 = vxpose.xlu0.b32.cont [5/16] 0.0, 128
  %1698 = vxpose.xlu0.b32.cont [6/16] 0.0, 128
  %1699 = vxpose.xlu0.b32.cont [7/16] 0.0, 128
  %1700 = vxpose.xlu0.b32.cont [8/16] 0.0, 128
  %1701 = vxpose.xlu0.b32.cont [9/16] 0.0, 128
  %1702 = vxpose.xlu0.b32.cont [10/16] 0.0, 128
  %1703 = vxpose.xlu0.b32.cont [11/16] 0.0, 128
  %1704 = vxpose.xlu0.b32.cont [12/16] 0.0, 128
  %1705 = vxpose.xlu0.b32.cont [13/16] 0.0, 128
  %1706 = vxpose.xlu0.b32.cont [14/16] 0.0, 128
  %1707 = vxpose.xlu0.b32.cont [15/16] 0.0, 128
  %1708 = vxpose.xlu0.b32.end [16/16] 0.0, 128
  %v1709 = vpop.trf.xlu0
  %v1710 = vpop.trf.xlu0
  %v1711 = vpop.trf.xlu0
  %v1712 = vpop.trf.xlu0
  %v1713 = vpop.trf.xlu0
  %v1714 = vpop.trf.xlu0
  %v1715 = vpop.trf.xlu0
  %v1716 = vpop.trf.xlu0
  %v1717 = vpop.trf.xlu0
  %v1718 = vpop.trf.xlu0
  %v1719 = vpop.trf.xlu0
  %v1720 = vpop.trf.xlu0
  %v1721 = vpop.trf.xlu0
  %v1722 = vpop.trf.xlu0
  %v1723 = vpop.trf.xlu0
  %v1724 = vpop.trf.xlu0
  %v1725 = vld [vmem:[%s5] sm:$0xf]
  %v1726 = vld [vmem:[%s5 + $0x4] sm:$0x1]
  %v1727 = vunpack.c.l.bf16 %v1725
  %v1728 = vunpack.c.l.bf16 %v1726
  %vm1729 = vcmp.gt.f32.partialorder %v1727, 0.0
  %vm1730 = vcmp.gt.f32.partialorder %v1728, 0.0
  %1732 = vset.pattern.permute.xlu0 0
  %1733 = vperm.xlu0 %1732, %v1651
  %v1734 = vpop.permute.xlu0 %1733
  %1737 = vset.pattern.permute.xlu0 0
  %1738 = vperm.xlu0 %1737, %v1653
  %v1739 = vpop.permute.xlu0 %1738
  %v1741 = vperm.slane %v1709, 0
  %v1742 = vadd.f32 %v1734, %v1741
  %v1743 = vadd.f32 %v1739, %v1741
  %vm1744 = vcmp.ge.f32.partialorder %v1742, 0.0
  %vm1745 = vcmp.ge.f32.partialorder %v1743, 0.0
  %v1746 = vmul.f32 %v1742, 0.2
  %v1747 = vmul.f32 %v1743, 0.2
  %v1748 = vsel %vm1744, %v1742, %v1746
  %v1749 = vsel %vm1745, %v1743, %v1747
  %v1750 = vsel %vm1729, %v1748, -1e+30
  %v1751 = vsel %vm1730, %v1749, -1e+30
  %v1752 = vsel %vm186, %v1750, -inf
  %1753 = vmax.xlane.f32.xlu0 %v1752
  %v1754 = vpop.xlane.xlu0 %1753
  %vm1755 = vcmask 91136
  %v1756 = vsel %vm1755, %v1751, -inf
  %1757 = vmax.xlane.f32.xlu0 %v1756
  %v1758 = vpop.xlane.xlu0 %1757
  %v1759 = vsub.f32 %v1750, %v1754
  %v1760 = vsub.f32 %v1751, %v1758
  %v1761 = vmul.f32 %v1759, 1.442695
  %v1762 = vpow.pop %v1761
  %v1763 = vmul.f32 %v1760, 1.442695
  %v1764 = vpow.pop %v1763
  %v1765 = vsel %vm1729, %v1762, 0.0
  %v1766 = vsel %vm1730, %v1764, 0.0
  %v1767 = vsel %vm186, %v1765, 0.0
  %1768 = vadd.xlane.f32.xlu0 %v1767
  %v1769 = vpop.xlane.xlu0 %1768
  %v1770 = vsel %vm1755, %v1766, 0.0
  %1771 = vadd.xlane.f32.xlu0 %v1770
  %v1772 = vpop.xlane.xlu0 %1771
  %v1773 = vmax.f32 %v1769, 1e-16
  %v1774 = vmax.f32 %v1772, 1e-16
  %v1775 = vrcp.pop %v1773
  %v1776 = vmul.f32 %v1773, %v1775
  %v1777 = vsub.f32 1.0, %v1776
  %v1778 = vmul.f32 %v1775, %v1777
  %v1779 = vadd.f32 %v1775, %v1778
  %vm1780 = vweird.f32 %v1773
  %vm1781 = vweird.f32 %v1775
  %vm1782 = vmor %vm1780, %vm1781
  %v1783 = vsel %vm1782, %v1775, %v1779
  %v1784 = vand.u32 2147483647, %v1773
  %vm1785 = vcmp.eq.f32.partialorder %v1784, 8.507059e+37
  %v1786 = vand.u32 %v1773, 2147483648
  %v1787 = vor.u32 1.1754944e-38, %v1786
  %v1788 = vsel %vm1785, %v1787, %v1783
  %v1789 = vmul.f32 %v1765, %v1788
  %v1790 = vrcp.pop %v1774
  %v1791 = vmul.f32 %v1774, %v1790
  %v1792 = vsub.f32 1.0, %v1791
  %v1793 = vmul.f32 %v1790, %v1792
  %v1794 = vadd.f32 %v1790, %v1793
  %vm1795 = vweird.f32 %v1774
  %vm1796 = vweird.f32 %v1790
  %vm1797 = vmor %vm1795, %vm1796
  %v1798 = vsel %vm1797, %v1790, %v1794
  %v1799 = vand.u32 2147483647, %v1774
  %vm1800 = vcmp.eq.f32.partialorder %v1799, 8.507059e+37
  %v1801 = vand.u32 %v1774, 2147483648
  %v1802 = vor.u32 1.1754944e-38, %v1801
  %v1803 = vsel %vm1800, %v1802, %v1798
  %v1804 = vmul.f32 %v1766, %v1803
  %v1805 = vpack.c.bf16 %v1804, %v1789
  %v1807 = vsel %vm186, %v1805, 0
  %v1810 = vsel %vm190, %v1655, 0
  %1812 = vmatpush.bf16.msra.mxu0 0
  %1813 = vmatpush.bf16.msra.mxu0 0
  %1814 = vmatpush.bf16.msra.mxu0 0
  %1815 = vmatpush.bf16.msra.mxu0 0
  %1816 = vmatpush.bf16.msra.mxu0 0
  %1817 = vmatpush.bf16.msra.mxu0 0
  %1818 = vmatpush.bf16.msra.mxu0 0
  %1819 = vmatpush.bf16.msra.mxu0 %v1810
  %1820 = vmatmul.bf16.gmra.mxu0 %v1807
  %v1821 = vpop.f32.mrf.mxu0
  %v1822 = vadd.f32 0.0, %v1821
  %v1823 = vpop.f32.mrf.mxu0
  %v1824 = vadd.f32 0.0, %v1823
  %1825 = vdwg.mxu0
  %1826 = vset.pattern.permute.xlu0 1
  %1827 = vperm.xlu0 %1826, %v1651
  %v1828 = vpop.permute.xlu0 %1827
  %1830 = vset.pattern.permute.xlu0 1
  %1831 = vperm.xlu0 %1830, %v1653
  %v1832 = vpop.permute.xlu0 %1831
  %v1834 = vperm.slane %v1709, 1
  %v1835 = vadd.f32 %v1828, %v1834
  %v1836 = vadd.f32 %v1832, %v1834
  %vm1837 = vcmp.ge.f32.partialorder %v1835, 0.0
  %vm1838 = vcmp.ge.f32.partialorder %v1836, 0.0
  %v1839 = vmul.f32 %v1835, 0.2
  %v1840 = vmul.f32 %v1836, 0.2
  %v1841 = vsel %vm1837, %v1835, %v1839
  %v1842 = vsel %vm1838, %v1836, %v1840
  %v1843 = vsel %vm1729, %v1841, -1e+30
  %v1844 = vsel %vm1730, %v1842, -1e+30
  %v1845 = vsel %vm186, %v1843, -inf
  %1846 = vmax.xlane.f32.xlu0 %v1845
  %v1847 = vpop.xlane.xlu0 %1846
  %v1848 = vsel %vm1755, %v1844, -inf
  %1849 = vmax.xlane.f32.xlu0 %v1848
  %v1850 = vpop.xlane.xlu0 %1849
  %v1851 = vsub.f32 %v1843, %v1847
  %v1852 = vsub.f32 %v1844, %v1850
  %v1853 = vmul.f32 %v1851, 1.442695
  %v1854 = vpow.pop %v1853
  %v1855 = vmul.f32 %v1852, 1.442695
  %v1856 = vpow.pop %v1855
  %v1857 = vsel %vm1729, %v1854, 0.0
  %v1858 = vsel %vm1730, %v1856, 0.0
  %v1859 = vsel %vm186, %v1857, 0.0
  %1860 = vadd.xlane.f32.xlu0 %v1859
  %v1861 = vpop.xlane.xlu0 %1860
  %v1862 = vsel %vm1755, %v1858, 0.0
  %1863 = vadd.xlane.f32.xlu0 %v1862
  %v1864 = vpop.xlane.xlu0 %1863
  %v1865 = vmax.f32 %v1861, 1e-16
  %v1866 = vmax.f32 %v1864, 1e-16
  %v1867 = vrcp.pop %v1865
  %v1868 = vmul.f32 %v1865, %v1867
  %v1869 = vsub.f32 1.0, %v1868
  %v1870 = vmul.f32 %v1867, %v1869
  %v1871 = vadd.f32 %v1867, %v1870
  %vm1872 = vweird.f32 %v1865
  %vm1873 = vweird.f32 %v1867
  %vm1874 = vmor %vm1872, %vm1873
  %v1875 = vsel %vm1874, %v1867, %v1871
  %v1876 = vand.u32 2147483647, %v1865
  %vm1877 = vcmp.eq.f32.partialorder %v1876, 8.507059e+37
  %v1878 = vand.u32 %v1865, 2147483648
  %v1879 = vor.u32 1.1754944e-38, %v1878
  %v1880 = vsel %vm1877, %v1879, %v1875
  %v1881 = vmul.f32 %v1857, %v1880
  %v1882 = vrcp.pop %v1866
  %v1883 = vmul.f32 %v1866, %v1882
  %v1884 = vsub.f32 1.0, %v1883
  %v1885 = vmul.f32 %v1882, %v1884
  %v1886 = vadd.f32 %v1882, %v1885
  %vm1887 = vweird.f32 %v1866
  %vm1888 = vweird.f32 %v1882
  %vm1889 = vmor %vm1887, %vm1888
  %v1890 = vsel %vm1889, %v1882, %v1886
  %v1891 = vand.u32 2147483647, %v1866
  %vm1892 = vcmp.eq.f32.partialorder %v1891, 8.507059e+37
  %v1893 = vand.u32 %v1866, 2147483648
  %v1894 = vor.u32 1.1754944e-38, %v1893
  %v1895 = vsel %vm1892, %v1894, %v1890
  %v1896 = vmul.f32 %v1858, %v1895
  %v1897 = vpack.c.bf16 %v1896, %v1881
  %1899 = vrot.lane.b32.xlu0 %v1655, 96
  %v1900 = vpop.permute.xlu0 %1899
  %v1902 = vsel %vm186, %v1897, 0
  %v1905 = vsel %vm190, %v1900, 0
  %1907 = vmatpush.bf16.msra.mxu0 0
  %1908 = vmatpush.bf16.msra.mxu0 0
  %1909 = vmatpush.bf16.msra.mxu0 0
  %1910 = vmatpush.bf16.msra.mxu0 0
  %1911 = vmatpush.bf16.msra.mxu0 0
  %1912 = vmatpush.bf16.msra.mxu0 0
  %1913 = vmatpush.bf16.msra.mxu0 0
  %1914 = vmatpush.bf16.msra.mxu0 %v1905
  %1915 = vmatmul.bf16.gmra.mxu0 %v1902
  %v1916 = vpop.f32.mrf.mxu0
  %v1917 = vadd.f32 0.0, %v1916
  %v1918 = vpop.f32.mrf.mxu0
  %v1919 = vadd.f32 0.0, %v1918
  %1920 = vdwg.mxu0
  %1921 = vset.pattern.permute.xlu0 2
  %1922 = vperm.xlu0 %1921, %v1651
  %v1923 = vpop.permute.xlu0 %1922
  %1925 = vset.pattern.permute.xlu0 2
  %1926 = vperm.xlu0 %1925, %v1653
  %v1927 = vpop.permute.xlu0 %1926
  %v1929 = vperm.slane %v1709, 2
  %v1930 = vadd.f32 %v1923, %v1929
  %v1931 = vadd.f32 %v1927, %v1929
  %vm1932 = vcmp.ge.f32.partialorder %v1930, 0.0
  %vm1933 = vcmp.ge.f32.partialorder %v1931, 0.0
  %v1934 = vmul.f32 %v1930, 0.2
  %v1935 = vmul.f32 %v1931, 0.2
  %v1936 = vsel %vm1932, %v1930, %v1934
  %v1937 = vsel %vm1933, %v1931, %v1935
  %v1938 = vsel %vm1729, %v1936, -1e+30
  %v1939 = vsel %vm1730, %v1937, -1e+30
  %v1940 = vsel %vm186, %v1938, -inf
  %1941 = vmax.xlane.f32.xlu0 %v1940
  %v1942 = vpop.xlane.xlu0 %1941
  %v1943 = vsel %vm1755, %v1939, -inf
  %1944 = vmax.xlane.f32.xlu0 %v1943
  %v1945 = vpop.xlane.xlu0 %1944
  %v1946 = vsub.f32 %v1938, %v1942
  %v1947 = vsub.f32 %v1939, %v1945
  %v1948 = vmul.f32 %v1946, 1.442695
  %v1949 = vpow.pop %v1948
  %v1950 = vmul.f32 %v1947, 1.442695
  %v1951 = vpow.pop %v1950
  %v1952 = vsel %vm1729, %v1949, 0.0
  %v1953 = vsel %vm1730, %v1951, 0.0
  %v1954 = vsel %vm186, %v1952, 0.0
  %1955 = vadd.xlane.f32.xlu0 %v1954
  %v1956 = vpop.xlane.xlu0 %1955
  %v1957 = vsel %vm1755, %v1953, 0.0
  %1958 = vadd.xlane.f32.xlu0 %v1957
  %v1959 = vpop.xlane.xlu0 %1958
  %v1960 = vmax.f32 %v1956, 1e-16
  %v1961 = vmax.f32 %v1959, 1e-16
  %v1962 = vrcp.pop %v1960
  %v1963 = vmul.f32 %v1960, %v1962
  %v1964 = vsub.f32 1.0, %v1963
  %v1965 = vmul.f32 %v1962, %v1964
  %v1966 = vadd.f32 %v1962, %v1965
  %vm1967 = vweird.f32 %v1960
  %vm1968 = vweird.f32 %v1962
  %vm1969 = vmor %vm1967, %vm1968
  %v1970 = vsel %vm1969, %v1962, %v1966
  %v1971 = vand.u32 2147483647, %v1960
  %vm1972 = vcmp.eq.f32.partialorder %v1971, 8.507059e+37
  %v1973 = vand.u32 %v1960, 2147483648
  %v1974 = vor.u32 1.1754944e-38, %v1973
  %v1975 = vsel %vm1972, %v1974, %v1970
  %v1976 = vmul.f32 %v1952, %v1975
  %v1977 = vrcp.pop %v1961
  %v1978 = vmul.f32 %v1961, %v1977
  %v1979 = vsub.f32 1.0, %v1978
  %v1980 = vmul.f32 %v1977, %v1979
  %v1981 = vadd.f32 %v1977, %v1980
  %vm1982 = vweird.f32 %v1961
  %vm1983 = vweird.f32 %v1977
  %vm1984 = vmor %vm1982, %vm1983
  %v1985 = vsel %vm1984, %v1977, %v1981
  %v1986 = vand.u32 2147483647, %v1961
  %vm1987 = vcmp.eq.f32.partialorder %v1986, 8.507059e+37
  %v1988 = vand.u32 %v1961, 2147483648
  %v1989 = vor.u32 1.1754944e-38, %v1988
  %v1990 = vsel %vm1987, %v1989, %v1985
  %v1991 = vmul.f32 %v1953, %v1990
  %v1992 = vpack.c.bf16 %v1991, %v1976
  %1993 = vrot.lane.b32.xlu0 %v1655, 64
  %v1994 = vpop.permute.xlu0 %1993
  %v1996 = vsel %vm186, %v1992, 0
  %v1999 = vsel %vm190, %v1994, 0
  %2001 = vmatpush.bf16.msra.mxu0 0
  %2002 = vmatpush.bf16.msra.mxu0 0
  %2003 = vmatpush.bf16.msra.mxu0 0
  %2004 = vmatpush.bf16.msra.mxu0 0
  %2005 = vmatpush.bf16.msra.mxu0 0
  %2006 = vmatpush.bf16.msra.mxu0 0
  %2007 = vmatpush.bf16.msra.mxu0 0
  %2008 = vmatpush.bf16.msra.mxu0 %v1999
  %2009 = vmatmul.bf16.gmra.mxu0 %v1996
  %v2010 = vpop.f32.mrf.mxu0
  %v2011 = vadd.f32 0.0, %v2010
  %v2012 = vpop.f32.mrf.mxu0
  %v2013 = vadd.f32 0.0, %v2012
  %2014 = vdwg.mxu0
  %2015 = vset.pattern.permute.xlu0 3
  %2016 = vperm.xlu0 %2015, %v1651
  %v2017 = vpop.permute.xlu0 %2016
  %2019 = vset.pattern.permute.xlu0 3
  %2020 = vperm.xlu0 %2019, %v1653
  %v2021 = vpop.permute.xlu0 %2020
  %v2023 = vperm.slane %v1709, 3
  %v2024 = vadd.f32 %v2017, %v2023
  %v2025 = vadd.f32 %v2021, %v2023
  %vm2026 = vcmp.ge.f32.partialorder %v2024, 0.0
  %vm2027 = vcmp.ge.f32.partialorder %v2025, 0.0
  %v2028 = vmul.f32 %v2024, 0.2
  %v2029 = vmul.f32 %v2025, 0.2
  %v2030 = vsel %vm2026, %v2024, %v2028
  %v2031 = vsel %vm2027, %v2025, %v2029
  %v2032 = vsel %vm1729, %v2030, -1e+30
  %v2033 = vsel %vm1730, %v2031, -1e+30
  %v2034 = vsel %vm186, %v2032, -inf
  %2035 = vmax.xlane.f32.xlu0 %v2034
  %v2036 = vpop.xlane.xlu0 %2035
  %v2037 = vsel %vm1755, %v2033, -inf
  %2038 = vmax.xlane.f32.xlu0 %v2037
  %v2039 = vpop.xlane.xlu0 %2038
  %v2040 = vsub.f32 %v2032, %v2036
  %v2041 = vsub.f32 %v2033, %v2039
  %v2042 = vmul.f32 %v2040, 1.442695
  %v2043 = vpow.pop %v2042
  %v2044 = vmul.f32 %v2041, 1.442695
  %v2045 = vpow.pop %v2044
  %v2046 = vsel %vm1729, %v2043, 0.0
  %v2047 = vsel %vm1730, %v2045, 0.0
  %v2048 = vsel %vm186, %v2046, 0.0
  %2049 = vadd.xlane.f32.xlu0 %v2048
  %v2050 = vpop.xlane.xlu0 %2049
  %v2051 = vsel %vm1755, %v2047, 0.0
  %2052 = vadd.xlane.f32.xlu0 %v2051
  %v2053 = vpop.xlane.xlu0 %2052
  %v2054 = vmax.f32 %v2050, 1e-16
  %v2055 = vmax.f32 %v2053, 1e-16
  %v2056 = vrcp.pop %v2054
  %v2057 = vmul.f32 %v2054, %v2056
  %v2058 = vsub.f32 1.0, %v2057
  %v2059 = vmul.f32 %v2056, %v2058
  %v2060 = vadd.f32 %v2056, %v2059
  %vm2061 = vweird.f32 %v2054
  %vm2062 = vweird.f32 %v2056
  %vm2063 = vmor %vm2061, %vm2062
  %v2064 = vsel %vm2063, %v2056, %v2060
  %v2065 = vand.u32 2147483647, %v2054
  %vm2066 = vcmp.eq.f32.partialorder %v2065, 8.507059e+37
  %v2067 = vand.u32 %v2054, 2147483648
  %v2068 = vor.u32 1.1754944e-38, %v2067
  %v2069 = vsel %vm2066, %v2068, %v2064
  %v2070 = vmul.f32 %v2046, %v2069
  %v2071 = vrcp.pop %v2055
  %v2072 = vmul.f32 %v2055, %v2071
  %v2073 = vsub.f32 1.0, %v2072
  %v2074 = vmul.f32 %v2071, %v2073
  %v2075 = vadd.f32 %v2071, %v2074
  %vm2076 = vweird.f32 %v2055
  %vm2077 = vweird.f32 %v2071
  %vm2078 = vmor %vm2076, %vm2077
  %v2079 = vsel %vm2078, %v2071, %v2075
  %v2080 = vand.u32 2147483647, %v2055
  %vm2081 = vcmp.eq.f32.partialorder %v2080, 8.507059e+37
  %v2082 = vand.u32 %v2055, 2147483648
  %v2083 = vor.u32 1.1754944e-38, %v2082
  %v2084 = vsel %vm2081, %v2083, %v2079
  %v2085 = vmul.f32 %v2047, %v2084
  %v2086 = vpack.c.bf16 %v2085, %v2070
  %2087 = vrot.lane.b32.xlu0 %v1655, 32
  %v2088 = vpop.permute.xlu0 %2087
  %v2090 = vsel %vm186, %v2086, 0
  %v2093 = vsel %vm190, %v2088, 0
  %2095 = vmatpush.bf16.msra.mxu0 0
  %2096 = vmatpush.bf16.msra.mxu0 0
  %2097 = vmatpush.bf16.msra.mxu0 0
  %2098 = vmatpush.bf16.msra.mxu0 0
  %2099 = vmatpush.bf16.msra.mxu0 0
  %2100 = vmatpush.bf16.msra.mxu0 0
  %2101 = vmatpush.bf16.msra.mxu0 0
  %2102 = vmatpush.bf16.msra.mxu0 %v2093
  %2103 = vmatmul.bf16.gmra.mxu0 %v2090
  %v2104 = vpop.f32.mrf.mxu0
  %v2105 = vadd.f32 0.0, %v2104
  %v2106 = vpop.f32.mrf.mxu0
  %v2107 = vadd.f32 0.0, %v2106
  %2108 = vdwg.mxu0
  %2109 = vset.pattern.permute.xlu0 4
  %2110 = vperm.xlu0 %2109, %v1651
  %v2111 = vpop.permute.xlu0 %2110
  %2113 = vset.pattern.permute.xlu0 4
  %2114 = vperm.xlu0 %2113, %v1653
  %v2115 = vpop.permute.xlu0 %2114
  %v2117 = vperm.slane %v1709, 4
  %v2118 = vadd.f32 %v2111, %v2117
  %v2119 = vadd.f32 %v2115, %v2117
  %vm2120 = vcmp.ge.f32.partialorder %v2118, 0.0
  %vm2121 = vcmp.ge.f32.partialorder %v2119, 0.0
  %v2122 = vmul.f32 %v2118, 0.2
  %v2123 = vmul.f32 %v2119, 0.2
  %v2124 = vsel %vm2120, %v2118, %v2122
  %v2125 = vsel %vm2121, %v2119, %v2123
  %v2126 = vsel %vm1729, %v2124, -1e+30
  %v2127 = vsel %vm1730, %v2125, -1e+30
  %v2128 = vsel %vm186, %v2126, -inf
  %2129 = vmax.xlane.f32.xlu0 %v2128
  %v2130 = vpop.xlane.xlu0 %2129
  %v2131 = vsel %vm1755, %v2127, -inf
  %2132 = vmax.xlane.f32.xlu0 %v2131
  %v2133 = vpop.xlane.xlu0 %2132
  %v2134 = vsub.f32 %v2126, %v2130
  %v2135 = vsub.f32 %v2127, %v2133
  %v2136 = vmul.f32 %v2134, 1.442695
  %v2137 = vpow.pop %v2136
  %v2138 = vmul.f32 %v2135, 1.442695
  %v2139 = vpow.pop %v2138
  %v2140 = vsel %vm1729, %v2137, 0.0
  %v2141 = vsel %vm1730, %v2139, 0.0
  %v2142 = vsel %vm186, %v2140, 0.0
  %2143 = vadd.xlane.f32.xlu0 %v2142
  %v2144 = vpop.xlane.xlu0 %2143
  %v2145 = vsel %vm1755, %v2141, 0.0
  %2146 = vadd.xlane.f32.xlu0 %v2145
  %v2147 = vpop.xlane.xlu0 %2146
  %v2148 = vmax.f32 %v2144, 1e-16
  %v2149 = vmax.f32 %v2147, 1e-16
  %v2150 = vrcp.pop %v2148
  %v2151 = vmul.f32 %v2148, %v2150
  %v2152 = vsub.f32 1.0, %v2151
  %v2153 = vmul.f32 %v2150, %v2152
  %v2154 = vadd.f32 %v2150, %v2153
  %vm2155 = vweird.f32 %v2148
  %vm2156 = vweird.f32 %v2150
  %vm2157 = vmor %vm2155, %vm2156
  %v2158 = vsel %vm2157, %v2150, %v2154
  %v2159 = vand.u32 2147483647, %v2148
  %vm2160 = vcmp.eq.f32.partialorder %v2159, 8.507059e+37
  %v2161 = vand.u32 %v2148, 2147483648
  %v2162 = vor.u32 1.1754944e-38, %v2161
  %v2163 = vsel %vm2160, %v2162, %v2158
  %v2164 = vmul.f32 %v2140, %v2163
  %v2165 = vrcp.pop %v2149
  %v2166 = vmul.f32 %v2149, %v2165
  %v2167 = vsub.f32 1.0, %v2166
  %v2168 = vmul.f32 %v2165, %v2167
  %v2169 = vadd.f32 %v2165, %v2168
  %vm2170 = vweird.f32 %v2149
  %vm2171 = vweird.f32 %v2165
  %vm2172 = vmor %vm2170, %vm2171
  %v2173 = vsel %vm2172, %v2165, %v2169
  %v2174 = vand.u32 2147483647, %v2149
  %vm2175 = vcmp.eq.f32.partialorder %v2174, 8.507059e+37
  %v2176 = vand.u32 %v2149, 2147483648
  %v2177 = vor.u32 1.1754944e-38, %v2176
  %v2178 = vsel %vm2175, %v2177, %v2173
  %v2179 = vmul.f32 %v2141, %v2178
  %v2180 = vpack.c.bf16 %v2179, %v2164
  %v2182 = vsel %vm186, %v2180, 0
  %v2185 = vsel %vm190, %v1656, 0
  %2187 = vmatpush.bf16.msra.mxu0 0
  %2188 = vmatpush.bf16.msra.mxu0 0
  %2189 = vmatpush.bf16.msra.mxu0 0
  %2190 = vmatpush.bf16.msra.mxu0 0
  %2191 = vmatpush.bf16.msra.mxu0 0
  %2192 = vmatpush.bf16.msra.mxu0 0
  %2193 = vmatpush.bf16.msra.mxu0 0
  %2194 = vmatpush.bf16.msra.mxu0 %v2185
  %2195 = vmatmul.bf16.gmra.mxu0 %v2182
  %v2196 = vpop.f32.mrf.mxu0
  %v2197 = vadd.f32 0.0, %v2196
  %v2198 = vpop.f32.mrf.mxu0
  %v2199 = vadd.f32 0.0, %v2198
  %2200 = vdwg.mxu0
  %2201 = vset.pattern.permute.xlu0 5
  %2202 = vperm.xlu0 %2201, %v1651
  %v2203 = vpop.permute.xlu0 %2202
  %2205 = vset.pattern.permute.xlu0 5
  %2206 = vperm.xlu0 %2205, %v1653
  %v2207 = vpop.permute.xlu0 %2206
  %v2209 = vperm.slane %v1709, 5
  %v2210 = vadd.f32 %v2203, %v2209
  %v2211 = vadd.f32 %v2207, %v2209
  %vm2212 = vcmp.ge.f32.partialorder %v2210, 0.0
  %vm2213 = vcmp.ge.f32.partialorder %v2211, 0.0
  %v2214 = vmul.f32 %v2210, 0.2
  %v2215 = vmul.f32 %v2211, 0.2
  %v2216 = vsel %vm2212, %v2210, %v2214
  %v2217 = vsel %vm2213, %v2211, %v2215
  %v2218 = vsel %vm1729, %v2216, -1e+30
  %v2219 = vsel %vm1730, %v2217, -1e+30
  %v2220 = vsel %vm186, %v2218, -inf
  %2221 = vmax.xlane.f32.xlu0 %v2220
  %v2222 = vpop.xlane.xlu0 %2221
  %v2223 = vsel %vm1755, %v2219, -inf
  %2224 = vmax.xlane.f32.xlu0 %v2223
  %v2225 = vpop.xlane.xlu0 %2224
  %v2226 = vsub.f32 %v2218, %v2222
  %v2227 = vsub.f32 %v2219, %v2225
  %v2228 = vmul.f32 %v2226, 1.442695
  %v2229 = vpow.pop %v2228
  %v2230 = vmul.f32 %v2227, 1.442695
  %v2231 = vpow.pop %v2230
  %v2232 = vsel %vm1729, %v2229, 0.0
  %v2233 = vsel %vm1730, %v2231, 0.0
  %v2234 = vsel %vm186, %v2232, 0.0
  %2235 = vadd.xlane.f32.xlu0 %v2234
  %v2236 = vpop.xlane.xlu0 %2235
  %v2237 = vsel %vm1755, %v2233, 0.0
  %2238 = vadd.xlane.f32.xlu0 %v2237
  %v2239 = vpop.xlane.xlu0 %2238
  %v2240 = vmax.f32 %v2236, 1e-16
  %v2241 = vmax.f32 %v2239, 1e-16
  %v2242 = vrcp.pop %v2240
  %v2243 = vmul.f32 %v2240, %v2242
  %v2244 = vsub.f32 1.0, %v2243
  %v2245 = vmul.f32 %v2242, %v2244
  %v2246 = vadd.f32 %v2242, %v2245
  %vm2247 = vweird.f32 %v2240
  %vm2248 = vweird.f32 %v2242
  %vm2249 = vmor %vm2247, %vm2248
  %v2250 = vsel %vm2249, %v2242, %v2246
  %v2251 = vand.u32 2147483647, %v2240
  %vm2252 = vcmp.eq.f32.partialorder %v2251, 8.507059e+37
  %v2253 = vand.u32 %v2240, 2147483648
  %v2254 = vor.u32 1.1754944e-38, %v2253
  %v2255 = vsel %vm2252, %v2254, %v2250
  %v2256 = vmul.f32 %v2232, %v2255
  %v2257 = vrcp.pop %v2241
  %v2258 = vmul.f32 %v2241, %v2257
  %v2259 = vsub.f32 1.0, %v2258
  %v2260 = vmul.f32 %v2257, %v2259
  %v2261 = vadd.f32 %v2257, %v2260
  %vm2262 = vweird.f32 %v2241
  %vm2263 = vweird.f32 %v2257
  %vm2264 = vmor %vm2262, %vm2263
  %v2265 = vsel %vm2264, %v2257, %v2261
  %v2266 = vand.u32 2147483647, %v2241
  %vm2267 = vcmp.eq.f32.partialorder %v2266, 8.507059e+37
  %v2268 = vand.u32 %v2241, 2147483648
  %v2269 = vor.u32 1.1754944e-38, %v2268
  %v2270 = vsel %vm2267, %v2269, %v2265
  %v2271 = vmul.f32 %v2233, %v2270
  %v2272 = vpack.c.bf16 %v2271, %v2256
  %2274 = vrot.lane.b32.xlu0 %v1656, 96
  %v2275 = vpop.permute.xlu0 %2274
  %v2277 = vsel %vm186, %v2272, 0
  %v2280 = vsel %vm190, %v2275, 0
  %2282 = vmatpush.bf16.msra.mxu0 0
  %2283 = vmatpush.bf16.msra.mxu0 0
  %2284 = vmatpush.bf16.msra.mxu0 0
  %2285 = vmatpush.bf16.msra.mxu0 0
  %2286 = vmatpush.bf16.msra.mxu0 0
  %2287 = vmatpush.bf16.msra.mxu0 0
  %2288 = vmatpush.bf16.msra.mxu0 0
  %2289 = vmatpush.bf16.msra.mxu0 %v2280
  %2290 = vmatmul.bf16.gmra.mxu0 %v2277
  %v2291 = vpop.f32.mrf.mxu0
  %v2292 = vadd.f32 0.0, %v2291
  %v2293 = vpop.f32.mrf.mxu0
  %v2294 = vadd.f32 0.0, %v2293
  %2295 = vdwg.mxu0
  %2296 = vset.pattern.permute.xlu0 6
  %2297 = vperm.xlu0 %2296, %v1651
  %v2298 = vpop.permute.xlu0 %2297
  %2300 = vset.pattern.permute.xlu0 6
  %2301 = vperm.xlu0 %2300, %v1653
  %v2302 = vpop.permute.xlu0 %2301
  %v2304 = vperm.slane %v1709, 6
  %v2305 = vadd.f32 %v2298, %v2304
  %v2306 = vadd.f32 %v2302, %v2304
  %vm2307 = vcmp.ge.f32.partialorder %v2305, 0.0
  %vm2308 = vcmp.ge.f32.partialorder %v2306, 0.0
  %v2309 = vmul.f32 %v2305, 0.2
  %v2310 = vmul.f32 %v2306, 0.2
  %v2311 = vsel %vm2307, %v2305, %v2309
  %v2312 = vsel %vm2308, %v2306, %v2310
  %v2313 = vsel %vm1729, %v2311, -1e+30
  %v2314 = vsel %vm1730, %v2312, -1e+30
  %v2315 = vsel %vm186, %v2313, -inf
  %2316 = vmax.xlane.f32.xlu0 %v2315
  %v2317 = vpop.xlane.xlu0 %2316
  %v2318 = vsel %vm1755, %v2314, -inf
  %2319 = vmax.xlane.f32.xlu0 %v2318
  %v2320 = vpop.xlane.xlu0 %2319
  %v2321 = vsub.f32 %v2313, %v2317
  %v2322 = vsub.f32 %v2314, %v2320
  %v2323 = vmul.f32 %v2321, 1.442695
  %v2324 = vpow.pop %v2323
  %v2325 = vmul.f32 %v2322, 1.442695
  %v2326 = vpow.pop %v2325
  %v2327 = vsel %vm1729, %v2324, 0.0
  %v2328 = vsel %vm1730, %v2326, 0.0
  %v2329 = vsel %vm186, %v2327, 0.0
  %2330 = vadd.xlane.f32.xlu0 %v2329
  %v2331 = vpop.xlane.xlu0 %2330
  %v2332 = vsel %vm1755, %v2328, 0.0
  %2333 = vadd.xlane.f32.xlu0 %v2332
  %v2334 = vpop.xlane.xlu0 %2333
  %v2335 = vmax.f32 %v2331, 1e-16
  %v2336 = vmax.f32 %v2334, 1e-16
  %v2337 = vrcp.pop %v2335
  %v2338 = vmul.f32 %v2335, %v2337
  %v2339 = vsub.f32 1.0, %v2338
  %v2340 = vmul.f32 %v2337, %v2339
  %v2341 = vadd.f32 %v2337, %v2340
  %vm2342 = vweird.f32 %v2335
  %vm2343 = vweird.f32 %v2337
  %vm2344 = vmor %vm2342, %vm2343
  %v2345 = vsel %vm2344, %v2337, %v2341
  %v2346 = vand.u32 2147483647, %v2335
  %vm2347 = vcmp.eq.f32.partialorder %v2346, 8.507059e+37
  %v2348 = vand.u32 %v2335, 2147483648
  %v2349 = vor.u32 1.1754944e-38, %v2348
  %v2350 = vsel %vm2347, %v2349, %v2345
  %v2351 = vmul.f32 %v2327, %v2350
  %v2352 = vrcp.pop %v2336
  %v2353 = vmul.f32 %v2336, %v2352
  %v2354 = vsub.f32 1.0, %v2353
  %v2355 = vmul.f32 %v2352, %v2354
  %v2356 = vadd.f32 %v2352, %v2355
  %vm2357 = vweird.f32 %v2336
  %vm2358 = vweird.f32 %v2352
  %vm2359 = vmor %vm2357, %vm2358
  %v2360 = vsel %vm2359, %v2352, %v2356
  %v2361 = vand.u32 2147483647, %v2336
  %vm2362 = vcmp.eq.f32.partialorder %v2361, 8.507059e+37
  %v2363 = vand.u32 %v2336, 2147483648
  %v2364 = vor.u32 1.1754944e-38, %v2363
  %v2365 = vsel %vm2362, %v2364, %v2360
  %v2366 = vmul.f32 %v2328, %v2365
  %v2367 = vpack.c.bf16 %v2366, %v2351
  %2368 = vrot.lane.b32.xlu0 %v1656, 64
  %v2369 = vpop.permute.xlu0 %2368
  %v2371 = vsel %vm186, %v2367, 0
  %v2374 = vsel %vm190, %v2369, 0
  %2376 = vmatpush.bf16.msra.mxu0 0
  %2377 = vmatpush.bf16.msra.mxu0 0
  %2378 = vmatpush.bf16.msra.mxu0 0
  %2379 = vmatpush.bf16.msra.mxu0 0
  %2380 = vmatpush.bf16.msra.mxu0 0
  %2381 = vmatpush.bf16.msra.mxu0 0
  %2382 = vmatpush.bf16.msra.mxu0 0
  %2383 = vmatpush.bf16.msra.mxu0 %v2374
  %2384 = vmatmul.bf16.gmra.mxu0 %v2371
  %v2385 = vpop.f32.mrf.mxu0
  %v2386 = vadd.f32 0.0, %v2385
  %v2387 = vpop.f32.mrf.mxu0
  %v2388 = vadd.f32 0.0, %v2387
  %2389 = vdwg.mxu0
  %2390 = vset.pattern.permute.xlu0 7
  %2391 = vperm.xlu0 %2390, %v1651
  %v2392 = vpop.permute.xlu0 %2391
  %2394 = vset.pattern.permute.xlu0 7
  %2395 = vperm.xlu0 %2394, %v1653
  %v2396 = vpop.permute.xlu0 %2395
  %v2398 = vperm.slane %v1709, 7
  %v2399 = vadd.f32 %v2392, %v2398
  %v2400 = vadd.f32 %v2396, %v2398
  %vm2401 = vcmp.ge.f32.partialorder %v2399, 0.0
  %vm2402 = vcmp.ge.f32.partialorder %v2400, 0.0
  %v2403 = vmul.f32 %v2399, 0.2
  %v2404 = vmul.f32 %v2400, 0.2
  %v2405 = vsel %vm2401, %v2399, %v2403
  %v2406 = vsel %vm2402, %v2400, %v2404
  %v2407 = vsel %vm1729, %v2405, -1e+30
  %v2408 = vsel %vm1730, %v2406, -1e+30
  %v2409 = vsel %vm186, %v2407, -inf
  %2410 = vmax.xlane.f32.xlu0 %v2409
  %v2411 = vpop.xlane.xlu0 %2410
  %v2412 = vsel %vm1755, %v2408, -inf
  %2413 = vmax.xlane.f32.xlu0 %v2412
  %v2414 = vpop.xlane.xlu0 %2413
  %v2415 = vsub.f32 %v2407, %v2411
  %v2416 = vsub.f32 %v2408, %v2414
  %v2417 = vmul.f32 %v2415, 1.442695
  %v2418 = vpow.pop %v2417
  %v2419 = vmul.f32 %v2416, 1.442695
  %v2420 = vpow.pop %v2419
  %v2421 = vsel %vm1729, %v2418, 0.0
  %v2422 = vsel %vm1730, %v2420, 0.0
  %v2423 = vsel %vm186, %v2421, 0.0
  %2424 = vadd.xlane.f32.xlu0 %v2423
  %v2425 = vpop.xlane.xlu0 %2424
  %v2426 = vsel %vm1755, %v2422, 0.0
  %2427 = vadd.xlane.f32.xlu0 %v2426
  %v2428 = vpop.xlane.xlu0 %2427
  %v2429 = vmax.f32 %v2425, 1e-16
  %v2430 = vmax.f32 %v2428, 1e-16
  %v2431 = vrcp.pop %v2429
  %v2432 = vmul.f32 %v2429, %v2431
  %v2433 = vsub.f32 1.0, %v2432
  %v2434 = vmul.f32 %v2431, %v2433
  %v2435 = vadd.f32 %v2431, %v2434
  %vm2436 = vweird.f32 %v2429
  %vm2437 = vweird.f32 %v2431
  %vm2438 = vmor %vm2436, %vm2437
  %v2439 = vsel %vm2438, %v2431, %v2435
  %v2440 = vand.u32 2147483647, %v2429
  %vm2441 = vcmp.eq.f32.partialorder %v2440, 8.507059e+37
  %v2442 = vand.u32 %v2429, 2147483648
  %v2443 = vor.u32 1.1754944e-38, %v2442
  %v2444 = vsel %vm2441, %v2443, %v2439
  %v2445 = vmul.f32 %v2421, %v2444
  %v2446 = vrcp.pop %v2430
  %v2447 = vmul.f32 %v2430, %v2446
  %v2448 = vsub.f32 1.0, %v2447
  %v2449 = vmul.f32 %v2446, %v2448
  %v2450 = vadd.f32 %v2446, %v2449
  %vm2451 = vweird.f32 %v2430
  %vm2452 = vweird.f32 %v2446
  %vm2453 = vmor %vm2451, %vm2452
  %v2454 = vsel %vm2453, %v2446, %v2450
  %v2455 = vand.u32 2147483647, %v2430
  %vm2456 = vcmp.eq.f32.partialorder %v2455, 8.507059e+37
  %v2457 = vand.u32 %v2430, 2147483648
  %v2458 = vor.u32 1.1754944e-38, %v2457
  %v2459 = vsel %vm2456, %v2458, %v2454
  %v2460 = vmul.f32 %v2422, %v2459
  %v2461 = vpack.c.bf16 %v2460, %v2445
  %2462 = vrot.lane.b32.xlu0 %v1656, 32
  %v2463 = vpop.permute.xlu0 %2462
  %v2465 = vsel %vm186, %v2461, 0
  %v2468 = vsel %vm190, %v2463, 0
  %2470 = vmatpush.bf16.msra.mxu0 0
  %2471 = vmatpush.bf16.msra.mxu0 0
  %2472 = vmatpush.bf16.msra.mxu0 0
  %2473 = vmatpush.bf16.msra.mxu0 0
  %2474 = vmatpush.bf16.msra.mxu0 0
  %2475 = vmatpush.bf16.msra.mxu0 0
  %2476 = vmatpush.bf16.msra.mxu0 0
  %2477 = vmatpush.bf16.msra.mxu0 %v2468
  %2478 = vmatmul.bf16.gmra.mxu0 %v2465
  %v2479 = vpop.f32.mrf.mxu0
  %v2480 = vadd.f32 0.0, %v2479
  %v2481 = vpop.f32.mrf.mxu0
  %v2482 = vadd.f32 0.0, %v2481
  %2483 = vdwg.mxu0
  %2486 = vrot.lane.b32.xlu0 %v1917, 32
  %v2487 = vpop.permute.xlu0 %2486
  %2488 = vrot.lane.b32.xlu0 %v1919, 32
  %v2489 = vpop.permute.xlu0 %2488
  %2494 = vrot.lane.b32.xlu0 %v2011, 64
  %v2495 = vpop.permute.xlu0 %2494
  %2496 = vrot.lane.b32.xlu0 %v2013, 64
  %v2497 = vpop.permute.xlu0 %2496
  %2502 = vrot.lane.b32.xlu0 %v2105, 96
  %v2503 = vpop.permute.xlu0 %2502
  %2504 = vrot.lane.b32.xlu0 %v2107, 96
  %v2505 = vpop.permute.xlu0 %2504
  %2510 = vrot.lane.b32.xlu0 %v2292, 32
  %v2511 = vpop.permute.xlu0 %2510
  %2512 = vrot.lane.b32.xlu0 %v2294, 32
  %v2513 = vpop.permute.xlu0 %2512
  %2518 = vrot.lane.b32.xlu0 %v2386, 64
  %v2519 = vpop.permute.xlu0 %2518
  %2520 = vrot.lane.b32.xlu0 %v2388, 64
  %v2521 = vpop.permute.xlu0 %2520
  %2526 = vrot.lane.b32.xlu0 %v2480, 96
  %v2527 = vpop.permute.xlu0 %2526
  %2528 = vrot.lane.b32.xlu0 %v2482, 96
  %v2529 = vpop.permute.xlu0 %2528
  %v2532 = vsel %vm116, %v1822, %v2487
  %v2533 = vsel %vm116, %v1824, %v2489
  %v2534 = vsel %vm147, %v2532, %v2495
  %v2535 = vsel %vm147, %v2533, %v2497
  %v2536 = vsel %vm1474, %v2534, %v2503
  %v2537 = vsel %vm1474, %v2535, %v2505
  %v2538 = vsel %vm116, %v2197, %v2511
  %v2539 = vsel %vm116, %v2199, %v2513
  %v2540 = vsel %vm147, %v2538, %v2519
  %v2541 = vsel %vm147, %v2539, %v2521
  %v2542 = vsel %vm1474, %v2540, %v2527
  %v2543 = vsel %vm1474, %v2541, %v2529
  %v2544 = vld [vmem:[%s14] sm:$0x3]
  %v2546 = vperm.slane %v2544, 0
  %v2547 = vperm.slane %v2544, 1
  %v2550 = vadd.f32 %v2536, %v2546
  %v2551 = vadd.f32 %v2542, %v2547
  %v2552 = vadd.f32 %v2537, %v2546
  %v2553 = vadd.f32 %v2543, %v2547
  %v2554 = vmax.f32 %v2550, 0.0
  %v2555 = vmax.f32 %v2551, 0.0
  %v2556 = vmax.f32 %v2552, 0.0
  %v2557 = vmax.f32 %v2553, 0.0
  %v2558 = vld [vmem:[%s15] sm:$0xf]
  %v2559 = vld [vmem:[%s15 + $0x4] sm:$0xf]
  %v2560 = vld [vmem:[%s15 + $0x8] sm:$0xf]
  %v2561 = vld [vmem:[%s15 + $0xc] sm:$0xf]
  %v2562 = vld [vmem:[%s15 + $0x10] sm:$0xf]
  %v2563 = vld [vmem:[%s15 + $0x14] sm:$0xf]
  %v2564 = vld [vmem:[%s15 + $0x18] sm:$0xf]
  %v2565 = vld [vmem:[%s15 + $0x1c] sm:$0xf]
  %v2566 = vld [vmem:[%s15 + $0x20] sm:$0xf]
  %v2567 = vld [vmem:[%s15 + $0x24] sm:$0xf]
  %v2568 = vld [vmem:[%s15 + $0x28] sm:$0xf]
  %v2569 = vld [vmem:[%s15 + $0x2c] sm:$0xf]
  %v2570 = vld [vmem:[%s15 + $0x30] sm:$0xf]
  %v2571 = vld [vmem:[%s15 + $0x34] sm:$0xf]
  %v2572 = vld [vmem:[%s15 + $0x38] sm:$0xf]
  %v2573 = vld [vmem:[%s15 + $0x3c] sm:$0xf]
  %v2574 = vld [vmem:[%s15 + $0x40] sm:$0xf]
  %v2575 = vld [vmem:[%s15 + $0x44] sm:$0xf]
  %v2576 = vld [vmem:[%s15 + $0x48] sm:$0xf]
  %v2577 = vld [vmem:[%s15 + $0x4c] sm:$0xf]
  %v2578 = vld [vmem:[%s15 + $0x50] sm:$0xf]
  %v2579 = vld [vmem:[%s15 + $0x54] sm:$0xf]
  %v2580 = vld [vmem:[%s15 + $0x58] sm:$0xf]
  %v2581 = vld [vmem:[%s15 + $0x5c] sm:$0xf]
  %v2582 = vld [vmem:[%s15 + $0x60] sm:$0xf]
  %v2583 = vld [vmem:[%s15 + $0x64] sm:$0xf]
  %v2584 = vld [vmem:[%s15 + $0x68] sm:$0xf]
  %v2585 = vld [vmem:[%s15 + $0x6c] sm:$0xf]
  %v2586 = vld [vmem:[%s15 + $0x70] sm:$0xf]
  %v2587 = vld [vmem:[%s15 + $0x74] sm:$0xf]
  %v2588 = vld [vmem:[%s15 + $0x78] sm:$0xf]
  %v2589 = vld [vmem:[%s15 + $0x7c] sm:$0xf]
  %v2590 = vpack.c.bf16 %v1495, %v1493
  %v2591 = vpack.c.bf16 %v1496, %v1494
  %v2592 = vld [vmem:[%s16] sm:$0x1]
  %v2594 = vperm.slane %v2592, 0
  %v2628 = vunpack.c.l.b16 %v2558
  %v2629 = vunpack.c.l.b16 %v2559
  %v2630 = vunpack.c.l.b16 %v2560
  %v2631 = vunpack.c.l.b16 %v2561
  %v2632 = vunpack.c.l.b16 %v2562
  %v2633 = vunpack.c.l.b16 %v2563
  %v2634 = vunpack.c.l.b16 %v2564
  %v2635 = vunpack.c.l.b16 %v2565
  %v2636 = vunpack.c.l.b16 %v2566
  %v2637 = vunpack.c.l.b16 %v2567
  %v2638 = vunpack.c.l.b16 %v2568
  %v2639 = vunpack.c.l.b16 %v2569
  %v2640 = vunpack.c.l.b16 %v2570
  %v2641 = vunpack.c.l.b16 %v2571
  %v2642 = vunpack.c.l.b16 %v2572
  %v2643 = vunpack.c.l.b16 %v2573
  %v2644 = vunpack.c.l.b16 %v2574
  %v2645 = vunpack.c.l.b16 %v2575
  %v2646 = vunpack.c.l.b16 %v2576
  %v2647 = vunpack.c.l.b16 %v2577
  %v2648 = vunpack.c.l.b16 %v2578
  %v2649 = vunpack.c.l.b16 %v2579
  %v2650 = vunpack.c.l.b16 %v2580
  %v2651 = vunpack.c.l.b16 %v2581
  %v2652 = vunpack.c.l.b16 %v2582
  %v2653 = vunpack.c.l.b16 %v2583
  %v2654 = vunpack.c.l.b16 %v2584
  %v2655 = vunpack.c.l.b16 %v2585
  %v2656 = vunpack.c.l.b16 %v2586
  %v2657 = vunpack.c.l.b16 %v2587
  %v2658 = vunpack.c.l.b16 %v2588
  %v2659 = vunpack.c.l.b16 %v2589
  %v2660 = vpack.c.b16 %v2629, %v2628
  %v2661 = vpack.c.b16 %v2631, %v2630
  %v2662 = vpack.c.b16 %v2633, %v2632
  %v2663 = vpack.c.b16 %v2635, %v2634
  %v2664 = vpack.c.b16 %v2637, %v2636
  %v2665 = vpack.c.b16 %v2639, %v2638
  %v2666 = vpack.c.b16 %v2641, %v2640
  %v2667 = vpack.c.b16 %v2643, %v2642
  %v2668 = vpack.c.b16 %v2645, %v2644
  %v2669 = vpack.c.b16 %v2647, %v2646
  %v2670 = vpack.c.b16 %v2649, %v2648
  %v2671 = vpack.c.b16 %v2651, %v2650
  %v2672 = vpack.c.b16 %v2653, %v2652
  %v2673 = vpack.c.b16 %v2655, %v2654
  %v2674 = vpack.c.b16 %v2657, %v2656
  %v2675 = vpack.c.b16 %v2659, %v2658
  %2692 = vmatpush.bf16.msra.mxu0 %v2667
  %2693 = vmatpush.bf16.msra.mxu0 %v2666
  %2694 = vmatpush.bf16.msra.mxu0 %v2665
  %2695 = vmatpush.bf16.msra.mxu0 %v2664
  %2696 = vmatpush.bf16.msra.mxu0 %v2663
  %2697 = vmatpush.bf16.msra.mxu0 %v2662
  %2698 = vmatpush.bf16.msra.mxu0 %v2661
  %2699 = vmatpush.bf16.msra.mxu0 %v2660
  %2700 = vmatmul.bf16.gmra.mxu0 %v2590
  %v2701 = vpop.f32.mrf.mxu0
  %v2702 = vadd.f32 %v2594, %v2701
  %v2703 = vpop.f32.mrf.mxu0
  %v2704 = vadd.f32 %v2594, %v2703
  %2705 = vdwg.mxu0
  %2706 = vmatpush.bf16.msra.mxu0 %v2675
  %2707 = vmatpush.bf16.msra.mxu0 %v2674
  %2708 = vmatpush.bf16.msra.mxu0 %v2673
  %2709 = vmatpush.bf16.msra.mxu0 %v2672
  %2710 = vmatpush.bf16.msra.mxu0 %v2671
  %2711 = vmatpush.bf16.msra.mxu0 %v2670
  %2712 = vmatpush.bf16.msra.mxu0 %v2669
  %2713 = vmatpush.bf16.msra.mxu0 %v2668
  %2714 = vmatmul.bf16.gmra.mxu0 %v2591
  %v2715 = vpop.f32.mrf.mxu0
  %v2716 = vadd.f32 %v2702, %v2715
  %v2717 = vpop.f32.mrf.mxu0
  %v2718 = vadd.f32 %v2704, %v2717
  %2719 = vdwg.mxu0
  %v2720 = vmax.f32 %v2716, 0.0
  %v2721 = vmax.f32 %v2718, 0.0
  %2722 = vst.msk [vmem:[%s19] sm:$0xff] %vm116, %v2720
  %vm2723 = vcmask 257024
  %2724 = vst.msk [vmem:[%s19 + $0x8] sm:$0xf] %vm2723, %v2721
  %v2725 = vld [vmem:[%s17] sm:$0xf]
  %v2726 = vld [vmem:[%s17 + $0x4] sm:$0xf]
  %v2727 = vld [vmem:[%s17 + $0x8] sm:$0xf]
  %v2728 = vld [vmem:[%s17 + $0xc] sm:$0xf]
  %v2729 = vld [vmem:[%s17 + $0x10] sm:$0xf]
  %v2730 = vld [vmem:[%s17 + $0x14] sm:$0xf]
  %v2731 = vld [vmem:[%s17 + $0x18] sm:$0xf]
  %v2732 = vld [vmem:[%s17 + $0x1c] sm:$0xf]
  %v2733 = vld [vmem:[%s17 + $0x20] sm:$0xf]
  %v2734 = vld [vmem:[%s17 + $0x24] sm:$0xf]
  %v2735 = vld [vmem:[%s17 + $0x28] sm:$0xf]
  %v2736 = vld [vmem:[%s17 + $0x2c] sm:$0xf]
  %v2737 = vld [vmem:[%s17 + $0x30] sm:$0xf]
  %v2738 = vld [vmem:[%s17 + $0x34] sm:$0xf]
  %v2739 = vld [vmem:[%s17 + $0x38] sm:$0xf]
  %v2740 = vld [vmem:[%s17 + $0x3c] sm:$0xf]
  %v2741 = vld [vmem:[%s17 + $0x40] sm:$0xf]
  %v2742 = vld [vmem:[%s17 + $0x44] sm:$0xf]
  %v2743 = vld [vmem:[%s17 + $0x48] sm:$0xf]
  %v2744 = vld [vmem:[%s17 + $0x4c] sm:$0xf]
  %v2745 = vld [vmem:[%s17 + $0x50] sm:$0xf]
  %v2746 = vld [vmem:[%s17 + $0x54] sm:$0xf]
  %v2747 = vld [vmem:[%s17 + $0x58] sm:$0xf]
  %v2748 = vld [vmem:[%s17 + $0x5c] sm:$0xf]
  %v2749 = vld [vmem:[%s17 + $0x60] sm:$0xf]
  %v2750 = vld [vmem:[%s17 + $0x64] sm:$0xf]
  %v2751 = vld [vmem:[%s17 + $0x68] sm:$0xf]
  %v2752 = vld [vmem:[%s17 + $0x6c] sm:$0xf]
  %v2753 = vld [vmem:[%s17 + $0x70] sm:$0xf]
  %v2754 = vld [vmem:[%s17 + $0x74] sm:$0xf]
  %v2755 = vld [vmem:[%s17 + $0x78] sm:$0xf]
  %v2756 = vld [vmem:[%s17 + $0x7c] sm:$0xf]
  %v2757 = vpack.c.bf16 %v2556, %v2554
  %v2758 = vpack.c.bf16 %v2557, %v2555
  %v2759 = vld [vmem:[%s18] sm:$0x1]
  %v2761 = vperm.slane %v2759, 0
  %v2795 = vunpack.c.l.b16 %v2725
  %v2796 = vunpack.c.l.b16 %v2726
  %v2797 = vunpack.c.l.b16 %v2727
  %v2798 = vunpack.c.l.b16 %v2728
  %v2799 = vunpack.c.l.b16 %v2729
  %v2800 = vunpack.c.l.b16 %v2730
  %v2801 = vunpack.c.l.b16 %v2731
  %v2802 = vunpack.c.l.b16 %v2732
  %v2803 = vunpack.c.l.b16 %v2733
  %v2804 = vunpack.c.l.b16 %v2734
  %v2805 = vunpack.c.l.b16 %v2735
  %v2806 = vunpack.c.l.b16 %v2736
  %v2807 = vunpack.c.l.b16 %v2737
  %v2808 = vunpack.c.l.b16 %v2738
  %v2809 = vunpack.c.l.b16 %v2739
  %v2810 = vunpack.c.l.b16 %v2740
  %v2811 = vunpack.c.l.b16 %v2741
  %v2812 = vunpack.c.l.b16 %v2742
  %v2813 = vunpack.c.l.b16 %v2743
  %v2814 = vunpack.c.l.b16 %v2744
  %v2815 = vunpack.c.l.b16 %v2745
  %v2816 = vunpack.c.l.b16 %v2746
  %v2817 = vunpack.c.l.b16 %v2747
  %v2818 = vunpack.c.l.b16 %v2748
  %v2819 = vunpack.c.l.b16 %v2749
  %v2820 = vunpack.c.l.b16 %v2750
  %v2821 = vunpack.c.l.b16 %v2751
  %v2822 = vunpack.c.l.b16 %v2752
  %v2823 = vunpack.c.l.b16 %v2753
  %v2824 = vunpack.c.l.b16 %v2754
  %v2825 = vunpack.c.l.b16 %v2755
  %v2826 = vunpack.c.l.b16 %v2756
  %v2827 = vpack.c.b16 %v2796, %v2795
  %v2828 = vpack.c.b16 %v2798, %v2797
  %v2829 = vpack.c.b16 %v2800, %v2799
  %v2830 = vpack.c.b16 %v2802, %v2801
  %v2831 = vpack.c.b16 %v2804, %v2803
  %v2832 = vpack.c.b16 %v2806, %v2805
  %v2833 = vpack.c.b16 %v2808, %v2807
  %v2834 = vpack.c.b16 %v2810, %v2809
  %v2835 = vpack.c.b16 %v2812, %v2811
  %v2836 = vpack.c.b16 %v2814, %v2813
  %v2837 = vpack.c.b16 %v2816, %v2815
  %v2838 = vpack.c.b16 %v2818, %v2817
  %v2839 = vpack.c.b16 %v2820, %v2819
  %v2840 = vpack.c.b16 %v2822, %v2821
  %v2841 = vpack.c.b16 %v2824, %v2823
  %v2842 = vpack.c.b16 %v2826, %v2825
  %2859 = vmatpush.bf16.msra.mxu0 %v2834
  %2860 = vmatpush.bf16.msra.mxu0 %v2833
  %2861 = vmatpush.bf16.msra.mxu0 %v2832
  %2862 = vmatpush.bf16.msra.mxu0 %v2831
  %2863 = vmatpush.bf16.msra.mxu0 %v2830
  %2864 = vmatpush.bf16.msra.mxu0 %v2829
  %2865 = vmatpush.bf16.msra.mxu0 %v2828
  %2866 = vmatpush.bf16.msra.mxu0 %v2827
  %2867 = vmatmul.bf16.gmra.mxu0 %v2757
  %v2868 = vpop.f32.mrf.mxu0
  %v2869 = vadd.f32 %v2761, %v2868
  %v2870 = vpop.f32.mrf.mxu0
  %v2871 = vadd.f32 %v2761, %v2870
  %2872 = vdwg.mxu0
  %2873 = vmatpush.bf16.msra.mxu0 %v2842
  %2874 = vmatpush.bf16.msra.mxu0 %v2841
  %2875 = vmatpush.bf16.msra.mxu0 %v2840
  %2876 = vmatpush.bf16.msra.mxu0 %v2839
  %2877 = vmatpush.bf16.msra.mxu0 %v2838
  %2878 = vmatpush.bf16.msra.mxu0 %v2837
  %2879 = vmatpush.bf16.msra.mxu0 %v2836
  %2880 = vmatpush.bf16.msra.mxu0 %v2835
  %2881 = vmatmul.bf16.gmra.mxu0 %v2758
  %v2882 = vpop.f32.mrf.mxu0
  %v2883 = vadd.f32 %v2869, %v2882
  %v2884 = vpop.f32.mrf.mxu0
  %v2885 = vadd.f32 %v2871, %v2884
  %2886 = vdwg.mxu0
  %v2887 = vmax.f32 %v2883, 0.0
  %v2888 = vmax.f32 %v2885, 0.0
  %2889 = vst.msk [vmem:[%s20] sm:$0xff] %vm116, %v2887
  %vm2890 = vcmask 254976
  %2891 = vst.msk [vmem:[%s20 + $0x8] sm:$0x3] %vm2890, %v2888
  // Predicated region
  $region78: #{improved_model_forward.5} parent=0 // pred_check
    _
  $region79: #{improved_model_forward.5} parent=0 // pred_check_branch
    %2893 = sbr.rel (0) target = $region81
  $region80: #{improved_model_forward.5} parent=0 // pred_region
    _
  $region81: #{improved_model_forward.5} parent=0 // pred_fallthru
    _
  // Predicated region
  $region82: #{improved_model_forward.5} parent=0 // pred_check
    _
  $region83: #{improved_model_forward.5} parent=0 // pred_check_branch
    %2895 = sbr.rel (0) target = $region85
  $region84: #{improved_model_forward.5} parent=0 // pred_region
    _
  $region85: #{improved_model_forward.5} parent=0 // pred_fallthru
    _
  // Predicated region
  $region86: #{improved_model_forward.5} parent=0 // pred_check
    _
  $region87: #{improved_model_forward.5} parent=0 // pred_check_branch
    %2897 = sbr.rel (0) target = $region89
  $region88: #{improved_model_forward.5} parent=0 // pred_region
    _
  $region89: #{improved_model_forward.5} parent=0 // pred_fallthru
    _
  // Predicated region
  $region90: #{improved_model_forward.5} parent=0 // pred_check
    _
  $region91: #{improved_model_forward.5} parent=0 // pred_check_branch
    %2899 = sbr.rel (0) target = $region93
  $region92: #{improved_model_forward.5} parent=0 // pred_region
    _
  $region93: #{improved_model_forward.5} parent=0 // pred_fallthru
    _

</llo_original>
